<compile_context>
chip_gen: v5e
topology: v5e:2x2
jax: 0.10.0
libtpu: 0.0.40
codegen_flags: <defaults>
</compile_context>

<pallas_src>
import functools

import jax
import jax.numpy as jnp
from jax.experimental import pallas as pl
from jax.experimental.pallas import tpu as pltpu

EPS = 1e-5

# 48 MiB: within v7x's 64 MiB physical VMEM; raises the v5e/v6e scoped default.
_VMEM_LIMIT_BYTES = 48 * 1024 * 1024


def _compiler_params(n_grid_axes):
    return pltpu.CompilerParams(
        dimension_semantics=("parallel",) * n_grid_axes,
        vmem_limit_bytes=_VMEM_LIMIT_BYTES,
    )


def _pick_row_tile(m, preferred=1024):
    """Largest row tile (multiple of 8, divisor of m, <= preferred), preferring
    an even tile count so both v7x TensorCores stay busy."""
    best = None
    for t in (1024, 512, 256, 128, 64, 32, 16, 8):
        if t <= preferred and m % t == 0:
            if best is None:
                best = t
            if (m // t) % 2 == 0:
                return t
    return best if best is not None else m


def _fold_bn(s_part, ss_part, gamma, beta, count):
    """Reduce (sum, sum_sq) partials of shape (t, 1, c) and fold gamma/beta
    into a per-channel (1, c) scale/shift (training BN, biased variance)."""
    mean = jnp.sum(s_part, axis=0) / count                      # (1, c)
    var = jnp.maximum(jnp.sum(ss_part, axis=0) / count - mean * mean, 0.0)
    scale = gamma / jnp.sqrt(var + EPS)
    shift = beta - mean * scale
    return scale, shift


# ---------------------------------------------------------------------------
# Kernel 1 / 3: 1x1 conv (channel matmul) over row tiles.
#   Optionally folds the previous stage's BN (from its stat partials) + ReLU
#   into the input load, and emits per-tile (sum, sum_sq) of the raw output.
# ---------------------------------------------------------------------------
def _pw_conv_kernel(*refs, count, fuse_bn):
    if fuse_bn:
        x_ref, w_ref, sp_ref, ssp_ref, g_ref, b_ref, y_ref, s_ref, ss_ref = refs
        scale, shift = _fold_bn(sp_ref[...], ssp_ref[...],
                                g_ref[...], b_ref[...], count)
        x = x_ref[...].astype(jnp.float32) * scale + shift
        x = jnp.maximum(x, 0.0).astype(jnp.bfloat16)            # cast once
    else:
        x_ref, w_ref, y_ref, s_ref, ss_ref = refs
        x = x_ref[...]                                          # already bf16

    y = jnp.dot(x, w_ref[...], preferred_element_type=jnp.float32)
    y_ref[...] = y.astype(y_ref.dtype)
    s_ref[0] = jnp.sum(y, axis=0, keepdims=True)
    ss_ref[0] = jnp.sum(y * y, axis=0, keepdims=True)


def pw_conv_stats(x2d, w, bn=None, *, tm):
    m, cin = x2d.shape
    cout = w.shape[1]
    assert m % tm == 0, (m, tm)
    nt = m // tm

    args = [x2d, w]
    in_specs = [pl.BlockSpec((tm, cin), lambda i: (i, 0)),
                pl.BlockSpec((cin, cout), lambda i: (0, 0))]
    count = None
    if bn is not None:
        sp, ssp, g, b, count = bn
        tprev = sp.shape[0]
        args += [sp, ssp, g, b]
        in_specs += [pl.BlockSpec((tprev, 1, cin), lambda i: (0, 0, 0)),
                     pl.BlockSpec((tprev, 1, cin), lambda i: (0, 0, 0)),
                     pl.BlockSpec((1, cin), lambda i: (0, 0)),
                     pl.BlockSpec((1, cin), lambda i: (0, 0))]

    y, s, ss = pl.pallas_call(
        functools.partial(_pw_conv_kernel, count=count, fuse_bn=bn is not None),
        out_shape=(jax.ShapeDtypeStruct((m, cout), jnp.bfloat16),
                   jax.ShapeDtypeStruct((nt, 1, cout), jnp.float32),
                   jax.ShapeDtypeStruct((nt, 1, cout), jnp.float32)),
        grid=(nt,),
        in_specs=in_specs,
        out_specs=(pl.BlockSpec((tm, cout), lambda i: (i, 0)),
                   pl.BlockSpec((1, 1, cout), lambda i: (i, 0, 0)),
                   pl.BlockSpec((1, 1, cout), lambda i: (i, 0, 0))),
        compiler_params=_compiler_params(1),
    )(*args)
    return y, s, ss


# ---------------------------------------------------------------------------
# Kernel 2: 3x3 stride-1 conv per image.  Producer BN+ReLU fused into the
#   input load, bf16 halo in VMEM scratch, one im2col MXU dot (K = 9*cin).
# ---------------------------------------------------------------------------
def _conv3x3_kernel(x_ref, w_ref, sp_ref, ssp_ref, g_ref, b_ref,
                    y_ref, s_ref, ss_ref, xp_ref, *, count):
    _, h, w, cin = x_ref.shape

    # previous stage's BN (folded in-kernel from partials) + ReLU, cast once.
    scale, shift = _fold_bn(sp_ref[...], ssp_ref[...], g_ref[...], b_ref[...],
                            count)
    x = jnp.maximum(x_ref[0].astype(jnp.float32) * scale + shift, 0.0)
    xb = x.astype(jnp.bfloat16)

    # zero ONLY the 1-px border ring; interior is fully overwritten each step.
    bf = jnp.bfloat16
    xp_ref[0:1, :, :] = jnp.zeros((1, w + 2, cin), bf)
    xp_ref[h + 1:h + 2, :, :] = jnp.zeros((1, w + 2, cin), bf)
    xp_ref[:, 0:1, :] = jnp.zeros((h + 2, 1, cin), bf)
    xp_ref[:, w + 1:w + 2, :] = jnp.zeros((h + 2, 1, cin), bf)
    xp_ref[1:h + 1, 1:w + 1, :] = xb

    # im2col: concatenate the 9 taps along K and do a single MXU dot.
    cols = []
    for dy in range(3):
        for dx in range(3):
            cols.append(xp_ref[dy:dy + h, dx:dx + w, :].reshape(h * w, cin))
    patches = jnp.concatenate(cols, axis=-1)                    # (h*w, 9*cin) bf16
    acc = jnp.dot(patches, w_ref[...], preferred_element_type=jnp.float32)

    y_ref[0] = acc.astype(y_ref.dtype)
    s_ref[0] = jnp.sum(acc, axis=0, keepdims=True)
    ss_ref[0] = jnp.sum(acc * acc, axis=0, keepdims=True)


def conv3x3_stats(x_nhwc, w_flat, bn):
    n, h, wd, cin = x_nhwc.shape
    cout = w_flat.shape[1]
    sp, ssp, g, b, count = bn
    tprev = sp.shape[0]

    y, s, ss = pl.pallas_call(
        functools.partial(_conv3x3_kernel, count=count),
        out_shape=(jax.ShapeDtypeStruct((n, h * wd, cout), jnp.bfloat16),
                   jax.ShapeDtypeStruct((n, 1, cout), jnp.float32),
                   jax.ShapeDtypeStruct((n, 1, cout), jnp.float32)),
        grid=(n,),
        in_specs=[pl.BlockSpec((1, h, wd, cin), lambda i: (i, 0, 0, 0)),
                  pl.BlockSpec((9 * cin, cout), lambda i: (0, 0)),
                  pl.BlockSpec((tprev, 1, cin), lambda i: (0, 0, 0)),
                  pl.BlockSpec((tprev, 1, cin), lambda i: (0, 0, 0)),
                  pl.BlockSpec((1, cin), lambda i: (0, 0)),
                  pl.BlockSpec((1, cin), lambda i: (0, 0))],
        out_specs=(pl.BlockSpec((1, h * wd, cout), lambda i: (i, 0, 0)),
                   pl.BlockSpec((1, 1, cout), lambda i: (i, 0, 0)),
                   pl.BlockSpec((1, 1, cout), lambda i: (i, 0, 0))),
        scratch_shapes=[pltpu.VMEM((h + 2, wd + 2, cin), jnp.bfloat16)],
        compiler_params=_compiler_params(1),
    )(x_nhwc, w_flat, sp, ssp, g, b)
    return y, s, ss


# ---------------------------------------------------------------------------
# Kernel 4: final bn3 (folded in-kernel) + residual add + ReLU, row-tiled.
# ---------------------------------------------------------------------------
def _bn_add_relu_kernel(y_ref, r_ref, sp_ref, ssp_ref, g_ref, b_ref, o_ref, *,
                        count):
    scale, shift = _fold_bn(sp_ref[...], ssp_ref[...], g_ref[...], b_ref[...],
                            count)
    y = y_ref[...].astype(jnp.float32) * scale + shift
    y = y + r_ref[...].astype(jnp.float32)
    o_ref[...] = jnp.maximum(y, 0.0).astype(o_ref.dtype)


def bn_add_relu(y2d, res2d, bn, *, tm):
    m, c = y2d.shape
    assert m % tm == 0, (m, tm)
    sp, ssp, g, b, count = bn
    tprev = sp.shape[0]
    # TODO(synk): emit bf16 here if the downstream block accepts it (halves
    #             the final writeback).
    return pl.pallas_call(
        functools.partial(_bn_add_relu_kernel, count=count),
        out_shape=jax.ShapeDtypeStruct((m, c), jnp.float32),
        grid=(m // tm,),
        in_specs=[pl.BlockSpec((tm, c), lambda i: (i, 0)),
                  pl.BlockSpec((tm, c), lambda i: (i, 0)),
                  pl.BlockSpec((tprev, 1, c), lambda i: (0, 0, 0)),
                  pl.BlockSpec((tprev, 1, c), lambda i: (0, 0, 0)),
                  pl.BlockSpec((1, c), lambda i: (0, 0)),
                  pl.BlockSpec((1, c), lambda i: (0, 0))],
        out_specs=pl.BlockSpec((tm, c), lambda i: (i, 0)),
        compiler_params=_compiler_params(1),
    )(y2d, res2d, sp, ssp, g, b)


# ---------------------------------------------------------------------------
# Bottleneck forward (stride=1, downsample=None => inplanes == planes*4)
# ---------------------------------------------------------------------------
def bottleneck_forward(x_nchw, params):
    # TODO(synk): stride=2 / downsample (1x1 conv + BN on residual) path.
    n, cin, h, w = x_nchw.shape
    planes = params["w1"].shape[1]
    cout = planes * 4
    assert cin == cout, "identity residual requires inplanes == planes*4"

    # NCHW -> NHWC layout glue (single fused transpose+cast under jit).
    # TODO(synk): accept channels-last I/O to drop this HBM round trip.
    x = jnp.transpose(x_nchw, (0, 2, 3, 1))
    m = n * h * w
    xb = x.reshape(m, cin).astype(jnp.bfloat16)

    w1 = params["w1"].astype(jnp.bfloat16)
    w2f = params["w2"].reshape(9 * planes, planes).astype(jnp.bfloat16)
    w3 = params["w3"].astype(jnp.bfloat16)
    f32 = jnp.float32
    g1, b1 = params["g1"].reshape(1, -1).astype(f32), params["b1"].reshape(1, -1).astype(f32)
    g2, b2 = params["g2"].reshape(1, -1).astype(f32), params["b2"].reshape(1, -1).astype(f32)
    g3, b3 = params["g3"].reshape(1, -1).astype(f32), params["b3"].reshape(1, -1).astype(f32)

    tm = _pick_row_tile(m)

    # conv1 (1x1) + per-tile batch-stat partials.
    y1, s1, ss1 = pw_conv_stats(xb, w1, tm=tm)

    # bn1+relu fused into conv2's input load; conv2 = single im2col MXU dot.
    y2, s2, ss2 = conv3x3_stats(y1.reshape(n, h, w, planes), w2f,
                                bn=(s1, ss1, g1, b1, m))

    # bn2+relu fused into conv3's input load; conv3 (1x1).
    y3, s3, ss3 = pw_conv_stats(y2.reshape(m, planes), w3,
                                bn=(s2, ss2, g2, b2, m), tm=tm)

    # bn3 + residual add + relu.
    out2d = bn_add_relu(y3, xb, bn=(s3, ss3, g3, b3, m), tm=tm)
    return jnp.transpose(out2d.reshape(n, h, w, cout), (0, 3, 1, 2))


# ---------------------------------------------------------------------------
# Pure-JAX reference mirroring the kernel pipeline's bf16 rounding points.
# ---------------------------------------------------------------------------
def ref_forward(x_nchw, params):
    f32, bf = jnp.float32, jnp.bfloat16
    hi = jax.lax.Precision.HIGHEST

    x = jnp.transpose(x_nchw, (0, 2, 3, 1))
    xb = x.astype(bf).astype(f32)
    w1 = params["w1"].astype(bf).astype(f32)
    w2 = params["w2"].astype(bf).astype(f32)
    w3 = params["w3"].astype(bf).astype(f32)

    def fold(y, gamma, beta):
        y2d = y.reshape(-1, y.shape[-1])
        return _fold_bn(y2d.sum(0, keepdims=True)[None],
                        (y2d * y2d).sum(0, keepdims=True)[None],
                        gamma.reshape(1, -1).astype(f32),
                        beta.reshape(1, -1).astype(f32),
                        y2d.shape[0])

    y1 = jnp.einsum("nhwc,cd->nhwd", xb, w1, precision=hi)
    sc1, sh1 = fold(y1, params["g1"], params["b1"])
    h1 = jnp.maximum(y1.astype(bf).astype(f32) * sc1 + sh1, 0.0).astype(bf).astype(f32)

    y2 = jax.lax.conv_general_dilated(
        h1, w2, (1, 1), ((1, 1), (1, 1)),
        dimension_numbers=("NHWC", "HWIO", "NHWC"), precision=hi)
    sc2, sh2 = fold(y2, params["g2"], params["b2"])
    h2 = jnp.maximum(y2.astype(bf).astype(f32) * sc2 + sh2, 0.0).astype(bf).astype(f32)

    y3 = jnp.einsum("nhwc,cd->nhwd", h2, w3, precision=hi)
    sc3, sh3 = fold(y3, params["g3"], params["b3"])
    out = jnp.maximum(y3.astype(bf).astype(f32) * sc3 + sh3 + xb, 0.0)
    return jnp.transpose(out, (0, 3, 1, 2))


def make_params(key, inplanes, planes):
    ks = jax.random.split(key, 9)
    f32 = jnp.float32
    w1 = jax.random.normal(ks[0], (inplanes, planes), f32) / jnp.sqrt(inplanes)
    w2 = jax.random.normal(ks[1], (3, 3, planes, planes), f32) / jnp.sqrt(9.0 * planes)
    w3 = jax.random.normal(ks[2], (planes, planes * 4), f32) / jnp.sqrt(planes)
    g1 = 1.0 + 0.1 * jax.random.normal(ks[3], (planes,), f32)
    b1 = 0.1 * jax.random.normal(ks[4], (planes,), f32)
    g2 = 1.0 + 0.1 * jax.random.normal(ks[5], (planes,), f32)
    b2 = 0.1 * jax.random.normal(ks[6], (planes,), f32)
    g3 = 1.0 + 0.1 * jax.random.normal(ks[7], (planes * 4,), f32)
    b3 = 0.1 * jax.random.normal(ks[8], (planes * 4,), f32)
    return dict(w1=w1, w2=w2, w3=w3, g1=g1, b1=b1, g2=g2, b2=b2, g3=g3, b3=b3)


if __name__ == "__main__":
    key = jax.random.PRNGKey(0)
    k_x, k_p = jax.random.split(key)

    # Realistic ResNet-50 identity block (expansion=4): inplanes=512, planes=128
    # => every intermediate / stats / output tensor is 128-lane dense.
    inplanes, planes = 512, 128
    n, h, w = 2, 16, 16
    x = jax.random.normal(k_x, (n, inplanes, h, w), jnp.float32)   # NCHW input
    params = make_params(k_p, inplanes, planes)

    fwd = jax.jit(bottleneck_forward)
    out = jax.block_until_ready(fwd(x, params))
    ref = jax.block_until_ready(ref_forward(x, params))

    assert out.shape == (n, planes * 4, h, w), out.shape
    max_err = float(jnp.max(jnp.abs(out - ref)))
    # bf16 intermediates + in-kernel sqrt vs XLA sqrt => loose-ish tolerance.
    assert jnp.allclose(out, ref, rtol=1e-2, atol=1e-2), max_err
    print("KERNEL_OK")
</pallas_src>

<mosaic_0001>
module attributes {stable_mosaic.version = 11 : i64} {
  func.func @_pw_conv_kernel(%arg0: i32, %arg1: memref<256x128xbf16, #tpu.memory_space<vmem>>, %arg2: memref<128x512xbf16, #tpu.memory_space<vmem>>, %arg3: memref<2x1x128xf32, #tpu.memory_space<vmem>>, %arg4: memref<2x1x128xf32, #tpu.memory_space<vmem>>, %arg5: memref<1x128xf32, #tpu.memory_space<vmem>>, %arg6: memref<1x128xf32, #tpu.memory_space<vmem>>, %arg7: memref<256x512xbf16, #tpu.memory_space<vmem>>, %arg8: memref<1x1x512xf32, #tpu.memory_space<vmem>>, %arg9: memref<1x1x512xf32, #tpu.memory_space<vmem>>) attributes {dimension_semantics = [#tpu.dimension_semantics<parallel>], iteration_bounds = array<i64: 2>, scalar_prefetch = 0 : i64, scratch_operands = 0 : i64, tpu.core_type = #tpu.core_type<tc>, window_params = [{transform_indices = @transform_0, window_bounds = array<i64: 256, 128>}, {pipeline_mode = #tpu.pipeline_mode<synchronous>, transform_indices = @transform_1, window_bounds = array<i64: 128, 512>}, {pipeline_mode = #tpu.pipeline_mode<synchronous>, transform_indices = @transform_2, window_bounds = array<i64: 2, 1, 128>}, {pipeline_mode = #tpu.pipeline_mode<synchronous>, transform_indices = @transform_3, window_bounds = array<i64: 2, 1, 128>}, {pipeline_mode = #tpu.pipeline_mode<synchronous>, transform_indices = @transform_4, window_bounds = array<i64: 1, 128>}, {pipeline_mode = #tpu.pipeline_mode<synchronous>, transform_indices = @transform_5, window_bounds = array<i64: 1, 128>}, {transform_indices = @transform_6, window_bounds = array<i64: 256, 512>}, {transform_indices = @transform_7, window_bounds = array<i64: 1, 1, 512>}, {transform_indices = @transform_8, window_bounds = array<i64: 1, 1, 512>}]} {
    %c0 = arith.constant 0 : index
    %c0_0 = arith.constant 0 : index
    %c0_1 = arith.constant 0 : index
    %0 = vector.load %arg3[%c0, %c0_0, %c0_1] : memref<2x1x128xf32, #tpu.memory_space<vmem>>, vector<2x1x128xf32>
    %c0_2 = arith.constant 0 : index
    %c0_3 = arith.constant 0 : index
    %c0_4 = arith.constant 0 : index
    %1 = vector.load %arg4[%c0_2, %c0_3, %c0_4] : memref<2x1x128xf32, #tpu.memory_space<vmem>>, vector<2x1x128xf32>
    %c0_5 = arith.constant 0 : index
    %c0_6 = arith.constant 0 : index
    %2 = vector.load %arg5[%c0_5, %c0_6] : memref<1x128xf32, #tpu.memory_space<vmem>>, vector<1x128xf32>
    %c0_7 = arith.constant 0 : index
    %c0_8 = arith.constant 0 : index
    %3 = vector.load %arg6[%c0_7, %c0_8] : memref<1x128xf32, #tpu.memory_space<vmem>>, vector<1x128xf32>
    %cst = arith.constant dense<0.000000e+00> : vector<1x128xf32>
    %4 = vector.multi_reduction <add>, %0, %cst [0] : vector<2x1x128xf32> to vector<1x128xf32>
    %cst_9 = arith.constant 5.120000e+02 : f32
    %5 = vector.broadcast %cst_9 : f32 to vector<1x128xf32>
    %6 = arith.divf %4, %5 : vector<1x128xf32>
    %cst_10 = arith.constant dense<0.000000e+00> : vector<1x128xf32>
    %7 = vector.multi_reduction <add>, %1, %cst_10 [0] : vector<2x1x128xf32> to vector<1x128xf32>
    %cst_11 = arith.constant 5.120000e+02 : f32
    %8 = vector.broadcast %cst_11 : f32 to vector<1x128xf32>
    %9 = arith.divf %7, %8 : vector<1x128xf32>
    %10 = arith.mulf %6, %6 : vector<1x128xf32>
    %11 = arith.subf %9, %10 : vector<1x128xf32>
    %cst_12 = arith.constant 0.000000e+00 : f32
    %12 = vector.broadcast %cst_12 : f32 to vector<1x128xf32>
    %13 = arith.maximumf %11, %12 : vector<1x128xf32>
    %cst_13 = arith.constant 9.99999974E-6 : f32
    %14 = vector.broadcast %cst_13 : f32 to vector<1x128xf32>
    %15 = arith.addf %13, %14 : vector<1x128xf32>
    %16 = math.sqrt %15 : vector<1x128xf32>
    %17 = arith.divf %2, %16 : vector<1x128xf32>
    %18 = arith.mulf %6, %17 : vector<1x128xf32>
    %19 = arith.subf %3, %18 : vector<1x128xf32>
    %c0_14 = arith.constant 0 : index
    %c0_15 = arith.constant 0 : index
    %20 = vector.load %arg1[%c0_14, %c0_15] : memref<256x128xbf16, #tpu.memory_space<vmem>>, vector<256x128xbf16>
    %21 = arith.extf %20 : vector<256x128xbf16> to vector<256x128xf32>
    %22 = vector.broadcast %17 : vector<1x128xf32> to vector<256x128xf32>
    %23 = arith.mulf %21, %22 : vector<256x128xf32>
    %24 = vector.broadcast %19 : vector<1x128xf32> to vector<256x128xf32>
    %25 = arith.addf %23, %24 : vector<256x128xf32>
    %cst_16 = arith.constant 0.000000e+00 : f32
    %26 = vector.broadcast %cst_16 : f32 to vector<256x128xf32>
    %27 = arith.maximumf %25, %26 : vector<256x128xf32>
    %28 = arith.truncf %27 : vector<256x128xf32> to vector<256x128xbf16>
    %c0_17 = arith.constant 0 : index
    %c0_18 = arith.constant 0 : index
    %29 = vector.load %arg2[%c0_17, %c0_18] : memref<128x512xbf16, #tpu.memory_space<vmem>>, vector<128x512xbf16>
    %cst_19 = arith.constant dense<0.000000e+00> : vector<256x512xf32>
    %30 = tpu.matmul %28, %29, %cst_19 {dimension_numbers = #tpu.dot_dimension_numbers<[1], [0], [0], [1], [0, 0, 1, 1], [], []>} : vector<256x128xbf16>, vector<128x512xbf16>, vector<256x512xf32> -> vector<256x512xf32>
    %31 = arith.truncf %30 : vector<256x512xf32> to vector<256x512xbf16>
    %c0_20 = arith.constant 0 : index
    %c0_21 = arith.constant 0 : index
    %32 = vector.load %arg7[%c0_20, %c0_21] : memref<256x512xbf16, #tpu.memory_space<vmem>>, vector<256x512xbf16>
    tpu.vector_store %arg7[%c0_20, %c0_21], %31 {strides = array<i32>} : memref<256x512xbf16, #tpu.memory_space<vmem>>, vector<256x512xbf16>,
    %cst_22 = arith.constant dense<0.000000e+00> : vector<512xf32>
    %33 = vector.multi_reduction <add>, %30, %cst_22 [0] : vector<256x512xf32> to vector<512xf32>
    %34 = vector.shape_cast %33 : vector<512xf32> to vector<1x512xf32>
    %c0_23 = arith.constant 0 : index
    %c0_24 = arith.constant 0 : index
    %c0_25 = arith.constant 0 : index
    %35 = vector.load %arg8[%c0_23, %c0_24, %c0_25] : memref<1x1x512xf32, #tpu.memory_space<vmem>>, vector<1x1x512xf32>
    %36 = vector.shape_cast %35 : vector<1x1x512xf32> to vector<1x512xf32>
    %37 = vector.shape_cast %34 : vector<1x512xf32> to vector<1x1x512xf32>
    tpu.vector_store %arg8[%c0_23, %c0_24, %c0_25], %37 {strides = array<i32>} : memref<1x1x512xf32, #tpu.memory_space<vmem>>, vector<1x1x512xf32>,
    %38 = arith.mulf %30, %30 : vector<256x512xf32>
    %cst_26 = arith.constant dense<0.000000e+00> : vector<512xf32>
    %39 = vector.multi_reduction <add>, %38, %cst_26 [0] : vector<256x512xf32> to vector<512xf32>
    %40 = vector.shape_cast %39 : vector<512xf32> to vector<1x512xf32>
    %c0_27 = arith.constant 0 : index
    %c0_28 = arith.constant 0 : index
    %c0_29 = arith.constant 0 : index
    %41 = vector.load %arg9[%c0_27, %c0_28, %c0_29] : memref<1x1x512xf32, #tpu.memory_space<vmem>>, vector<1x1x512xf32>
    %42 = vector.shape_cast %41 : vector<1x1x512xf32> to vector<1x512xf32>
    %43 = vector.shape_cast %40 : vector<1x512xf32> to vector<1x1x512xf32>
    tpu.vector_store %arg9[%c0_27, %c0_28, %c0_29], %43 {strides = array<i32>} : memref<1x1x512xf32, #tpu.memory_space<vmem>>, vector<1x1x512xf32>,
    return
  }
  func.func @transform_0(%arg0: i32) -> (i32, i32) {
    %c0_i32 = arith.constant 0 : i32
    %c0_i32_0 = arith.constant 0 : i32
    return %arg0, %c0_i32 : i32, i32
  }
  func.func @transform_1(%arg0: i32) -> (i32, i32) {
    %c0_i32 = arith.constant 0 : i32
    %c0_i32_0 = arith.constant 0 : i32
    %c0_i32_1 = arith.constant 0 : i32
    return %c0_i32, %c0_i32_0 : i32, i32
  }
  func.func @transform_2(%arg0: i32) -> (i32, i32, i32) {
    %c0_i32 = arith.constant 0 : i32
    %c0_i32_0 = arith.constant 0 : i32
    %c0_i32_1 = arith.constant 0 : i32
    %c0_i32_2 = arith.constant 0 : i32
    return %c0_i32, %c0_i32_0, %c0_i32_1 : i32, i32, i32
  }
  func.func @transform_3(%arg0: i32) -> (i32, i32, i32) {
    %c0_i32 = arith.constant 0 : i32
    %c0_i32_0 = arith.constant 0 : i32
    %c0_i32_1 = arith.constant 0 : i32
    %c0_i32_2 = arith.constant 0 : i32
    return %c0_i32, %c0_i32_0, %c0_i32_1 : i32, i32, i32
  }
  func.func @transform_4(%arg0: i32) -> (i32, i32) {
    %c0_i32 = arith.constant 0 : i32
    %c0_i32_0 = arith.constant 0 : i32
    %c0_i32_1 = arith.constant 0 : i32
    return %c0_i32, %c0_i32_0 : i32, i32
  }
  func.func @transform_5(%arg0: i32) -> (i32, i32) {
    %c0_i32 = arith.constant 0 : i32
    %c0_i32_0 = arith.constant 0 : i32
    %c0_i32_1 = arith.constant 0 : i32
    return %c0_i32, %c0_i32_0 : i32, i32
  }
  func.func @transform_6(%arg0: i32) -> (i32, i32) {
    %c0_i32 = arith.constant 0 : i32
    %c0_i32_0 = arith.constant 0 : i32
    return %arg0, %c0_i32 : i32, i32
  }
  func.func @transform_7(%arg0: i32) -> (i32, i32, i32) {
    %c0_i32 = arith.constant 0 : i32
    %c0_i32_0 = arith.constant 0 : i32
    %c0_i32_1 = arith.constant 0 : i32
    return %arg0, %c0_i32, %c0_i32_0 : i32, i32, i32
  }
  func.func @transform_8(%arg0: i32) -> (i32, i32, i32) {
    %c0_i32 = arith.constant 0 : i32
    %c0_i32_0 = arith.constant 0 : i32
    %c0_i32_1 = arith.constant 0 : i32
    return %arg0, %c0_i32, %c0_i32_0 : i32, i32, i32
  }
}

module attributes {stable_mosaic.version = 11 : i64} {
  func.func @_pw_conv_kernel(%arg0: i32, %arg1: memref<256x512xbf16, #tpu.memory_space<vmem>>, %arg2: memref<512x128xbf16, #tpu.memory_space<vmem>>, %arg3: memref<256x128xbf16, #tpu.memory_space<vmem>>, %arg4: memref<1x1x128xf32, #tpu.memory_space<vmem>>, %arg5: memref<1x1x128xf32, #tpu.memory_space<vmem>>) attributes {dimension_semantics = [#tpu.dimension_semantics<parallel>], iteration_bounds = array<i64: 2>, scalar_prefetch = 0 : i64, scratch_operands = 0 : i64, tpu.core_type = #tpu.core_type<tc>, window_params = [{transform_indices = @transform_0, window_bounds = array<i64: 256, 512>}, {pipeline_mode = #tpu.pipeline_mode<synchronous>, transform_indices = @transform_1, window_bounds = array<i64: 512, 128>}, {transform_indices = @transform_2, window_bounds = array<i64: 256, 128>}, {transform_indices = @transform_3, window_bounds = array<i64: 1, 1, 128>}, {transform_indices = @transform_4, window_bounds = array<i64: 1, 1, 128>}]} {
    %c0 = arith.constant 0 : index
    %c0_0 = arith.constant 0 : index
    %0 = vector.load %arg1[%c0, %c0_0] : memref<256x512xbf16, #tpu.memory_space<vmem>>, vector<256x512xbf16>
    %c0_1 = arith.constant 0 : index
    %c0_2 = arith.constant 0 : index
    %1 = vector.load %arg2[%c0_1, %c0_2] : memref<512x128xbf16, #tpu.memory_space<vmem>>, vector<512x128xbf16>
    %cst = arith.constant dense<0.000000e+00> : vector<256x128xf32>
    %2 = tpu.matmul %0, %1, %cst {dimension_numbers = #tpu.dot_dimension_numbers<[1], [0], [0], [1], [0, 0, 1, 1], [], []>} : vector<256x512xbf16>, vector<512x128xbf16>, vector<256x128xf32> -> vector<256x128xf32>
    %3 = arith.truncf %2 : vector<256x128xf32> to vector<256x128xbf16>
    %c0_3 = arith.constant 0 : index
    %c0_4 = arith.constant 0 : index
    %4 = vector.load %arg3[%c0_3, %c0_4] : memref<256x128xbf16, #tpu.memory_space<vmem>>, vector<256x128xbf16>
    tpu.vector_store %arg3[%c0_3, %c0_4], %3 {strides = array<i32>} : memref<256x128xbf16, #tpu.memory_space<vmem>>, vector<256x128xbf16>,
    %cst_5 = arith.constant dense<0.000000e+00> : vector<128xf32>
    %5 = vector.multi_reduction <add>, %2, %cst_5 [0] : vector<256x128xf32> to vector<128xf32>
    %6 = vector.shape_cast %5 : vector<128xf32> to vector<1x128xf32>
    %c0_6 = arith.constant 0 : index
    %c0_7 = arith.constant 0 : index
    %c0_8 = arith.constant 0 : index
    %7 = vector.load %arg4[%c0_6, %c0_7, %c0_8] : memref<1x1x128xf32, #tpu.memory_space<vmem>>, vector<1x1x128xf32>
    %8 = vector.shape_cast %7 : vector<1x1x128xf32> to vector<1x128xf32>
    %9 = vector.shape_cast %6 : vector<1x128xf32> to vector<1x1x128xf32>
    tpu.vector_store %arg4[%c0_6, %c0_7, %c0_8], %9 {strides = array<i32>} : memref<1x1x128xf32, #tpu.memory_space<vmem>>, vector<1x1x128xf32>,
    %10 = arith.mulf %2, %2 : vector<256x128xf32>
    %cst_9 = arith.constant dense<0.000000e+00> : vector<128xf32>
    %11 = vector.multi_reduction <add>, %10, %cst_9 [0] : vector<256x128xf32> to vector<128xf32>
    %12 = vector.shape_cast %11 : vector<128xf32> to vector<1x128xf32>
    %c0_10 = arith.constant 0 : index
    %c0_11 = arith.constant 0 : index
    %c0_12 = arith.constant 0 : index
    %13 = vector.load %arg5[%c0_10, %c0_11, %c0_12] : memref<1x1x128xf32, #tpu.memory_space<vmem>>, vector<1x1x128xf32>
    %14 = vector.shape_cast %13 : vector<1x1x128xf32> to vector<1x128xf32>
    %15 = vector.shape_cast %12 : vector<1x128xf32> to vector<1x1x128xf32>
    tpu.vector_store %arg5[%c0_10, %c0_11, %c0_12], %15 {strides = array<i32>} : memref<1x1x128xf32, #tpu.memory_space<vmem>>, vector<1x1x128xf32>,
    return
  }
  func.func @transform_0(%arg0: i32) -> (i32, i32) {
    %c0_i32 = arith.constant 0 : i32
    %c0_i32_0 = arith.constant 0 : i32
    return %arg0, %c0_i32 : i32, i32
  }
  func.func @transform_1(%arg0: i32) -> (i32, i32) {
    %c0_i32 = arith.constant 0 : i32
    %c0_i32_0 = arith.constant 0 : i32
    %c0_i32_1 = arith.constant 0 : i32
    return %c0_i32, %c0_i32_0 : i32, i32
  }
  func.func @transform_2(%arg0: i32) -> (i32, i32) {
    %c0_i32 = arith.constant 0 : i32
    %c0_i32_0 = arith.constant 0 : i32
    return %arg0, %c0_i32 : i32, i32
  }
  func.func @transform_3(%arg0: i32) -> (i32, i32, i32) {
    %c0_i32 = arith.constant 0 : i32
    %c0_i32_0 = arith.constant 0 : i32
    %c0_i32_1 = arith.constant 0 : i32
    return %arg0, %c0_i32, %c0_i32_0 : i32, i32, i32
  }
  func.func @transform_4(%arg0: i32) -> (i32, i32, i32) {
    %c0_i32 = arith.constant 0 : i32
    %c0_i32_0 = arith.constant 0 : i32
    %c0_i32_1 = arith.constant 0 : i32
    return %arg0, %c0_i32, %c0_i32_0 : i32, i32, i32
  }
}

module attributes {stable_mosaic.version = 11 : i64} {
  func.func @_conv3x3_kernel(%arg0: i32, %arg1: memref<1x16x16x128xbf16, #tpu.memory_space<vmem>>, %arg2: memref<1152x128xbf16, #tpu.memory_space<vmem>>, %arg3: memref<2x1x128xf32, #tpu.memory_space<vmem>>, %arg4: memref<2x1x128xf32, #tpu.memory_space<vmem>>, %arg5: memref<1x128xf32, #tpu.memory_space<vmem>>, %arg6: memref<1x128xf32, #tpu.memory_space<vmem>>, %arg7: memref<1x256x128xbf16, #tpu.memory_space<vmem>>, %arg8: memref<1x1x128xf32, #tpu.memory_space<vmem>>, %arg9: memref<1x1x128xf32, #tpu.memory_space<vmem>>, %arg10: memref<18x18x128xbf16, #tpu.memory_space<vmem>>) attributes {dimension_semantics = [#tpu.dimension_semantics<parallel>], iteration_bounds = array<i64: 2>, scalar_prefetch = 0 : i64, scratch_operands = 1 : i64, tpu.core_type = #tpu.core_type<tc>, window_params = [{transform_indices = @transform_0, window_bounds = array<i64: 1, 16, 16, 128>}, {pipeline_mode = #tpu.pipeline_mode<synchronous>, transform_indices = @transform_1, window_bounds = array<i64: 1152, 128>}, {pipeline_mode = #tpu.pipeline_mode<synchronous>, transform_indices = @transform_2, window_bounds = array<i64: 2, 1, 128>}, {pipeline_mode = #tpu.pipeline_mode<synchronous>, transform_indices = @transform_3, window_bounds = array<i64: 2, 1, 128>}, {pipeline_mode = #tpu.pipeline_mode<synchronous>, transform_indices = @transform_4, window_bounds = array<i64: 1, 128>}, {pipeline_mode = #tpu.pipeline_mode<synchronous>, transform_indices = @transform_5, window_bounds = array<i64: 1, 128>}, {transform_indices = @transform_6, window_bounds = array<i64: 1, 256, 128>}, {transform_indices = @transform_7, window_bounds = array<i64: 1, 1, 128>}, {transform_indices = @transform_8, window_bounds = array<i64: 1, 1, 128>}]} {
    %c0 = arith.constant 0 : index
    %c0_0 = arith.constant 0 : index
    %c0_1 = arith.constant 0 : index
    %0 = vector.load %arg3[%c0, %c0_0, %c0_1] : memref<2x1x128xf32, #tpu.memory_space<vmem>>, vector<2x1x128xf32>
    %c0_2 = arith.constant 0 : index
    %c0_3 = arith.constant 0 : index
    %c0_4 = arith.constant 0 : index
    %1 = vector.load %arg4[%c0_2, %c0_3, %c0_4] : memref<2x1x128xf32, #tpu.memory_space<vmem>>, vector<2x1x128xf32>
    %c0_5 = arith.constant 0 : index
    %c0_6 = arith.constant 0 : index
    %2 = vector.load %arg5[%c0_5, %c0_6] : memref<1x128xf32, #tpu.memory_space<vmem>>, vector<1x128xf32>
    %c0_7 = arith.constant 0 : index
    %c0_8 = arith.constant 0 : index
    %3 = vector.load %arg6[%c0_7, %c0_8] : memref<1x128xf32, #tpu.memory_space<vmem>>, vector<1x128xf32>
    %cst = arith.constant dense<0.000000e+00> : vector<1x128xf32>
    %4 = vector.multi_reduction <add>, %0, %cst [0] : vector<2x1x128xf32> to vector<1x128xf32>
    %cst_9 = arith.constant 5.120000e+02 : f32
    %5 = vector.broadcast %cst_9 : f32 to vector<1x128xf32>
    %6 = arith.divf %4, %5 : vector<1x128xf32>
    %cst_10 = arith.constant dense<0.000000e+00> : vector<1x128xf32>
    %7 = vector.multi_reduction <add>, %1, %cst_10 [0] : vector<2x1x128xf32> to vector<1x128xf32>
    %cst_11 = arith.constant 5.120000e+02 : f32
    %8 = vector.broadcast %cst_11 : f32 to vector<1x128xf32>
    %9 = arith.divf %7, %8 : vector<1x128xf32>
    %10 = arith.mulf %6, %6 : vector<1x128xf32>
    %11 = arith.subf %9, %10 : vector<1x128xf32>
    %cst_12 = arith.constant 0.000000e+00 : f32
    %12 = vector.broadcast %cst_12 : f32 to vector<1x128xf32>
    %13 = arith.maximumf %11, %12 : vector<1x128xf32>
    %cst_13 = arith.constant 9.99999974E-6 : f32
    %14 = vector.broadcast %cst_13 : f32 to vector<1x128xf32>
    %15 = arith.addf %13, %14 : vector<1x128xf32>
    %16 = math.sqrt %15 : vector<1x128xf32>
    %17 = arith.divf %2, %16 : vector<1x128xf32>
    %18 = arith.mulf %6, %17 : vector<1x128xf32>
    %19 = arith.subf %3, %18 : vector<1x128xf32>
    %c0_14 = arith.constant 0 : index
    %c0_15 = arith.constant 0 : index
    %c0_16 = arith.constant 0 : index
    %c0_17 = arith.constant 0 : index
    %20 = vector.load %arg1[%c0_14, %c0_15, %c0_16, %c0_17] : memref<1x16x16x128xbf16, #tpu.memory_space<vmem>>, vector<1x16x16x128xbf16>
    %21 = vector.shape_cast %20 : vector<1x16x16x128xbf16> to vector<16x16x128xbf16>
    %22 = arith.extf %21 : vector<16x16x128xbf16> to vector<16x16x128xf32>
    %23 = vector.shape_cast %17 : vector<1x128xf32> to vector<1x1x128xf32>
    %24 = vector.broadcast %23 : vector<1x1x128xf32> to vector<16x16x128xf32>
    %25 = arith.mulf %22, %24 : vector<16x16x128xf32>
    %26 = vector.shape_cast %19 : vector<1x128xf32> to vector<1x1x128xf32>
    %27 = vector.broadcast %26 : vector<1x1x128xf32> to vector<16x16x128xf32>
    %28 = arith.addf %25, %27 : vector<16x16x128xf32>
    %cst_18 = arith.constant 0.000000e+00 : f32
    %29 = vector.broadcast %cst_18 : f32 to vector<16x16x128xf32>
    %30 = arith.maximumf %28, %29 : vector<16x16x128xf32>
    %31 = arith.truncf %30 : vector<16x16x128xf32> to vector<16x16x128xbf16>
    %cst_19 = arith.constant 0.000000e+00 : bf16
    %32 = vector.broadcast %cst_19 : bf16 to vector<1x18x128xbf16>
    %c0_20 = arith.constant 0 : index
    %c0_21 = arith.constant 0 : index
    %c0_22 = arith.constant 0 : index
    %33 = vector.load %arg10[%c0_20, %c0_21, %c0_22] : memref<18x18x128xbf16, #tpu.memory_space<vmem>>, vector<1x18x128xbf16>
    tpu.vector_store %arg10[%c0_20, %c0_21, %c0_22], %32 {strides = array<i32>} : memref<18x18x128xbf16, #tpu.memory_space<vmem>>, vector<1x18x128xbf16>,
    %cst_23 = arith.constant 0.000000e+00 : bf16
    %34 = vector.broadcast %cst_23 : bf16 to vector<1x18x128xbf16>
    %c17 = arith.constant 17 : index
    %c0_24 = arith.constant 0 : index
    %c0_25 = arith.constant 0 : index
    %35 = vector.load %arg10[%c17, %c0_24, %c0_25] : memref<18x18x128xbf16, #tpu.memory_space<vmem>>, vector<1x18x128xbf16>
    tpu.vector_store %arg10[%c17, %c0_24, %c0_25], %34 {strides = array<i32>} : memref<18x18x128xbf16, #tpu.memory_space<vmem>>, vector<1x18x128xbf16>,
    %cst_26 = arith.constant 0.000000e+00 : bf16
    %36 = vector.broadcast %cst_26 : bf16 to vector<18x1x128xbf16>
    %c0_27 = arith.constant 0 : index
    %c0_28 = arith.constant 0 : index
    %c0_29 = arith.constant 0 : index
    %37 = vector.load %arg10[%c0_27, %c0_28, %c0_29] : memref<18x18x128xbf16, #tpu.memory_space<vmem>>, vector<18x1x128xbf16>
    tpu.vector_store %arg10[%c0_27, %c0_28, %c0_29], %36 {strides = array<i32>} : memref<18x18x128xbf16, #tpu.memory_space<vmem>>, vector<18x1x128xbf16>,
    %cst_30 = arith.constant 0.000000e+00 : bf16
    %38 = vector.broadcast %cst_30 : bf16 to vector<18x1x128xbf16>
    %c0_31 = arith.constant 0 : index
    %c17_32 = arith.constant 17 : index
    %c0_33 = arith.constant 0 : index
    %39 = vector.load %arg10[%c0_31, %c17_32, %c0_33] : memref<18x18x128xbf16, #tpu.memory_space<vmem>>, vector<18x1x128xbf16>
    tpu.vector_store %arg10[%c0_31, %c17_32, %c0_33], %38 {strides = array<i32>} : memref<18x18x128xbf16, #tpu.memory_space<vmem>>, vector<18x1x128xbf16>,
    %c1 = arith.constant 1 : index
    %c1_34 = arith.constant 1 : index
    %c0_35 = arith.constant 0 : index
    %40 = vector.load %arg10[%c1, %c1_34, %c0_35] : memref<18x18x128xbf16, #tpu.memory_space<vmem>>, vector<16x16x128xbf16>
    tpu.vector_store %arg10[%c1, %c1_34, %c0_35], %31 {strides = array<i32>} : memref<18x18x128xbf16, #tpu.memory_space<vmem>>, vector<16x16x128xbf16>,
    %c0_36 = arith.constant 0 : index
    %c0_37 = arith.constant 0 : index
    %c0_38 = arith.constant 0 : index
    %41 = vector.load %arg10[%c0_36, %c0_37, %c0_38] : memref<18x18x128xbf16, #tpu.memory_space<vmem>>, vector<16x16x128xbf16>
    %42 = vector.shape_cast %41 : vector<16x16x128xbf16> to vector<256x128xbf16>
    %c0_39 = arith.constant 0 : index
    %c1_40 = arith.constant 1 : index
    %c0_41 = arith.constant 0 : index
    %43 = vector.load %arg10[%c0_39, %c1_40, %c0_41] : memref<18x18x128xbf16, #tpu.memory_space<vmem>>, vector<16x16x128xbf16>
    %44 = vector.shape_cast %43 : vector<16x16x128xbf16> to vector<256x128xbf16>
    %c0_42 = arith.constant 0 : index
    %c2 = arith.constant 2 : index
    %c0_43 = arith.constant 0 : index
    %45 = vector.load %arg10[%c0_42, %c2, %c0_43] : memref<18x18x128xbf16, #tpu.memory_space<vmem>>, vector<16x16x128xbf16>
    %46 = vector.shape_cast %45 : vector<16x16x128xbf16> to vector<256x128xbf16>
    %c1_44 = arith.constant 1 : index
    %c0_45 = arith.constant 0 : index
    %c0_46 = arith.constant 0 : index
    %47 = vector.load %arg10[%c1_44, %c0_45, %c0_46] : memref<18x18x128xbf16, #tpu.memory_space<vmem>>, vector<16x16x128xbf16>
    %48 = vector.shape_cast %47 : vector<16x16x128xbf16> to vector<256x128xbf16>
    %c1_47 = arith.constant 1 : index
    %c1_48 = arith.constant 1 : index
    %c0_49 = arith.constant 0 : index
    %49 = vector.load %arg10[%c1_47, %c1_48, %c0_49] : memref<18x18x128xbf16, #tpu.memory_space<vmem>>, vector<16x16x128xbf16>
    %50 = vector.shape_cast %49 : vector<16x16x128xbf16> to vector<256x128xbf16>
    %c1_50 = arith.constant 1 : index
    %c2_51 = arith.constant 2 : index
    %c0_52 = arith.constant 0 : index
    %51 = vector.load %arg10[%c1_50, %c2_51, %c0_52] : memref<18x18x128xbf16, #tpu.memory_space<vmem>>, vector<16x16x128xbf16>
    %52 = vector.shape_cast %51 : vector<16x16x128xbf16> to vector<256x128xbf16>
    %c2_53 = arith.constant 2 : index
    %c0_54 = arith.constant 0 : index
    %c0_55 = arith.constant 0 : index
    %53 = vector.load %arg10[%c2_53, %c0_54, %c0_55] : memref<18x18x128xbf16, #tpu.memory_space<vmem>>, vector<16x16x128xbf16>
    %54 = vector.shape_cast %53 : vector<16x16x128xbf16> to vector<256x128xbf16>
    %c2_56 = arith.constant 2 : index
    %c1_57 = arith.constant 1 : index
    %c0_58 = arith.constant 0 : index
    %55 = vector.load %arg10[%c2_56, %c1_57, %c0_58] : memref<18x18x128xbf16, #tpu.memory_space<vmem>>, vector<16x16x128xbf16>
    %56 = vector.shape_cast %55 : vector<16x16x128xbf16> to vector<256x128xbf16>
    %c2_59 = arith.constant 2 : index
    %c2_60 = arith.constant 2 : index
    %c0_61 = arith.constant 0 : index
    %57 = vector.load %arg10[%c2_59, %c2_60, %c0_61] : memref<18x18x128xbf16, #tpu.memory_space<vmem>>, vector<16x16x128xbf16>
    %58 = vector.shape_cast %57 : vector<16x16x128xbf16> to vector<256x128xbf16>
    %59 = tpu.concatenate %42, %44, %46, %48, %50, %52, %54, %56, %58 in 1 : vector<256x128xbf16>, vector<256x128xbf16>, vector<256x128xbf16>, vector<256x128xbf16>, vector<256x128xbf16>, vector<256x128xbf16>, vector<256x128xbf16>, vector<256x128xbf16>, vector<256x128xbf16> -> vector<256x1152xbf16>
    %c0_62 = arith.constant 0 : index
    %c0_63 = arith.constant 0 : index
    %60 = vector.load %arg2[%c0_62, %c0_63] : memref<1152x128xbf16, #tpu.memory_space<vmem>>, vector<1152x128xbf16>
    %cst_64 = arith.constant dense<0.000000e+00> : vector<256x128xf32>
    %61 = tpu.matmul %59, %60, %cst_64 {dimension_numbers = #tpu.dot_dimension_numbers<[1], [0], [0], [1], [0, 0, 1, 1], [], []>} : vector<256x1152xbf16>, vector<1152x128xbf16>, vector<256x128xf32> -> vector<256x128xf32>
    %62 = arith.truncf %61 : vector<256x128xf32> to vector<256x128xbf16>
    %c0_65 = arith.constant 0 : index
    %c0_66 = arith.constant 0 : index
    %c0_67 = arith.constant 0 : index
    %63 = vector.load %arg7[%c0_65, %c0_66, %c0_67] : memref<1x256x128xbf16, #tpu.memory_space<vmem>>, vector<1x256x128xbf16>
    %64 = vector.shape_cast %63 : vector<1x256x128xbf16> to vector<256x128xbf16>
    %65 = vector.shape_cast %62 : vector<256x128xbf16> to vector<1x256x128xbf16>
    tpu.vector_store %arg7[%c0_65, %c0_66, %c0_67], %65 {strides = array<i32>} : memref<1x256x128xbf16, #tpu.memory_space<vmem>>, vector<1x256x128xbf16>,
    %cst_68 = arith.constant dense<0.000000e+00> : vector<128xf32>
    %66 = vector.multi_reduction <add>, %61, %cst_68 [0] : vector<256x128xf32> to vector<128xf32>
    %67 = vector.shape_cast %66 : vector<128xf32> to vector<1x128xf32>
    %c0_69 = arith.constant 0 : index
    %c0_70 = arith.constant 0 : index
    %c0_71 = arith.constant 0 : index
    %68 = vector.load %arg8[%c0_69, %c0_70, %c0_71] : memref<1x1x128xf32, #tpu.memory_space<vmem>>, vector<1x1x128xf32>
    %69 = vector.shape_cast %68 : vector<1x1x128xf32> to vector<1x128xf32>
    %70 = vector.shape_cast %67 : vector<1x128xf32> to vector<1x1x128xf32>
    tpu.vector_store %arg8[%c0_69, %c0_70, %c0_71], %70 {strides = array<i32>} : memref<1x1x128xf32, #tpu.memory_space<vmem>>, vector<1x1x128xf32>,
    %71 = arith.mulf %61, %61 : vector<256x128xf32>
    %cst_72 = arith.constant dense<0.000000e+00> : vector<128xf32>
    %72 = vector.multi_reduction <add>, %71, %cst_72 [0] : vector<256x128xf32> to vector<128xf32>
    %73 = vector.shape_cast %72 : vector<128xf32> to vector<1x128xf32>
    %c0_73 = arith.constant 0 : index
    %c0_74 = arith.constant 0 : index
    %c0_75 = arith.constant 0 : index
    %74 = vector.load %arg9[%c0_73, %c0_74, %c0_75] : memref<1x1x128xf32, #tpu.memory_space<vmem>>, vector<1x1x128xf32>
    %75 = vector.shape_cast %74 : vector<1x1x128xf32> to vector<1x128xf32>
    %76 = vector.shape_cast %73 : vector<1x128xf32> to vector<1x1x128xf32>
    tpu.vector_store %arg9[%c0_73, %c0_74, %c0_75], %76 {strides = array<i32>} : memref<1x1x128xf32, #tpu.memory_space<vmem>>, vector<1x1x128xf32>,
    return
  }
  func.func @transform_0(%arg0: i32) -> (i32, i32, i32, i32) {
    %c0_i32 = arith.constant 0 : i32
    %c0_i32_0 = arith.constant 0 : i32
    %c0_i32_1 = arith.constant 0 : i32
    %c0_i32_2 = arith.constant 0 : i32
    return %arg0, %c0_i32, %c0_i32_0, %c0_i32_1 : i32, i32, i32, i32
  }
  func.func @transform_1(%arg0: i32) -> (i32, i32) {
    %c0_i32 = arith.constant 0 : i32
    %c0_i32_0 = arith.constant 0 : i32
    %c0_i32_1 = arith.constant 0 : i32
    return %c0_i32, %c0_i32_0 : i32, i32
  }
  func.func @transform_2(%arg0: i32) -> (i32, i32, i32) {
    %c0_i32 = arith.constant 0 : i32
    %c0_i32_0 = arith.constant 0 : i32
    %c0_i32_1 = arith.constant 0 : i32
    %c0_i32_2 = arith.constant 0 : i32
    return %c0_i32, %c0_i32_0, %c0_i32_1 : i32, i32, i32
  }
  func.func @transform_3(%arg0: i32) -> (i32, i32, i32) {
    %c0_i32 = arith.constant 0 : i32
    %c0_i32_0 = arith.constant 0 : i32
    %c0_i32_1 = arith.constant 0 : i32
    %c0_i32_2 = arith.constant 0 : i32
    return %c0_i32, %c0_i32_0, %c0_i32_1 : i32, i32, i32
  }
  func.func @transform_4(%arg0: i32) -> (i32, i32) {
    %c0_i32 = arith.constant 0 : i32
    %c0_i32_0 = arith.constant 0 : i32
    %c0_i32_1 = arith.constant 0 : i32
    return %c0_i32, %c0_i32_0 : i32, i32
  }
  func.func @transform_5(%arg0: i32) -> (i32, i32) {
    %c0_i32 = arith.constant 0 : i32
    %c0_i32_0 = arith.constant 0 : i32
    %c0_i32_1 = arith.constant 0 : i32
    return %c0_i32, %c0_i32_0 : i32, i32
  }
  func.func @transform_6(%arg0: i32) -> (i32, i32, i32) {
    %c0_i32 = arith.constant 0 : i32
    %c0_i32_0 = arith.constant 0 : i32
    %c0_i32_1 = arith.constant 0 : i32
    return %arg0, %c0_i32, %c0_i32_0 : i32, i32, i32
  }
  func.func @transform_7(%arg0: i32) -> (i32, i32, i32) {
    %c0_i32 = arith.constant 0 : i32
    %c0_i32_0 = arith.constant 0 : i32
    %c0_i32_1 = arith.constant 0 : i32
    return %arg0, %c0_i32, %c0_i32_0 : i32, i32, i32
  }
  func.func @transform_8(%arg0: i32) -> (i32, i32, i32) {
    %c0_i32 = arith.constant 0 : i32
    %c0_i32_0 = arith.constant 0 : i32
    %c0_i32_1 = arith.constant 0 : i32
    return %arg0, %c0_i32, %c0_i32_0 : i32, i32, i32
  }
}

module attributes {stable_mosaic.version = 11 : i64} {
  func.func @_bn_add_relu_kernel(%arg0: i32, %arg1: memref<256x512xbf16, #tpu.memory_space<vmem>>, %arg2: memref<256x512xbf16, #tpu.memory_space<vmem>>, %arg3: memref<2x1x512xf32, #tpu.memory_space<vmem>>, %arg4: memref<2x1x512xf32, #tpu.memory_space<vmem>>, %arg5: memref<1x512xf32, #tpu.memory_space<vmem>>, %arg6: memref<1x512xf32, #tpu.memory_space<vmem>>, %arg7: memref<256x512xf32, #tpu.memory_space<vmem>>) attributes {dimension_semantics = [#tpu.dimension_semantics<parallel>], iteration_bounds = array<i64: 2>, scalar_prefetch = 0 : i64, scratch_operands = 0 : i64, tpu.core_type = #tpu.core_type<tc>, window_params = [{transform_indices = @transform_0, window_bounds = array<i64: 256, 512>}, {transform_indices = @transform_1, window_bounds = array<i64: 256, 512>}, {pipeline_mode = #tpu.pipeline_mode<synchronous>, transform_indices = @transform_2, window_bounds = array<i64: 2, 1, 512>}, {pipeline_mode = #tpu.pipeline_mode<synchronous>, transform_indices = @transform_3, window_bounds = array<i64: 2, 1, 512>}, {pipeline_mode = #tpu.pipeline_mode<synchronous>, transform_indices = @transform_4, window_bounds = array<i64: 1, 512>}, {pipeline_mode = #tpu.pipeline_mode<synchronous>, transform_indices = @transform_5, window_bounds = array<i64: 1, 512>}, {transform_indices = @transform_6, window_bounds = array<i64: 256, 512>}]} {
    %c0 = arith.constant 0 : index
    %c0_0 = arith.constant 0 : index
    %c0_1 = arith.constant 0 : index
    %0 = vector.load %arg3[%c0, %c0_0, %c0_1] : memref<2x1x512xf32, #tpu.memory_space<vmem>>, vector<2x1x512xf32>
    %c0_2 = arith.constant 0 : index
    %c0_3 = arith.constant 0 : index
    %c0_4 = arith.constant 0 : index
    %1 = vector.load %arg4[%c0_2, %c0_3, %c0_4] : memref<2x1x512xf32, #tpu.memory_space<vmem>>, vector<2x1x512xf32>
    %c0_5 = arith.constant 0 : index
    %c0_6 = arith.constant 0 : index
    %2 = vector.load %arg5[%c0_5, %c0_6] : memref<1x512xf32, #tpu.memory_space<vmem>>, vector<1x512xf32>
    %c0_7 = arith.constant 0 : index
    %c0_8 = arith.constant 0 : index
    %3 = vector.load %arg6[%c0_7, %c0_8] : memref<1x512xf32, #tpu.memory_space<vmem>>, vector<1x512xf32>
    %cst = arith.constant dense<0.000000e+00> : vector<1x512xf32>
    %4 = vector.multi_reduction <add>, %0, %cst [0] : vector<2x1x512xf32> to vector<1x512xf32>
    %cst_9 = arith.constant 5.120000e+02 : f32
    %5 = vector.broadcast %cst_9 : f32 to vector<1x512xf32>
    %6 = arith.divf %4, %5 : vector<1x512xf32>
    %cst_10 = arith.constant dense<0.000000e+00> : vector<1x512xf32>
    %7 = vector.multi_reduction <add>, %1, %cst_10 [0] : vector<2x1x512xf32> to vector<1x512xf32>
    %cst_11 = arith.constant 5.120000e+02 : f32
    %8 = vector.broadcast %cst_11 : f32 to vector<1x512xf32>
    %9 = arith.divf %7, %8 : vector<1x512xf32>
    %10 = arith.mulf %6, %6 : vector<1x512xf32>
    %11 = arith.subf %9, %10 : vector<1x512xf32>
    %cst_12 = arith.constant 0.000000e+00 : f32
    %12 = vector.broadcast %cst_12 : f32 to vector<1x512xf32>
    %13 = arith.maximumf %11, %12 : vector<1x512xf32>
    %cst_13 = arith.constant 9.99999974E-6 : f32
    %14 = vector.broadcast %cst_13 : f32 to vector<1x512xf32>
    %15 = arith.addf %13, %14 : vector<1x512xf32>
    %16 = math.sqrt %15 : vector<1x512xf32>
    %17 = arith.divf %2, %16 : vector<1x512xf32>
    %18 = arith.mulf %6, %17 : vector<1x512xf32>
    %19 = arith.subf %3, %18 : vector<1x512xf32>
    %c0_14 = arith.constant 0 : index
    %c0_15 = arith.constant 0 : index
    %20 = vector.load %arg1[%c0_14, %c0_15] : memref<256x512xbf16, #tpu.memory_space<vmem>>, vector<256x512xbf16>
    %21 = arith.extf %20 : vector<256x512xbf16> to vector<256x512xf32>
    %22 = vector.broadcast %17 : vector<1x512xf32> to vector<256x512xf32>
    %23 = arith.mulf %21, %22 : vector<256x512xf32>
    %24 = vector.broadcast %19 : vector<1x512xf32> to vector<256x512xf32>
    %25 = arith.addf %23, %24 : vector<256x512xf32>
    %c0_16 = arith.constant 0 : index
    %c0_17 = arith.constant 0 : index
    %26 = vector.load %arg2[%c0_16, %c0_17] : memref<256x512xbf16, #tpu.memory_space<vmem>>, vector<256x512xbf16>
    %27 = arith.extf %26 : vector<256x512xbf16> to vector<256x512xf32>
    %28 = arith.addf %25, %27 : vector<256x512xf32>
    %cst_18 = arith.constant 0.000000e+00 : f32
    %29 = vector.broadcast %cst_18 : f32 to vector<256x512xf32>
    %30 = arith.maximumf %28, %29 : vector<256x512xf32>
    %c0_19 = arith.constant 0 : index
    %c0_20 = arith.constant 0 : index
    %31 = vector.load %arg7[%c0_19, %c0_20] : memref<256x512xf32, #tpu.memory_space<vmem>>, vector<256x512xf32>
    tpu.vector_store %arg7[%c0_19, %c0_20], %30 {strides = array<i32>} : memref<256x512xf32, #tpu.memory_space<vmem>>, vector<256x512xf32>,
    return
  }
  func.func @transform_0(%arg0: i32) -> (i32, i32) {
    %c0_i32 = arith.constant 0 : i32
    %c0_i32_0 = arith.constant 0 : i32
    return %arg0, %c0_i32 : i32, i32
  }
  func.func @transform_1(%arg0: i32) -> (i32, i32) {
    %c0_i32 = arith.constant 0 : i32
    %c0_i32_0 = arith.constant 0 : i32
    return %arg0, %c0_i32 : i32, i32
  }
  func.func @transform_2(%arg0: i32) -> (i32, i32, i32) {
    %c0_i32 = arith.constant 0 : i32
    %c0_i32_0 = arith.constant 0 : i32
    %c0_i32_1 = arith.constant 0 : i32
    %c0_i32_2 = arith.constant 0 : i32
    return %c0_i32, %c0_i32_0, %c0_i32_1 : i32, i32, i32
  }
  func.func @transform_3(%arg0: i32) -> (i32, i32, i32) {
    %c0_i32 = arith.constant 0 : i32
    %c0_i32_0 = arith.constant 0 : i32
    %c0_i32_1 = arith.constant 0 : i32
    %c0_i32_2 = arith.constant 0 : i32
    return %c0_i32, %c0_i32_0, %c0_i32_1 : i32, i32, i32
  }
  func.func @transform_4(%arg0: i32) -> (i32, i32) {
    %c0_i32 = arith.constant 0 : i32
    %c0_i32_0 = arith.constant 0 : i32
    %c0_i32_1 = arith.constant 0 : i32
    return %c0_i32, %c0_i32_0 : i32, i32
  }
  func.func @transform_5(%arg0: i32) -> (i32, i32) {
    %c0_i32 = arith.constant 0 : i32
    %c0_i32_0 = arith.constant 0 : i32
    %c0_i32_1 = arith.constant 0 : i32
    return %c0_i32, %c0_i32_0 : i32, i32
  }
  func.func @transform_6(%arg0: i32) -> (i32, i32) {
    %c0_i32 = arith.constant 0 : i32
    %c0_i32_0 = arith.constant 0 : i32
    return %arg0, %c0_i32 : i32, i32
  }
}

</mosaic_0001>

<llo_original>
// kernel: bottleneck_forward.6
$region0: #{bottleneck_forward.6}
  #allocation0 [shape = 'u32[]', space=smem, size = 0x4, offset = 0x4, fixed_abs, tag = 'smem constant byte address 0x4 - core index']
  #allocation1 [shape = 'u32[72,128]{1,0:T(1,128)}', space=vmem, size = 0x9000, scoped, tag = 'internal scratch']
  %s0 = inlined_call_operand.vmem [shape: bf16[512,128], index: 0, kind: input, shape index: {}]
  %s1 = inlined_call_operand.vmem [shape: bf16[128,512], index: 1, kind: input, shape index: {}]
  %s2 = inlined_call_operand.vmem [shape: f32[2,1,128], index: 2, kind: input, shape index: {}]
  %s3 = inlined_call_operand.vmem [shape: f32[2,1,128], index: 3, kind: input, shape index: {}]
  %s4 = inlined_call_operand.vmem [shape: f32[1,128], index: 4, kind: input, shape index: {}]
  %s5 = inlined_call_operand.vmem [shape: f32[1,128], index: 5, kind: input, shape index: {}]
  %s6 = inlined_call_operand.vmem [shape: bf16[512,512], index: 6, kind: output, shape index: {0}]
  %s7 = inlined_call_operand.vmem [shape: f32[2,1,512], index: 7, kind: output, shape index: {1}]
  %s8 = inlined_call_operand.vmem [shape: f32[2,1,512], index: 8, kind: output, shape index: {2}]
  %9 = xla_tuple %s6, %s7, %s8
  %s10 = sld [smem:[#allocation0]]
  $region73: #{bottleneck_forward.6} parent=0
    _
  %s12 = ssub.s32 1, %s10
  %s13 = scalar_select 0, %s12, %s10
  loop: start=0, step=1, limit=4
  $region2: #{bottleneck_forward.6} parent=0 // loop_pre_header
    _
  $region3: #{bottleneck_forward.6} parent=0 // loop_header
    %s15 = sphi 0, %s19
    %p16 = scmp.ge.s32.totalorder %s15, 4
    %s25 = sphi 0, %s27
    %s28 = sphi 0, %s25
    %s29 = sphi 0, %s28
    %s45 = sphi 0, %s29
    %s49 = sphi 0, %s49
    %s51 = sphi 0, %s49
    %s52 = sphi 0, %s51
    %s66 = sphi 0, %s52
    %s70 = sphi 0, %s70
    %s72 = sphi 0, %s70
    %s73 = sphi 0, %s72
    %s87 = sphi 0, %s73
    %s91 = sphi 0, %s91
    %s93 = sphi 0, %s91
    %s94 = sphi 0, %s93
    %s108 = sphi 0, %s94
    %s112 = sphi 0, %s112
    %s114 = sphi 0, %s112
    %s115 = sphi 0, %s114
    %s129 = sphi 0, %s115
    %s133 = sphi 0, %s133
    %s135 = sphi 0, %s133
    %s136 = sphi 0, %s135
    %s150 = sphi 0, %s136
    %s156 = sphi 0, %s158
    %s159 = sphi 0, %s156
    %s160 = sphi 0, %s159
    %s176 = sphi 0, %s160
    %s182 = sphi 0, %s184
    %s185 = sphi 0, %s182
    %s186 = sphi 0, %s185
    %s202 = sphi 0, %s186
    %s208 = sphi 0, %s210
    %s211 = sphi 0, %s208
    %s212 = sphi 0, %s211
    %s228 = sphi 0, %s212
  $region4: #{bottleneck_forward.6} parent=0 // loop_header_branch
    %18 = sbr.rel (%p16) target = $region8
  $region5: #{bottleneck_forward.6} parent=0 // loop_body
    %s20 = ssub.s32 %s15, 1
    %s21 = ssub.s32 %s15, 2
    %s22 = sadd.s32 %s15, 1
    %s23 = ssub.s32 %s15, %s22
    %p24 = scmp.eq.s32.totalorder %s23, 0
    %s26 = sadd.s32 %s25, 1
    %s27 = scalar_select %p24, %s25, %s26
    %p30 = pneg %p24
    %p31 = scmp.eq.s32.totalorder %s15, 1
    %p32 = por %p30, %p31
    %p33 = scmp.ne.s32.totalorder %s25, %s28
    %p34 = scmp.eq.s32.totalorder %s15, 0
    %p35 = por %p33, %p34
    %p36 = scmp.ne.s32.totalorder %s25, %s28
    %p37 = scmp.eq.s32.totalorder %s20, 1
    %p38 = por %p36, %p37
    %p39 = scmp.ne.s32.totalorder %s28, %s29
    %p40 = scmp.eq.s32.totalorder %s20, 0
    %p41 = por %p39, %p40
    %p42 = scmp.ne.s32.totalorder %s28, %s29
    %p43 = scmp.eq.s32.totalorder %s21, 1
    %p44 = por %p42, %p43
    %p46 = scmp.ne.s32.totalorder %s29, %s45
    %p47 = scmp.eq.s32.totalorder %s21, 0
    %p48 = por %p46, %p47
    %s50 = sadd.s32 %s49, 1
    %p53 = scmp.eq.s32.totalorder %s15, 1
    %p54 = scmp.ne.s32.totalorder %s49, %s51
    %p55 = scmp.eq.s32.totalorder %s15, 0
    %p56 = por %p54, %p55
    %p57 = scmp.ne.s32.totalorder %s49, %s51
    %p58 = scmp.eq.s32.totalorder %s20, 1
    %p59 = por %p57, %p58
    %p60 = scmp.ne.s32.totalorder %s51, %s52
    %p61 = scmp.eq.s32.totalorder %s20, 0
    %p62 = por %p60, %p61
    %p63 = scmp.ne.s32.totalorder %s51, %s52
    %p64 = scmp.eq.s32.totalorder %s21, 1
    %p65 = por %p63, %p64
    %p67 = scmp.ne.s32.totalorder %s52, %s66
    %p68 = scmp.eq.s32.totalorder %s21, 0
    %p69 = por %p67, %p68
    %s71 = sadd.s32 %s70, 1
    %p74 = scmp.eq.s32.totalorder %s15, 1
    %p75 = scmp.ne.s32.totalorder %s70, %s72
    %p76 = scmp.eq.s32.totalorder %s15, 0
    %p77 = por %p75, %p76
    %p78 = scmp.ne.s32.totalorder %s70, %s72
    %p79 = scmp.eq.s32.totalorder %s20, 1
    %p80 = por %p78, %p79
    %p81 = scmp.ne.s32.totalorder %s72, %s73
    %p82 = scmp.eq.s32.totalorder %s20, 0
    %p83 = por %p81, %p82
    %p84 = scmp.ne.s32.totalorder %s72, %s73
    %p85 = scmp.eq.s32.totalorder %s21, 1
    %p86 = por %p84, %p85
    %p88 = scmp.ne.s32.totalorder %s73, %s87
    %p89 = scmp.eq.s32.totalorder %s21, 0
    %p90 = por %p88, %p89
    %s92 = sadd.s32 %s91, 1
    %p95 = scmp.eq.s32.totalorder %s15, 1
    %p96 = scmp.ne.s32.totalorder %s91, %s93
    %p97 = scmp.eq.s32.totalorder %s15, 0
    %p98 = por %p96, %p97
    %p99 = scmp.ne.s32.totalorder %s91, %s93
    %p100 = scmp.eq.s32.totalorder %s20, 1
    %p101 = por %p99, %p100
    %p102 = scmp.ne.s32.totalorder %s93, %s94
    %p103 = scmp.eq.s32.totalorder %s20, 0
    %p104 = por %p102, %p103
    %p105 = scmp.ne.s32.totalorder %s93, %s94
    %p106 = scmp.eq.s32.totalorder %s21, 1
    %p107 = por %p105, %p106
    %p109 = scmp.ne.s32.totalorder %s94, %s108
    %p110 = scmp.eq.s32.totalorder %s21, 0
    %p111 = por %p109, %p110
    %s113 = sadd.s32 %s112, 1
    %p116 = scmp.eq.s32.totalorder %s15, 1
    %p117 = scmp.ne.s32.totalorder %s112, %s114
    %p118 = scmp.eq.s32.totalorder %s15, 0
    %p119 = por %p117, %p118
    %p120 = scmp.ne.s32.totalorder %s112, %s114
    %p121 = scmp.eq.s32.totalorder %s20, 1
    %p122 = por %p120, %p121
    %p123 = scmp.ne.s32.totalorder %s114, %s115
    %p124 = scmp.eq.s32.totalorder %s20, 0
    %p125 = por %p123, %p124
    %p126 = scmp.ne.s32.totalorder %s114, %s115
    %p127 = scmp.eq.s32.totalorder %s21, 1
    %p128 = por %p126, %p127
    %p130 = scmp.ne.s32.totalorder %s115, %s129
    %p131 = scmp.eq.s32.totalorder %s21, 0
    %p132 = por %p130, %p131
    %s134 = sadd.s32 %s133, 1
    %p137 = scmp.eq.s32.totalorder %s15, 1
    %p138 = scmp.ne.s32.totalorder %s133, %s135
    %p139 = scmp.eq.s32.totalorder %s15, 0
    %p140 = por %p138, %p139
    %p141 = scmp.ne.s32.totalorder %s133, %s135
    %p142 = scmp.eq.s32.totalorder %s20, 1
    %p143 = por %p141, %p142
    %p144 = scmp.ne.s32.totalorder %s135, %s136
    %p145 = scmp.eq.s32.totalorder %s20, 0
    %p146 = por %p144, %p145
    %p147 = scmp.ne.s32.totalorder %s135, %s136
    %p148 = scmp.eq.s32.totalorder %s21, 1
    %p149 = por %p147, %p148
    %p151 = scmp.ne.s32.totalorder %s136, %s150
    %p152 = scmp.eq.s32.totalorder %s21, 0
    %p153 = por %p151, %p152
    %s154 = ssub.s32 %s15, %s22
    %p155 = scmp.eq.s32.totalorder %s154, 0
    %s157 = sadd.s32 %s156, 1
    %s158 = scalar_select %p155, %s156, %s157
    %p161 = pneg %p155
    %p162 = scmp.eq.s32.totalorder %s15, 1
    %p163 = por %p161, %p162
    %p164 = scmp.ne.s32.totalorder %s156, %s159
    %p165 = scmp.eq.s32.totalorder %s15, 0
    %p166 = por %p164, %p165
    %p167 = scmp.ne.s32.totalorder %s156, %s159
    %p168 = scmp.eq.s32.totalorder %s20, 1
    %p169 = por %p167, %p168
    %p170 = scmp.ne.s32.totalorder %s159, %s160
    %p171 = scmp.eq.s32.totalorder %s20, 0
    %p172 = por %p170, %p171
    %p173 = scmp.ne.s32.totalorder %s159, %s160
    %p174 = scmp.eq.s32.totalorder %s21, 1
    %p175 = por %p173, %p174
    %p177 = scmp.ne.s32.totalorder %s160, %s176
    %p178 = scmp.eq.s32.totalorder %s21, 0
    %p179 = por %p177, %p178
    %s180 = ssub.s32 %s15, %s22
    %p181 = scmp.eq.s32.totalorder %s180, 0
    %s183 = sadd.s32 %s182, 1
    %s184 = scalar_select %p181, %s182, %s183
    %p187 = pneg %p181
    %p188 = scmp.eq.s32.totalorder %s15, 1
    %p189 = por %p187, %p188
    %p190 = scmp.ne.s32.totalorder %s182, %s185
    %p191 = scmp.eq.s32.totalorder %s15, 0
    %p192 = por %p190, %p191
    %p193 = scmp.ne.s32.totalorder %s182, %s185
    %p194 = scmp.eq.s32.totalorder %s20, 1
    %p195 = por %p193, %p194
    %p196 = scmp.ne.s32.totalorder %s185, %s186
    %p197 = scmp.eq.s32.totalorder %s20, 0
    %p198 = por %p196, %p197
    %p199 = scmp.ne.s32.totalorder %s185, %s186
    %p200 = scmp.eq.s32.totalorder %s21, 1
    %p201 = por %p199, %p200
    %p203 = scmp.ne.s32.totalorder %s186, %s202
    %p204 = scmp.eq.s32.totalorder %s21, 0
    %p205 = por %p203, %p204
    %s206 = ssub.s32 %s15, %s22
    %p207 = scmp.eq.s32.totalorder %s206, 0
    %s209 = sadd.s32 %s208, 1
    %s210 = scalar_select %p207, %s208, %s209
    %p213 = pneg %p207
    %p214 = scmp.eq.s32.totalorder %s15, 1
    %p215 = por %p213, %p214
    %p216 = scmp.ne.s32.totalorder %s208, %s211
    %p217 = scmp.eq.s32.totalorder %s15, 0
    %p218 = por %p216, %p217
    %p219 = scmp.ne.s32.totalorder %s208, %s211
    %p220 = scmp.eq.s32.totalorder %s20, 1
    %p221 = por %p219, %p220
    %p222 = scmp.ne.s32.totalorder %s211, %s212
    %p223 = scmp.eq.s32.totalorder %s20, 0
    %p224 = por %p222, %p223
    %p225 = scmp.ne.s32.totalorder %s211, %s212
    %p226 = scmp.eq.s32.totalorder %s21, 1
    %p227 = por %p225, %p226
    %p229 = scmp.ne.s32.totalorder %s212, %s228
    %p230 = scmp.eq.s32.totalorder %s21, 0
    %p231 = por %p229, %p230
    %p232 = scmp.le.s32.totalorder 1, %s15
    %p233 = scmp.lt.s32.totalorder %s15, 3
    %p234 = pnand %p232, %p233
    %p235 = pneg %p234
    // Predicated region
    $region9: #{bottleneck_forward.6} parent=5 // pred_check
      _
    $region10: #{bottleneck_forward.6} parent=5 // pred_check_branch
      %237 = sbr.rel (%p234) target = $region12
    $region11: #{bottleneck_forward.6} parent=5 // pred_region
      %s238 = ssub.s32 %s15, 1
      // Predicated region
      $region13: #{bottleneck_forward.6} parent=11 // pred_check
        %p239 = pneg %p62
      $region14: #{bottleneck_forward.6} parent=11 // pred_check_branch
        %241 = sbr.rel (%p239) target = $region16
      $region15: #{bottleneck_forward.6} parent=11 // pred_region
        _
      $region16: #{bottleneck_forward.6} parent=11 // pred_fallthru
        _
      // Predicated region
      $region17: #{bottleneck_forward.6} parent=11 // pred_check
        %p242 = pneg %p83
      $region18: #{bottleneck_forward.6} parent=11 // pred_check_branch
        %244 = sbr.rel (%p242) target = $region20
      $region19: #{bottleneck_forward.6} parent=11 // pred_region
        _
      $region20: #{bottleneck_forward.6} parent=11 // pred_fallthru
        _
      // Predicated region
      $region21: #{bottleneck_forward.6} parent=11 // pred_check
        %p245 = pneg %p104
      $region22: #{bottleneck_forward.6} parent=11 // pred_check_branch
        %247 = sbr.rel (%p245) target = $region24
      $region23: #{bottleneck_forward.6} parent=11 // pred_region
        _
      $region24: #{bottleneck_forward.6} parent=11 // pred_fallthru
        _
      // Predicated region
      $region25: #{bottleneck_forward.6} parent=11 // pred_check
        %p248 = pneg %p125
      $region26: #{bottleneck_forward.6} parent=11 // pred_check_branch
        %250 = sbr.rel (%p248) target = $region28
      $region27: #{bottleneck_forward.6} parent=11 // pred_region
        _
      $region28: #{bottleneck_forward.6} parent=11 // pred_fallthru
        _
      // Predicated region
      $region29: #{bottleneck_forward.6} parent=11 // pred_check
        %p251 = pneg %p146
      $region30: #{bottleneck_forward.6} parent=11 // pred_check_branch
        %253 = sbr.rel (%p251) target = $region32
      $region31: #{bottleneck_forward.6} parent=11 // pred_region
        _
      $region32: #{bottleneck_forward.6} parent=11 // pred_fallthru
        _
    $region12: #{bottleneck_forward.6} parent=5 // pred_fallthru
      _
    %p254 = scmp.lt.s32.totalorder %s15, 2
    // Predicated region
    $region33: #{bottleneck_forward.6} parent=5 // pred_check
      %p255 = pneg %p254
    $region34: #{bottleneck_forward.6} parent=5 // pred_check_branch
      %257 = sbr.rel (%p255) target = $region36
    $region35: #{bottleneck_forward.6} parent=5 // pred_region
      // Predicated region
      $region37: #{bottleneck_forward.6} parent=35 // pred_check
        %p258 = pneg %p35
      $region38: #{bottleneck_forward.6} parent=35 // pred_check_branch
        %260 = sbr.rel (%p258) target = $region40
      $region39: #{bottleneck_forward.6} parent=35 // pred_region
        %s261 = smul.u32 32, %s15
        %p262 = scmp.lt.s32.totalorder %s261, 63
        %s263 = scalar_select %p262, %s261, 63
        %s264 = smul.addr %s263, 4
        %s265 = scalar_lea.vmem %s0, %s264
        %s266 = smul.u32 32, %s15
      $region40: #{bottleneck_forward.6} parent=35 // pred_fallthru
        _
    $region36: #{bottleneck_forward.6} parent=5 // pred_fallthru
      _
    %p267 = scmp.le.s32.totalorder 1, %s15
    %p268 = scmp.lt.s32.totalorder %s15, 3
    %p269 = pnand %p267, %p268
    %p270 = pneg %p269
    // Predicated region
    $region41: #{bottleneck_forward.6} parent=5 // pred_check
      _
    $region42: #{bottleneck_forward.6} parent=5 // pred_check_branch
      %272 = sbr.rel (%p269) target = $region44
    $region43: #{bottleneck_forward.6} parent=5 // pred_region
      %s273 = ssub.s32 %s15, 1
      %s274 = smul.u32 32, %s20
      %p275 = scmp.lt.s32.totalorder %s274, 63
      %s276 = scalar_select %p275, %s274, 63
      %s277 = smul.addr %s276, 4
      %s278 = scalar_lea.vmem %s0, %s277
      %p279 = pneg %p41
      %p280 = pneg %p38
      %p281 = pneg %p62
      %p282 = pneg %p59
      %p283 = pneg %p83
      %p284 = pneg %p80
      %p285 = pneg %p104
      %p286 = pneg %p101
      %p287 = pneg %p125
      %p288 = pneg %p122
      %p289 = pneg %p146
      %p290 = pneg %p143
      %p291 = pneg %p172
      %p292 = pneg %p169
      %s293 = smul.u32 32, %s20
      %p294 = scmp.lt.s32.totalorder %s293, 63
      %s295 = scalar_select %p294, %s293, 63
      %s296 = smul.addr %s295, 4
      %s297 = smul.addr %s296, 4
      %s298 = scalar_lea.vmem %s6, %s297
      %p299 = pneg %p198
      %p300 = pneg %p195
      %p301 = scmp.lt.s32.totalorder %s20, 1
      %s302 = scalar_select %p301, %s20, 1
      %s303 = smul.addr %s302, 4
      %s304 = scalar_lea.vmem %s7, %s303
      %p305 = pneg %p224
      %p306 = pneg %p221
      %p307 = scmp.lt.s32.totalorder %s20, 1
      %s308 = scalar_select %p307, %s20, 1
      %s309 = smul.addr %s308, 4
      %s310 = scalar_lea.vmem %s8, %s309
      %s311 = smul.u32 32, %s20
      %p312 = scmp.lt.s32.totalorder %s311, 63
      %s313 = scalar_select %p312, %s311, 63
      %s314 = smul.addr %s313, 4
      %s315 = scalar_lea.vmem %s0, %s314
      %s316 = smul.u32 32, %s20
      %s317 = smul.u32 32, %s20
      %p318 = scmp.lt.s32.totalorder %s317, 63
      %s319 = scalar_select %p318, %s317, 63
      %s320 = smul.addr %s319, 4
      %s321 = smul.addr %s320, 4
      %s322 = scalar_lea.vmem %s6, %s321
      %s323 = smul.u32 32, %s20
      %p324 = scmp.lt.s32.totalorder %s20, 1
      %s325 = scalar_select %p324, %s20, 1
      %s326 = smul.addr %s325, 4
      %s327 = scalar_lea.vmem %s7, %s326
      %p328 = scmp.lt.s32.totalorder %s20, 1
      %s329 = scalar_select %p328, %s20, 1
      %s330 = smul.addr %s329, 4
      %s331 = scalar_lea.vmem %s8, %s330
      %v332 = vld [vmem:[%s2] sm:$0x1]
      %v333 = vld [vmem:[%s2 + $0x1] sm:$0x1]
      %v334 = vld [vmem:[%s3] sm:$0x1]
      %v335 = vld [vmem:[%s3 + $0x1] sm:$0x1]
      %v336 = vld [vmem:[%s4] sm:$0x1]
      %v337 = vld [vmem:[%s5] sm:$0x1]
      %vm338 = vcmask 1040384
      %v339 = vsel %vm338, %v332, 0.0
      %v340 = vsel %vm338, %v333, 0.0
      %v341 = vadd.f32 %v339, %v340
      %v342 = vrcp.pop 512.0
      %v343 = vmul.f32 512.0, %v342
      %v344 = vsub.f32 1.0, %v343
      %v345 = vmul.f32 %v342, %v344
      %v346 = vadd.f32 %v342, %v345
      %vm347 = vweird.f32 %v342
      %v348 = vsel %vm347, %v342, %v346
      %v349 = vmul.f32 %v341, %v348
      %v350 = vsel %vm338, %v334, 0.0
      %v351 = vsel %vm338, %v335, 0.0
      %v352 = vadd.f32 %v350, %v351
      %v353 = vmul.f32 %v352, %v348
      %v354 = vmul.f32 %v349, %v349
      %v355 = vsub.f32 %v353, %v354
      %v356 = vmax.f32 %v355, 0.0
      %v357 = vadd.f32 %v356, 1e-05
      %v358 = vrsqrt.pop %v357
      %v359 = vmul.f32 %v358, %v357
      %v360 = vmul.f32 %v359, %v358
      %v361 = vmul.f32 0.5, %v360
      %v362 = vsub.f32 1.5, %v361
      %v363 = vmul.f32 %v358, %v362
      %v364 = vmul.f32 %v357, %v363
      %vm365 = vcmp.eq.f32.partialorder %v357, inf
      %v366 = vsel %vm365, %v357, %v364
      %vm367 = vcmp.eq.f32.partialorder %v357, 0.0
      %v368 = vand.u32 %v357, 2147483648
      %v369 = vsel %vm367, %v368, %v366
      %v370 = vrcp.pop %v369
      %v371 = vmul.f32 %v369, %v370
      %v372 = vsub.f32 1.0, %v371
      %v373 = vmul.f32 %v370, %v372
      %v374 = vadd.f32 %v370, %v373
      %vm375 = vweird.f32 %v369
      %vm376 = vweird.f32 %v370
      %vm377 = vmor %vm375, %vm376
      %v378 = vsel %vm377, %v370, %v374
      %v379 = vand.u32 2147483647, %v369
      %vm380 = vcmp.eq.f32.partialorder %v379, 8.507059e+37
      %v381 = vand.u32 %v369, 2147483648
      %v382 = vor.u32 1.1754944e-38, %v381
      %v383 = vsel %vm380, %v382, %v378
      %v384 = vmul.f32 %v336, %v383
      %v385 = vmul.f32 %v349, %v384
      %v386 = vsub.f32 %v337, %v385
      %v387 = vld [vmem:[%s315] sm:$0xf]
      %v388 = vld [vmem:[%s315 + $0x4] sm:$0xf]
      %v389 = vld [vmem:[%s315 + $0x8] sm:$0xf]
      %v390 = vld [vmem:[%s315 + $0xc] sm:$0xf]
      %v391 = vld [vmem:[%s315 + $0x10] sm:$0xf]
      %v392 = vld [vmem:[%s315 + $0x14] sm:$0xf]
      %v393 = vld [vmem:[%s315 + $0x18] sm:$0xf]
      %v394 = vld [vmem:[%s315 + $0x1c] sm:$0xf]
      %v395 = vld [vmem:[%s315 + $0x20] sm:$0xf]
      %v396 = vld [vmem:[%s315 + $0x24] sm:$0xf]
      %v397 = vld [vmem:[%s315 + $0x28] sm:$0xf]
      %v398 = vld [vmem:[%s315 + $0x2c] sm:$0xf]
      %v399 = vld [vmem:[%s315 + $0x30] sm:$0xf]
      %v400 = vld [vmem:[%s315 + $0x34] sm:$0xf]
      %v401 = vld [vmem:[%s315 + $0x38] sm:$0xf]
      %v402 = vld [vmem:[%s315 + $0x3c] sm:$0xf]
      %v403 = vld [vmem:[%s315 + $0x40] sm:$0xf]
      %v404 = vld [vmem:[%s315 + $0x44] sm:$0xf]
      %v405 = vld [vmem:[%s315 + $0x48] sm:$0xf]
      %v406 = vld [vmem:[%s315 + $0x4c] sm:$0xf]
      %v407 = vld [vmem:[%s315 + $0x50] sm:$0xf]
      %v408 = vld [vmem:[%s315 + $0x54] sm:$0xf]
      %v409 = vld [vmem:[%s315 + $0x58] sm:$0xf]
      %v410 = vld [vmem:[%s315 + $0x5c] sm:$0xf]
      %v411 = vld [vmem:[%s315 + $0x60] sm:$0xf]
      %v412 = vld [vmem:[%s315 + $0x64] sm:$0xf]
      %v413 = vld [vmem:[%s315 + $0x68] sm:$0xf]
      %v414 = vld [vmem:[%s315 + $0x6c] sm:$0xf]
      %v415 = vld [vmem:[%s315 + $0x70] sm:$0xf]
      %v416 = vld [vmem:[%s315 + $0x74] sm:$0xf]
      %v417 = vld [vmem:[%s315 + $0x78] sm:$0xf]
      %v418 = vld [vmem:[%s315 + $0x7c] sm:$0xf]
      %v419 = vunpack.c.l.bf16 %v387
      %v420 = vunpack.c.l.bf16 %v388
      %v421 = vunpack.c.l.bf16 %v389
      %v422 = vunpack.c.l.bf16 %v390
      %v423 = vunpack.c.l.bf16 %v391
      %v424 = vunpack.c.l.bf16 %v392
      %v425 = vunpack.c.l.bf16 %v393
      %v426 = vunpack.c.l.bf16 %v394
      %v427 = vunpack.c.l.bf16 %v395
      %v428 = vunpack.c.l.bf16 %v396
      %v429 = vunpack.c.l.bf16 %v397
      %v430 = vunpack.c.l.bf16 %v398
      %v431 = vunpack.c.l.bf16 %v399
      %v432 = vunpack.c.l.bf16 %v400
      %v433 = vunpack.c.l.bf16 %v401
      %v434 = vunpack.c.l.bf16 %v402
      %v435 = vunpack.c.l.bf16 %v403
      %v436 = vunpack.c.l.bf16 %v404
      %v437 = vunpack.c.l.bf16 %v405
      %v438 = vunpack.c.l.bf16 %v406
      %v439 = vunpack.c.l.bf16 %v407
      %v440 = vunpack.c.l.bf16 %v408
      %v441 = vunpack.c.l.bf16 %v409
      %v442 = vunpack.c.l.bf16 %v410
      %v443 = vunpack.c.l.bf16 %v411
      %v444 = vunpack.c.l.bf16 %v412
      %v445 = vunpack.c.l.bf16 %v413
      %v446 = vunpack.c.l.bf16 %v414
      %v447 = vunpack.c.l.bf16 %v415
      %v448 = vunpack.c.l.bf16 %v416
      %v449 = vunpack.c.l.bf16 %v417
      %v450 = vunpack.c.l.bf16 %v418
      %v452 = vperm.slane %v384, 0
      %v454 = vmul.f32 %v419, %v452
      %v455 = vmul.f32 %v420, %v452
      %v456 = vmul.f32 %v421, %v452
      %v457 = vmul.f32 %v422, %v452
      %v458 = vmul.f32 %v423, %v452
      %v459 = vmul.f32 %v424, %v452
      %v460 = vmul.f32 %v425, %v452
      %v461 = vmul.f32 %v426, %v452
      %v462 = vmul.f32 %v427, %v452
      %v463 = vmul.f32 %v428, %v452
      %v464 = vmul.f32 %v429, %v452
      %v465 = vmul.f32 %v430, %v452
      %v466 = vmul.f32 %v431, %v452
      %v467 = vmul.f32 %v432, %v452
      %v468 = vmul.f32 %v433, %v452
      %v469 = vmul.f32 %v434, %v452
      %v470 = vmul.f32 %v435, %v452
      %v471 = vmul.f32 %v436, %v452
      %v472 = vmul.f32 %v437, %v452
      %v473 = vmul.f32 %v438, %v452
      %v474 = vmul.f32 %v439, %v452
      %v475 = vmul.f32 %v440, %v452
      %v476 = vmul.f32 %v441, %v452
      %v477 = vmul.f32 %v442, %v452
      %v478 = vmul.f32 %v443, %v452
      %v479 = vmul.f32 %v444, %v452
      %v480 = vmul.f32 %v445, %v452
      %v481 = vmul.f32 %v446, %v452
      %v482 = vmul.f32 %v447, %v452
      %v483 = vmul.f32 %v448, %v452
      %v484 = vmul.f32 %v449, %v452
      %v485 = vmul.f32 %v450, %v452
      %v487 = vperm.slane %v386, 0
      %v489 = vadd.f32 %v454, %v487
      %v490 = vadd.f32 %v455, %v487
      %v491 = vadd.f32 %v456, %v487
      %v492 = vadd.f32 %v457, %v487
      %v493 = vadd.f32 %v458, %v487
      %v494 = vadd.f32 %v459, %v487
      %v495 = vadd.f32 %v460, %v487
      %v496 = vadd.f32 %v461, %v487
      %v497 = vadd.f32 %v462, %v487
      %v498 = vadd.f32 %v463, %v487
      %v499 = vadd.f32 %v464, %v487
      %v500 = vadd.f32 %v465, %v487
      %v501 = vadd.f32 %v466, %v487
      %v502 = vadd.f32 %v467, %v487
      %v503 = vadd.f32 %v468, %v487
      %v504 = vadd.f32 %v469, %v487
      %v505 = vadd.f32 %v470, %v487
      %v506 = vadd.f32 %v471, %v487
      %v507 = vadd.f32 %v472, %v487
      %v508 = vadd.f32 %v473, %v487
      %v509 = vadd.f32 %v474, %v487
      %v510 = vadd.f32 %v475, %v487
      %v511 = vadd.f32 %v476, %v487
      %v512 = vadd.f32 %v477, %v487
      %v513 = vadd.f32 %v478, %v487
      %v514 = vadd.f32 %v479, %v487
      %v515 = vadd.f32 %v480, %v487
      %v516 = vadd.f32 %v481, %v487
      %v517 = vadd.f32 %v482, %v487
      %v518 = vadd.f32 %v483, %v487
      %v519 = vadd.f32 %v484, %v487
      %v520 = vadd.f32 %v485, %v487
      %v521 = vmax.f32 %v489, 0.0
      %v522 = vmax.f32 %v490, 0.0
      %v523 = vmax.f32 %v491, 0.0
      %v524 = vmax.f32 %v492, 0.0
      %v525 = vmax.f32 %v493, 0.0
      %v526 = vmax.f32 %v494, 0.0
      %v527 = vmax.f32 %v495, 0.0
      %v528 = vmax.f32 %v496, 0.0
      %v529 = vmax.f32 %v497, 0.0
      %v530 = vmax.f32 %v498, 0.0
      %v531 = vmax.f32 %v499, 0.0
      %v532 = vmax.f32 %v500, 0.0
      %v533 = vmax.f32 %v501, 0.0
      %v534 = vmax.f32 %v502, 0.0
      %v535 = vmax.f32 %v503, 0.0
      %v536 = vmax.f32 %v504, 0.0
      %v537 = vmax.f32 %v505, 0.0
      %v538 = vmax.f32 %v506, 0.0
      %v539 = vmax.f32 %v507, 0.0
      %v540 = vmax.f32 %v508, 0.0
      %v541 = vmax.f32 %v509, 0.0
      %v542 = vmax.f32 %v510, 0.0
      %v543 = vmax.f32 %v511, 0.0
      %v544 = vmax.f32 %v512, 0.0
      %v545 = vmax.f32 %v513, 0.0
      %v546 = vmax.f32 %v514, 0.0
      %v547 = vmax.f32 %v515, 0.0
      %v548 = vmax.f32 %v516, 0.0
      %v549 = vmax.f32 %v517, 0.0
      %v550 = vmax.f32 %v518, 0.0
      %v551 = vmax.f32 %v519, 0.0
      %v552 = vmax.f32 %v520, 0.0
      %v553 = vpack.c.bf16 %v522, %v521
      %v554 = vpack.c.bf16 %v524, %v523
      %v555 = vpack.c.bf16 %v526, %v525
      %v556 = vpack.c.bf16 %v528, %v527
      %v557 = vpack.c.bf16 %v530, %v529
      %v558 = vpack.c.bf16 %v532, %v531
      %v559 = vpack.c.bf16 %v534, %v533
      %v560 = vpack.c.bf16 %v536, %v535
      %v561 = vpack.c.bf16 %v538, %v537
      %v562 = vpack.c.bf16 %v540, %v539
      %v563 = vpack.c.bf16 %v542, %v541
      %v564 = vpack.c.bf16 %v544, %v543
      %v565 = vpack.c.bf16 %v546, %v545
      %v566 = vpack.c.bf16 %v548, %v547
      %v567 = vpack.c.bf16 %v550, %v549
      %v568 = vpack.c.bf16 %v552, %v551
      %v569 = vld [vmem:[%s1] sm:$0xff]
      %v570 = vld [vmem:[%s1 + $0x8] sm:$0xff]
      %v571 = vld [vmem:[%s1 + $0x10] sm:$0xff]
      %v572 = vld [vmem:[%s1 + $0x18] sm:$0xff]
      %v573 = vld [vmem:[%s1 + $0x20] sm:$0xff]
      %v574 = vld [vmem:[%s1 + $0x28] sm:$0xff]
      %v575 = vld [vmem:[%s1 + $0x30] sm:$0xff]
      %v576 = vld [vmem:[%s1 + $0x38] sm:$0xff]
      %v577 = vld [vmem:[%s1 + $0x40] sm:$0xff]
      %v578 = vld [vmem:[%s1 + $0x48] sm:$0xff]
      %v579 = vld [vmem:[%s1 + $0x50] sm:$0xff]
      %v580 = vld [vmem:[%s1 + $0x58] sm:$0xff]
      %v581 = vld [vmem:[%s1 + $0x60] sm:$0xff]
      %v582 = vld [vmem:[%s1 + $0x68] sm:$0xff]
      %v583 = vld [vmem:[%s1 + $0x70] sm:$0xff]
      %v584 = vld [vmem:[%s1 + $0x78] sm:$0xff]
      %v585 = vld [vmem:[%s1 + $0x80] sm:$0xff]
      %v586 = vld [vmem:[%s1 + $0x88] sm:$0xff]
      %v587 = vld [vmem:[%s1 + $0x90] sm:$0xff]
      %v588 = vld [vmem:[%s1 + $0x98] sm:$0xff]
      %v589 = vld [vmem:[%s1 + $0xa0] sm:$0xff]
      %v590 = vld [vmem:[%s1 + $0xa8] sm:$0xff]
      %v591 = vld [vmem:[%s1 + $0xb0] sm:$0xff]
      %v592 = vld [vmem:[%s1 + $0xb8] sm:$0xff]
      %v593 = vld [vmem:[%s1 + $0xc0] sm:$0xff]
      %v594 = vld [vmem:[%s1 + $0xc8] sm:$0xff]
      %v595 = vld [vmem:[%s1 + $0xd0] sm:$0xff]
      %v596 = vld [vmem:[%s1 + $0xd8] sm:$0xff]
      %v597 = vld [vmem:[%s1 + $0xe0] sm:$0xff]
      %v598 = vld [vmem:[%s1 + $0xe8] sm:$0xff]
      %v599 = vld [vmem:[%s1 + $0xf0] sm:$0xff]
      %v600 = vld [vmem:[%s1 + $0xf8] sm:$0xff]
      %v633 = vunpack.c.l.b16 %v569
      %v634 = vunpack.c.h.b16 %v569
      %v635 = vunpack.c.l.b16 %v570
      %v636 = vunpack.c.h.b16 %v570
      %v637 = vunpack.c.l.b16 %v571
      %v638 = vunpack.c.h.b16 %v571
      %v639 = vunpack.c.l.b16 %v572
      %v640 = vunpack.c.h.b16 %v572
      %v641 = vunpack.c.l.b16 %v573
      %v642 = vunpack.c.h.b16 %v573
      %v643 = vunpack.c.l.b16 %v574
      %v644 = vunpack.c.h.b16 %v574
      %v645 = vunpack.c.l.b16 %v575
      %v646 = vunpack.c.h.b16 %v575
      %v647 = vunpack.c.l.b16 %v576
      %v648 = vunpack.c.h.b16 %v576
      %v649 = vunpack.c.l.b16 %v577
      %v650 = vunpack.c.h.b16 %v577
      %v651 = vunpack.c.l.b16 %v578
      %v652 = vunpack.c.h.b16 %v578
      %v653 = vunpack.c.l.b16 %v579
      %v654 = vunpack.c.h.b16 %v579
      %v655 = vunpack.c.l.b16 %v580
      %v656 = vunpack.c.h.b16 %v580
      %v657 = vunpack.c.l.b16 %v581
      %v658 = vunpack.c.h.b16 %v581
      %v659 = vunpack.c.l.b16 %v582
      %v660 = vunpack.c.h.b16 %v582
      %v661 = vunpack.c.l.b16 %v583
      %v662 = vunpack.c.h.b16 %v583
      %v663 = vunpack.c.l.b16 %v584
      %v664 = vunpack.c.h.b16 %v584
      %v665 = vunpack.c.l.b16 %v585
      %v666 = vunpack.c.h.b16 %v585
      %v667 = vunpack.c.l.b16 %v586
      %v668 = vunpack.c.h.b16 %v586
      %v669 = vunpack.c.l.b16 %v587
      %v670 = vunpack.c.h.b16 %v587
      %v671 = vunpack.c.l.b16 %v588
      %v672 = vunpack.c.h.b16 %v588
      %v673 = vunpack.c.l.b16 %v589
      %v674 = vunpack.c.h.b16 %v589
      %v675 = vunpack.c.l.b16 %v590
      %v676 = vunpack.c.h.b16 %v590
      %v677 = vunpack.c.l.b16 %v591
      %v678 = vunpack.c.h.b16 %v591
      %v679 = vunpack.c.l.b16 %v592
      %v680 = vunpack.c.h.b16 %v592
      %v681 = vunpack.c.l.b16 %v593
      %v682 = vunpack.c.h.b16 %v593
      %v683 = vunpack.c.l.b16 %v594
      %v684 = vunpack.c.h.b16 %v594
      %v685 = vunpack.c.l.b16 %v595
      %v686 = vunpack.c.h.b16 %v595
      %v687 = vunpack.c.l.b16 %v596
      %v688 = vunpack.c.h.b16 %v596
      %v689 = vunpack.c.l.b16 %v597
      %v690 = vunpack.c.h.b16 %v597
      %v691 = vunpack.c.l.b16 %v598
      %v692 = vunpack.c.h.b16 %v598
      %v693 = vunpack.c.l.b16 %v599
      %v694 = vunpack.c.h.b16 %v599
      %v695 = vunpack.c.l.b16 %v600
      %v696 = vunpack.c.h.b16 %v600
      %v697 = vpack.c.b16 %v637, %v633
      %v698 = vpack.c.b16 %v638, %v634
      %v699 = vpack.c.b16 %v639, %v635
      %v700 = vpack.c.b16 %v640, %v636
      %v701 = vpack.c.b16 %v645, %v641
      %v702 = vpack.c.b16 %v646, %v642
      %v703 = vpack.c.b16 %v647, %v643
      %v704 = vpack.c.b16 %v648, %v644
      %v705 = vpack.c.b16 %v653, %v649
      %v706 = vpack.c.b16 %v654, %v650
      %v707 = vpack.c.b16 %v655, %v651
      %v708 = vpack.c.b16 %v656, %v652
      %v709 = vpack.c.b16 %v661, %v657
      %v710 = vpack.c.b16 %v662, %v658
      %v711 = vpack.c.b16 %v663, %v659
      %v712 = vpack.c.b16 %v664, %v660
      %v713 = vpack.c.b16 %v669, %v665
      %v714 = vpack.c.b16 %v670, %v666
      %v715 = vpack.c.b16 %v671, %v667
      %v716 = vpack.c.b16 %v672, %v668
      %v717 = vpack.c.b16 %v677, %v673
      %v718 = vpack.c.b16 %v678, %v674
      %v719 = vpack.c.b16 %v679, %v675
      %v720 = vpack.c.b16 %v680, %v676
      %v721 = vpack.c.b16 %v685, %v681
      %v722 = vpack.c.b16 %v686, %v682
      %v723 = vpack.c.b16 %v687, %v683
      %v724 = vpack.c.b16 %v688, %v684
      %v725 = vpack.c.b16 %v693, %v689
      %v726 = vpack.c.b16 %v694, %v690
      %v727 = vpack.c.b16 %v695, %v691
      %v728 = vpack.c.b16 %v696, %v692
      %761 = vmatpush.bf16.msra.mxu0 %v725
      %762 = vmatpush.bf16.msra.mxu0 %v721
      %763 = vmatpush.bf16.msra.mxu0 %v717
      %764 = vmatpush.bf16.msra.mxu0 %v713
      %765 = vmatpush.bf16.msra.mxu0 %v709
      %766 = vmatpush.bf16.msra.mxu0 %v705
      %767 = vmatpush.bf16.msra.mxu0 %v701
      %768 = vmatpush.bf16.msra.mxu0 %v697
      %769 = vmatmul.bf16.gmra.mxu0 %v553
      %v770 = vpop.f32.mrf.mxu0
      %v771 = vadd.f32 0.0, %v770
      %v772 = vpop.f32.mrf.mxu0
      %v773 = vadd.f32 0.0, %v772
      %774 = vmatmul.bf16.gmra.mxu0 %v554
      %v775 = vpop.f32.mrf.mxu0
      %v776 = vadd.f32 0.0, %v775
      %v777 = vpop.f32.mrf.mxu0
      %v778 = vadd.f32 0.0, %v777
      %779 = vmatmul.bf16.gmra.mxu0 %v555
      %v780 = vpop.f32.mrf.mxu0
      %v781 = vadd.f32 0.0, %v780
      %v782 = vpop.f32.mrf.mxu0
      %v783 = vadd.f32 0.0, %v782
      %784 = vmatmul.bf16.gmra.mxu0 %v556
      %v785 = vpop.f32.mrf.mxu0
      %v786 = vadd.f32 0.0, %v785
      %v787 = vpop.f32.mrf.mxu0
      %v788 = vadd.f32 0.0, %v787
      %789 = vmatmul.bf16.gmra.mxu0 %v557
      %v790 = vpop.f32.mrf.mxu0
      %v791 = vadd.f32 0.0, %v790
      %v792 = vpop.f32.mrf.mxu0
      %v793 = vadd.f32 0.0, %v792
      %794 = vmatmul.bf16.gmra.mxu0 %v558
      %v795 = vpop.f32.mrf.mxu0
      %v796 = vadd.f32 0.0, %v795
      %v797 = vpop.f32.mrf.mxu0
      %v798 = vadd.f32 0.0, %v797
      %799 = vmatmul.bf16.gmra.mxu0 %v559
      %v800 = vpop.f32.mrf.mxu0
      %v801 = vadd.f32 0.0, %v800
      %v802 = vpop.f32.mrf.mxu0
      %v803 = vadd.f32 0.0, %v802
      %804 = vmatmul.bf16.gmra.mxu0 %v560
      %v805 = vpop.f32.mrf.mxu0
      %v806 = vadd.f32 0.0, %v805
      %v807 = vpop.f32.mrf.mxu0
      %v808 = vadd.f32 0.0, %v807
      %809 = vmatmul.bf16.gmra.mxu0 %v561
      %v810 = vpop.f32.mrf.mxu0
      %v811 = vadd.f32 0.0, %v810
      %v812 = vpop.f32.mrf.mxu0
      %v813 = vadd.f32 0.0, %v812
      %814 = vmatmul.bf16.gmra.mxu0 %v562
      %v815 = vpop.f32.mrf.mxu0
      %v816 = vadd.f32 0.0, %v815
      %v817 = vpop.f32.mrf.mxu0
      %v818 = vadd.f32 0.0, %v817
      %819 = vmatmul.bf16.gmra.mxu0 %v563
      %v820 = vpop.f32.mrf.mxu0
      %v821 = vadd.f32 0.0, %v820
      %v822 = vpop.f32.mrf.mxu0
      %v823 = vadd.f32 0.0, %v822
      %824 = vmatmul.bf16.gmra.mxu0 %v564
      %v825 = vpop.f32.mrf.mxu0
      %v826 = vadd.f32 0.0, %v825
      %v827 = vpop.f32.mrf.mxu0
      %v828 = vadd.f32 0.0, %v827
      %829 = vmatmul.bf16.gmra.mxu0 %v565
      %v830 = vpop.f32.mrf.mxu0
      %v831 = vadd.f32 0.0, %v830
      %v832 = vpop.f32.mrf.mxu0
      %v833 = vadd.f32 0.0, %v832
      %834 = vmatmul.bf16.gmra.mxu0 %v566
      %v835 = vpop.f32.mrf.mxu0
      %v836 = vadd.f32 0.0, %v835
      %v837 = vpop.f32.mrf.mxu0
      %v838 = vadd.f32 0.0, %v837
      %839 = vmatmul.bf16.gmra.mxu0 %v567
      %v840 = vpop.f32.mrf.mxu0
      %v841 = vadd.f32 0.0, %v840
      %v842 = vpop.f32.mrf.mxu0
      %v843 = vadd.f32 0.0, %v842
      %844 = vmatmul.bf16.gmra.mxu0 %v568
      %v845 = vpop.f32.mrf.mxu0
      %v846 = vadd.f32 0.0, %v845
      %v847 = vpop.f32.mrf.mxu0
      %v848 = vadd.f32 0.0, %v847
      %849 = vdwg.mxu0
      %850 = vmatpush.bf16.msra.mxu0 %v726
      %851 = vmatpush.bf16.msra.mxu0 %v722
      %852 = vmatpush.bf16.msra.mxu0 %v718
      %853 = vmatpush.bf16.msra.mxu0 %v714
      %854 = vmatpush.bf16.msra.mxu0 %v710
      %855 = vmatpush.bf16.msra.mxu0 %v706
      %856 = vmatpush.bf16.msra.mxu0 %v702
      %857 = vmatpush.bf16.msra.mxu0 %v698
      %858 = vmatmul.bf16.gmra.mxu0 %v553
      %v859 = vpop.f32.mrf.mxu0
      %v860 = vadd.f32 0.0, %v859
      %v861 = vpop.f32.mrf.mxu0
      %v862 = vadd.f32 0.0, %v861
      %863 = vmatmul.bf16.gmra.mxu0 %v554
      %v864 = vpop.f32.mrf.mxu0
      %v865 = vadd.f32 0.0, %v864
      %v866 = vpop.f32.mrf.mxu0
      %v867 = vadd.f32 0.0, %v866
      %868 = vmatmul.bf16.gmra.mxu0 %v555
      %v869 = vpop.f32.mrf.mxu0
      %v870 = vadd.f32 0.0, %v869
      %v871 = vpop.f32.mrf.mxu0
      %v872 = vadd.f32 0.0, %v871
      %873 = vmatmul.bf16.gmra.mxu0 %v556
      %v874 = vpop.f32.mrf.mxu0
      %v875 = vadd.f32 0.0, %v874
      %v876 = vpop.f32.mrf.mxu0
      %v877 = vadd.f32 0.0, %v876
      %878 = vmatmul.bf16.gmra.mxu0 %v557
      %v879 = vpop.f32.mrf.mxu0
      %v880 = vadd.f32 0.0, %v879
      %v881 = vpop.f32.mrf.mxu0
      %v882 = vadd.f32 0.0, %v881
      %883 = vmatmul.bf16.gmra.mxu0 %v558
      %v884 = vpop.f32.mrf.mxu0
      %v885 = vadd.f32 0.0, %v884
      %v886 = vpop.f32.mrf.mxu0
      %v887 = vadd.f32 0.0, %v886
      %888 = vmatmul.bf16.gmra.mxu0 %v559
      %v889 = vpop.f32.mrf.mxu0
      %v890 = vadd.f32 0.0, %v889
      %v891 = vpop.f32.mrf.mxu0
      %v892 = vadd.f32 0.0, %v891
      %893 = vmatmul.bf16.gmra.mxu0 %v560
      %v894 = vpop.f32.mrf.mxu0
      %v895 = vadd.f32 0.0, %v894
      %v896 = vpop.f32.mrf.mxu0
      %v897 = vadd.f32 0.0, %v896
      %898 = vmatmul.bf16.gmra.mxu0 %v561
      %v899 = vpop.f32.mrf.mxu0
      %v900 = vadd.f32 0.0, %v899
      %v901 = vpop.f32.mrf.mxu0
      %v902 = vadd.f32 0.0, %v901
      %903 = vmatmul.bf16.gmra.mxu0 %v562
      %v904 = vpop.f32.mrf.mxu0
      %v905 = vadd.f32 0.0, %v904
      %v906 = vpop.f32.mrf.mxu0
      %v907 = vadd.f32 0.0, %v906
      %908 = vmatmul.bf16.gmra.mxu0 %v563
      %v909 = vpop.f32.mrf.mxu0
      %v910 = vadd.f32 0.0, %v909
      %v911 = vpop.f32.mrf.mxu0
      %v912 = vadd.f32 0.0, %v911
      %913 = vmatmul.bf16.gmra.mxu0 %v564
      %v914 = vpop.f32.mrf.mxu0
      %v915 = vadd.f32 0.0, %v914
      %v916 = vpop.f32.mrf.mxu0
      %v917 = vadd.f32 0.0, %v916
      %918 = vmatmul.bf16.gmra.mxu0 %v565
      %v919 = vpop.f32.mrf.mxu0
      %v920 = vadd.f32 0.0, %v919
      %v921 = vpop.f32.mrf.mxu0
      %v922 = vadd.f32 0.0, %v921
      %923 = vmatmul.bf16.gmra.mxu0 %v566
      %v924 = vpop.f32.mrf.mxu0
      %v925 = vadd.f32 0.0, %v924
      %v926 = vpop.f32.mrf.mxu0
      %v927 = vadd.f32 0.0, %v926
      %928 = vmatmul.bf16.gmra.mxu0 %v567
      %v929 = vpop.f32.mrf.mxu0
      %v930 = vadd.f32 0.0, %v929
      %v931 = vpop.f32.mrf.mxu0
      %v932 = vadd.f32 0.0, %v931
      %933 = vmatmul.bf16.gmra.mxu0 %v568
      %v934 = vpop.f32.mrf.mxu0
      %v935 = vadd.f32 0.0, %v934
      %v936 = vpop.f32.mrf.mxu0
      %v937 = vadd.f32 0.0, %v936
      %938 = vdwg.mxu0
      %939 = vmatpush.bf16.msra.mxu0 %v727
      %940 = vmatpush.bf16.msra.mxu0 %v723
      %941 = vmatpush.bf16.msra.mxu0 %v719
      %942 = vmatpush.bf16.msra.mxu0 %v715
      %943 = vmatpush.bf16.msra.mxu0 %v711
      %944 = vmatpush.bf16.msra.mxu0 %v707
      %945 = vmatpush.bf16.msra.mxu0 %v703
      %946 = vmatpush.bf16.msra.mxu0 %v699
      %947 = vmatmul.bf16.gmra.mxu0 %v553
      %v948 = vpop.f32.mrf.mxu0
      %v949 = vadd.f32 0.0, %v948
      %v950 = vpop.f32.mrf.mxu0
      %v951 = vadd.f32 0.0, %v950
      %952 = vmatmul.bf16.gmra.mxu0 %v554
      %v953 = vpop.f32.mrf.mxu0
      %v954 = vadd.f32 0.0, %v953
      %v955 = vpop.f32.mrf.mxu0
      %v956 = vadd.f32 0.0, %v955
      %957 = vmatmul.bf16.gmra.mxu0 %v555
      %v958 = vpop.f32.mrf.mxu0
      %v959 = vadd.f32 0.0, %v958
      %v960 = vpop.f32.mrf.mxu0
      %v961 = vadd.f32 0.0, %v960
      %962 = vmatmul.bf16.gmra.mxu0 %v556
      %v963 = vpop.f32.mrf.mxu0
      %v964 = vadd.f32 0.0, %v963
      %v965 = vpop.f32.mrf.mxu0
      %v966 = vadd.f32 0.0, %v965
      %967 = vmatmul.bf16.gmra.mxu0 %v557
      %v968 = vpop.f32.mrf.mxu0
      %v969 = vadd.f32 0.0, %v968
      %v970 = vpop.f32.mrf.mxu0
      %v971 = vadd.f32 0.0, %v970
      %972 = vmatmul.bf16.gmra.mxu0 %v558
      %v973 = vpop.f32.mrf.mxu0
      %v974 = vadd.f32 0.0, %v973
      %v975 = vpop.f32.mrf.mxu0
      %v976 = vadd.f32 0.0, %v975
      %977 = vmatmul.bf16.gmra.mxu0 %v559
      %v978 = vpop.f32.mrf.mxu0
      %v979 = vadd.f32 0.0, %v978
      %v980 = vpop.f32.mrf.mxu0
      %v981 = vadd.f32 0.0, %v980
      %982 = vmatmul.bf16.gmra.mxu0 %v560
      %v983 = vpop.f32.mrf.mxu0
      %v984 = vadd.f32 0.0, %v983
      %v985 = vpop.f32.mrf.mxu0
      %v986 = vadd.f32 0.0, %v985
      %987 = vmatmul.bf16.gmra.mxu0 %v561
      %v988 = vpop.f32.mrf.mxu0
      %v989 = vadd.f32 0.0, %v988
      %v990 = vpop.f32.mrf.mxu0
      %v991 = vadd.f32 0.0, %v990
      %992 = vmatmul.bf16.gmra.mxu0 %v562
      %v993 = vpop.f32.mrf.mxu0
      %v994 = vadd.f32 0.0, %v993
      %v995 = vpop.f32.mrf.mxu0
      %v996 = vadd.f32 0.0, %v995
      %997 = vmatmul.bf16.gmra.mxu0 %v563
      %v998 = vpop.f32.mrf.mxu0
      %v999 = vadd.f32 0.0, %v998
      %v1000 = vpop.f32.mrf.mxu0
      %v1001 = vadd.f32 0.0, %v1000
      %1002 = vmatmul.bf16.gmra.mxu0 %v564
      %v1003 = vpop.f32.mrf.mxu0
      %v1004 = vadd.f32 0.0, %v1003
      %v1005 = vpop.f32.mrf.mxu0
      %v1006 = vadd.f32 0.0, %v1005
      %1007 = vmatmul.bf16.gmra.mxu0 %v565
      %v1008 = vpop.f32.mrf.mxu0
      %v1009 = vadd.f32 0.0, %v1008
      %v1010 = vpop.f32.mrf.mxu0
      %v1011 = vadd.f32 0.0, %v1010
      %1012 = vmatmul.bf16.gmra.mxu0 %v566
      %v1013 = vpop.f32.mrf.mxu0
      %v1014 = vadd.f32 0.0, %v1013
      %v1015 = vpop.f32.mrf.mxu0
      %v1016 = vadd.f32 0.0, %v1015
      %1017 = vmatmul.bf16.gmra.mxu0 %v567
      %v1018 = vpop.f32.mrf.mxu0
      %v1019 = vadd.f32 0.0, %v1018
      %v1020 = vpop.f32.mrf.mxu0
      %v1021 = vadd.f32 0.0, %v1020
      %1022 = vmatmul.bf16.gmra.mxu0 %v568
      %v1023 = vpop.f32.mrf.mxu0
      %v1024 = vadd.f32 0.0, %v1023
      %v1025 = vpop.f32.mrf.mxu0
      %v1026 = vadd.f32 0.0, %v1025
      %1027 = vdwg.mxu0
      %1028 = vmatpush.bf16.msra.mxu0 %v728
      %1029 = vmatpush.bf16.msra.mxu0 %v724
      %1030 = vmatpush.bf16.msra.mxu0 %v720
      %1031 = vmatpush.bf16.msra.mxu0 %v716
      %1032 = vmatpush.bf16.msra.mxu0 %v712
      %1033 = vmatpush.bf16.msra.mxu0 %v708
      %1034 = vmatpush.bf16.msra.mxu0 %v704
      %1035 = vmatpush.bf16.msra.mxu0 %v700
      %1036 = vmatmul.bf16.gmra.mxu0 %v553
      %v1037 = vpop.f32.mrf.mxu0
      %v1038 = vadd.f32 0.0, %v1037
      %v1039 = vpop.f32.mrf.mxu0
      %v1040 = vadd.f32 0.0, %v1039
      %1041 = vmatmul.bf16.gmra.mxu0 %v554
      %v1042 = vpop.f32.mrf.mxu0
      %v1043 = vadd.f32 0.0, %v1042
      %v1044 = vpop.f32.mrf.mxu0
      %v1045 = vadd.f32 0.0, %v1044
      %1046 = vmatmul.bf16.gmra.mxu0 %v555
      %v1047 = vpop.f32.mrf.mxu0
      %v1048 = vadd.f32 0.0, %v1047
      %v1049 = vpop.f32.mrf.mxu0
      %v1050 = vadd.f32 0.0, %v1049
      %1051 = vmatmul.bf16.gmra.mxu0 %v556
      %v1052 = vpop.f32.mrf.mxu0
      %v1053 = vadd.f32 0.0, %v1052
      %v1054 = vpop.f32.mrf.mxu0
      %v1055 = vadd.f32 0.0, %v1054
      %1056 = vmatmul.bf16.gmra.mxu0 %v557
      %v1057 = vpop.f32.mrf.mxu0
      %v1058 = vadd.f32 0.0, %v1057
      %v1059 = vpop.f32.mrf.mxu0
      %v1060 = vadd.f32 0.0, %v1059
      %1061 = vmatmul.bf16.gmra.mxu0 %v558
      %v1062 = vpop.f32.mrf.mxu0
      %v1063 = vadd.f32 0.0, %v1062
      %v1064 = vpop.f32.mrf.mxu0
      %v1065 = vadd.f32 0.0, %v1064
      %1066 = vmatmul.bf16.gmra.mxu0 %v559
      %v1067 = vpop.f32.mrf.mxu0
      %v1068 = vadd.f32 0.0, %v1067
      %v1069 = vpop.f32.mrf.mxu0
      %v1070 = vadd.f32 0.0, %v1069
      %1071 = vmatmul.bf16.gmra.mxu0 %v560
      %v1072 = vpop.f32.mrf.mxu0
      %v1073 = vadd.f32 0.0, %v1072
      %v1074 = vpop.f32.mrf.mxu0
      %v1075 = vadd.f32 0.0, %v1074
      %1076 = vmatmul.bf16.gmra.mxu0 %v561
      %v1077 = vpop.f32.mrf.mxu0
      %v1078 = vadd.f32 0.0, %v1077
      %v1079 = vpop.f32.mrf.mxu0
      %v1080 = vadd.f32 0.0, %v1079
      %1081 = vmatmul.bf16.gmra.mxu0 %v562
      %v1082 = vpop.f32.mrf.mxu0
      %v1083 = vadd.f32 0.0, %v1082
      %v1084 = vpop.f32.mrf.mxu0
      %v1085 = vadd.f32 0.0, %v1084
      %1086 = vmatmul.bf16.gmra.mxu0 %v563
      %v1087 = vpop.f32.mrf.mxu0
      %v1088 = vadd.f32 0.0, %v1087
      %v1089 = vpop.f32.mrf.mxu0
      %v1090 = vadd.f32 0.0, %v1089
      %1091 = vmatmul.bf16.gmra.mxu0 %v564
      %v1092 = vpop.f32.mrf.mxu0
      %v1093 = vadd.f32 0.0, %v1092
      %v1094 = vpop.f32.mrf.mxu0
      %v1095 = vadd.f32 0.0, %v1094
      %1096 = vmatmul.bf16.gmra.mxu0 %v565
      %v1097 = vpop.f32.mrf.mxu0
      %v1098 = vadd.f32 0.0, %v1097
      %v1099 = vpop.f32.mrf.mxu0
      %v1100 = vadd.f32 0.0, %v1099
      %1101 = vmatmul.bf16.gmra.mxu0 %v566
      %v1102 = vpop.f32.mrf.mxu0
      %v1103 = vadd.f32 0.0, %v1102
      %v1104 = vpop.f32.mrf.mxu0
      %v1105 = vadd.f32 0.0, %v1104
      %1106 = vmatmul.bf16.gmra.mxu0 %v567
      %v1107 = vpop.f32.mrf.mxu0
      %v1108 = vadd.f32 0.0, %v1107
      %v1109 = vpop.f32.mrf.mxu0
      %v1110 = vadd.f32 0.0, %v1109
      %1111 = vmatmul.bf16.gmra.mxu0 %v568
      %v1112 = vpop.f32.mrf.mxu0
      %v1113 = vadd.f32 0.0, %v1112
      %v1114 = vpop.f32.mrf.mxu0
      %v1115 = vadd.f32 0.0, %v1114
      %1116 = vdwg.mxu0
      %v1117 = vpack.c.bf16 %v860, %v771
      %v1118 = vpack.c.bf16 %v1038, %v949
      %v1119 = vpack.c.bf16 %v862, %v773
      %v1120 = vpack.c.bf16 %v1040, %v951
      %v1121 = vpack.c.bf16 %v865, %v776
      %v1122 = vpack.c.bf16 %v1043, %v954
      %v1123 = vpack.c.bf16 %v867, %v778
      %v1124 = vpack.c.bf16 %v1045, %v956
      %v1125 = vpack.c.bf16 %v870, %v781
      %v1126 = vpack.c.bf16 %v1048, %v959
      %v1127 = vpack.c.bf16 %v872, %v783
      %v1128 = vpack.c.bf16 %v1050, %v961
      %v1129 = vpack.c.bf16 %v875, %v786
      %v1130 = vpack.c.bf16 %v1053, %v964
      %v1131 = vpack.c.bf16 %v877, %v788
      %v1132 = vpack.c.bf16 %v1055, %v966
      %v1133 = vpack.c.bf16 %v880, %v791
      %v1134 = vpack.c.bf16 %v1058, %v969
      %v1135 = vpack.c.bf16 %v882, %v793
      %v1136 = vpack.c.bf16 %v1060, %v971
      %v1137 = vpack.c.bf16 %v885, %v796
      %v1138 = vpack.c.bf16 %v1063, %v974
      %v1139 = vpack.c.bf16 %v887, %v798
      %v1140 = vpack.c.bf16 %v1065, %v976
      %v1141 = vpack.c.bf16 %v890, %v801
      %v1142 = vpack.c.bf16 %v1068, %v979
      %v1143 = vpack.c.bf16 %v892, %v803
      %v1144 = vpack.c.bf16 %v1070, %v981
      %v1145 = vpack.c.bf16 %v895, %v806
      %v1146 = vpack.c.bf16 %v1073, %v984
      %v1147 = vpack.c.bf16 %v897, %v808
      %v1148 = vpack.c.bf16 %v1075, %v986
      %v1149 = vpack.c.bf16 %v900, %v811
      %v1150 = vpack.c.bf16 %v1078, %v989
      %v1151 = vpack.c.bf16 %v902, %v813
      %v1152 = vpack.c.bf16 %v1080, %v991
      %v1153 = vpack.c.bf16 %v905, %v816
      %v1154 = vpack.c.bf16 %v1083, %v994
      %v1155 = vpack.c.bf16 %v907, %v818
      %v1156 = vpack.c.bf16 %v1085, %v996
      %v1157 = vpack.c.bf16 %v910, %v821
      %v1158 = vpack.c.bf16 %v1088, %v999
      %v1159 = vpack.c.bf16 %v912, %v823
      %v1160 = vpack.c.bf16 %v1090, %v1001
      %v1161 = vpack.c.bf16 %v915, %v826
      %v1162 = vpack.c.bf16 %v1093, %v1004
      %v1163 = vpack.c.bf16 %v917, %v828
      %v1164 = vpack.c.bf16 %v1095, %v1006
      %v1165 = vpack.c.bf16 %v920, %v831
      %v1166 = vpack.c.bf16 %v1098, %v1009
      %v1167 = vpack.c.bf16 %v922, %v833
      %v1168 = vpack.c.bf16 %v1100, %v1011
      %v1169 = vpack.c.bf16 %v925, %v836
      %v1170 = vpack.c.bf16 %v1103, %v1014
      %v1171 = vpack.c.bf16 %v927, %v838
      %v1172 = vpack.c.bf16 %v1105, %v1016
      %v1173 = vpack.c.bf16 %v930, %v841
      %v1174 = vpack.c.bf16 %v1108, %v1019
      %v1175 = vpack.c.bf16 %v932, %v843
      %v1176 = vpack.c.bf16 %v1110, %v1021
      %v1177 = vpack.c.bf16 %v935, %v846
      %v1178 = vpack.c.bf16 %v1113, %v1024
      %v1179 = vpack.c.bf16 %v937, %v848
      %v1180 = vpack.c.bf16 %v1115, %v1026
      %1181 = vst [vmem:[%s322] sm:$0xff] %v1117
      %1182 = vst [vmem:[%s322 + $0x8] sm:$0xff] %v1118
      %1183 = vst [vmem:[%s322 + $0x10] sm:$0xff] %v1119
      %1184 = vst [vmem:[%s322 + $0x18] sm:$0xff] %v1120
      %1185 = vst [vmem:[%s322 + $0x20] sm:$0xff] %v1121
      %1186 = vst [vmem:[%s322 + $0x28] sm:$0xff] %v1122
      %1187 = vst [vmem:[%s322 + $0x30] sm:$0xff] %v1123
      %1188 = vst [vmem:[%s322 + $0x38] sm:$0xff] %v1124
      %1189 = vst [vmem:[%s322 + $0x40] sm:$0xff] %v1125
      %1190 = vst [vmem:[%s322 + $0x48] sm:$0xff] %v1126
      %1191 = vst [vmem:[%s322 + $0x50] sm:$0xff] %v1127
      %1192 = vst [vmem:[%s322 + $0x58] sm:$0xff] %v1128
      %1193 = vst [vmem:[%s322 + $0x60] sm:$0xff] %v1129
      %1194 = vst [vmem:[%s322 + $0x68] sm:$0xff] %v1130
      %1195 = vst [vmem:[%s322 + $0x70] sm:$0xff] %v1131
      %1196 = vst [vmem:[%s322 + $0x78] sm:$0xff] %v1132
      %1197 = vst [vmem:[%s322 + $0x80] sm:$0xff] %v1133
      %1198 = vst [vmem:[%s322 + $0x88] sm:$0xff] %v1134
      %1199 = vst [vmem:[%s322 + $0x90] sm:$0xff] %v1135
      %1200 = vst [vmem:[%s322 + $0x98] sm:$0xff] %v1136
      %1201 = vst [vmem:[%s322 + $0xa0] sm:$0xff] %v1137
      %1202 = vst [vmem:[%s322 + $0xa8] sm:$0xff] %v1138
      %1203 = vst [vmem:[%s322 + $0xb0] sm:$0xff] %v1139
      %1204 = vst [vmem:[%s322 + $0xb8] sm:$0xff] %v1140
      %1205 = vst [vmem:[%s322 + $0xc0] sm:$0xff] %v1141
      %1206 = vst [vmem:[%s322 + $0xc8] sm:$0xff] %v1142
      %1207 = vst [vmem:[%s322 + $0xd0] sm:$0xff] %v1143
      %1208 = vst [vmem:[%s322 + $0xd8] sm:$0xff] %v1144
      %1209 = vst [vmem:[%s322 + $0xe0] sm:$0xff] %v1145
      %1210 = vst [vmem:[%s322 + $0xe8] sm:$0xff] %v1146
      %1211 = vst [vmem:[%s322 + $0xf0] sm:$0xff] %v1147
      %1212 = vst [vmem:[%s322 + $0xf8] sm:$0xff] %v1148
      %1213 = vst [vmem:[%s322 + $0x100] sm:$0xff] %v1149
      %1214 = vst [vmem:[%s322 + $0x108] sm:$0xff] %v1150
      %1215 = vst [vmem:[%s322 + $0x110] sm:$0xff] %v1151
      %1216 = vst [vmem:[%s322 + $0x118] sm:$0xff] %v1152
      %1217 = vst [vmem:[%s322 + $0x120] sm:$0xff] %v1153
      %1218 = vst [vmem:[%s322 + $0x128] sm:$0xff] %v1154
      %1219 = vst [vmem:[%s322 + $0x130] sm:$0xff] %v1155
      %1220 = vst [vmem:[%s322 + $0x138] sm:$0xff] %v1156
      %1221 = vst [vmem:[%s322 + $0x140] sm:$0xff] %v1157
      %1222 = vst [vmem:[%s322 + $0x148] sm:$0xff] %v1158
      %1223 = vst [vmem:[%s322 + $0x150] sm:$0xff] %v1159
      %1224 = vst [vmem:[%s322 + $0x158] sm:$0xff] %v1160
      %1225 = vst [vmem:[%s322 + $0x160] sm:$0xff] %v1161
      %1226 = vst [vmem:[%s322 + $0x168] sm:$0xff] %v1162
      %1227 = vst [vmem:[%s322 + $0x170] sm:$0xff] %v1163
      %1228 = vst [vmem:[%s322 + $0x178] sm:$0xff] %v1164
      %1229 = vst [vmem:[%s322 + $0x180] sm:$0xff] %v1165
      %1230 = vst [vmem:[%s322 + $0x188] sm:$0xff] %v1166
      %1231 = vst [vmem:[%s322 + $0x190] sm:$0xff] %v1167
      %1232 = vst [vmem:[%s322 + $0x198] sm:$0xff] %v1168
      %1233 = vst [vmem:[%s322 + $0x1a0] sm:$0xff] %v1169
      %1234 = vst [vmem:[%s322 + $0x1a8] sm:$0xff] %v1170
      %1235 = vst [vmem:[%s322 + $0x1b0] sm:$0xff] %v1171
      %1236 = vst [vmem:[%s322 + $0x1b8] sm:$0xff] %v1172
      %1237 = vst [vmem:[%s322 + $0x1c0] sm:$0xff] %v1173
      %1238 = vst [vmem:[%s322 + $0x1c8] sm:$0xff] %v1174
      %1239 = vst [vmem:[%s322 + $0x1d0] sm:$0xff] %v1175
      %1240 = vst [vmem:[%s322 + $0x1d8] sm:$0xff] %v1176
      %1241 = vst [vmem:[%s322 + $0x1e0] sm:$0xff] %v1177
      %1242 = vst [vmem:[%s322 + $0x1e8] sm:$0xff] %v1178
      %1243 = vst [vmem:[%s322 + $0x1f0] sm:$0xff] %v1179
      %1244 = vst [vmem:[%s322 + $0x1f8] sm:$0xff] %v1180
      %v1245 = vadd.f32 %v771, %v773
      %v1246 = vadd.f32 %v1245, %v776
      %v1247 = vadd.f32 %v1246, %v778
      %v1248 = vadd.f32 %v1247, %v781
      %v1249 = vadd.f32 %v1248, %v783
      %v1250 = vadd.f32 %v1249, %v786
      %v1251 = vadd.f32 %v1250, %v788
      %v1252 = vadd.f32 %v1251, %v791
      %v1253 = vadd.f32 %v1252, %v793
      %v1254 = vadd.f32 %v1253, %v796
      %v1255 = vadd.f32 %v1254, %v798
      %v1256 = vadd.f32 %v1255, %v801
      %v1257 = vadd.f32 %v1256, %v803
      %v1258 = vadd.f32 %v1257, %v806
      %v1259 = vadd.f32 %v1258, %v808
      %v1260 = vadd.f32 %v1259, %v811
      %v1261 = vadd.f32 %v1260, %v813
      %v1262 = vadd.f32 %v1261, %v816
      %v1263 = vadd.f32 %v1262, %v818
      %v1264 = vadd.f32 %v1263, %v821
      %v1265 = vadd.f32 %v1264, %v823
      %v1266 = vadd.f32 %v1265, %v826
      %v1267 = vadd.f32 %v1266, %v828
      %v1268 = vadd.f32 %v1267, %v831
      %v1269 = vadd.f32 %v1268, %v833
      %v1270 = vadd.f32 %v1269, %v836
      %v1271 = vadd.f32 %v1270, %v838
      %v1272 = vadd.f32 %v1271, %v841
      %v1273 = vadd.f32 %v1272, %v843
      %v1274 = vadd.f32 %v1273, %v846
      %v1275 = vadd.f32 %v1274, %v848
      %v1276 = vrot.slane %v1275, 4
      %v1277 = vadd.f32 %v1275, %v1276
      %v1278 = vrot.slane %v1277, 2
      %v1279 = vadd.f32 %v1277, %v1278
      %v1280 = vrot.slane %v1279, 1
      %v1281 = vadd.f32 %v1279, %v1280
      %v1282 = vadd.f32 %v860, %v862
      %v1283 = vadd.f32 %v1282, %v865
      %v1284 = vadd.f32 %v1283, %v867
      %v1285 = vadd.f32 %v1284, %v870
      %v1286 = vadd.f32 %v1285, %v872
      %v1287 = vadd.f32 %v1286, %v875
      %v1288 = vadd.f32 %v1287, %v877
      %v1289 = vadd.f32 %v1288, %v880
      %v1290 = vadd.f32 %v1289, %v882
      %v1291 = vadd.f32 %v1290, %v885
      %v1292 = vadd.f32 %v1291, %v887
      %v1293 = vadd.f32 %v1292, %v890
      %v1294 = vadd.f32 %v1293, %v892
      %v1295 = vadd.f32 %v1294, %v895
      %v1296 = vadd.f32 %v1295, %v897
      %v1297 = vadd.f32 %v1296, %v900
      %v1298 = vadd.f32 %v1297, %v902
      %v1299 = vadd.f32 %v1298, %v905
      %v1300 = vadd.f32 %v1299, %v907
      %v1301 = vadd.f32 %v1300, %v910
      %v1302 = vadd.f32 %v1301, %v912
      %v1303 = vadd.f32 %v1302, %v915
      %v1304 = vadd.f32 %v1303, %v917
      %v1305 = vadd.f32 %v1304, %v920
      %v1306 = vadd.f32 %v1305, %v922
      %v1307 = vadd.f32 %v1306, %v925
      %v1308 = vadd.f32 %v1307, %v927
      %v1309 = vadd.f32 %v1308, %v930
      %v1310 = vadd.f32 %v1309, %v932
      %v1311 = vadd.f32 %v1310, %v935
      %v1312 = vadd.f32 %v1311, %v937
      %v1313 = vrot.slane %v1312, 4
      %v1314 = vadd.f32 %v1312, %v1313
      %v1315 = vrot.slane %v1314, 2
      %v1316 = vadd.f32 %v1314, %v1315
      %v1317 = vrot.slane %v1316, 1
      %v1318 = vadd.f32 %v1316, %v1317
      %v1319 = vadd.f32 %v949, %v951
      %v1320 = vadd.f32 %v1319, %v954
      %v1321 = vadd.f32 %v1320, %v956
      %v1322 = vadd.f32 %v1321, %v959
      %v1323 = vadd.f32 %v1322, %v961
      %v1324 = vadd.f32 %v1323, %v964
      %v1325 = vadd.f32 %v1324, %v966
      %v1326 = vadd.f32 %v1325, %v969
      %v1327 = vadd.f32 %v1326, %v971
      %v1328 = vadd.f32 %v1327, %v974
      %v1329 = vadd.f32 %v1328, %v976
      %v1330 = vadd.f32 %v1329, %v979
      %v1331 = vadd.f32 %v1330, %v981
      %v1332 = vadd.f32 %v1331, %v984
      %v1333 = vadd.f32 %v1332, %v986
      %v1334 = vadd.f32 %v1333, %v989
      %v1335 = vadd.f32 %v1334, %v991
      %v1336 = vadd.f32 %v1335, %v994
      %v1337 = vadd.f32 %v1336, %v996
      %v1338 = vadd.f32 %v1337, %v999
      %v1339 = vadd.f32 %v1338, %v1001
      %v1340 = vadd.f32 %v1339, %v1004
      %v1341 = vadd.f32 %v1340, %v1006
      %v1342 = vadd.f32 %v1341, %v1009
      %v1343 = vadd.f32 %v1342, %v1011
      %v1344 = vadd.f32 %v1343, %v1014
      %v1345 = vadd.f32 %v1344, %v1016
      %v1346 = vadd.f32 %v1345, %v1019
      %v1347 = vadd.f32 %v1346, %v1021
      %v1348 = vadd.f32 %v1347, %v1024
      %v1349 = vadd.f32 %v1348, %v1026
      %v1350 = vrot.slane %v1349, 4
      %v1351 = vadd.f32 %v1349, %v1350
      %v1352 = vrot.slane %v1351, 2
      %v1353 = vadd.f32 %v1351, %v1352
      %v1354 = vrot.slane %v1353, 1
      %v1355 = vadd.f32 %v1353, %v1354
      %v1356 = vadd.f32 %v1038, %v1040
      %v1357 = vadd.f32 %v1356, %v1043
      %v1358 = vadd.f32 %v1357, %v1045
      %v1359 = vadd.f32 %v1358, %v1048
      %v1360 = vadd.f32 %v1359, %v1050
      %v1361 = vadd.f32 %v1360, %v1053
      %v1362 = vadd.f32 %v1361, %v1055
      %v1363 = vadd.f32 %v1362, %v1058
      %v1364 = vadd.f32 %v1363, %v1060
      %v1365 = vadd.f32 %v1364, %v1063
      %v1366 = vadd.f32 %v1365, %v1065
      %v1367 = vadd.f32 %v1366, %v1068
      %v1368 = vadd.f32 %v1367, %v1070
      %v1369 = vadd.f32 %v1368, %v1073
      %v1370 = vadd.f32 %v1369, %v1075
      %v1371 = vadd.f32 %v1370, %v1078
      %v1372 = vadd.f32 %v1371, %v1080
      %v1373 = vadd.f32 %v1372, %v1083
      %v1374 = vadd.f32 %v1373, %v1085
      %v1375 = vadd.f32 %v1374, %v1088
      %v1376 = vadd.f32 %v1375, %v1090
      %v1377 = vadd.f32 %v1376, %v1093
      %v1378 = vadd.f32 %v1377, %v1095
      %v1379 = vadd.f32 %v1378, %v1098
      %v1380 = vadd.f32 %v1379, %v1100
      %v1381 = vadd.f32 %v1380, %v1103
      %v1382 = vadd.f32 %v1381, %v1105
      %v1383 = vadd.f32 %v1382, %v1108
      %v1384 = vadd.f32 %v1383, %v1110
      %v1385 = vadd.f32 %v1384, %v1113
      %v1386 = vadd.f32 %v1385, %v1115
      %v1387 = vrot.slane %v1386, 4
      %v1388 = vadd.f32 %v1386, %v1387
      %v1389 = vrot.slane %v1388, 2
      %v1390 = vadd.f32 %v1388, %v1389
      %v1391 = vrot.slane %v1390, 1
      %v1392 = vadd.f32 %v1390, %v1391
      %v1397 = vrot.slane %v1318, 7
      %v1398 = vrot.slane %v1355, 6
      %v1399 = vrot.slane %v1392, 5
      %v1400 = vsel %vm338, %v1281, %v1397
      %vm1401 = vcmask 1042434
      %v1402 = vsel %vm1401, %v1398, %v1399
      %vm1403 = vcmask 1041408
      %v1404 = vsel %vm1403, %v1400, %v1402
      %v1406 = vlaneseq
      %vm1407 = vcmp.ge.s32.totalorder %v1406, 0
      %vm1408 = vcmp.lt.s32.totalorder %v1406, 512
      %vm1409 = vmand %vm1407, %vm1408
      %1410 = vst.msk [vmem:[%s327] sm:$0xf] %vm1409, %v1404
      %v1411 = vmul.f32 %v771, %v771
      %v1412 = vmul.f32 %v860, %v860
      %v1413 = vmul.f32 %v949, %v949
      %v1414 = vmul.f32 %v1038, %v1038
      %v1415 = vmul.f32 %v773, %v773
      %v1416 = vmul.f32 %v862, %v862
      %v1417 = vmul.f32 %v951, %v951
      %v1418 = vmul.f32 %v1040, %v1040
      %v1419 = vmul.f32 %v776, %v776
      %v1420 = vmul.f32 %v865, %v865
      %v1421 = vmul.f32 %v954, %v954
      %v1422 = vmul.f32 %v1043, %v1043
      %v1423 = vmul.f32 %v778, %v778
      %v1424 = vmul.f32 %v867, %v867
      %v1425 = vmul.f32 %v956, %v956
      %v1426 = vmul.f32 %v1045, %v1045
      %v1427 = vmul.f32 %v781, %v781
      %v1428 = vmul.f32 %v870, %v870
      %v1429 = vmul.f32 %v959, %v959
      %v1430 = vmul.f32 %v1048, %v1048
      %v1431 = vmul.f32 %v783, %v783
      %v1432 = vmul.f32 %v872, %v872
      %v1433 = vmul.f32 %v961, %v961
      %v1434 = vmul.f32 %v1050, %v1050
      %v1435 = vmul.f32 %v786, %v786
      %v1436 = vmul.f32 %v875, %v875
      %v1437 = vmul.f32 %v964, %v964
      %v1438 = vmul.f32 %v1053, %v1053
      %v1439 = vmul.f32 %v788, %v788
      %v1440 = vmul.f32 %v877, %v877
      %v1441 = vmul.f32 %v966, %v966
      %v1442 = vmul.f32 %v1055, %v1055
      %v1443 = vmul.f32 %v791, %v791
      %v1444 = vmul.f32 %v880, %v880
      %v1445 = vmul.f32 %v969, %v969
      %v1446 = vmul.f32 %v1058, %v1058
      %v1447 = vmul.f32 %v793, %v793
      %v1448 = vmul.f32 %v882, %v882
      %v1449 = vmul.f32 %v971, %v971
      %v1450 = vmul.f32 %v1060, %v1060
      %v1451 = vmul.f32 %v796, %v796
      %v1452 = vmul.f32 %v885, %v885
      %v1453 = vmul.f32 %v974, %v974
      %v1454 = vmul.f32 %v1063, %v1063
      %v1455 = vmul.f32 %v798, %v798
      %v1456 = vmul.f32 %v887, %v887
      %v1457 = vmul.f32 %v976, %v976
      %v1458 = vmul.f32 %v1065, %v1065
      %v1459 = vmul.f32 %v801, %v801
      %v1460 = vmul.f32 %v890, %v890
      %v1461 = vmul.f32 %v979, %v979
      %v1462 = vmul.f32 %v1068, %v1068
      %v1463 = vmul.f32 %v803, %v803
      %v1464 = vmul.f32 %v892, %v892
      %v1465 = vmul.f32 %v981, %v981
      %v1466 = vmul.f32 %v1070, %v1070
      %v1467 = vmul.f32 %v806, %v806
      %v1468 = vmul.f32 %v895, %v895
      %v1469 = vmul.f32 %v984, %v984
      %v1470 = vmul.f32 %v1073, %v1073
      %v1471 = vmul.f32 %v808, %v808
      %v1472 = vmul.f32 %v897, %v897
      %v1473 = vmul.f32 %v986, %v986
      %v1474 = vmul.f32 %v1075, %v1075
      %v1475 = vmul.f32 %v811, %v811
      %v1476 = vmul.f32 %v900, %v900
      %v1477 = vmul.f32 %v989, %v989
      %v1478 = vmul.f32 %v1078, %v1078
      %v1479 = vmul.f32 %v813, %v813
      %v1480 = vmul.f32 %v902, %v902
      %v1481 = vmul.f32 %v991, %v991
      %v1482 = vmul.f32 %v1080, %v1080
      %v1483 = vmul.f32 %v816, %v816
      %v1484 = vmul.f32 %v905, %v905
      %v1485 = vmul.f32 %v994, %v994
      %v1486 = vmul.f32 %v1083, %v1083
      %v1487 = vmul.f32 %v818, %v818
      %v1488 = vmul.f32 %v907, %v907
      %v1489 = vmul.f32 %v996, %v996
      %v1490 = vmul.f32 %v1085, %v1085
      %v1491 = vmul.f32 %v821, %v821
      %v1492 = vmul.f32 %v910, %v910
      %v1493 = vmul.f32 %v999, %v999
      %v1494 = vmul.f32 %v1088, %v1088
      %v1495 = vmul.f32 %v823, %v823
      %v1496 = vmul.f32 %v912, %v912
      %v1497 = vmul.f32 %v1001, %v1001
      %v1498 = vmul.f32 %v1090, %v1090
      %v1499 = vmul.f32 %v826, %v826
      %v1500 = vmul.f32 %v915, %v915
      %v1501 = vmul.f32 %v1004, %v1004
      %v1502 = vmul.f32 %v1093, %v1093
      %v1503 = vmul.f32 %v828, %v828
      %v1504 = vmul.f32 %v917, %v917
      %v1505 = vmul.f32 %v1006, %v1006
      %v1506 = vmul.f32 %v1095, %v1095
      %v1507 = vmul.f32 %v831, %v831
      %v1508 = vmul.f32 %v920, %v920
      %v1509 = vmul.f32 %v1009, %v1009
      %v1510 = vmul.f32 %v1098, %v1098
      %v1511 = vmul.f32 %v833, %v833
      %v1512 = vmul.f32 %v922, %v922
      %v1513 = vmul.f32 %v1011, %v1011
      %v1514 = vmul.f32 %v1100, %v1100
      %v1515 = vmul.f32 %v836, %v836
      %v1516 = vmul.f32 %v925, %v925
      %v1517 = vmul.f32 %v1014, %v1014
      %v1518 = vmul.f32 %v1103, %v1103
      %v1519 = vmul.f32 %v838, %v838
      %v1520 = vmul.f32 %v927, %v927
      %v1521 = vmul.f32 %v1016, %v1016
      %v1522 = vmul.f32 %v1105, %v1105
      %v1523 = vmul.f32 %v841, %v841
      %v1524 = vmul.f32 %v930, %v930
      %v1525 = vmul.f32 %v1019, %v1019
      %v1526 = vmul.f32 %v1108, %v1108
      %v1527 = vmul.f32 %v843, %v843
      %v1528 = vmul.f32 %v932, %v932
      %v1529 = vmul.f32 %v1021, %v1021
      %v1530 = vmul.f32 %v1110, %v1110
      %v1531 = vmul.f32 %v846, %v846
      %v1532 = vmul.f32 %v935, %v935
      %v1533 = vmul.f32 %v1024, %v1024
      %v1534 = vmul.f32 %v1113, %v1113
      %v1535 = vmul.f32 %v848, %v848
      %v1536 = vmul.f32 %v937, %v937
      %v1537 = vmul.f32 %v1026, %v1026
      %v1538 = vmul.f32 %v1115, %v1115
      %v1539 = vadd.f32 %v1411, %v1415
      %v1540 = vadd.f32 %v1539, %v1419
      %v1541 = vadd.f32 %v1540, %v1423
      %v1542 = vadd.f32 %v1541, %v1427
      %v1543 = vadd.f32 %v1542, %v1431
      %v1544 = vadd.f32 %v1543, %v1435
      %v1545 = vadd.f32 %v1544, %v1439
      %v1546 = vadd.f32 %v1545, %v1443
      %v1547 = vadd.f32 %v1546, %v1447
      %v1548 = vadd.f32 %v1547, %v1451
      %v1549 = vadd.f32 %v1548, %v1455
      %v1550 = vadd.f32 %v1549, %v1459
      %v1551 = vadd.f32 %v1550, %v1463
      %v1552 = vadd.f32 %v1551, %v1467
      %v1553 = vadd.f32 %v1552, %v1471
      %v1554 = vadd.f32 %v1553, %v1475
      %v1555 = vadd.f32 %v1554, %v1479
      %v1556 = vadd.f32 %v1555, %v1483
      %v1557 = vadd.f32 %v1556, %v1487
      %v1558 = vadd.f32 %v1557, %v1491
      %v1559 = vadd.f32 %v1558, %v1495
      %v1560 = vadd.f32 %v1559, %v1499
      %v1561 = vadd.f32 %v1560, %v1503
      %v1562 = vadd.f32 %v1561, %v1507
      %v1563 = vadd.f32 %v1562, %v1511
      %v1564 = vadd.f32 %v1563, %v1515
      %v1565 = vadd.f32 %v1564, %v1519
      %v1566 = vadd.f32 %v1565, %v1523
      %v1567 = vadd.f32 %v1566, %v1527
      %v1568 = vadd.f32 %v1567, %v1531
      %v1569 = vadd.f32 %v1568, %v1535
      %v1570 = vrot.slane %v1569, 4
      %v1571 = vadd.f32 %v1569, %v1570
      %v1572 = vrot.slane %v1571, 2
      %v1573 = vadd.f32 %v1571, %v1572
      %v1574 = vrot.slane %v1573, 1
      %v1575 = vadd.f32 %v1573, %v1574
      %v1576 = vadd.f32 %v1412, %v1416
      %v1577 = vadd.f32 %v1576, %v1420
      %v1578 = vadd.f32 %v1577, %v1424
      %v1579 = vadd.f32 %v1578, %v1428
      %v1580 = vadd.f32 %v1579, %v1432
      %v1581 = vadd.f32 %v1580, %v1436
      %v1582 = vadd.f32 %v1581, %v1440
      %v1583 = vadd.f32 %v1582, %v1444
      %v1584 = vadd.f32 %v1583, %v1448
      %v1585 = vadd.f32 %v1584, %v1452
      %v1586 = vadd.f32 %v1585, %v1456
      %v1587 = vadd.f32 %v1586, %v1460
      %v1588 = vadd.f32 %v1587, %v1464
      %v1589 = vadd.f32 %v1588, %v1468
      %v1590 = vadd.f32 %v1589, %v1472
      %v1591 = vadd.f32 %v1590, %v1476
      %v1592 = vadd.f32 %v1591, %v1480
      %v1593 = vadd.f32 %v1592, %v1484
      %v1594 = vadd.f32 %v1593, %v1488
      %v1595 = vadd.f32 %v1594, %v1492
      %v1596 = vadd.f32 %v1595, %v1496
      %v1597 = vadd.f32 %v1596, %v1500
      %v1598 = vadd.f32 %v1597, %v1504
      %v1599 = vadd.f32 %v1598, %v1508
      %v1600 = vadd.f32 %v1599, %v1512
      %v1601 = vadd.f32 %v1600, %v1516
      %v1602 = vadd.f32 %v1601, %v1520
      %v1603 = vadd.f32 %v1602, %v1524
      %v1604 = vadd.f32 %v1603, %v1528
      %v1605 = vadd.f32 %v1604, %v1532
      %v1606 = vadd.f32 %v1605, %v1536
      %v1607 = vrot.slane %v1606, 4
      %v1608 = vadd.f32 %v1606, %v1607
      %v1609 = vrot.slane %v1608, 2
      %v1610 = vadd.f32 %v1608, %v1609
      %v1611 = vrot.slane %v1610, 1
      %v1612 = vadd.f32 %v1610, %v1611
      %v1613 = vadd.f32 %v1413, %v1417
      %v1614 = vadd.f32 %v1613, %v1421
      %v1615 = vadd.f32 %v1614, %v1425
      %v1616 = vadd.f32 %v1615, %v1429
      %v1617 = vadd.f32 %v1616, %v1433
      %v1618 = vadd.f32 %v1617, %v1437
      %v1619 = vadd.f32 %v1618, %v1441
      %v1620 = vadd.f32 %v1619, %v1445
      %v1621 = vadd.f32 %v1620, %v1449
      %v1622 = vadd.f32 %v1621, %v1453
      %v1623 = vadd.f32 %v1622, %v1457
      %v1624 = vadd.f32 %v1623, %v1461
      %v1625 = vadd.f32 %v1624, %v1465
      %v1626 = vadd.f32 %v1625, %v1469
      %v1627 = vadd.f32 %v1626, %v1473
      %v1628 = vadd.f32 %v1627, %v1477
      %v1629 = vadd.f32 %v1628, %v1481
      %v1630 = vadd.f32 %v1629, %v1485
      %v1631 = vadd.f32 %v1630, %v1489
      %v1632 = vadd.f32 %v1631, %v1493
      %v1633 = vadd.f32 %v1632, %v1497
      %v1634 = vadd.f32 %v1633, %v1501
      %v1635 = vadd.f32 %v1634, %v1505
      %v1636 = vadd.f32 %v1635, %v1509
      %v1637 = vadd.f32 %v1636, %v1513
      %v1638 = vadd.f32 %v1637, %v1517
      %v1639 = vadd.f32 %v1638, %v1521
      %v1640 = vadd.f32 %v1639, %v1525
      %v1641 = vadd.f32 %v1640, %v1529
      %v1642 = vadd.f32 %v1641, %v1533
      %v1643 = vadd.f32 %v1642, %v1537
      %v1644 = vrot.slane %v1643, 4
      %v1645 = vadd.f32 %v1643, %v1644
      %v1646 = vrot.slane %v1645, 2
      %v1647 = vadd.f32 %v1645, %v1646
      %v1648 = vrot.slane %v1647, 1
      %v1649 = vadd.f32 %v1647, %v1648
      %v1650 = vadd.f32 %v1414, %v1418
      %v1651 = vadd.f32 %v1650, %v1422
      %v1652 = vadd.f32 %v1651, %v1426
      %v1653 = vadd.f32 %v1652, %v1430
      %v1654 = vadd.f32 %v1653, %v1434
      %v1655 = vadd.f32 %v1654, %v1438
      %v1656 = vadd.f32 %v1655, %v1442
      %v1657 = vadd.f32 %v1656, %v1446
      %v1658 = vadd.f32 %v1657, %v1450
      %v1659 = vadd.f32 %v1658, %v1454
      %v1660 = vadd.f32 %v1659, %v1458
      %v1661 = vadd.f32 %v1660, %v1462
      %v1662 = vadd.f32 %v1661, %v1466
      %v1663 = vadd.f32 %v1662, %v1470
      %v1664 = vadd.f32 %v1663, %v1474
      %v1665 = vadd.f32 %v1664, %v1478
      %v1666 = vadd.f32 %v1665, %v1482
      %v1667 = vadd.f32 %v1666, %v1486
      %v1668 = vadd.f32 %v1667, %v1490
      %v1669 = vadd.f32 %v1668, %v1494
      %v1670 = vadd.f32 %v1669, %v1498
      %v1671 = vadd.f32 %v1670, %v1502
      %v1672 = vadd.f32 %v1671, %v1506
      %v1673 = vadd.f32 %v1672, %v1510
      %v1674 = vadd.f32 %v1673, %v1514
      %v1675 = vadd.f32 %v1674, %v1518
      %v1676 = vadd.f32 %v1675, %v1522
      %v1677 = vadd.f32 %v1676, %v1526
      %v1678 = vadd.f32 %v1677, %v1530
      %v1679 = vadd.f32 %v1678, %v1534
      %v1680 = vadd.f32 %v1679, %v1538
      %v1681 = vrot.slane %v1680, 4
      %v1682 = vadd.f32 %v1680, %v1681
      %v1683 = vrot.slane %v1682, 2
      %v1684 = vadd.f32 %v1682, %v1683
      %v1685 = vrot.slane %v1684, 1
      %v1686 = vadd.f32 %v1684, %v1685
      %v1691 = vrot.slane %v1612, 7
      %v1692 = vrot.slane %v1649, 6
      %v1693 = vrot.slane %v1686, 5
      %v1694 = vsel %vm338, %v1575, %v1691
      %v1695 = vsel %vm1401, %v1692, %v1693
      %v1696 = vsel %vm1403, %v1694, %v1695
      %1698 = vst.msk [vmem:[%s331] sm:$0xf] %vm1409, %v1696
      %s1699 = smul.u32 32, %s20
      %p1700 = scmp.lt.s32.totalorder %s1699, 63
      %s1701 = scalar_select %p1700, %s1699, 63
      %s1702 = smul.addr %s1701, 4
      %s1703 = smul.addr %s1702, 4
      %s1704 = scalar_lea.vmem %s6, %s1703
      %p1705 = scmp.lt.s32.totalorder %s20, 1
      %s1706 = scalar_select %p1705, %s20, 1
      %s1707 = smul.addr %s1706, 4
      %s1708 = scalar_lea.vmem %s7, %s1707
      %p1709 = scmp.lt.s32.totalorder %s20, 1
      %s1710 = scalar_select %p1709, %s20, 1
      %s1711 = smul.addr %s1710, 4
      %s1712 = scalar_lea.vmem %s8, %s1711
      // Predicated region
      $region45: #{bottleneck_forward.6} parent=43 // pred_check
        %p1713 = pneg %p169
      $region46: #{bottleneck_forward.6} parent=43 // pred_check_branch
        %1715 = sbr.rel (%p1713) target = $region48
      $region47: #{bottleneck_forward.6} parent=43 // pred_region
        %s1716 = smul.u32 32, %s20
      $region48: #{bottleneck_forward.6} parent=43 // pred_fallthru
        _
      // Predicated region
      $region49: #{bottleneck_forward.6} parent=43 // pred_check
        %p1717 = pneg %p195
      $region50: #{bottleneck_forward.6} parent=43 // pred_check_branch
        %1719 = sbr.rel (%p1717) target = $region52
      $region51: #{bottleneck_forward.6} parent=43 // pred_region
        _
      $region52: #{bottleneck_forward.6} parent=43 // pred_fallthru
        _
      // Predicated region
      $region53: #{bottleneck_forward.6} parent=43 // pred_check
        %p1720 = pneg %p221
      $region54: #{bottleneck_forward.6} parent=43 // pred_check_branch
        %1722 = sbr.rel (%p1720) target = $region56
      $region55: #{bottleneck_forward.6} parent=43 // pred_region
        _
      $region56: #{bottleneck_forward.6} parent=43 // pred_fallthru
        _
    $region44: #{bottleneck_forward.6} parent=5 // pred_fallthru
      _
    %p1723 = scmp.le.s32.totalorder 2, %s15
    // Predicated region
    $region57: #{bottleneck_forward.6} parent=5 // pred_check
      %p1724 = pneg %p1723
    $region58: #{bottleneck_forward.6} parent=5 // pred_check_branch
      %1726 = sbr.rel (%p1724) target = $region60
    $region59: #{bottleneck_forward.6} parent=5 // pred_region
      %s1727 = ssub.s32 %s15, 2
      // Predicated region
      $region61: #{bottleneck_forward.6} parent=59 // pred_check
        %p1728 = pneg %p175
      $region62: #{bottleneck_forward.6} parent=59 // pred_check_branch
        %1730 = sbr.rel (%p1728) target = $region64
      $region63: #{bottleneck_forward.6} parent=59 // pred_region
        %s1731 = smul.u32 32, %s21
        %p1732 = scmp.lt.s32.totalorder %s1731, 63
        %s1733 = scalar_select %p1732, %s1731, 63
        %s1734 = smul.addr %s1733, 4
        %s1735 = smul.addr %s1734, 4
        %s1736 = scalar_lea.vmem %s6, %s1735
      $region64: #{bottleneck_forward.6} parent=59 // pred_fallthru
        _
      // Predicated region
      $region65: #{bottleneck_forward.6} parent=59 // pred_check
        %p1737 = pneg %p201
      $region66: #{bottleneck_forward.6} parent=59 // pred_check_branch
        %1739 = sbr.rel (%p1737) target = $region68
      $region67: #{bottleneck_forward.6} parent=59 // pred_region
        %p1740 = scmp.lt.s32.totalorder %s21, 1
        %s1741 = scalar_select %p1740, %s21, 1
        %s1742 = smul.addr %s1741, 4
        %s1743 = scalar_lea.vmem %s7, %s1742
      $region68: #{bottleneck_forward.6} parent=59 // pred_fallthru
        _
      // Predicated region
      $region69: #{bottleneck_forward.6} parent=59 // pred_check
        %p1744 = pneg %p227
      $region70: #{bottleneck_forward.6} parent=59 // pred_check_branch
        %1746 = sbr.rel (%p1744) target = $region72
      $region71: #{bottleneck_forward.6} parent=59 // pred_region
        %p1747 = scmp.lt.s32.totalorder %s21, 1
        %s1748 = scalar_select %p1747, %s21, 1
        %s1749 = smul.addr %s1748, 4
        %s1750 = scalar_lea.vmem %s8, %s1749
      $region72: #{bottleneck_forward.6} parent=59 // pred_fallthru
        _
    $region60: #{bottleneck_forward.6} parent=5 // pred_fallthru
      _
  $region6: #{bottleneck_forward.6} parent=0 // loop_footer
    %s19 = sadd.s32 1, %s15
  $region7: #{bottleneck_forward.6} parent=0 // loop_footer_branch
    %14 = sbr.rel target = $region3
  $region8: #{bottleneck_forward.6} parent=0 // loop_exit
    _

// kernel: bottleneck_forward.4
$region0: #{bottleneck_forward.4}
  #allocation0 [shape = 'u32[]', space=smem, size = 0x4, offset = 0x4, fixed_abs, tag = 'smem constant byte address 0x4 - core index']
  #allocation1 [shape = 'u32[72,128]{1,0:T(1,128)}', space=vmem, size = 0x9000, scoped, tag = 'internal scratch']
  %s0 = inlined_call_operand.vmem [shape: bf16[512,512], index: 0, kind: input, shape index: {}]
  %s1 = inlined_call_operand.vmem [shape: bf16[512,128], index: 1, kind: input, shape index: {}]
  %s2 = inlined_call_operand.vmem [shape: bf16[512,128], index: 2, kind: output, shape index: {0}]
  %s3 = inlined_call_operand.vmem [shape: f32[2,1,128], index: 3, kind: output, shape index: {1}]
  %s4 = inlined_call_operand.vmem [shape: f32[2,1,128], index: 4, kind: output, shape index: {2}]
  %5 = xla_tuple %s2, %s3, %s4
  %s6 = sld [smem:[#allocation0]]
  $region57: #{bottleneck_forward.4} parent=0
    _
  %s8 = ssub.s32 1, %s6
  %s9 = scalar_select 0, %s8, %s6
  loop: start=0, step=1, limit=4
  $region2: #{bottleneck_forward.4} parent=0 // loop_pre_header
    _
  $region3: #{bottleneck_forward.4} parent=0 // loop_header
    %s11 = sphi 0, %s15
    %p12 = scmp.ge.s32.totalorder %s11, 4
    %s21 = sphi 0, %s23
    %s24 = sphi 0, %s21
    %s25 = sphi 0, %s24
    %s41 = sphi 0, %s25
    %s45 = sphi 0, %s45
    %s47 = sphi 0, %s45
    %s48 = sphi 0, %s47
    %s62 = sphi 0, %s48
    %s68 = sphi 0, %s70
    %s71 = sphi 0, %s68
    %s72 = sphi 0, %s71
    %s88 = sphi 0, %s72
    %s94 = sphi 0, %s96
    %s97 = sphi 0, %s94
    %s98 = sphi 0, %s97
    %s114 = sphi 0, %s98
    %s120 = sphi 0, %s122
    %s123 = sphi 0, %s120
    %s124 = sphi 0, %s123
    %s140 = sphi 0, %s124
  $region4: #{bottleneck_forward.4} parent=0 // loop_header_branch
    %14 = sbr.rel (%p12) target = $region8
  $region5: #{bottleneck_forward.4} parent=0 // loop_body
    %s16 = ssub.s32 %s11, 1
    %s17 = ssub.s32 %s11, 2
    %s18 = sadd.s32 %s11, 1
    %s19 = ssub.s32 %s11, %s18
    %p20 = scmp.eq.s32.totalorder %s19, 0
    %s22 = sadd.s32 %s21, 1
    %s23 = scalar_select %p20, %s21, %s22
    %p26 = pneg %p20
    %p27 = scmp.eq.s32.totalorder %s11, 1
    %p28 = por %p26, %p27
    %p29 = scmp.ne.s32.totalorder %s21, %s24
    %p30 = scmp.eq.s32.totalorder %s11, 0
    %p31 = por %p29, %p30
    %p32 = scmp.ne.s32.totalorder %s21, %s24
    %p33 = scmp.eq.s32.totalorder %s16, 1
    %p34 = por %p32, %p33
    %p35 = scmp.ne.s32.totalorder %s24, %s25
    %p36 = scmp.eq.s32.totalorder %s16, 0
    %p37 = por %p35, %p36
    %p38 = scmp.ne.s32.totalorder %s24, %s25
    %p39 = scmp.eq.s32.totalorder %s17, 1
    %p40 = por %p38, %p39
    %p42 = scmp.ne.s32.totalorder %s25, %s41
    %p43 = scmp.eq.s32.totalorder %s17, 0
    %p44 = por %p42, %p43
    %s46 = sadd.s32 %s45, 1
    %p49 = scmp.eq.s32.totalorder %s11, 1
    %p50 = scmp.ne.s32.totalorder %s45, %s47
    %p51 = scmp.eq.s32.totalorder %s11, 0
    %p52 = por %p50, %p51
    %p53 = scmp.ne.s32.totalorder %s45, %s47
    %p54 = scmp.eq.s32.totalorder %s16, 1
    %p55 = por %p53, %p54
    %p56 = scmp.ne.s32.totalorder %s47, %s48
    %p57 = scmp.eq.s32.totalorder %s16, 0
    %p58 = por %p56, %p57
    %p59 = scmp.ne.s32.totalorder %s47, %s48
    %p60 = scmp.eq.s32.totalorder %s17, 1
    %p61 = por %p59, %p60
    %p63 = scmp.ne.s32.totalorder %s48, %s62
    %p64 = scmp.eq.s32.totalorder %s17, 0
    %p65 = por %p63, %p64
    %s66 = ssub.s32 %s11, %s18
    %p67 = scmp.eq.s32.totalorder %s66, 0
    %s69 = sadd.s32 %s68, 1
    %s70 = scalar_select %p67, %s68, %s69
    %p73 = pneg %p67
    %p74 = scmp.eq.s32.totalorder %s11, 1
    %p75 = por %p73, %p74
    %p76 = scmp.ne.s32.totalorder %s68, %s71
    %p77 = scmp.eq.s32.totalorder %s11, 0
    %p78 = por %p76, %p77
    %p79 = scmp.ne.s32.totalorder %s68, %s71
    %p80 = scmp.eq.s32.totalorder %s16, 1
    %p81 = por %p79, %p80
    %p82 = scmp.ne.s32.totalorder %s71, %s72
    %p83 = scmp.eq.s32.totalorder %s16, 0
    %p84 = por %p82, %p83
    %p85 = scmp.ne.s32.totalorder %s71, %s72
    %p86 = scmp.eq.s32.totalorder %s17, 1
    %p87 = por %p85, %p86
    %p89 = scmp.ne.s32.totalorder %s72, %s88
    %p90 = scmp.eq.s32.totalorder %s17, 0
    %p91 = por %p89, %p90
    %s92 = ssub.s32 %s11, %s18
    %p93 = scmp.eq.s32.totalorder %s92, 0
    %s95 = sadd.s32 %s94, 1
    %s96 = scalar_select %p93, %s94, %s95
    %p99 = pneg %p93
    %p100 = scmp.eq.s32.totalorder %s11, 1
    %p101 = por %p99, %p100
    %p102 = scmp.ne.s32.totalorder %s94, %s97
    %p103 = scmp.eq.s32.totalorder %s11, 0
    %p104 = por %p102, %p103
    %p105 = scmp.ne.s32.totalorder %s94, %s97
    %p106 = scmp.eq.s32.totalorder %s16, 1
    %p107 = por %p105, %p106
    %p108 = scmp.ne.s32.totalorder %s97, %s98
    %p109 = scmp.eq.s32.totalorder %s16, 0
    %p110 = por %p108, %p109
    %p111 = scmp.ne.s32.totalorder %s97, %s98
    %p112 = scmp.eq.s32.totalorder %s17, 1
    %p113 = por %p111, %p112
    %p115 = scmp.ne.s32.totalorder %s98, %s114
    %p116 = scmp.eq.s32.totalorder %s17, 0
    %p117 = por %p115, %p116
    %s118 = ssub.s32 %s11, %s18
    %p119 = scmp.eq.s32.totalorder %s118, 0
    %s121 = sadd.s32 %s120, 1
    %s122 = scalar_select %p119, %s120, %s121
    %p125 = pneg %p119
    %p126 = scmp.eq.s32.totalorder %s11, 1
    %p127 = por %p125, %p126
    %p128 = scmp.ne.s32.totalorder %s120, %s123
    %p129 = scmp.eq.s32.totalorder %s11, 0
    %p130 = por %p128, %p129
    %p131 = scmp.ne.s32.totalorder %s120, %s123
    %p132 = scmp.eq.s32.totalorder %s16, 1
    %p133 = por %p131, %p132
    %p134 = scmp.ne.s32.totalorder %s123, %s124
    %p135 = scmp.eq.s32.totalorder %s16, 0
    %p136 = por %p134, %p135
    %p137 = scmp.ne.s32.totalorder %s123, %s124
    %p138 = scmp.eq.s32.totalorder %s17, 1
    %p139 = por %p137, %p138
    %p141 = scmp.ne.s32.totalorder %s124, %s140
    %p142 = scmp.eq.s32.totalorder %s17, 0
    %p143 = por %p141, %p142
    %p144 = scmp.le.s32.totalorder 1, %s11
    %p145 = scmp.lt.s32.totalorder %s11, 3
    %p146 = pnand %p144, %p145
    %p147 = pneg %p146
    // Predicated region
    $region9: #{bottleneck_forward.4} parent=5 // pred_check
      _
    $region10: #{bottleneck_forward.4} parent=5 // pred_check_branch
      %149 = sbr.rel (%p146) target = $region12
    $region11: #{bottleneck_forward.4} parent=5 // pred_region
      %s150 = ssub.s32 %s11, 1
      // Predicated region
      $region13: #{bottleneck_forward.4} parent=11 // pred_check
        %p151 = pneg %p58
      $region14: #{bottleneck_forward.4} parent=11 // pred_check_branch
        %153 = sbr.rel (%p151) target = $region16
      $region15: #{bottleneck_forward.4} parent=11 // pred_region
        _
      $region16: #{bottleneck_forward.4} parent=11 // pred_fallthru
        _
    $region12: #{bottleneck_forward.4} parent=5 // pred_fallthru
      _
    %p154 = scmp.lt.s32.totalorder %s11, 2
    // Predicated region
    $region17: #{bottleneck_forward.4} parent=5 // pred_check
      %p155 = pneg %p154
    $region18: #{bottleneck_forward.4} parent=5 // pred_check_branch
      %157 = sbr.rel (%p155) target = $region20
    $region19: #{bottleneck_forward.4} parent=5 // pred_region
      // Predicated region
      $region21: #{bottleneck_forward.4} parent=19 // pred_check
        %p158 = pneg %p31
      $region22: #{bottleneck_forward.4} parent=19 // pred_check_branch
        %160 = sbr.rel (%p158) target = $region24
      $region23: #{bottleneck_forward.4} parent=19 // pred_region
        %s161 = smul.u32 32, %s11
        %p162 = scmp.lt.s32.totalorder %s161, 63
        %s163 = scalar_select %p162, %s161, 63
        %s164 = smul.addr %s163, 4
        %s165 = smul.addr %s164, 4
        %s166 = scalar_lea.vmem %s0, %s165
        %s167 = smul.u32 32, %s11
      $region24: #{bottleneck_forward.4} parent=19 // pred_fallthru
        _
    $region20: #{bottleneck_forward.4} parent=5 // pred_fallthru
      _
    %p168 = scmp.le.s32.totalorder 1, %s11
    %p169 = scmp.lt.s32.totalorder %s11, 3
    %p170 = pnand %p168, %p169
    %p171 = pneg %p170
    // Predicated region
    $region25: #{bottleneck_forward.4} parent=5 // pred_check
      _
    $region26: #{bottleneck_forward.4} parent=5 // pred_check_branch
      %173 = sbr.rel (%p170) target = $region28
    $region27: #{bottleneck_forward.4} parent=5 // pred_region
      %s174 = ssub.s32 %s11, 1
      %s175 = smul.u32 32, %s16
      %p176 = scmp.lt.s32.totalorder %s175, 63
      %s177 = scalar_select %p176, %s175, 63
      %s178 = smul.addr %s177, 4
      %s179 = smul.addr %s178, 4
      %s180 = scalar_lea.vmem %s0, %s179
      %p181 = pneg %p37
      %p182 = pneg %p34
      %p183 = pneg %p58
      %p184 = pneg %p55
      %p185 = pneg %p84
      %p186 = pneg %p81
      %s187 = smul.u32 32, %s16
      %p188 = scmp.lt.s32.totalorder %s187, 63
      %s189 = scalar_select %p188, %s187, 63
      %s190 = smul.addr %s189, 4
      %s191 = scalar_lea.vmem %s2, %s190
      %p192 = pneg %p110
      %p193 = pneg %p107
      %p194 = scmp.lt.s32.totalorder %s16, 1
      %s195 = scalar_select %p194, %s16, 1
      %s196 = scalar_lea.vmem %s3, %s195
      %p197 = pneg %p136
      %p198 = pneg %p133
      %p199 = scmp.lt.s32.totalorder %s16, 1
      %s200 = scalar_select %p199, %s16, 1
      %s201 = scalar_lea.vmem %s4, %s200
      %s202 = smul.u32 32, %s16
      %p203 = scmp.lt.s32.totalorder %s202, 63
      %s204 = scalar_select %p203, %s202, 63
      %s205 = smul.addr %s204, 4
      %s206 = smul.addr %s205, 4
      %s207 = scalar_lea.vmem %s0, %s206
      %s208 = smul.u32 32, %s16
      %s209 = smul.u32 32, %s16
      %p210 = scmp.lt.s32.totalorder %s209, 63
      %s211 = scalar_select %p210, %s209, 63
      %s212 = smul.addr %s211, 4
      %s213 = scalar_lea.vmem %s2, %s212
      %s214 = smul.u32 32, %s16
      %p215 = scmp.lt.s32.totalorder %s16, 1
      %s216 = scalar_select %p215, %s16, 1
      %s217 = scalar_lea.vmem %s3, %s216
      %p218 = scmp.lt.s32.totalorder %s16, 1
      %s219 = scalar_select %p218, %s16, 1
      %s220 = scalar_lea.vmem %s4, %s219
      %v221 = vld [vmem:[%s207] sm:$0xff]
      %v222 = vld [vmem:[%s207 + $0x8] sm:$0xff]
      %v223 = vld [vmem:[%s207 + $0x10] sm:$0xff]
      %v224 = vld [vmem:[%s207 + $0x18] sm:$0xff]
      %v225 = vld [vmem:[%s207 + $0x20] sm:$0xff]
      %v226 = vld [vmem:[%s207 + $0x28] sm:$0xff]
      %v227 = vld [vmem:[%s207 + $0x30] sm:$0xff]
      %v228 = vld [vmem:[%s207 + $0x38] sm:$0xff]
      %v229 = vld [vmem:[%s207 + $0x40] sm:$0xff]
      %v230 = vld [vmem:[%s207 + $0x48] sm:$0xff]
      %v231 = vld [vmem:[%s207 + $0x50] sm:$0xff]
      %v232 = vld [vmem:[%s207 + $0x58] sm:$0xff]
      %v233 = vld [vmem:[%s207 + $0x60] sm:$0xff]
      %v234 = vld [vmem:[%s207 + $0x68] sm:$0xff]
      %v235 = vld [vmem:[%s207 + $0x70] sm:$0xff]
      %v236 = vld [vmem:[%s207 + $0x78] sm:$0xff]
      %v237 = vld [vmem:[%s207 + $0x80] sm:$0xff]
      %v238 = vld [vmem:[%s207 + $0x88] sm:$0xff]
      %v239 = vld [vmem:[%s207 + $0x90] sm:$0xff]
      %v240 = vld [vmem:[%s207 + $0x98] sm:$0xff]
      %v241 = vld [vmem:[%s207 + $0xa0] sm:$0xff]
      %v242 = vld [vmem:[%s207 + $0xa8] sm:$0xff]
      %v243 = vld [vmem:[%s207 + $0xb0] sm:$0xff]
      %v244 = vld [vmem:[%s207 + $0xb8] sm:$0xff]
      %v245 = vld [vmem:[%s207 + $0xc0] sm:$0xff]
      %v246 = vld [vmem:[%s207 + $0xc8] sm:$0xff]
      %v247 = vld [vmem:[%s207 + $0xd0] sm:$0xff]
      %v248 = vld [vmem:[%s207 + $0xd8] sm:$0xff]
      %v249 = vld [vmem:[%s207 + $0xe0] sm:$0xff]
      %v250 = vld [vmem:[%s207 + $0xe8] sm:$0xff]
      %v251 = vld [vmem:[%s207 + $0xf0] sm:$0xff]
      %v252 = vld [vmem:[%s207 + $0xf8] sm:$0xff]
      %v253 = vld [vmem:[%s207 + $0x100] sm:$0xff]
      %v254 = vld [vmem:[%s207 + $0x108] sm:$0xff]
      %v255 = vld [vmem:[%s207 + $0x110] sm:$0xff]
      %v256 = vld [vmem:[%s207 + $0x118] sm:$0xff]
      %v257 = vld [vmem:[%s207 + $0x120] sm:$0xff]
      %v258 = vld [vmem:[%s207 + $0x128] sm:$0xff]
      %v259 = vld [vmem:[%s207 + $0x130] sm:$0xff]
      %v260 = vld [vmem:[%s207 + $0x138] sm:$0xff]
      %v261 = vld [vmem:[%s207 + $0x140] sm:$0xff]
      %v262 = vld [vmem:[%s207 + $0x148] sm:$0xff]
      %v263 = vld [vmem:[%s207 + $0x150] sm:$0xff]
      %v264 = vld [vmem:[%s207 + $0x158] sm:$0xff]
      %v265 = vld [vmem:[%s207 + $0x160] sm:$0xff]
      %v266 = vld [vmem:[%s207 + $0x168] sm:$0xff]
      %v267 = vld [vmem:[%s207 + $0x170] sm:$0xff]
      %v268 = vld [vmem:[%s207 + $0x178] sm:$0xff]
      %v269 = vld [vmem:[%s207 + $0x180] sm:$0xff]
      %v270 = vld [vmem:[%s207 + $0x188] sm:$0xff]
      %v271 = vld [vmem:[%s207 + $0x190] sm:$0xff]
      %v272 = vld [vmem:[%s207 + $0x198] sm:$0xff]
      %v273 = vld [vmem:[%s207 + $0x1a0] sm:$0xff]
      %v274 = vld [vmem:[%s207 + $0x1a8] sm:$0xff]
      %v275 = vld [vmem:[%s207 + $0x1b0] sm:$0xff]
      %v276 = vld [vmem:[%s207 + $0x1b8] sm:$0xff]
      %v277 = vld [vmem:[%s207 + $0x1c0] sm:$0xff]
      %v278 = vld [vmem:[%s207 + $0x1c8] sm:$0xff]
      %v279 = vld [vmem:[%s207 + $0x1d0] sm:$0xff]
      %v280 = vld [vmem:[%s207 + $0x1d8] sm:$0xff]
      %v281 = vld [vmem:[%s207 + $0x1e0] sm:$0xff]
      %v282 = vld [vmem:[%s207 + $0x1e8] sm:$0xff]
      %v283 = vld [vmem:[%s207 + $0x1f0] sm:$0xff]
      %v284 = vld [vmem:[%s207 + $0x1f8] sm:$0xff]
      %v285 = vld [vmem:[%s1] sm:$0xf]
      %v286 = vld [vmem:[%s1 + $0x4] sm:$0xf]
      %v287 = vld [vmem:[%s1 + $0x8] sm:$0xf]
      %v288 = vld [vmem:[%s1 + $0xc] sm:$0xf]
      %v289 = vld [vmem:[%s1 + $0x10] sm:$0xf]
      %v290 = vld [vmem:[%s1 + $0x14] sm:$0xf]
      %v291 = vld [vmem:[%s1 + $0x18] sm:$0xf]
      %v292 = vld [vmem:[%s1 + $0x1c] sm:$0xf]
      %v293 = vld [vmem:[%s1 + $0x20] sm:$0xf]
      %v294 = vld [vmem:[%s1 + $0x24] sm:$0xf]
      %v295 = vld [vmem:[%s1 + $0x28] sm:$0xf]
      %v296 = vld [vmem:[%s1 + $0x2c] sm:$0xf]
      %v297 = vld [vmem:[%s1 + $0x30] sm:$0xf]
      %v298 = vld [vmem:[%s1 + $0x34] sm:$0xf]
      %v299 = vld [vmem:[%s1 + $0x38] sm:$0xf]
      %v300 = vld [vmem:[%s1 + $0x3c] sm:$0xf]
      %v301 = vld [vmem:[%s1 + $0x40] sm:$0xf]
      %v302 = vld [vmem:[%s1 + $0x44] sm:$0xf]
      %v303 = vld [vmem:[%s1 + $0x48] sm:$0xf]
      %v304 = vld [vmem:[%s1 + $0x4c] sm:$0xf]
      %v305 = vld [vmem:[%s1 + $0x50] sm:$0xf]
      %v306 = vld [vmem:[%s1 + $0x54] sm:$0xf]
      %v307 = vld [vmem:[%s1 + $0x58] sm:$0xf]
      %v308 = vld [vmem:[%s1 + $0x5c] sm:$0xf]
      %v309 = vld [vmem:[%s1 + $0x60] sm:$0xf]
      %v310 = vld [vmem:[%s1 + $0x64] sm:$0xf]
      %v311 = vld [vmem:[%s1 + $0x68] sm:$0xf]
      %v312 = vld [vmem:[%s1 + $0x6c] sm:$0xf]
      %v313 = vld [vmem:[%s1 + $0x70] sm:$0xf]
      %v314 = vld [vmem:[%s1 + $0x74] sm:$0xf]
      %v315 = vld [vmem:[%s1 + $0x78] sm:$0xf]
      %v316 = vld [vmem:[%s1 + $0x7c] sm:$0xf]
      %v317 = vld [vmem:[%s1 + $0x80] sm:$0xf]
      %v318 = vld [vmem:[%s1 + $0x84] sm:$0xf]
      %v319 = vld [vmem:[%s1 + $0x88] sm:$0xf]
      %v320 = vld [vmem:[%s1 + $0x8c] sm:$0xf]
      %v321 = vld [vmem:[%s1 + $0x90] sm:$0xf]
      %v322 = vld [vmem:[%s1 + $0x94] sm:$0xf]
      %v323 = vld [vmem:[%s1 + $0x98] sm:$0xf]
      %v324 = vld [vmem:[%s1 + $0x9c] sm:$0xf]
      %v325 = vld [vmem:[%s1 + $0xa0] sm:$0xf]
      %v326 = vld [vmem:[%s1 + $0xa4] sm:$0xf]
      %v327 = vld [vmem:[%s1 + $0xa8] sm:$0xf]
      %v328 = vld [vmem:[%s1 + $0xac] sm:$0xf]
      %v329 = vld [vmem:[%s1 + $0xb0] sm:$0xf]
      %v330 = vld [vmem:[%s1 + $0xb4] sm:$0xf]
      %v331 = vld [vmem:[%s1 + $0xb8] sm:$0xf]
      %v332 = vld [vmem:[%s1 + $0xbc] sm:$0xf]
      %v333 = vld [vmem:[%s1 + $0xc0] sm:$0xf]
      %v334 = vld [vmem:[%s1 + $0xc4] sm:$0xf]
      %v335 = vld [vmem:[%s1 + $0xc8] sm:$0xf]
      %v336 = vld [vmem:[%s1 + $0xcc] sm:$0xf]
      %v337 = vld [vmem:[%s1 + $0xd0] sm:$0xf]
      %v338 = vld [vmem:[%s1 + $0xd4] sm:$0xf]
      %v339 = vld [vmem:[%s1 + $0xd8] sm:$0xf]
      %v340 = vld [vmem:[%s1 + $0xdc] sm:$0xf]
      %v341 = vld [vmem:[%s1 + $0xe0] sm:$0xf]
      %v342 = vld [vmem:[%s1 + $0xe4] sm:$0xf]
      %v343 = vld [vmem:[%s1 + $0xe8] sm:$0xf]
      %v344 = vld [vmem:[%s1 + $0xec] sm:$0xf]
      %v345 = vld [vmem:[%s1 + $0xf0] sm:$0xf]
      %v346 = vld [vmem:[%s1 + $0xf4] sm:$0xf]
      %v347 = vld [vmem:[%s1 + $0xf8] sm:$0xf]
      %v348 = vld [vmem:[%s1 + $0xfc] sm:$0xf]
      %v413 = vunpack.c.l.b16 %v221
      %v414 = vunpack.c.h.b16 %v221
      %v415 = vunpack.c.l.b16 %v222
      %v416 = vunpack.c.h.b16 %v222
      %v417 = vunpack.c.l.b16 %v223
      %v418 = vunpack.c.h.b16 %v223
      %v419 = vunpack.c.l.b16 %v224
      %v420 = vunpack.c.h.b16 %v224
      %v421 = vunpack.c.l.b16 %v225
      %v422 = vunpack.c.h.b16 %v225
      %v423 = vunpack.c.l.b16 %v226
      %v424 = vunpack.c.h.b16 %v226
      %v425 = vunpack.c.l.b16 %v227
      %v426 = vunpack.c.h.b16 %v227
      %v427 = vunpack.c.l.b16 %v228
      %v428 = vunpack.c.h.b16 %v228
      %v429 = vunpack.c.l.b16 %v229
      %v430 = vunpack.c.h.b16 %v229
      %v431 = vunpack.c.l.b16 %v230
      %v432 = vunpack.c.h.b16 %v230
      %v433 = vunpack.c.l.b16 %v231
      %v434 = vunpack.c.h.b16 %v231
      %v435 = vunpack.c.l.b16 %v232
      %v436 = vunpack.c.h.b16 %v232
      %v437 = vunpack.c.l.b16 %v233
      %v438 = vunpack.c.h.b16 %v233
      %v439 = vunpack.c.l.b16 %v234
      %v440 = vunpack.c.h.b16 %v234
      %v441 = vunpack.c.l.b16 %v235
      %v442 = vunpack.c.h.b16 %v235
      %v443 = vunpack.c.l.b16 %v236
      %v444 = vunpack.c.h.b16 %v236
      %v445 = vunpack.c.l.b16 %v237
      %v446 = vunpack.c.h.b16 %v237
      %v447 = vunpack.c.l.b16 %v238
      %v448 = vunpack.c.h.b16 %v238
      %v449 = vunpack.c.l.b16 %v239
      %v450 = vunpack.c.h.b16 %v239
      %v451 = vunpack.c.l.b16 %v240
      %v452 = vunpack.c.h.b16 %v240
      %v453 = vunpack.c.l.b16 %v241
      %v454 = vunpack.c.h.b16 %v241
      %v455 = vunpack.c.l.b16 %v242
      %v456 = vunpack.c.h.b16 %v242
      %v457 = vunpack.c.l.b16 %v243
      %v458 = vunpack.c.h.b16 %v243
      %v459 = vunpack.c.l.b16 %v244
      %v460 = vunpack.c.h.b16 %v244
      %v461 = vunpack.c.l.b16 %v245
      %v462 = vunpack.c.h.b16 %v245
      %v463 = vunpack.c.l.b16 %v246
      %v464 = vunpack.c.h.b16 %v246
      %v465 = vunpack.c.l.b16 %v247
      %v466 = vunpack.c.h.b16 %v247
      %v467 = vunpack.c.l.b16 %v248
      %v468 = vunpack.c.h.b16 %v248
      %v469 = vunpack.c.l.b16 %v249
      %v470 = vunpack.c.h.b16 %v249
      %v471 = vunpack.c.l.b16 %v250
      %v472 = vunpack.c.h.b16 %v250
      %v473 = vunpack.c.l.b16 %v251
      %v474 = vunpack.c.h.b16 %v251
      %v475 = vunpack.c.l.b16 %v252
      %v476 = vunpack.c.h.b16 %v252
      %v477 = vunpack.c.l.b16 %v253
      %v478 = vunpack.c.h.b16 %v253
      %v479 = vunpack.c.l.b16 %v254
      %v480 = vunpack.c.h.b16 %v254
      %v481 = vunpack.c.l.b16 %v255
      %v482 = vunpack.c.h.b16 %v255
      %v483 = vunpack.c.l.b16 %v256
      %v484 = vunpack.c.h.b16 %v256
      %v485 = vunpack.c.l.b16 %v257
      %v486 = vunpack.c.h.b16 %v257
      %v487 = vunpack.c.l.b16 %v258
      %v488 = vunpack.c.h.b16 %v258
      %v489 = vunpack.c.l.b16 %v259
      %v490 = vunpack.c.h.b16 %v259
      %v491 = vunpack.c.l.b16 %v260
      %v492 = vunpack.c.h.b16 %v260
      %v493 = vunpack.c.l.b16 %v261
      %v494 = vunpack.c.h.b16 %v261
      %v495 = vunpack.c.l.b16 %v262
      %v496 = vunpack.c.h.b16 %v262
      %v497 = vunpack.c.l.b16 %v263
      %v498 = vunpack.c.h.b16 %v263
      %v499 = vunpack.c.l.b16 %v264
      %v500 = vunpack.c.h.b16 %v264
      %v501 = vunpack.c.l.b16 %v265
      %v502 = vunpack.c.h.b16 %v265
      %v503 = vunpack.c.l.b16 %v266
      %v504 = vunpack.c.h.b16 %v266
      %v505 = vunpack.c.l.b16 %v267
      %v506 = vunpack.c.h.b16 %v267
      %v507 = vunpack.c.l.b16 %v268
      %v508 = vunpack.c.h.b16 %v268
      %v509 = vunpack.c.l.b16 %v269
      %v510 = vunpack.c.h.b16 %v269
      %v511 = vunpack.c.l.b16 %v270
      %v512 = vunpack.c.h.b16 %v270
      %v513 = vunpack.c.l.b16 %v271
      %v514 = vunpack.c.h.b16 %v271
      %v515 = vunpack.c.l.b16 %v272
      %v516 = vunpack.c.h.b16 %v272
      %v517 = vunpack.c.l.b16 %v273
      %v518 = vunpack.c.h.b16 %v273
      %v519 = vunpack.c.l.b16 %v274
      %v520 = vunpack.c.h.b16 %v274
      %v521 = vunpack.c.l.b16 %v275
      %v522 = vunpack.c.h.b16 %v275
      %v523 = vunpack.c.l.b16 %v276
      %v524 = vunpack.c.h.b16 %v276
      %v525 = vunpack.c.l.b16 %v277
      %v526 = vunpack.c.h.b16 %v277
      %v527 = vunpack.c.l.b16 %v278
      %v528 = vunpack.c.h.b16 %v278
      %v529 = vunpack.c.l.b16 %v279
      %v530 = vunpack.c.h.b16 %v279
      %v531 = vunpack.c.l.b16 %v280
      %v532 = vunpack.c.h.b16 %v280
      %v533 = vunpack.c.l.b16 %v281
      %v534 = vunpack.c.h.b16 %v281
      %v535 = vunpack.c.l.b16 %v282
      %v536 = vunpack.c.h.b16 %v282
      %v537 = vunpack.c.l.b16 %v283
      %v538 = vunpack.c.h.b16 %v283
      %v539 = vunpack.c.l.b16 %v284
      %v540 = vunpack.c.h.b16 %v284
      %v541 = vpack.c.b16 %v417, %v413
      %v542 = vpack.c.b16 %v418, %v414
      %v543 = vpack.c.b16 %v419, %v415
      %v544 = vpack.c.b16 %v420, %v416
      %v545 = vpack.c.b16 %v425, %v421
      %v546 = vpack.c.b16 %v426, %v422
      %v547 = vpack.c.b16 %v427, %v423
      %v548 = vpack.c.b16 %v428, %v424
      %v549 = vpack.c.b16 %v433, %v429
      %v550 = vpack.c.b16 %v434, %v430
      %v551 = vpack.c.b16 %v435, %v431
      %v552 = vpack.c.b16 %v436, %v432
      %v553 = vpack.c.b16 %v441, %v437
      %v554 = vpack.c.b16 %v442, %v438
      %v555 = vpack.c.b16 %v443, %v439
      %v556 = vpack.c.b16 %v444, %v440
      %v557 = vpack.c.b16 %v449, %v445
      %v558 = vpack.c.b16 %v450, %v446
      %v559 = vpack.c.b16 %v451, %v447
      %v560 = vpack.c.b16 %v452, %v448
      %v561 = vpack.c.b16 %v457, %v453
      %v562 = vpack.c.b16 %v458, %v454
      %v563 = vpack.c.b16 %v459, %v455
      %v564 = vpack.c.b16 %v460, %v456
      %v565 = vpack.c.b16 %v465, %v461
      %v566 = vpack.c.b16 %v466, %v462
      %v567 = vpack.c.b16 %v467, %v463
      %v568 = vpack.c.b16 %v468, %v464
      %v569 = vpack.c.b16 %v473, %v469
      %v570 = vpack.c.b16 %v474, %v470
      %v571 = vpack.c.b16 %v475, %v471
      %v572 = vpack.c.b16 %v476, %v472
      %v573 = vpack.c.b16 %v481, %v477
      %v574 = vpack.c.b16 %v482, %v478
      %v575 = vpack.c.b16 %v483, %v479
      %v576 = vpack.c.b16 %v484, %v480
      %v577 = vpack.c.b16 %v489, %v485
      %v578 = vpack.c.b16 %v490, %v486
      %v579 = vpack.c.b16 %v491, %v487
      %v580 = vpack.c.b16 %v492, %v488
      %v581 = vpack.c.b16 %v497, %v493
      %v582 = vpack.c.b16 %v498, %v494
      %v583 = vpack.c.b16 %v499, %v495
      %v584 = vpack.c.b16 %v500, %v496
      %v585 = vpack.c.b16 %v505, %v501
      %v586 = vpack.c.b16 %v506, %v502
      %v587 = vpack.c.b16 %v507, %v503
      %v588 = vpack.c.b16 %v508, %v504
      %v589 = vpack.c.b16 %v513, %v509
      %v590 = vpack.c.b16 %v514, %v510
      %v591 = vpack.c.b16 %v515, %v511
      %v592 = vpack.c.b16 %v516, %v512
      %v593 = vpack.c.b16 %v521, %v517
      %v594 = vpack.c.b16 %v522, %v518
      %v595 = vpack.c.b16 %v523, %v519
      %v596 = vpack.c.b16 %v524, %v520
      %v597 = vpack.c.b16 %v529, %v525
      %v598 = vpack.c.b16 %v530, %v526
      %v599 = vpack.c.b16 %v531, %v527
      %v600 = vpack.c.b16 %v532, %v528
      %v601 = vpack.c.b16 %v537, %v533
      %v602 = vpack.c.b16 %v538, %v534
      %v603 = vpack.c.b16 %v539, %v535
      %v604 = vpack.c.b16 %v540, %v536
      %v733 = vunpack.c.l.b16 %v285
      %v734 = vunpack.c.l.b16 %v286
      %v735 = vunpack.c.l.b16 %v287
      %v736 = vunpack.c.l.b16 %v288
      %v737 = vunpack.c.l.b16 %v289
      %v738 = vunpack.c.l.b16 %v290
      %v739 = vunpack.c.l.b16 %v291
      %v740 = vunpack.c.l.b16 %v292
      %v741 = vunpack.c.l.b16 %v293
      %v742 = vunpack.c.l.b16 %v294
      %v743 = vunpack.c.l.b16 %v295
      %v744 = vunpack.c.l.b16 %v296
      %v745 = vunpack.c.l.b16 %v297
      %v746 = vunpack.c.l.b16 %v298
      %v747 = vunpack.c.l.b16 %v299
      %v748 = vunpack.c.l.b16 %v300
      %v749 = vunpack.c.l.b16 %v301
      %v750 = vunpack.c.l.b16 %v302
      %v751 = vunpack.c.l.b16 %v303
      %v752 = vunpack.c.l.b16 %v304
      %v753 = vunpack.c.l.b16 %v305
      %v754 = vunpack.c.l.b16 %v306
      %v755 = vunpack.c.l.b16 %v307
      %v756 = vunpack.c.l.b16 %v308
      %v757 = vunpack.c.l.b16 %v309
      %v758 = vunpack.c.l.b16 %v310
      %v759 = vunpack.c.l.b16 %v311
      %v760 = vunpack.c.l.b16 %v312
      %v761 = vunpack.c.l.b16 %v313
      %v762 = vunpack.c.l.b16 %v314
      %v763 = vunpack.c.l.b16 %v315
      %v764 = vunpack.c.l.b16 %v316
      %v765 = vunpack.c.l.b16 %v317
      %v766 = vunpack.c.l.b16 %v318
      %v767 = vunpack.c.l.b16 %v319
      %v768 = vunpack.c.l.b16 %v320
      %v769 = vunpack.c.l.b16 %v321
      %v770 = vunpack.c.l.b16 %v322
      %v771 = vunpack.c.l.b16 %v323
      %v772 = vunpack.c.l.b16 %v324
      %v773 = vunpack.c.l.b16 %v325
      %v774 = vunpack.c.l.b16 %v326
      %v775 = vunpack.c.l.b16 %v327
      %v776 = vunpack.c.l.b16 %v328
      %v777 = vunpack.c.l.b16 %v329
      %v778 = vunpack.c.l.b16 %v330
      %v779 = vunpack.c.l.b16 %v331
      %v780 = vunpack.c.l.b16 %v332
      %v781 = vunpack.c.l.b16 %v333
      %v782 = vunpack.c.l.b16 %v334
      %v783 = vunpack.c.l.b16 %v335
      %v784 = vunpack.c.l.b16 %v336
      %v785 = vunpack.c.l.b16 %v337
      %v786 = vunpack.c.l.b16 %v338
      %v787 = vunpack.c.l.b16 %v339
      %v788 = vunpack.c.l.b16 %v340
      %v789 = vunpack.c.l.b16 %v341
      %v790 = vunpack.c.l.b16 %v342
      %v791 = vunpack.c.l.b16 %v343
      %v792 = vunpack.c.l.b16 %v344
      %v793 = vunpack.c.l.b16 %v345
      %v794 = vunpack.c.l.b16 %v346
      %v795 = vunpack.c.l.b16 %v347
      %v796 = vunpack.c.l.b16 %v348
      %v797 = vpack.c.b16 %v734, %v733
      %v798 = vpack.c.b16 %v736, %v735
      %v799 = vpack.c.b16 %v738, %v737
      %v800 = vpack.c.b16 %v740, %v739
      %v801 = vpack.c.b16 %v742, %v741
      %v802 = vpack.c.b16 %v744, %v743
      %v803 = vpack.c.b16 %v746, %v745
      %v804 = vpack.c.b16 %v748, %v747
      %v805 = vpack.c.b16 %v750, %v749
      %v806 = vpack.c.b16 %v752, %v751
      %v807 = vpack.c.b16 %v754, %v753
      %v808 = vpack.c.b16 %v756, %v755
      %v809 = vpack.c.b16 %v758, %v757
      %v810 = vpack.c.b16 %v760, %v759
      %v811 = vpack.c.b16 %v762, %v761
      %v812 = vpack.c.b16 %v764, %v763
      %v813 = vpack.c.b16 %v766, %v765
      %v814 = vpack.c.b16 %v768, %v767
      %v815 = vpack.c.b16 %v770, %v769
      %v816 = vpack.c.b16 %v772, %v771
      %v817 = vpack.c.b16 %v774, %v773
      %v818 = vpack.c.b16 %v776, %v775
      %v819 = vpack.c.b16 %v778, %v777
      %v820 = vpack.c.b16 %v780, %v779
      %v821 = vpack.c.b16 %v782, %v781
      %v822 = vpack.c.b16 %v784, %v783
      %v823 = vpack.c.b16 %v786, %v785
      %v824 = vpack.c.b16 %v788, %v787
      %v825 = vpack.c.b16 %v790, %v789
      %v826 = vpack.c.b16 %v792, %v791
      %v827 = vpack.c.b16 %v794, %v793
      %v828 = vpack.c.b16 %v796, %v795
      %861 = vmatpush.bf16.msra.mxu0 %v804
      %862 = vmatpush.bf16.msra.mxu0 %v803
      %863 = vmatpush.bf16.msra.mxu0 %v802
      %864 = vmatpush.bf16.msra.mxu0 %v801
      %865 = vmatpush.bf16.msra.mxu0 %v800
      %866 = vmatpush.bf16.msra.mxu0 %v799
      %867 = vmatpush.bf16.msra.mxu0 %v798
      %868 = vmatpush.bf16.msra.mxu0 %v797
      %869 = vmatmul.bf16.gmra.mxu0 %v541
      %v870 = vpop.f32.mrf.mxu0
      %v871 = vadd.f32 0.0, %v870
      %v872 = vpop.f32.mrf.mxu0
      %v873 = vadd.f32 0.0, %v872
      %874 = vmatmul.bf16.gmra.mxu0 %v545
      %v875 = vpop.f32.mrf.mxu0
      %v876 = vadd.f32 0.0, %v875
      %v877 = vpop.f32.mrf.mxu0
      %v878 = vadd.f32 0.0, %v877
      %879 = vmatmul.bf16.gmra.mxu0 %v549
      %v880 = vpop.f32.mrf.mxu0
      %v881 = vadd.f32 0.0, %v880
      %v882 = vpop.f32.mrf.mxu0
      %v883 = vadd.f32 0.0, %v882
      %884 = vmatmul.bf16.gmra.mxu0 %v553
      %v885 = vpop.f32.mrf.mxu0
      %v886 = vadd.f32 0.0, %v885
      %v887 = vpop.f32.mrf.mxu0
      %v888 = vadd.f32 0.0, %v887
      %889 = vmatmul.bf16.gmra.mxu0 %v557
      %v890 = vpop.f32.mrf.mxu0
      %v891 = vadd.f32 0.0, %v890
      %v892 = vpop.f32.mrf.mxu0
      %v893 = vadd.f32 0.0, %v892
      %894 = vmatmul.bf16.gmra.mxu0 %v561
      %v895 = vpop.f32.mrf.mxu0
      %v896 = vadd.f32 0.0, %v895
      %v897 = vpop.f32.mrf.mxu0
      %v898 = vadd.f32 0.0, %v897
      %899 = vmatmul.bf16.gmra.mxu0 %v565
      %v900 = vpop.f32.mrf.mxu0
      %v901 = vadd.f32 0.0, %v900
      %v902 = vpop.f32.mrf.mxu0
      %v903 = vadd.f32 0.0, %v902
      %904 = vmatmul.bf16.gmra.mxu0 %v569
      %v905 = vpop.f32.mrf.mxu0
      %v906 = vadd.f32 0.0, %v905
      %v907 = vpop.f32.mrf.mxu0
      %v908 = vadd.f32 0.0, %v907
      %909 = vmatmul.bf16.gmra.mxu0 %v573
      %v910 = vpop.f32.mrf.mxu0
      %v911 = vadd.f32 0.0, %v910
      %v912 = vpop.f32.mrf.mxu0
      %v913 = vadd.f32 0.0, %v912
      %914 = vmatmul.bf16.gmra.mxu0 %v577
      %v915 = vpop.f32.mrf.mxu0
      %v916 = vadd.f32 0.0, %v915
      %v917 = vpop.f32.mrf.mxu0
      %v918 = vadd.f32 0.0, %v917
      %919 = vmatmul.bf16.gmra.mxu0 %v581
      %v920 = vpop.f32.mrf.mxu0
      %v921 = vadd.f32 0.0, %v920
      %v922 = vpop.f32.mrf.mxu0
      %v923 = vadd.f32 0.0, %v922
      %924 = vmatmul.bf16.gmra.mxu0 %v585
      %v925 = vpop.f32.mrf.mxu0
      %v926 = vadd.f32 0.0, %v925
      %v927 = vpop.f32.mrf.mxu0
      %v928 = vadd.f32 0.0, %v927
      %929 = vmatmul.bf16.gmra.mxu0 %v589
      %v930 = vpop.f32.mrf.mxu0
      %v931 = vadd.f32 0.0, %v930
      %v932 = vpop.f32.mrf.mxu0
      %v933 = vadd.f32 0.0, %v932
      %934 = vmatmul.bf16.gmra.mxu0 %v593
      %v935 = vpop.f32.mrf.mxu0
      %v936 = vadd.f32 0.0, %v935
      %v937 = vpop.f32.mrf.mxu0
      %v938 = vadd.f32 0.0, %v937
      %939 = vmatmul.bf16.gmra.mxu0 %v597
      %v940 = vpop.f32.mrf.mxu0
      %v941 = vadd.f32 0.0, %v940
      %v942 = vpop.f32.mrf.mxu0
      %v943 = vadd.f32 0.0, %v942
      %944 = vmatmul.bf16.gmra.mxu0 %v601
      %v945 = vpop.f32.mrf.mxu0
      %v946 = vadd.f32 0.0, %v945
      %v947 = vpop.f32.mrf.mxu0
      %v948 = vadd.f32 0.0, %v947
      %949 = vdwg.mxu0
      %950 = vmatpush.bf16.msra.mxu0 %v812
      %951 = vmatpush.bf16.msra.mxu0 %v811
      %952 = vmatpush.bf16.msra.mxu0 %v810
      %953 = vmatpush.bf16.msra.mxu0 %v809
      %954 = vmatpush.bf16.msra.mxu0 %v808
      %955 = vmatpush.bf16.msra.mxu0 %v807
      %956 = vmatpush.bf16.msra.mxu0 %v806
      %957 = vmatpush.bf16.msra.mxu0 %v805
      %958 = vmatmul.bf16.gmra.mxu0 %v542
      %v959 = vpop.f32.mrf.mxu0
      %v960 = vadd.f32 %v871, %v959
      %v961 = vpop.f32.mrf.mxu0
      %v962 = vadd.f32 %v873, %v961
      %963 = vmatmul.bf16.gmra.mxu0 %v546
      %v964 = vpop.f32.mrf.mxu0
      %v965 = vadd.f32 %v876, %v964
      %v966 = vpop.f32.mrf.mxu0
      %v967 = vadd.f32 %v878, %v966
      %968 = vmatmul.bf16.gmra.mxu0 %v550
      %v969 = vpop.f32.mrf.mxu0
      %v970 = vadd.f32 %v881, %v969
      %v971 = vpop.f32.mrf.mxu0
      %v972 = vadd.f32 %v883, %v971
      %973 = vmatmul.bf16.gmra.mxu0 %v554
      %v974 = vpop.f32.mrf.mxu0
      %v975 = vadd.f32 %v886, %v974
      %v976 = vpop.f32.mrf.mxu0
      %v977 = vadd.f32 %v888, %v976
      %978 = vmatmul.bf16.gmra.mxu0 %v558
      %v979 = vpop.f32.mrf.mxu0
      %v980 = vadd.f32 %v891, %v979
      %v981 = vpop.f32.mrf.mxu0
      %v982 = vadd.f32 %v893, %v981
      %983 = vmatmul.bf16.gmra.mxu0 %v562
      %v984 = vpop.f32.mrf.mxu0
      %v985 = vadd.f32 %v896, %v984
      %v986 = vpop.f32.mrf.mxu0
      %v987 = vadd.f32 %v898, %v986
      %988 = vmatmul.bf16.gmra.mxu0 %v566
      %v989 = vpop.f32.mrf.mxu0
      %v990 = vadd.f32 %v901, %v989
      %v991 = vpop.f32.mrf.mxu0
      %v992 = vadd.f32 %v903, %v991
      %993 = vmatmul.bf16.gmra.mxu0 %v570
      %v994 = vpop.f32.mrf.mxu0
      %v995 = vadd.f32 %v906, %v994
      %v996 = vpop.f32.mrf.mxu0
      %v997 = vadd.f32 %v908, %v996
      %998 = vmatmul.bf16.gmra.mxu0 %v574
      %v999 = vpop.f32.mrf.mxu0
      %v1000 = vadd.f32 %v911, %v999
      %v1001 = vpop.f32.mrf.mxu0
      %v1002 = vadd.f32 %v913, %v1001
      %1003 = vmatmul.bf16.gmra.mxu0 %v578
      %v1004 = vpop.f32.mrf.mxu0
      %v1005 = vadd.f32 %v916, %v1004
      %v1006 = vpop.f32.mrf.mxu0
      %v1007 = vadd.f32 %v918, %v1006
      %1008 = vmatmul.bf16.gmra.mxu0 %v582
      %v1009 = vpop.f32.mrf.mxu0
      %v1010 = vadd.f32 %v921, %v1009
      %v1011 = vpop.f32.mrf.mxu0
      %v1012 = vadd.f32 %v923, %v1011
      %1013 = vmatmul.bf16.gmra.mxu0 %v586
      %v1014 = vpop.f32.mrf.mxu0
      %v1015 = vadd.f32 %v926, %v1014
      %v1016 = vpop.f32.mrf.mxu0
      %v1017 = vadd.f32 %v928, %v1016
      %1018 = vmatmul.bf16.gmra.mxu0 %v590
      %v1019 = vpop.f32.mrf.mxu0
      %v1020 = vadd.f32 %v931, %v1019
      %v1021 = vpop.f32.mrf.mxu0
      %v1022 = vadd.f32 %v933, %v1021
      %1023 = vmatmul.bf16.gmra.mxu0 %v594
      %v1024 = vpop.f32.mrf.mxu0
      %v1025 = vadd.f32 %v936, %v1024
      %v1026 = vpop.f32.mrf.mxu0
      %v1027 = vadd.f32 %v938, %v1026
      %1028 = vmatmul.bf16.gmra.mxu0 %v598
      %v1029 = vpop.f32.mrf.mxu0
      %v1030 = vadd.f32 %v941, %v1029
      %v1031 = vpop.f32.mrf.mxu0
      %v1032 = vadd.f32 %v943, %v1031
      %1033 = vmatmul.bf16.gmra.mxu0 %v602
      %v1034 = vpop.f32.mrf.mxu0
      %v1035 = vadd.f32 %v946, %v1034
      %v1036 = vpop.f32.mrf.mxu0
      %v1037 = vadd.f32 %v948, %v1036
      %1038 = vdwg.mxu0
      %1039 = vmatpush.bf16.msra.mxu0 %v820
      %1040 = vmatpush.bf16.msra.mxu0 %v819
      %1041 = vmatpush.bf16.msra.mxu0 %v818
      %1042 = vmatpush.bf16.msra.mxu0 %v817
      %1043 = vmatpush.bf16.msra.mxu0 %v816
      %1044 = vmatpush.bf16.msra.mxu0 %v815
      %1045 = vmatpush.bf16.msra.mxu0 %v814
      %1046 = vmatpush.bf16.msra.mxu0 %v813
      %1047 = vmatmul.bf16.gmra.mxu0 %v543
      %v1048 = vpop.f32.mrf.mxu0
      %v1049 = vadd.f32 %v960, %v1048
      %v1050 = vpop.f32.mrf.mxu0
      %v1051 = vadd.f32 %v962, %v1050
      %1052 = vmatmul.bf16.gmra.mxu0 %v547
      %v1053 = vpop.f32.mrf.mxu0
      %v1054 = vadd.f32 %v965, %v1053
      %v1055 = vpop.f32.mrf.mxu0
      %v1056 = vadd.f32 %v967, %v1055
      %1057 = vmatmul.bf16.gmra.mxu0 %v551
      %v1058 = vpop.f32.mrf.mxu0
      %v1059 = vadd.f32 %v970, %v1058
      %v1060 = vpop.f32.mrf.mxu0
      %v1061 = vadd.f32 %v972, %v1060
      %1062 = vmatmul.bf16.gmra.mxu0 %v555
      %v1063 = vpop.f32.mrf.mxu0
      %v1064 = vadd.f32 %v975, %v1063
      %v1065 = vpop.f32.mrf.mxu0
      %v1066 = vadd.f32 %v977, %v1065
      %1067 = vmatmul.bf16.gmra.mxu0 %v559
      %v1068 = vpop.f32.mrf.mxu0
      %v1069 = vadd.f32 %v980, %v1068
      %v1070 = vpop.f32.mrf.mxu0
      %v1071 = vadd.f32 %v982, %v1070
      %1072 = vmatmul.bf16.gmra.mxu0 %v563
      %v1073 = vpop.f32.mrf.mxu0
      %v1074 = vadd.f32 %v985, %v1073
      %v1075 = vpop.f32.mrf.mxu0
      %v1076 = vadd.f32 %v987, %v1075
      %1077 = vmatmul.bf16.gmra.mxu0 %v567
      %v1078 = vpop.f32.mrf.mxu0
      %v1079 = vadd.f32 %v990, %v1078
      %v1080 = vpop.f32.mrf.mxu0
      %v1081 = vadd.f32 %v992, %v1080
      %1082 = vmatmul.bf16.gmra.mxu0 %v571
      %v1083 = vpop.f32.mrf.mxu0
      %v1084 = vadd.f32 %v995, %v1083
      %v1085 = vpop.f32.mrf.mxu0
      %v1086 = vadd.f32 %v997, %v1085
      %1087 = vmatmul.bf16.gmra.mxu0 %v575
      %v1088 = vpop.f32.mrf.mxu0
      %v1089 = vadd.f32 %v1000, %v1088
      %v1090 = vpop.f32.mrf.mxu0
      %v1091 = vadd.f32 %v1002, %v1090
      %1092 = vmatmul.bf16.gmra.mxu0 %v579
      %v1093 = vpop.f32.mrf.mxu0
      %v1094 = vadd.f32 %v1005, %v1093
      %v1095 = vpop.f32.mrf.mxu0
      %v1096 = vadd.f32 %v1007, %v1095
      %1097 = vmatmul.bf16.gmra.mxu0 %v583
      %v1098 = vpop.f32.mrf.mxu0
      %v1099 = vadd.f32 %v1010, %v1098
      %v1100 = vpop.f32.mrf.mxu0
      %v1101 = vadd.f32 %v1012, %v1100
      %1102 = vmatmul.bf16.gmra.mxu0 %v587
      %v1103 = vpop.f32.mrf.mxu0
      %v1104 = vadd.f32 %v1015, %v1103
      %v1105 = vpop.f32.mrf.mxu0
      %v1106 = vadd.f32 %v1017, %v1105
      %1107 = vmatmul.bf16.gmra.mxu0 %v591
      %v1108 = vpop.f32.mrf.mxu0
      %v1109 = vadd.f32 %v1020, %v1108
      %v1110 = vpop.f32.mrf.mxu0
      %v1111 = vadd.f32 %v1022, %v1110
      %1112 = vmatmul.bf16.gmra.mxu0 %v595
      %v1113 = vpop.f32.mrf.mxu0
      %v1114 = vadd.f32 %v1025, %v1113
      %v1115 = vpop.f32.mrf.mxu0
      %v1116 = vadd.f32 %v1027, %v1115
      %1117 = vmatmul.bf16.gmra.mxu0 %v599
      %v1118 = vpop.f32.mrf.mxu0
      %v1119 = vadd.f32 %v1030, %v1118
      %v1120 = vpop.f32.mrf.mxu0
      %v1121 = vadd.f32 %v1032, %v1120
      %1122 = vmatmul.bf16.gmra.mxu0 %v603
      %v1123 = vpop.f32.mrf.mxu0
      %v1124 = vadd.f32 %v1035, %v1123
      %v1125 = vpop.f32.mrf.mxu0
      %v1126 = vadd.f32 %v1037, %v1125
      %1127 = vdwg.mxu0
      %1128 = vmatpush.bf16.msra.mxu0 %v828
      %1129 = vmatpush.bf16.msra.mxu0 %v827
      %1130 = vmatpush.bf16.msra.mxu0 %v826
      %1131 = vmatpush.bf16.msra.mxu0 %v825
      %1132 = vmatpush.bf16.msra.mxu0 %v824
      %1133 = vmatpush.bf16.msra.mxu0 %v823
      %1134 = vmatpush.bf16.msra.mxu0 %v822
      %1135 = vmatpush.bf16.msra.mxu0 %v821
      %1136 = vmatmul.bf16.gmra.mxu0 %v544
      %v1137 = vpop.f32.mrf.mxu0
      %v1138 = vadd.f32 %v1049, %v1137
      %v1139 = vpop.f32.mrf.mxu0
      %v1140 = vadd.f32 %v1051, %v1139
      %1141 = vmatmul.bf16.gmra.mxu0 %v548
      %v1142 = vpop.f32.mrf.mxu0
      %v1143 = vadd.f32 %v1054, %v1142
      %v1144 = vpop.f32.mrf.mxu0
      %v1145 = vadd.f32 %v1056, %v1144
      %1146 = vmatmul.bf16.gmra.mxu0 %v552
      %v1147 = vpop.f32.mrf.mxu0
      %v1148 = vadd.f32 %v1059, %v1147
      %v1149 = vpop.f32.mrf.mxu0
      %v1150 = vadd.f32 %v1061, %v1149
      %1151 = vmatmul.bf16.gmra.mxu0 %v556
      %v1152 = vpop.f32.mrf.mxu0
      %v1153 = vadd.f32 %v1064, %v1152
      %v1154 = vpop.f32.mrf.mxu0
      %v1155 = vadd.f32 %v1066, %v1154
      %1156 = vmatmul.bf16.gmra.mxu0 %v560
      %v1157 = vpop.f32.mrf.mxu0
      %v1158 = vadd.f32 %v1069, %v1157
      %v1159 = vpop.f32.mrf.mxu0
      %v1160 = vadd.f32 %v1071, %v1159
      %1161 = vmatmul.bf16.gmra.mxu0 %v564
      %v1162 = vpop.f32.mrf.mxu0
      %v1163 = vadd.f32 %v1074, %v1162
      %v1164 = vpop.f32.mrf.mxu0
      %v1165 = vadd.f32 %v1076, %v1164
      %1166 = vmatmul.bf16.gmra.mxu0 %v568
      %v1167 = vpop.f32.mrf.mxu0
      %v1168 = vadd.f32 %v1079, %v1167
      %v1169 = vpop.f32.mrf.mxu0
      %v1170 = vadd.f32 %v1081, %v1169
      %1171 = vmatmul.bf16.gmra.mxu0 %v572
      %v1172 = vpop.f32.mrf.mxu0
      %v1173 = vadd.f32 %v1084, %v1172
      %v1174 = vpop.f32.mrf.mxu0
      %v1175 = vadd.f32 %v1086, %v1174
      %1176 = vmatmul.bf16.gmra.mxu0 %v576
      %v1177 = vpop.f32.mrf.mxu0
      %v1178 = vadd.f32 %v1089, %v1177
      %v1179 = vpop.f32.mrf.mxu0
      %v1180 = vadd.f32 %v1091, %v1179
      %1181 = vmatmul.bf16.gmra.mxu0 %v580
      %v1182 = vpop.f32.mrf.mxu0
      %v1183 = vadd.f32 %v1094, %v1182
      %v1184 = vpop.f32.mrf.mxu0
      %v1185 = vadd.f32 %v1096, %v1184
      %1186 = vmatmul.bf16.gmra.mxu0 %v584
      %v1187 = vpop.f32.mrf.mxu0
      %v1188 = vadd.f32 %v1099, %v1187
      %v1189 = vpop.f32.mrf.mxu0
      %v1190 = vadd.f32 %v1101, %v1189
      %1191 = vmatmul.bf16.gmra.mxu0 %v588
      %v1192 = vpop.f32.mrf.mxu0
      %v1193 = vadd.f32 %v1104, %v1192
      %v1194 = vpop.f32.mrf.mxu0
      %v1195 = vadd.f32 %v1106, %v1194
      %1196 = vmatmul.bf16.gmra.mxu0 %v592
      %v1197 = vpop.f32.mrf.mxu0
      %v1198 = vadd.f32 %v1109, %v1197
      %v1199 = vpop.f32.mrf.mxu0
      %v1200 = vadd.f32 %v1111, %v1199
      %1201 = vmatmul.bf16.gmra.mxu0 %v596
      %v1202 = vpop.f32.mrf.mxu0
      %v1203 = vadd.f32 %v1114, %v1202
      %v1204 = vpop.f32.mrf.mxu0
      %v1205 = vadd.f32 %v1116, %v1204
      %1206 = vmatmul.bf16.gmra.mxu0 %v600
      %v1207 = vpop.f32.mrf.mxu0
      %v1208 = vadd.f32 %v1119, %v1207
      %v1209 = vpop.f32.mrf.mxu0
      %v1210 = vadd.f32 %v1121, %v1209
      %1211 = vmatmul.bf16.gmra.mxu0 %v604
      %v1212 = vpop.f32.mrf.mxu0
      %v1213 = vadd.f32 %v1124, %v1212
      %v1214 = vpop.f32.mrf.mxu0
      %v1215 = vadd.f32 %v1126, %v1214
      %1216 = vdwg.mxu0
      %v1217 = vpack.c.bf16 %v1138, %v1138
      %v1218 = vpack.c.bf16 %v1140, %v1140
      %v1219 = vpack.c.bf16 %v1143, %v1143
      %v1220 = vpack.c.bf16 %v1145, %v1145
      %v1221 = vpack.c.bf16 %v1148, %v1148
      %v1222 = vpack.c.bf16 %v1150, %v1150
      %v1223 = vpack.c.bf16 %v1153, %v1153
      %v1224 = vpack.c.bf16 %v1155, %v1155
      %v1225 = vpack.c.bf16 %v1158, %v1158
      %v1226 = vpack.c.bf16 %v1160, %v1160
      %v1227 = vpack.c.bf16 %v1163, %v1163
      %v1228 = vpack.c.bf16 %v1165, %v1165
      %v1229 = vpack.c.bf16 %v1168, %v1168
      %v1230 = vpack.c.bf16 %v1170, %v1170
      %v1231 = vpack.c.bf16 %v1173, %v1173
      %v1232 = vpack.c.bf16 %v1175, %v1175
      %v1233 = vpack.c.bf16 %v1178, %v1178
      %v1234 = vpack.c.bf16 %v1180, %v1180
      %v1235 = vpack.c.bf16 %v1183, %v1183
      %v1236 = vpack.c.bf16 %v1185, %v1185
      %v1237 = vpack.c.bf16 %v1188, %v1188
      %v1238 = vpack.c.bf16 %v1190, %v1190
      %v1239 = vpack.c.bf16 %v1193, %v1193
      %v1240 = vpack.c.bf16 %v1195, %v1195
      %v1241 = vpack.c.bf16 %v1198, %v1198
      %v1242 = vpack.c.bf16 %v1200, %v1200
      %v1243 = vpack.c.bf16 %v1203, %v1203
      %v1244 = vpack.c.bf16 %v1205, %v1205
      %v1245 = vpack.c.bf16 %v1208, %v1208
      %v1246 = vpack.c.bf16 %v1210, %v1210
      %v1247 = vpack.c.bf16 %v1213, %v1213
      %v1248 = vpack.c.bf16 %v1215, %v1215
      %1249 = vst [vmem:[%s213] sm:$0xf] %v1217
      %1250 = vst [vmem:[%s213 + $0x4] sm:$0xf] %v1218
      %1251 = vst [vmem:[%s213 + $0x8] sm:$0xf] %v1219
      %1252 = vst [vmem:[%s213 + $0xc] sm:$0xf] %v1220
      %1253 = vst [vmem:[%s213 + $0x10] sm:$0xf] %v1221
      %1254 = vst [vmem:[%s213 + $0x14] sm:$0xf] %v1222
      %1255 = vst [vmem:[%s213 + $0x18] sm:$0xf] %v1223
      %1256 = vst [vmem:[%s213 + $0x1c] sm:$0xf] %v1224
      %1257 = vst [vmem:[%s213 + $0x20] sm:$0xf] %v1225
      %1258 = vst [vmem:[%s213 + $0x24] sm:$0xf] %v1226
      %1259 = vst [vmem:[%s213 + $0x28] sm:$0xf] %v1227
      %1260 = vst [vmem:[%s213 + $0x2c] sm:$0xf] %v1228
      %1261 = vst [vmem:[%s213 + $0x30] sm:$0xf] %v1229
      %1262 = vst [vmem:[%s213 + $0x34] sm:$0xf] %v1230
      %1263 = vst [vmem:[%s213 + $0x38] sm:$0xf] %v1231
      %1264 = vst [vmem:[%s213 + $0x3c] sm:$0xf] %v1232
      %1265 = vst [vmem:[%s213 + $0x40] sm:$0xf] %v1233
      %1266 = vst [vmem:[%s213 + $0x44] sm:$0xf] %v1234
      %1267 = vst [vmem:[%s213 + $0x48] sm:$0xf] %v1235
      %1268 = vst [vmem:[%s213 + $0x4c] sm:$0xf] %v1236
      %1269 = vst [vmem:[%s213 + $0x50] sm:$0xf] %v1237
      %1270 = vst [vmem:[%s213 + $0x54] sm:$0xf] %v1238
      %1271 = vst [vmem:[%s213 + $0x58] sm:$0xf] %v1239
      %1272 = vst [vmem:[%s213 + $0x5c] sm:$0xf] %v1240
      %1273 = vst [vmem:[%s213 + $0x60] sm:$0xf] %v1241
      %1274 = vst [vmem:[%s213 + $0x64] sm:$0xf] %v1242
      %1275 = vst [vmem:[%s213 + $0x68] sm:$0xf] %v1243
      %1276 = vst [vmem:[%s213 + $0x6c] sm:$0xf] %v1244
      %1277 = vst [vmem:[%s213 + $0x70] sm:$0xf] %v1245
      %1278 = vst [vmem:[%s213 + $0x74] sm:$0xf] %v1246
      %1279 = vst [vmem:[%s213 + $0x78] sm:$0xf] %v1247
      %1280 = vst [vmem:[%s213 + $0x7c] sm:$0xf] %v1248
      %v1281 = vadd.f32 %v1138, %v1140
      %v1282 = vadd.f32 %v1281, %v1143
      %v1283 = vadd.f32 %v1282, %v1145
      %v1284 = vadd.f32 %v1283, %v1148
      %v1285 = vadd.f32 %v1284, %v1150
      %v1286 = vadd.f32 %v1285, %v1153
      %v1287 = vadd.f32 %v1286, %v1155
      %v1288 = vadd.f32 %v1287, %v1158
      %v1289 = vadd.f32 %v1288, %v1160
      %v1290 = vadd.f32 %v1289, %v1163
      %v1291 = vadd.f32 %v1290, %v1165
      %v1292 = vadd.f32 %v1291, %v1168
      %v1293 = vadd.f32 %v1292, %v1170
      %v1294 = vadd.f32 %v1293, %v1173
      %v1295 = vadd.f32 %v1294, %v1175
      %v1296 = vadd.f32 %v1295, %v1178
      %v1297 = vadd.f32 %v1296, %v1180
      %v1298 = vadd.f32 %v1297, %v1183
      %v1299 = vadd.f32 %v1298, %v1185
      %v1300 = vadd.f32 %v1299, %v1188
      %v1301 = vadd.f32 %v1300, %v1190
      %v1302 = vadd.f32 %v1301, %v1193
      %v1303 = vadd.f32 %v1302, %v1195
      %v1304 = vadd.f32 %v1303, %v1198
      %v1305 = vadd.f32 %v1304, %v1200
      %v1306 = vadd.f32 %v1305, %v1203
      %v1307 = vadd.f32 %v1306, %v1205
      %v1308 = vadd.f32 %v1307, %v1208
      %v1309 = vadd.f32 %v1308, %v1210
      %v1310 = vadd.f32 %v1309, %v1213
      %v1311 = vadd.f32 %v1310, %v1215
      %v1312 = vrot.slane %v1311, 4
      %v1313 = vadd.f32 %v1311, %v1312
      %v1314 = vrot.slane %v1313, 2
      %v1315 = vadd.f32 %v1313, %v1314
      %v1316 = vrot.slane %v1315, 1
      %v1317 = vadd.f32 %v1315, %v1316
      %1318 = vst [vmem:[%s217] sm:$0x1] %v1317
      %v1319 = vmul.f32 %v1138, %v1138
      %v1320 = vmul.f32 %v1140, %v1140
      %v1321 = vmul.f32 %v1143, %v1143
      %v1322 = vmul.f32 %v1145, %v1145
      %v1323 = vmul.f32 %v1148, %v1148
      %v1324 = vmul.f32 %v1150, %v1150
      %v1325 = vmul.f32 %v1153, %v1153
      %v1326 = vmul.f32 %v1155, %v1155
      %v1327 = vmul.f32 %v1158, %v1158
      %v1328 = vmul.f32 %v1160, %v1160
      %v1329 = vmul.f32 %v1163, %v1163
      %v1330 = vmul.f32 %v1165, %v1165
      %v1331 = vmul.f32 %v1168, %v1168
      %v1332 = vmul.f32 %v1170, %v1170
      %v1333 = vmul.f32 %v1173, %v1173
      %v1334 = vmul.f32 %v1175, %v1175
      %v1335 = vmul.f32 %v1178, %v1178
      %v1336 = vmul.f32 %v1180, %v1180
      %v1337 = vmul.f32 %v1183, %v1183
      %v1338 = vmul.f32 %v1185, %v1185
      %v1339 = vmul.f32 %v1188, %v1188
      %v1340 = vmul.f32 %v1190, %v1190
      %v1341 = vmul.f32 %v1193, %v1193
      %v1342 = vmul.f32 %v1195, %v1195
      %v1343 = vmul.f32 %v1198, %v1198
      %v1344 = vmul.f32 %v1200, %v1200
      %v1345 = vmul.f32 %v1203, %v1203
      %v1346 = vmul.f32 %v1205, %v1205
      %v1347 = vmul.f32 %v1208, %v1208
      %v1348 = vmul.f32 %v1210, %v1210
      %v1349 = vmul.f32 %v1213, %v1213
      %v1350 = vmul.f32 %v1215, %v1215
      %v1351 = vadd.f32 %v1319, %v1320
      %v1352 = vadd.f32 %v1351, %v1321
      %v1353 = vadd.f32 %v1352, %v1322
      %v1354 = vadd.f32 %v1353, %v1323
      %v1355 = vadd.f32 %v1354, %v1324
      %v1356 = vadd.f32 %v1355, %v1325
      %v1357 = vadd.f32 %v1356, %v1326
      %v1358 = vadd.f32 %v1357, %v1327
      %v1359 = vadd.f32 %v1358, %v1328
      %v1360 = vadd.f32 %v1359, %v1329
      %v1361 = vadd.f32 %v1360, %v1330
      %v1362 = vadd.f32 %v1361, %v1331
      %v1363 = vadd.f32 %v1362, %v1332
      %v1364 = vadd.f32 %v1363, %v1333
      %v1365 = vadd.f32 %v1364, %v1334
      %v1366 = vadd.f32 %v1365, %v1335
      %v1367 = vadd.f32 %v1366, %v1336
      %v1368 = vadd.f32 %v1367, %v1337
      %v1369 = vadd.f32 %v1368, %v1338
      %v1370 = vadd.f32 %v1369, %v1339
      %v1371 = vadd.f32 %v1370, %v1340
      %v1372 = vadd.f32 %v1371, %v1341
      %v1373 = vadd.f32 %v1372, %v1342
      %v1374 = vadd.f32 %v1373, %v1343
      %v1375 = vadd.f32 %v1374, %v1344
      %v1376 = vadd.f32 %v1375, %v1345
      %v1377 = vadd.f32 %v1376, %v1346
      %v1378 = vadd.f32 %v1377, %v1347
      %v1379 = vadd.f32 %v1378, %v1348
      %v1380 = vadd.f32 %v1379, %v1349
      %v1381 = vadd.f32 %v1380, %v1350
      %v1382 = vrot.slane %v1381, 4
      %v1383 = vadd.f32 %v1381, %v1382
      %v1384 = vrot.slane %v1383, 2
      %v1385 = vadd.f32 %v1383, %v1384
      %v1386 = vrot.slane %v1385, 1
      %v1387 = vadd.f32 %v1385, %v1386
      %1388 = vst [vmem:[%s220] sm:$0x1] %v1387
      %s1389 = smul.u32 32, %s16
      %p1390 = scmp.lt.s32.totalorder %s1389, 63
      %s1391 = scalar_select %p1390, %s1389, 63
      %s1392 = smul.addr %s1391, 4
      %s1393 = scalar_lea.vmem %s2, %s1392
      %p1394 = scmp.lt.s32.totalorder %s16, 1
      %s1395 = scalar_select %p1394, %s16, 1
      %s1396 = scalar_lea.vmem %s3, %s1395
      %p1397 = scmp.lt.s32.totalorder %s16, 1
      %s1398 = scalar_select %p1397, %s16, 1
      %s1399 = scalar_lea.vmem %s4, %s1398
      // Predicated region
      $region29: #{bottleneck_forward.4} parent=27 // pred_check
        %p1400 = pneg %p81
      $region30: #{bottleneck_forward.4} parent=27 // pred_check_branch
        %1402 = sbr.rel (%p1400) target = $region32
      $region31: #{bottleneck_forward.4} parent=27 // pred_region
        %s1403 = smul.u32 32, %s16
      $region32: #{bottleneck_forward.4} parent=27 // pred_fallthru
        _
      // Predicated region
      $region33: #{bottleneck_forward.4} parent=27 // pred_check
        %p1404 = pneg %p107
      $region34: #{bottleneck_forward.4} parent=27 // pred_check_branch
        %1406 = sbr.rel (%p1404) target = $region36
      $region35: #{bottleneck_forward.4} parent=27 // pred_region
        _
      $region36: #{bottleneck_forward.4} parent=27 // pred_fallthru
        _
      // Predicated region
      $region37: #{bottleneck_forward.4} parent=27 // pred_check
        %p1407 = pneg %p133
      $region38: #{bottleneck_forward.4} parent=27 // pred_check_branch
        %1409 = sbr.rel (%p1407) target = $region40
      $region39: #{bottleneck_forward.4} parent=27 // pred_region
        _
      $region40: #{bottleneck_forward.4} parent=27 // pred_fallthru
        _
    $region28: #{bottleneck_forward.4} parent=5 // pred_fallthru
      _
    %p1410 = scmp.le.s32.totalorder 2, %s11
    // Predicated region
    $region41: #{bottleneck_forward.4} parent=5 // pred_check
      %p1411 = pneg %p1410
    $region42: #{bottleneck_forward.4} parent=5 // pred_check_branch
      %1413 = sbr.rel (%p1411) target = $region44
    $region43: #{bottleneck_forward.4} parent=5 // pred_region
      %s1414 = ssub.s32 %s11, 2
      // Predicated region
      $region45: #{bottleneck_forward.4} parent=43 // pred_check
        %p1415 = pneg %p87
      $region46: #{bottleneck_forward.4} parent=43 // pred_check_branch
        %1417 = sbr.rel (%p1415) target = $region48
      $region47: #{bottleneck_forward.4} parent=43 // pred_region
        %s1418 = smul.u32 32, %s17
        %p1419 = scmp.lt.s32.totalorder %s1418, 63
        %s1420 = scalar_select %p1419, %s1418, 63
        %s1421 = smul.addr %s1420, 4
        %s1422 = scalar_lea.vmem %s2, %s1421
      $region48: #{bottleneck_forward.4} parent=43 // pred_fallthru
        _
      // Predicated region
      $region49: #{bottleneck_forward.4} parent=43 // pred_check
        %p1423 = pneg %p113
      $region50: #{bottleneck_forward.4} parent=43 // pred_check_branch
        %1425 = sbr.rel (%p1423) target = $region52
      $region51: #{bottleneck_forward.4} parent=43 // pred_region
        %p1426 = scmp.lt.s32.totalorder %s17, 1
        %s1427 = scalar_select %p1426, %s17, 1
        %s1428 = scalar_lea.vmem %s3, %s1427
      $region52: #{bottleneck_forward.4} parent=43 // pred_fallthru
        _
      // Predicated region
      $region53: #{bottleneck_forward.4} parent=43 // pred_check
        %p1429 = pneg %p139
      $region54: #{bottleneck_forward.4} parent=43 // pred_check_branch
        %1431 = sbr.rel (%p1429) target = $region56
      $region55: #{bottleneck_forward.4} parent=43 // pred_region
        %p1432 = scmp.lt.s32.totalorder %s17, 1
        %s1433 = scalar_select %p1432, %s17, 1
        %s1434 = scalar_lea.vmem %s4, %s1433
      $region56: #{bottleneck_forward.4} parent=43 // pred_fallthru
        _
    $region44: #{bottleneck_forward.4} parent=5 // pred_fallthru
      _
  $region6: #{bottleneck_forward.4} parent=0 // loop_footer
    %s15 = sadd.s32 1, %s11
  $region7: #{bottleneck_forward.4} parent=0 // loop_footer_branch
    %10 = sbr.rel target = $region3
  $region8: #{bottleneck_forward.4} parent=0 // loop_exit
    _

// kernel: bottleneck_forward.7
$region0: #{bottleneck_forward.7}
  #allocation0 [shape = 'u32[]', space=smem, size = 0x4, offset = 0x4, fixed_abs, tag = 'smem constant byte address 0x4 - core index']
  #allocation1 [shape = 'u32[72,128]{1,0:T(1,128)}', space=vmem, size = 0x9000, scoped, tag = 'internal scratch']
  %s0 = inlined_call_operand.vmem [shape: bf16[512,512], index: 0, kind: input, shape index: {}]
  %s1 = inlined_call_operand.vmem [shape: bf16[512,512], index: 1, kind: input, shape index: {}]
  %s2 = inlined_call_operand.vmem [shape: f32[2,1,512], index: 2, kind: input, shape index: {}]
  %s3 = inlined_call_operand.vmem [shape: f32[2,1,512], index: 3, kind: input, shape index: {}]
  %s4 = inlined_call_operand.vmem [shape: f32[1,512], index: 4, kind: input, shape index: {}]
  %s5 = inlined_call_operand.vmem [shape: f32[1,512], index: 5, kind: input, shape index: {}]
  %s6 = inlined_call_operand.hbm [shape: f32[512,512], index: 6, kind: output, shape index: {}]
  %s7 = sld [smem:[#allocation0]]
  $region57: #{bottleneck_forward.7} parent=0
    _
  %s9 = ssub.s32 1, %s7
  %s10 = scalar_select 0, %s9, %s7
  $region1: #{bottleneck_forward.7} parent=0
    #allocation2 [shape = 'u8[1048576]{0}', space=vmem, size = 0x100000, scoped, tag = 'output window, operand 0']
    #allocation3 [shape = 's32[2]{0}', space=sflag, size = 0x8, scoped, tag = 'scoped memory for bottleneck_forward.7']
    %11 = vsyncpa [#allocation3], 0
    %s12 = scalar_lea.sflag [#allocation3], 1
    %13 = vsyncpa %s12, 0
    loop: start=0, step=1, limit=4
    $region2: #{bottleneck_forward.7} parent=1 // loop_pre_header
      _
    $region3: #{bottleneck_forward.7} parent=1 // loop_header
      %s15 = sphi 0, %s19
      %p16 = scmp.ge.s32.totalorder %s15, 4
      %s25 = sphi 0, %s27
      %s28 = sphi 0, %s25
      %s29 = sphi 0, %s28
      %s45 = sphi 0, %s29
      %s51 = sphi 0, %s53
      %s54 = sphi 0, %s51
      %s55 = sphi 0, %s54
      %s71 = sphi 0, %s55
      %s75 = sphi 0, %s75
      %s77 = sphi 0, %s75
      %s78 = sphi 0, %s77
      %s92 = sphi 0, %s78
      %s96 = sphi 0, %s96
      %s98 = sphi 0, %s96
      %s99 = sphi 0, %s98
      %s113 = sphi 0, %s99
      %s117 = sphi 0, %s117
      %s119 = sphi 0, %s117
      %s120 = sphi 0, %s119
      %s134 = sphi 0, %s120
      %s138 = sphi 0, %s138
      %s140 = sphi 0, %s138
      %s141 = sphi 0, %s140
      %s155 = sphi 0, %s141
      %s161 = sphi 0, %s163
      %s164 = sphi 0, %s161
      %s165 = sphi 0, %s164
      %s181 = sphi 0, %s165
    $region4: #{bottleneck_forward.7} parent=1 // loop_header_branch
      %18 = sbr.rel (%p16) target = $region8
    $region5: #{bottleneck_forward.7} parent=1 // loop_body
      %s20 = ssub.s32 %s15, 1
      %s21 = ssub.s32 %s15, 2
      %s22 = sadd.s32 %s15, 1
      %s23 = ssub.s32 %s15, %s22
      %p24 = scmp.eq.s32.totalorder %s23, 0
      %s26 = sadd.s32 %s25, 1
      %s27 = scalar_select %p24, %s25, %s26
      %p30 = pneg %p24
      %p31 = scmp.eq.s32.totalorder %s15, 1
      %p32 = por %p30, %p31
      %p33 = scmp.ne.s32.totalorder %s25, %s28
      %p34 = scmp.eq.s32.totalorder %s15, 0
      %p35 = por %p33, %p34
      %p36 = scmp.ne.s32.totalorder %s25, %s28
      %p37 = scmp.eq.s32.totalorder %s20, 1
      %p38 = por %p36, %p37
      %p39 = scmp.ne.s32.totalorder %s28, %s29
      %p40 = scmp.eq.s32.totalorder %s20, 0
      %p41 = por %p39, %p40
      %p42 = scmp.ne.s32.totalorder %s28, %s29
      %p43 = scmp.eq.s32.totalorder %s21, 1
      %p44 = por %p42, %p43
      %p46 = scmp.ne.s32.totalorder %s29, %s45
      %p47 = scmp.eq.s32.totalorder %s21, 0
      %p48 = por %p46, %p47
      %s49 = ssub.s32 %s15, %s22
      %p50 = scmp.eq.s32.totalorder %s49, 0
      %s52 = sadd.s32 %s51, 1
      %s53 = scalar_select %p50, %s51, %s52
      %p56 = pneg %p50
      %p57 = scmp.eq.s32.totalorder %s15, 1
      %p58 = por %p56, %p57
      %p59 = scmp.ne.s32.totalorder %s51, %s54
      %p60 = scmp.eq.s32.totalorder %s15, 0
      %p61 = por %p59, %p60
      %p62 = scmp.ne.s32.totalorder %s51, %s54
      %p63 = scmp.eq.s32.totalorder %s20, 1
      %p64 = por %p62, %p63
      %p65 = scmp.ne.s32.totalorder %s54, %s55
      %p66 = scmp.eq.s32.totalorder %s20, 0
      %p67 = por %p65, %p66
      %p68 = scmp.ne.s32.totalorder %s54, %s55
      %p69 = scmp.eq.s32.totalorder %s21, 1
      %p70 = por %p68, %p69
      %p72 = scmp.ne.s32.totalorder %s55, %s71
      %p73 = scmp.eq.s32.totalorder %s21, 0
      %p74 = por %p72, %p73
      %s76 = sadd.s32 %s75, 1
      %p79 = scmp.eq.s32.totalorder %s15, 1
      %p80 = scmp.ne.s32.totalorder %s75, %s77
      %p81 = scmp.eq.s32.totalorder %s15, 0
      %p82 = por %p80, %p81
      %p83 = scmp.ne.s32.totalorder %s75, %s77
      %p84 = scmp.eq.s32.totalorder %s20, 1
      %p85 = por %p83, %p84
      %p86 = scmp.ne.s32.totalorder %s77, %s78
      %p87 = scmp.eq.s32.totalorder %s20, 0
      %p88 = por %p86, %p87
      %p89 = scmp.ne.s32.totalorder %s77, %s78
      %p90 = scmp.eq.s32.totalorder %s21, 1
      %p91 = por %p89, %p90
      %p93 = scmp.ne.s32.totalorder %s78, %s92
      %p94 = scmp.eq.s32.totalorder %s21, 0
      %p95 = por %p93, %p94
      %s97 = sadd.s32 %s96, 1
      %p100 = scmp.eq.s32.totalorder %s15, 1
      %p101 = scmp.ne.s32.totalorder %s96, %s98
      %p102 = scmp.eq.s32.totalorder %s15, 0
      %p103 = por %p101, %p102
      %p104 = scmp.ne.s32.totalorder %s96, %s98
      %p105 = scmp.eq.s32.totalorder %s20, 1
      %p106 = por %p104, %p105
      %p107 = scmp.ne.s32.totalorder %s98, %s99
      %p108 = scmp.eq.s32.totalorder %s20, 0
      %p109 = por %p107, %p108
      %p110 = scmp.ne.s32.totalorder %s98, %s99
      %p111 = scmp.eq.s32.totalorder %s21, 1
      %p112 = por %p110, %p111
      %p114 = scmp.ne.s32.totalorder %s99, %s113
      %p115 = scmp.eq.s32.totalorder %s21, 0
      %p116 = por %p114, %p115
      %s118 = sadd.s32 %s117, 1
      %p121 = scmp.eq.s32.totalorder %s15, 1
      %p122 = scmp.ne.s32.totalorder %s117, %s119
      %p123 = scmp.eq.s32.totalorder %s15, 0
      %p124 = por %p122, %p123
      %p125 = scmp.ne.s32.totalorder %s117, %s119
      %p126 = scmp.eq.s32.totalorder %s20, 1
      %p127 = por %p125, %p126
      %p128 = scmp.ne.s32.totalorder %s119, %s120
      %p129 = scmp.eq.s32.totalorder %s20, 0
      %p130 = por %p128, %p129
      %p131 = scmp.ne.s32.totalorder %s119, %s120
      %p132 = scmp.eq.s32.totalorder %s21, 1
      %p133 = por %p131, %p132
      %p135 = scmp.ne.s32.totalorder %s120, %s134
      %p136 = scmp.eq.s32.totalorder %s21, 0
      %p137 = por %p135, %p136
      %s139 = sadd.s32 %s138, 1
      %p142 = scmp.eq.s32.totalorder %s15, 1
      %p143 = scmp.ne.s32.totalorder %s138, %s140
      %p144 = scmp.eq.s32.totalorder %s15, 0
      %p145 = por %p143, %p144
      %p146 = scmp.ne.s32.totalorder %s138, %s140
      %p147 = scmp.eq.s32.totalorder %s20, 1
      %p148 = por %p146, %p147
      %p149 = scmp.ne.s32.totalorder %s140, %s141
      %p150 = scmp.eq.s32.totalorder %s20, 0
      %p151 = por %p149, %p150
      %p152 = scmp.ne.s32.totalorder %s140, %s141
      %p153 = scmp.eq.s32.totalorder %s21, 1
      %p154 = por %p152, %p153
      %p156 = scmp.ne.s32.totalorder %s141, %s155
      %p157 = scmp.eq.s32.totalorder %s21, 0
      %p158 = por %p156, %p157
      %s159 = ssub.s32 %s15, %s22
      %p160 = scmp.eq.s32.totalorder %s159, 0
      %s162 = sadd.s32 %s161, 1
      %s163 = scalar_select %p160, %s161, %s162
      %p166 = pneg %p160
      %p167 = scmp.eq.s32.totalorder %s15, 1
      %p168 = por %p166, %p167
      %p169 = scmp.ne.s32.totalorder %s161, %s164
      %p170 = scmp.eq.s32.totalorder %s15, 0
      %p171 = por %p169, %p170
      %p172 = scmp.ne.s32.totalorder %s161, %s164
      %p173 = scmp.eq.s32.totalorder %s20, 1
      %p174 = por %p172, %p173
      %p175 = scmp.ne.s32.totalorder %s164, %s165
      %p176 = scmp.eq.s32.totalorder %s20, 0
      %p177 = por %p175, %p176
      %p178 = scmp.ne.s32.totalorder %s164, %s165
      %p179 = scmp.eq.s32.totalorder %s21, 1
      %p180 = por %p178, %p179
      %p182 = scmp.ne.s32.totalorder %s165, %s181
      %p183 = scmp.eq.s32.totalorder %s21, 0
      %p184 = por %p182, %p183
      %p185 = scmp.le.s32.totalorder 1, %s15
      %p186 = scmp.lt.s32.totalorder %s15, 3
      %p187 = pnand %p185, %p186
      %p188 = pneg %p187
      // Predicated region
      $region9: #{bottleneck_forward.7} parent=5 // pred_check
        _
      $region10: #{bottleneck_forward.7} parent=5 // pred_check_branch
        %190 = sbr.rel (%p187) target = $region12
      $region11: #{bottleneck_forward.7} parent=5 // pred_region
        %s191 = ssub.s32 %s15, 1
        // Predicated region
        $region13: #{bottleneck_forward.7} parent=11 // pred_check
          %p192 = pneg %p88
        $region14: #{bottleneck_forward.7} parent=11 // pred_check_branch
          %194 = sbr.rel (%p192) target = $region16
        $region15: #{bottleneck_forward.7} parent=11 // pred_region
          _
        $region16: #{bottleneck_forward.7} parent=11 // pred_fallthru
          _
        // Predicated region
        $region17: #{bottleneck_forward.7} parent=11 // pred_check
          %p195 = pneg %p109
        $region18: #{bottleneck_forward.7} parent=11 // pred_check_branch
          %197 = sbr.rel (%p195) target = $region20
        $region19: #{bottleneck_forward.7} parent=11 // pred_region
          _
        $region20: #{bottleneck_forward.7} parent=11 // pred_fallthru
          _
        // Predicated region
        $region21: #{bottleneck_forward.7} parent=11 // pred_check
          %p198 = pneg %p130
        $region22: #{bottleneck_forward.7} parent=11 // pred_check_branch
          %200 = sbr.rel (%p198) target = $region24
        $region23: #{bottleneck_forward.7} parent=11 // pred_region
          _
        $region24: #{bottleneck_forward.7} parent=11 // pred_fallthru
          _
        // Predicated region
        $region25: #{bottleneck_forward.7} parent=11 // pred_check
          %p201 = pneg %p151
        $region26: #{bottleneck_forward.7} parent=11 // pred_check_branch
          %203 = sbr.rel (%p201) target = $region28
        $region27: #{bottleneck_forward.7} parent=11 // pred_region
          _
        $region28: #{bottleneck_forward.7} parent=11 // pred_fallthru
          _
      $region12: #{bottleneck_forward.7} parent=5 // pred_fallthru
        _
      %p204 = scmp.lt.s32.totalorder %s15, 2
      // Predicated region
      $region29: #{bottleneck_forward.7} parent=5 // pred_check
        %p205 = pneg %p204
      $region30: #{bottleneck_forward.7} parent=5 // pred_check_branch
        %207 = sbr.rel (%p205) target = $region32
      $region31: #{bottleneck_forward.7} parent=5 // pred_region
        // Predicated region
        $region33: #{bottleneck_forward.7} parent=31 // pred_check
          %p208 = pneg %p35
        $region34: #{bottleneck_forward.7} parent=31 // pred_check_branch
          %210 = sbr.rel (%p208) target = $region36
        $region35: #{bottleneck_forward.7} parent=31 // pred_region
          %s211 = smul.u32 32, %s15
          %p212 = scmp.lt.s32.totalorder %s211, 63
          %s213 = scalar_select %p212, %s211, 63
          %s214 = smul.addr %s213, 4
          %s215 = smul.addr %s214, 4
          %s216 = scalar_lea.vmem %s0, %s215
          %s217 = smul.u32 32, %s15
        $region36: #{bottleneck_forward.7} parent=31 // pred_fallthru
          _
        // Predicated region
        $region37: #{bottleneck_forward.7} parent=31 // pred_check
          %p218 = pneg %p61
        $region38: #{bottleneck_forward.7} parent=31 // pred_check_branch
          %220 = sbr.rel (%p218) target = $region40
        $region39: #{bottleneck_forward.7} parent=31 // pred_region
          %s221 = smul.u32 32, %s15
          %p222 = scmp.lt.s32.totalorder %s221, 63
          %s223 = scalar_select %p222, %s221, 63
          %s224 = smul.addr %s223, 4
          %s225 = smul.addr %s224, 4
          %s226 = scalar_lea.vmem %s1, %s225
          %s227 = smul.u32 32, %s15
        $region40: #{bottleneck_forward.7} parent=31 // pred_fallthru
          _
      $region32: #{bottleneck_forward.7} parent=5 // pred_fallthru
        _
      %p228 = scmp.le.s32.totalorder 1, %s15
      %p229 = scmp.lt.s32.totalorder %s15, 3
      %p230 = pnand %p228, %p229
      %p231 = pneg %p230
      // Predicated region
      $region41: #{bottleneck_forward.7} parent=5 // pred_check
        _
      $region42: #{bottleneck_forward.7} parent=5 // pred_check_branch
        %233 = sbr.rel (%p230) target = $region44
      $region43: #{bottleneck_forward.7} parent=5 // pred_region
        %s234 = ssub.s32 %s15, 1
        %s235 = smul.u32 32, %s20
        %p236 = scmp.lt.s32.totalorder %s235, 63
        %s237 = scalar_select %p236, %s235, 63
        %s238 = smul.addr %s237, 4
        %s239 = smul.addr %s238, 4
        %s240 = scalar_lea.vmem %s0, %s239
        %p241 = pneg %p41
        %p242 = pneg %p38
        %s243 = smul.u32 32, %s20
        %p244 = scmp.lt.s32.totalorder %s243, 63
        %s245 = scalar_select %p244, %s243, 63
        %s246 = smul.addr %s245, 4
        %s247 = smul.addr %s246, 4
        %s248 = scalar_lea.vmem %s1, %s247
        %p249 = pneg %p67
        %p250 = pneg %p64
        %p251 = pneg %p88
        %p252 = pneg %p85
        %p253 = pneg %p109
        %p254 = pneg %p106
        %p255 = pneg %p130
        %p256 = pneg %p127
        %p257 = pneg %p151
        %p258 = pneg %p148
        %p259 = pneg %p177
        %p260 = pneg %p174
        %s261 = sand.u32 %s164, 1
        %s262 = scalar_lea.sflag [#allocation3], %s261
        %s263 = sand.u32 %s164, 1
        %s264 = smul.addr %s263, 1024
        %s265 = scalar_lea.vmem [#allocation2], %s264
        %s266 = smul.u32 32, %s20
        %p267 = scmp.lt.s32.totalorder %s266, 63
        %s268 = scalar_select %p267, %s266, 63
        %s269 = smul.addr %s268, 4
        %s270 = smul.addr %s269, 4
        %s271 = scalar_lea.vmem %s0, %s270
        %s272 = smul.u32 32, %s20
        %s273 = smul.u32 32, %s20
        %p274 = scmp.lt.s32.totalorder %s273, 63
        %s275 = scalar_select %p274, %s273, 63
        %s276 = smul.addr %s275, 4
        %s277 = smul.addr %s276, 4
        %s278 = scalar_lea.vmem %s1, %s277
        %s279 = smul.u32 32, %s20
        %s280 = smul.u32 32, %s20
        %v281 = vld [vmem:[%s2] sm:$0xf]
        %v282 = vld [vmem:[%s2 + $0x4] sm:$0xf]
        %v283 = vld [vmem:[%s3] sm:$0xf]
        %v284 = vld [vmem:[%s3 + $0x4] sm:$0xf]
        %v285 = vld [vmem:[%s4] sm:$0xf]
        %v286 = vld [vmem:[%s5] sm:$0xf]
        %v289 = vperm.slane %v281, 0
        %v290 = vperm.slane %v281, 1
        %v291 = vperm.slane %v281, 2
        %v292 = vperm.slane %v281, 3
        %v293 = vperm.slane %v282, 0
        %v294 = vperm.slane %v282, 1
        %v295 = vperm.slane %v282, 2
        %v296 = vperm.slane %v282, 3
        %vm305 = vcmask 1040384
        %v306 = vsel %vm305, %v289, 0.0
        %v307 = vsel %vm305, %v293, 0.0
        %v308 = vadd.f32 %v306, %v307
        %v309 = vsel %vm305, %v290, 0.0
        %v310 = vsel %vm305, %v294, 0.0
        %v311 = vadd.f32 %v309, %v310
        %v312 = vsel %vm305, %v291, 0.0
        %v313 = vsel %vm305, %v295, 0.0
        %v314 = vadd.f32 %v312, %v313
        %v315 = vsel %vm305, %v292, 0.0
        %v316 = vsel %vm305, %v296, 0.0
        %v317 = vadd.f32 %v315, %v316
        %v318 = vrcp.pop 512.0
        %v319 = vmul.f32 512.0, %v318
        %v320 = vsub.f32 1.0, %v319
        %v321 = vmul.f32 %v318, %v320
        %v322 = vadd.f32 %v318, %v321
        %vm323 = vweird.f32 %v318
        %v324 = vsel %vm323, %v318, %v322
        %v325 = vmul.f32 %v308, %v324
        %v326 = vmul.f32 %v311, %v324
        %v327 = vmul.f32 %v314, %v324
        %v328 = vmul.f32 %v317, %v324
        %v331 = vperm.slane %v283, 0
        %v332 = vperm.slane %v283, 1
        %v333 = vperm.slane %v283, 2
        %v334 = vperm.slane %v283, 3
        %v335 = vperm.slane %v284, 0
        %v336 = vperm.slane %v284, 1
        %v337 = vperm.slane %v284, 2
        %v338 = vperm.slane %v284, 3
        %v347 = vsel %vm305, %v331, 0.0
        %v348 = vsel %vm305, %v335, 0.0
        %v349 = vadd.f32 %v347, %v348
        %v350 = vsel %vm305, %v332, 0.0
        %v351 = vsel %vm305, %v336, 0.0
        %v352 = vadd.f32 %v350, %v351
        %v353 = vsel %vm305, %v333, 0.0
        %v354 = vsel %vm305, %v337, 0.0
        %v355 = vadd.f32 %v353, %v354
        %v356 = vsel %vm305, %v334, 0.0
        %v357 = vsel %vm305, %v338, 0.0
        %v358 = vadd.f32 %v356, %v357
        %v359 = vmul.f32 %v349, %v324
        %v360 = vmul.f32 %v352, %v324
        %v361 = vmul.f32 %v355, %v324
        %v362 = vmul.f32 %v358, %v324
        %v363 = vmul.f32 %v325, %v325
        %v364 = vmul.f32 %v326, %v326
        %v365 = vmul.f32 %v327, %v327
        %v366 = vmul.f32 %v328, %v328
        %v367 = vsub.f32 %v359, %v363
        %v368 = vsub.f32 %v360, %v364
        %v369 = vsub.f32 %v361, %v365
        %v370 = vsub.f32 %v362, %v366
        %v371 = vmax.f32 %v367, 0.0
        %v372 = vmax.f32 %v368, 0.0
        %v373 = vmax.f32 %v369, 0.0
        %v374 = vmax.f32 %v370, 0.0
        %v375 = vadd.f32 %v371, 1e-05
        %v376 = vadd.f32 %v372, 1e-05
        %v377 = vadd.f32 %v373, 1e-05
        %v378 = vadd.f32 %v374, 1e-05
        %v379 = vrsqrt.pop %v375
        %v380 = vmul.f32 %v379, %v375
        %v381 = vmul.f32 %v380, %v379
        %v382 = vmul.f32 0.5, %v381
        %v383 = vsub.f32 1.5, %v382
        %v384 = vmul.f32 %v379, %v383
        %v385 = vmul.f32 %v375, %v384
        %vm386 = vcmp.eq.f32.partialorder %v375, inf
        %v387 = vsel %vm386, %v375, %v385
        %vm388 = vcmp.eq.f32.partialorder %v375, 0.0
        %v389 = vand.u32 %v375, 2147483648
        %v390 = vsel %vm388, %v389, %v387
        %v391 = vrsqrt.pop %v376
        %v392 = vmul.f32 %v391, %v376
        %v393 = vmul.f32 %v392, %v391
        %v394 = vmul.f32 0.5, %v393
        %v395 = vsub.f32 1.5, %v394
        %v396 = vmul.f32 %v391, %v395
        %v397 = vmul.f32 %v376, %v396
        %vm398 = vcmp.eq.f32.partialorder %v376, inf
        %v399 = vsel %vm398, %v376, %v397
        %vm400 = vcmp.eq.f32.partialorder %v376, 0.0
        %v401 = vand.u32 %v376, 2147483648
        %v402 = vsel %vm400, %v401, %v399
        %v403 = vrsqrt.pop %v377
        %v404 = vmul.f32 %v403, %v377
        %v405 = vmul.f32 %v404, %v403
        %v406 = vmul.f32 0.5, %v405
        %v407 = vsub.f32 1.5, %v406
        %v408 = vmul.f32 %v403, %v407
        %v409 = vmul.f32 %v377, %v408
        %vm410 = vcmp.eq.f32.partialorder %v377, inf
        %v411 = vsel %vm410, %v377, %v409
        %vm412 = vcmp.eq.f32.partialorder %v377, 0.0
        %v413 = vand.u32 %v377, 2147483648
        %v414 = vsel %vm412, %v413, %v411
        %v415 = vrsqrt.pop %v378
        %v416 = vmul.f32 %v415, %v378
        %v417 = vmul.f32 %v416, %v415
        %v418 = vmul.f32 0.5, %v417
        %v419 = vsub.f32 1.5, %v418
        %v420 = vmul.f32 %v415, %v419
        %v421 = vmul.f32 %v378, %v420
        %vm422 = vcmp.eq.f32.partialorder %v378, inf
        %v423 = vsel %vm422, %v378, %v421
        %vm424 = vcmp.eq.f32.partialorder %v378, 0.0
        %v425 = vand.u32 %v378, 2147483648
        %v426 = vsel %vm424, %v425, %v423
        %v431 = vrot.slane %v402, 7
        %v432 = vrot.slane %v414, 6
        %v433 = vrot.slane %v426, 5
        %v434 = vsel %vm305, %v390, %v431
        %vm435 = vcmask 1042434
        %v436 = vsel %vm435, %v432, %v433
        %vm437 = vcmask 1041408
        %v438 = vsel %vm437, %v434, %v436
        %v440 = vrcp.pop %v438
        %v441 = vmul.f32 %v438, %v440
        %v442 = vsub.f32 1.0, %v441
        %v443 = vmul.f32 %v440, %v442
        %v444 = vadd.f32 %v440, %v443
        %vm445 = vweird.f32 %v438
        %vm446 = vweird.f32 %v440
        %vm447 = vmor %vm445, %vm446
        %v448 = vsel %vm447, %v440, %v444
        %v449 = vand.u32 2147483647, %v438
        %vm450 = vcmp.eq.f32.partialorder %v449, 8.507059e+37
        %v451 = vand.u32 %v438, 2147483648
        %v452 = vor.u32 1.1754944e-38, %v451
        %v453 = vsel %vm450, %v452, %v448
        %v454 = vmul.f32 %v285, %v453
        %v456 = vperm.slane %v454, 0
        %v457 = vperm.slane %v454, 1
        %v458 = vperm.slane %v454, 2
        %v459 = vperm.slane %v454, 3
        %v464 = vmul.f32 %v325, %v456
        %v465 = vmul.f32 %v326, %v457
        %v466 = vmul.f32 %v327, %v458
        %v467 = vmul.f32 %v328, %v459
        %v472 = vrot.slane %v465, 7
        %v473 = vrot.slane %v466, 6
        %v474 = vrot.slane %v467, 5
        %v475 = vsel %vm305, %v464, %v472
        %v476 = vsel %vm435, %v473, %v474
        %v477 = vsel %vm437, %v475, %v476
        %v479 = vsub.f32 %v286, %v477
        %v480 = vld [vmem:[%s271] sm:$0xff]
        %v481 = vld [vmem:[%s271 + $0x8] sm:$0xff]
        %v482 = vld [vmem:[%s271 + $0x10] sm:$0xff]
        %v483 = vld [vmem:[%s271 + $0x18] sm:$0xff]
        %v484 = vld [vmem:[%s271 + $0x20] sm:$0xff]
        %v485 = vld [vmem:[%s271 + $0x28] sm:$0xff]
        %v486 = vld [vmem:[%s271 + $0x30] sm:$0xff]
        %v487 = vld [vmem:[%s271 + $0x38] sm:$0xff]
        %v488 = vld [vmem:[%s271 + $0x40] sm:$0xff]
        %v489 = vld [vmem:[%s271 + $0x48] sm:$0xff]
        %v490 = vld [vmem:[%s271 + $0x50] sm:$0xff]
        %v491 = vld [vmem:[%s271 + $0x58] sm:$0xff]
        %v492 = vld [vmem:[%s271 + $0x60] sm:$0xff]
        %v493 = vld [vmem:[%s271 + $0x68] sm:$0xff]
        %v494 = vld [vmem:[%s271 + $0x70] sm:$0xff]
        %v495 = vld [vmem:[%s271 + $0x78] sm:$0xff]
        %v496 = vld [vmem:[%s271 + $0x80] sm:$0xff]
        %v497 = vld [vmem:[%s271 + $0x88] sm:$0xff]
        %v498 = vld [vmem:[%s271 + $0x90] sm:$0xff]
        %v499 = vld [vmem:[%s271 + $0x98] sm:$0xff]
        %v500 = vld [vmem:[%s271 + $0xa0] sm:$0xff]
        %v501 = vld [vmem:[%s271 + $0xa8] sm:$0xff]
        %v502 = vld [vmem:[%s271 + $0xb0] sm:$0xff]
        %v503 = vld [vmem:[%s271 + $0xb8] sm:$0xff]
        %v504 = vld [vmem:[%s271 + $0xc0] sm:$0xff]
        %v505 = vld [vmem:[%s271 + $0xc8] sm:$0xff]
        %v506 = vld [vmem:[%s271 + $0xd0] sm:$0xff]
        %v507 = vld [vmem:[%s271 + $0xd8] sm:$0xff]
        %v508 = vld [vmem:[%s271 + $0xe0] sm:$0xff]
        %v509 = vld [vmem:[%s271 + $0xe8] sm:$0xff]
        %v510 = vld [vmem:[%s271 + $0xf0] sm:$0xff]
        %v511 = vld [vmem:[%s271 + $0xf8] sm:$0xff]
        %v512 = vld [vmem:[%s271 + $0x100] sm:$0xff]
        %v513 = vld [vmem:[%s271 + $0x108] sm:$0xff]
        %v514 = vld [vmem:[%s271 + $0x110] sm:$0xff]
        %v515 = vld [vmem:[%s271 + $0x118] sm:$0xff]
        %v516 = vld [vmem:[%s271 + $0x120] sm:$0xff]
        %v517 = vld [vmem:[%s271 + $0x128] sm:$0xff]
        %v518 = vld [vmem:[%s271 + $0x130] sm:$0xff]
        %v519 = vld [vmem:[%s271 + $0x138] sm:$0xff]
        %v520 = vld [vmem:[%s271 + $0x140] sm:$0xff]
        %v521 = vld [vmem:[%s271 + $0x148] sm:$0xff]
        %v522 = vld [vmem:[%s271 + $0x150] sm:$0xff]
        %v523 = vld [vmem:[%s271 + $0x158] sm:$0xff]
        %v524 = vld [vmem:[%s271 + $0x160] sm:$0xff]
        %v525 = vld [vmem:[%s271 + $0x168] sm:$0xff]
        %v526 = vld [vmem:[%s271 + $0x170] sm:$0xff]
        %v527 = vld [vmem:[%s271 + $0x178] sm:$0xff]
        %v528 = vld [vmem:[%s271 + $0x180] sm:$0xff]
        %v529 = vld [vmem:[%s271 + $0x188] sm:$0xff]
        %v530 = vld [vmem:[%s271 + $0x190] sm:$0xff]
        %v531 = vld [vmem:[%s271 + $0x198] sm:$0xff]
        %v532 = vld [vmem:[%s271 + $0x1a0] sm:$0xff]
        %v533 = vld [vmem:[%s271 + $0x1a8] sm:$0xff]
        %v534 = vld [vmem:[%s271 + $0x1b0] sm:$0xff]
        %v535 = vld [vmem:[%s271 + $0x1b8] sm:$0xff]
        %v536 = vld [vmem:[%s271 + $0x1c0] sm:$0xff]
        %v537 = vld [vmem:[%s271 + $0x1c8] sm:$0xff]
        %v538 = vld [vmem:[%s271 + $0x1d0] sm:$0xff]
        %v539 = vld [vmem:[%s271 + $0x1d8] sm:$0xff]
        %v540 = vld [vmem:[%s271 + $0x1e0] sm:$0xff]
        %v541 = vld [vmem:[%s271 + $0x1e8] sm:$0xff]
        %v542 = vld [vmem:[%s271 + $0x1f0] sm:$0xff]
        %v543 = vld [vmem:[%s271 + $0x1f8] sm:$0xff]
        %v544 = vunpack.c.l.bf16 %v480
        %v545 = vunpack.c.h.bf16 %v480
        %v546 = vunpack.c.l.bf16 %v481
        %v547 = vunpack.c.h.bf16 %v481
        %v548 = vunpack.c.l.bf16 %v482
        %v549 = vunpack.c.h.bf16 %v482
        %v550 = vunpack.c.l.bf16 %v483
        %v551 = vunpack.c.h.bf16 %v483
        %v552 = vunpack.c.l.bf16 %v484
        %v553 = vunpack.c.h.bf16 %v484
        %v554 = vunpack.c.l.bf16 %v485
        %v555 = vunpack.c.h.bf16 %v485
        %v556 = vunpack.c.l.bf16 %v486
        %v557 = vunpack.c.h.bf16 %v486
        %v558 = vunpack.c.l.bf16 %v487
        %v559 = vunpack.c.h.bf16 %v487
        %v560 = vunpack.c.l.bf16 %v488
        %v561 = vunpack.c.h.bf16 %v488
        %v562 = vunpack.c.l.bf16 %v489
        %v563 = vunpack.c.h.bf16 %v489
        %v564 = vunpack.c.l.bf16 %v490
        %v565 = vunpack.c.h.bf16 %v490
        %v566 = vunpack.c.l.bf16 %v491
        %v567 = vunpack.c.h.bf16 %v491
        %v568 = vunpack.c.l.bf16 %v492
        %v569 = vunpack.c.h.bf16 %v492
        %v570 = vunpack.c.l.bf16 %v493
        %v571 = vunpack.c.h.bf16 %v493
        %v572 = vunpack.c.l.bf16 %v494
        %v573 = vunpack.c.h.bf16 %v494
        %v574 = vunpack.c.l.bf16 %v495
        %v575 = vunpack.c.h.bf16 %v495
        %v576 = vunpack.c.l.bf16 %v496
        %v577 = vunpack.c.h.bf16 %v496
        %v578 = vunpack.c.l.bf16 %v497
        %v579 = vunpack.c.h.bf16 %v497
        %v580 = vunpack.c.l.bf16 %v498
        %v581 = vunpack.c.h.bf16 %v498
        %v582 = vunpack.c.l.bf16 %v499
        %v583 = vunpack.c.h.bf16 %v499
        %v584 = vunpack.c.l.bf16 %v500
        %v585 = vunpack.c.h.bf16 %v500
        %v586 = vunpack.c.l.bf16 %v501
        %v587 = vunpack.c.h.bf16 %v501
        %v588 = vunpack.c.l.bf16 %v502
        %v589 = vunpack.c.h.bf16 %v502
        %v590 = vunpack.c.l.bf16 %v503
        %v591 = vunpack.c.h.bf16 %v503
        %v592 = vunpack.c.l.bf16 %v504
        %v593 = vunpack.c.h.bf16 %v504
        %v594 = vunpack.c.l.bf16 %v505
        %v595 = vunpack.c.h.bf16 %v505
        %v596 = vunpack.c.l.bf16 %v506
        %v597 = vunpack.c.h.bf16 %v506
        %v598 = vunpack.c.l.bf16 %v507
        %v599 = vunpack.c.h.bf16 %v507
        %v600 = vunpack.c.l.bf16 %v508
        %v601 = vunpack.c.h.bf16 %v508
        %v602 = vunpack.c.l.bf16 %v509
        %v603 = vunpack.c.h.bf16 %v509
        %v604 = vunpack.c.l.bf16 %v510
        %v605 = vunpack.c.h.bf16 %v510
        %v606 = vunpack.c.l.bf16 %v511
        %v607 = vunpack.c.h.bf16 %v511
        %v608 = vunpack.c.l.bf16 %v512
        %v609 = vunpack.c.h.bf16 %v512
        %v610 = vunpack.c.l.bf16 %v513
        %v611 = vunpack.c.h.bf16 %v513
        %v612 = vunpack.c.l.bf16 %v514
        %v613 = vunpack.c.h.bf16 %v514
        %v614 = vunpack.c.l.bf16 %v515
        %v615 = vunpack.c.h.bf16 %v515
        %v616 = vunpack.c.l.bf16 %v516
        %v617 = vunpack.c.h.bf16 %v516
        %v618 = vunpack.c.l.bf16 %v517
        %v619 = vunpack.c.h.bf16 %v517
        %v620 = vunpack.c.l.bf16 %v518
        %v621 = vunpack.c.h.bf16 %v518
        %v622 = vunpack.c.l.bf16 %v519
        %v623 = vunpack.c.h.bf16 %v519
        %v624 = vunpack.c.l.bf16 %v520
        %v625 = vunpack.c.h.bf16 %v520
        %v626 = vunpack.c.l.bf16 %v521
        %v627 = vunpack.c.h.bf16 %v521
        %v628 = vunpack.c.l.bf16 %v522
        %v629 = vunpack.c.h.bf16 %v522
        %v630 = vunpack.c.l.bf16 %v523
        %v631 = vunpack.c.h.bf16 %v523
        %v632 = vunpack.c.l.bf16 %v524
        %v633 = vunpack.c.h.bf16 %v524
        %v634 = vunpack.c.l.bf16 %v525
        %v635 = vunpack.c.h.bf16 %v525
        %v636 = vunpack.c.l.bf16 %v526
        %v637 = vunpack.c.h.bf16 %v526
        %v638 = vunpack.c.l.bf16 %v527
        %v639 = vunpack.c.h.bf16 %v527
        %v640 = vunpack.c.l.bf16 %v528
        %v641 = vunpack.c.h.bf16 %v528
        %v642 = vunpack.c.l.bf16 %v529
        %v643 = vunpack.c.h.bf16 %v529
        %v644 = vunpack.c.l.bf16 %v530
        %v645 = vunpack.c.h.bf16 %v530
        %v646 = vunpack.c.l.bf16 %v531
        %v647 = vunpack.c.h.bf16 %v531
        %v648 = vunpack.c.l.bf16 %v532
        %v649 = vunpack.c.h.bf16 %v532
        %v650 = vunpack.c.l.bf16 %v533
        %v651 = vunpack.c.h.bf16 %v533
        %v652 = vunpack.c.l.bf16 %v534
        %v653 = vunpack.c.h.bf16 %v534
        %v654 = vunpack.c.l.bf16 %v535
        %v655 = vunpack.c.h.bf16 %v535
        %v656 = vunpack.c.l.bf16 %v536
        %v657 = vunpack.c.h.bf16 %v536
        %v658 = vunpack.c.l.bf16 %v537
        %v659 = vunpack.c.h.bf16 %v537
        %v660 = vunpack.c.l.bf16 %v538
        %v661 = vunpack.c.h.bf16 %v538
        %v662 = vunpack.c.l.bf16 %v539
        %v663 = vunpack.c.h.bf16 %v539
        %v664 = vunpack.c.l.bf16 %v540
        %v665 = vunpack.c.h.bf16 %v540
        %v666 = vunpack.c.l.bf16 %v541
        %v667 = vunpack.c.h.bf16 %v541
        %v668 = vunpack.c.l.bf16 %v542
        %v669 = vunpack.c.h.bf16 %v542
        %v670 = vunpack.c.l.bf16 %v543
        %v671 = vunpack.c.h.bf16 %v543
        %v672 = vmul.f32 %v544, %v456
        %v673 = vmul.f32 %v545, %v457
        %v674 = vmul.f32 %v546, %v458
        %v675 = vmul.f32 %v547, %v459
        %v676 = vmul.f32 %v548, %v456
        %v677 = vmul.f32 %v549, %v457
        %v678 = vmul.f32 %v550, %v458
        %v679 = vmul.f32 %v551, %v459
        %v680 = vmul.f32 %v552, %v456
        %v681 = vmul.f32 %v553, %v457
        %v682 = vmul.f32 %v554, %v458
        %v683 = vmul.f32 %v555, %v459
        %v684 = vmul.f32 %v556, %v456
        %v685 = vmul.f32 %v557, %v457
        %v686 = vmul.f32 %v558, %v458
        %v687 = vmul.f32 %v559, %v459
        %v688 = vmul.f32 %v560, %v456
        %v689 = vmul.f32 %v561, %v457
        %v690 = vmul.f32 %v562, %v458
        %v691 = vmul.f32 %v563, %v459
        %v692 = vmul.f32 %v564, %v456
        %v693 = vmul.f32 %v565, %v457
        %v694 = vmul.f32 %v566, %v458
        %v695 = vmul.f32 %v567, %v459
        %v696 = vmul.f32 %v568, %v456
        %v697 = vmul.f32 %v569, %v457
        %v698 = vmul.f32 %v570, %v458
        %v699 = vmul.f32 %v571, %v459
        %v700 = vmul.f32 %v572, %v456
        %v701 = vmul.f32 %v573, %v457
        %v702 = vmul.f32 %v574, %v458
        %v703 = vmul.f32 %v575, %v459
        %v704 = vmul.f32 %v576, %v456
        %v705 = vmul.f32 %v577, %v457
        %v706 = vmul.f32 %v578, %v458
        %v707 = vmul.f32 %v579, %v459
        %v708 = vmul.f32 %v580, %v456
        %v709 = vmul.f32 %v581, %v457
        %v710 = vmul.f32 %v582, %v458
        %v711 = vmul.f32 %v583, %v459
        %v712 = vmul.f32 %v584, %v456
        %v713 = vmul.f32 %v585, %v457
        %v714 = vmul.f32 %v586, %v458
        %v715 = vmul.f32 %v587, %v459
        %v716 = vmul.f32 %v588, %v456
        %v717 = vmul.f32 %v589, %v457
        %v718 = vmul.f32 %v590, %v458
        %v719 = vmul.f32 %v591, %v459
        %v720 = vmul.f32 %v592, %v456
        %v721 = vmul.f32 %v593, %v457
        %v722 = vmul.f32 %v594, %v458
        %v723 = vmul.f32 %v595, %v459
        %v724 = vmul.f32 %v596, %v456
        %v725 = vmul.f32 %v597, %v457
        %v726 = vmul.f32 %v598, %v458
        %v727 = vmul.f32 %v599, %v459
        %v728 = vmul.f32 %v600, %v456
        %v729 = vmul.f32 %v601, %v457
        %v730 = vmul.f32 %v602, %v458
        %v731 = vmul.f32 %v603, %v459
        %v732 = vmul.f32 %v604, %v456
        %v733 = vmul.f32 %v605, %v457
        %v734 = vmul.f32 %v606, %v458
        %v735 = vmul.f32 %v607, %v459
        %v736 = vmul.f32 %v608, %v456
        %v737 = vmul.f32 %v609, %v457
        %v738 = vmul.f32 %v610, %v458
        %v739 = vmul.f32 %v611, %v459
        %v740 = vmul.f32 %v612, %v456
        %v741 = vmul.f32 %v613, %v457
        %v742 = vmul.f32 %v614, %v458
        %v743 = vmul.f32 %v615, %v459
        %v744 = vmul.f32 %v616, %v456
        %v745 = vmul.f32 %v617, %v457
        %v746 = vmul.f32 %v618, %v458
        %v747 = vmul.f32 %v619, %v459
        %v748 = vmul.f32 %v620, %v456
        %v749 = vmul.f32 %v621, %v457
        %v750 = vmul.f32 %v622, %v458
        %v751 = vmul.f32 %v623, %v459
        %v752 = vmul.f32 %v624, %v456
        %v753 = vmul.f32 %v625, %v457
        %v754 = vmul.f32 %v626, %v458
        %v755 = vmul.f32 %v627, %v459
        %v756 = vmul.f32 %v628, %v456
        %v757 = vmul.f32 %v629, %v457
        %v758 = vmul.f32 %v630, %v458
        %v759 = vmul.f32 %v631, %v459
        %v760 = vmul.f32 %v632, %v456
        %v761 = vmul.f32 %v633, %v457
        %v762 = vmul.f32 %v634, %v458
        %v763 = vmul.f32 %v635, %v459
        %v764 = vmul.f32 %v636, %v456
        %v765 = vmul.f32 %v637, %v457
        %v766 = vmul.f32 %v638, %v458
        %v767 = vmul.f32 %v639, %v459
        %v768 = vmul.f32 %v640, %v456
        %v769 = vmul.f32 %v641, %v457
        %v770 = vmul.f32 %v642, %v458
        %v771 = vmul.f32 %v643, %v459
        %v772 = vmul.f32 %v644, %v456
        %v773 = vmul.f32 %v645, %v457
        %v774 = vmul.f32 %v646, %v458
        %v775 = vmul.f32 %v647, %v459
        %v776 = vmul.f32 %v648, %v456
        %v777 = vmul.f32 %v649, %v457
        %v778 = vmul.f32 %v650, %v458
        %v779 = vmul.f32 %v651, %v459
        %v780 = vmul.f32 %v652, %v456
        %v781 = vmul.f32 %v653, %v457
        %v782 = vmul.f32 %v654, %v458
        %v783 = vmul.f32 %v655, %v459
        %v784 = vmul.f32 %v656, %v456
        %v785 = vmul.f32 %v657, %v457
        %v786 = vmul.f32 %v658, %v458
        %v787 = vmul.f32 %v659, %v459
        %v788 = vmul.f32 %v660, %v456
        %v789 = vmul.f32 %v661, %v457
        %v790 = vmul.f32 %v662, %v458
        %v791 = vmul.f32 %v663, %v459
        %v792 = vmul.f32 %v664, %v456
        %v793 = vmul.f32 %v665, %v457
        %v794 = vmul.f32 %v666, %v458
        %v795 = vmul.f32 %v667, %v459
        %v796 = vmul.f32 %v668, %v456
        %v797 = vmul.f32 %v669, %v457
        %v798 = vmul.f32 %v670, %v458
        %v799 = vmul.f32 %v671, %v459
        %v801 = vperm.slane %v479, 0
        %v802 = vperm.slane %v479, 1
        %v803 = vperm.slane %v479, 2
        %v804 = vperm.slane %v479, 3
        %v809 = vadd.f32 %v672, %v801
        %v810 = vadd.f32 %v673, %v802
        %v811 = vadd.f32 %v674, %v803
        %v812 = vadd.f32 %v675, %v804
        %v813 = vadd.f32 %v676, %v801
        %v814 = vadd.f32 %v677, %v802
        %v815 = vadd.f32 %v678, %v803
        %v816 = vadd.f32 %v679, %v804
        %v817 = vadd.f32 %v680, %v801
        %v818 = vadd.f32 %v681, %v802
        %v819 = vadd.f32 %v682, %v803
        %v820 = vadd.f32 %v683, %v804
        %v821 = vadd.f32 %v684, %v801
        %v822 = vadd.f32 %v685, %v802
        %v823 = vadd.f32 %v686, %v803
        %v824 = vadd.f32 %v687, %v804
        %v825 = vadd.f32 %v688, %v801
        %v826 = vadd.f32 %v689, %v802
        %v827 = vadd.f32 %v690, %v803
        %v828 = vadd.f32 %v691, %v804
        %v829 = vadd.f32 %v692, %v801
        %v830 = vadd.f32 %v693, %v802
        %v831 = vadd.f32 %v694, %v803
        %v832 = vadd.f32 %v695, %v804
        %v833 = vadd.f32 %v696, %v801
        %v834 = vadd.f32 %v697, %v802
        %v835 = vadd.f32 %v698, %v803
        %v836 = vadd.f32 %v699, %v804
        %v837 = vadd.f32 %v700, %v801
        %v838 = vadd.f32 %v701, %v802
        %v839 = vadd.f32 %v702, %v803
        %v840 = vadd.f32 %v703, %v804
        %v841 = vadd.f32 %v704, %v801
        %v842 = vadd.f32 %v705, %v802
        %v843 = vadd.f32 %v706, %v803
        %v844 = vadd.f32 %v707, %v804
        %v845 = vadd.f32 %v708, %v801
        %v846 = vadd.f32 %v709, %v802
        %v847 = vadd.f32 %v710, %v803
        %v848 = vadd.f32 %v711, %v804
        %v849 = vadd.f32 %v712, %v801
        %v850 = vadd.f32 %v713, %v802
        %v851 = vadd.f32 %v714, %v803
        %v852 = vadd.f32 %v715, %v804
        %v853 = vadd.f32 %v716, %v801
        %v854 = vadd.f32 %v717, %v802
        %v855 = vadd.f32 %v718, %v803
        %v856 = vadd.f32 %v719, %v804
        %v857 = vadd.f32 %v720, %v801
        %v858 = vadd.f32 %v721, %v802
        %v859 = vadd.f32 %v722, %v803
        %v860 = vadd.f32 %v723, %v804
        %v861 = vadd.f32 %v724, %v801
        %v862 = vadd.f32 %v725, %v802
        %v863 = vadd.f32 %v726, %v803
        %v864 = vadd.f32 %v727, %v804
        %v865 = vadd.f32 %v728, %v801
        %v866 = vadd.f32 %v729, %v802
        %v867 = vadd.f32 %v730, %v803
        %v868 = vadd.f32 %v731, %v804
        %v869 = vadd.f32 %v732, %v801
        %v870 = vadd.f32 %v733, %v802
        %v871 = vadd.f32 %v734, %v803
        %v872 = vadd.f32 %v735, %v804
        %v873 = vadd.f32 %v736, %v801
        %v874 = vadd.f32 %v737, %v802
        %v875 = vadd.f32 %v738, %v803
        %v876 = vadd.f32 %v739, %v804
        %v877 = vadd.f32 %v740, %v801
        %v878 = vadd.f32 %v741, %v802
        %v879 = vadd.f32 %v742, %v803
        %v880 = vadd.f32 %v743, %v804
        %v881 = vadd.f32 %v744, %v801
        %v882 = vadd.f32 %v745, %v802
        %v883 = vadd.f32 %v746, %v803
        %v884 = vadd.f32 %v747, %v804
        %v885 = vadd.f32 %v748, %v801
        %v886 = vadd.f32 %v749, %v802
        %v887 = vadd.f32 %v750, %v803
        %v888 = vadd.f32 %v751, %v804
        %v889 = vadd.f32 %v752, %v801
        %v890 = vadd.f32 %v753, %v802
        %v891 = vadd.f32 %v754, %v803
        %v892 = vadd.f32 %v755, %v804
        %v893 = vadd.f32 %v756, %v801
        %v894 = vadd.f32 %v757, %v802
        %v895 = vadd.f32 %v758, %v803
        %v896 = vadd.f32 %v759, %v804
        %v897 = vadd.f32 %v760, %v801
        %v898 = vadd.f32 %v761, %v802
        %v899 = vadd.f32 %v762, %v803
        %v900 = vadd.f32 %v763, %v804
        %v901 = vadd.f32 %v764, %v801
        %v902 = vadd.f32 %v765, %v802
        %v903 = vadd.f32 %v766, %v803
        %v904 = vadd.f32 %v767, %v804
        %v905 = vadd.f32 %v768, %v801
        %v906 = vadd.f32 %v769, %v802
        %v907 = vadd.f32 %v770, %v803
        %v908 = vadd.f32 %v771, %v804
        %v909 = vadd.f32 %v772, %v801
        %v910 = vadd.f32 %v773, %v802
        %v911 = vadd.f32 %v774, %v803
        %v912 = vadd.f32 %v775, %v804
        %v913 = vadd.f32 %v776, %v801
        %v914 = vadd.f32 %v777, %v802
        %v915 = vadd.f32 %v778, %v803
        %v916 = vadd.f32 %v779, %v804
        %v917 = vadd.f32 %v780, %v801
        %v918 = vadd.f32 %v781, %v802
        %v919 = vadd.f32 %v782, %v803
        %v920 = vadd.f32 %v783, %v804
        %v921 = vadd.f32 %v784, %v801
        %v922 = vadd.f32 %v785, %v802
        %v923 = vadd.f32 %v786, %v803
        %v924 = vadd.f32 %v787, %v804
        %v925 = vadd.f32 %v788, %v801
        %v926 = vadd.f32 %v789, %v802
        %v927 = vadd.f32 %v790, %v803
        %v928 = vadd.f32 %v791, %v804
        %v929 = vadd.f32 %v792, %v801
        %v930 = vadd.f32 %v793, %v802
        %v931 = vadd.f32 %v794, %v803
        %v932 = vadd.f32 %v795, %v804
        %v933 = vadd.f32 %v796, %v801
        %v934 = vadd.f32 %v797, %v802
        %v935 = vadd.f32 %v798, %v803
        %v936 = vadd.f32 %v799, %v804
        %v937 = vld [vmem:[%s278] sm:$0xff]
        %v938 = vld [vmem:[%s278 + $0x8] sm:$0xff]
        %v939 = vld [vmem:[%s278 + $0x10] sm:$0xff]
        %v940 = vld [vmem:[%s278 + $0x18] sm:$0xff]
        %v941 = vld [vmem:[%s278 + $0x20] sm:$0xff]
        %v942 = vld [vmem:[%s278 + $0x28] sm:$0xff]
        %v943 = vld [vmem:[%s278 + $0x30] sm:$0xff]
        %v944 = vld [vmem:[%s278 + $0x38] sm:$0xff]
        %v945 = vld [vmem:[%s278 + $0x40] sm:$0xff]
        %v946 = vld [vmem:[%s278 + $0x48] sm:$0xff]
        %v947 = vld [vmem:[%s278 + $0x50] sm:$0xff]
        %v948 = vld [vmem:[%s278 + $0x58] sm:$0xff]
        %v949 = vld [vmem:[%s278 + $0x60] sm:$0xff]
        %v950 = vld [vmem:[%s278 + $0x68] sm:$0xff]
        %v951 = vld [vmem:[%s278 + $0x70] sm:$0xff]
        %v952 = vld [vmem:[%s278 + $0x78] sm:$0xff]
        %v953 = vld [vmem:[%s278 + $0x80] sm:$0xff]
        %v954 = vld [vmem:[%s278 + $0x88] sm:$0xff]
        %v955 = vld [vmem:[%s278 + $0x90] sm:$0xff]
        %v956 = vld [vmem:[%s278 + $0x98] sm:$0xff]
        %v957 = vld [vmem:[%s278 + $0xa0] sm:$0xff]
        %v958 = vld [vmem:[%s278 + $0xa8] sm:$0xff]
        %v959 = vld [vmem:[%s278 + $0xb0] sm:$0xff]
        %v960 = vld [vmem:[%s278 + $0xb8] sm:$0xff]
        %v961 = vld [vmem:[%s278 + $0xc0] sm:$0xff]
        %v962 = vld [vmem:[%s278 + $0xc8] sm:$0xff]
        %v963 = vld [vmem:[%s278 + $0xd0] sm:$0xff]
        %v964 = vld [vmem:[%s278 + $0xd8] sm:$0xff]
        %v965 = vld [vmem:[%s278 + $0xe0] sm:$0xff]
        %v966 = vld [vmem:[%s278 + $0xe8] sm:$0xff]
        %v967 = vld [vmem:[%s278 + $0xf0] sm:$0xff]
        %v968 = vld [vmem:[%s278 + $0xf8] sm:$0xff]
        %v969 = vld [vmem:[%s278 + $0x100] sm:$0xff]
        %v970 = vld [vmem:[%s278 + $0x108] sm:$0xff]
        %v971 = vld [vmem:[%s278 + $0x110] sm:$0xff]
        %v972 = vld [vmem:[%s278 + $0x118] sm:$0xff]
        %v973 = vld [vmem:[%s278 + $0x120] sm:$0xff]
        %v974 = vld [vmem:[%s278 + $0x128] sm:$0xff]
        %v975 = vld [vmem:[%s278 + $0x130] sm:$0xff]
        %v976 = vld [vmem:[%s278 + $0x138] sm:$0xff]
        %v977 = vld [vmem:[%s278 + $0x140] sm:$0xff]
        %v978 = vld [vmem:[%s278 + $0x148] sm:$0xff]
        %v979 = vld [vmem:[%s278 + $0x150] sm:$0xff]
        %v980 = vld [vmem:[%s278 + $0x158] sm:$0xff]
        %v981 = vld [vmem:[%s278 + $0x160] sm:$0xff]
        %v982 = vld [vmem:[%s278 + $0x168] sm:$0xff]
        %v983 = vld [vmem:[%s278 + $0x170] sm:$0xff]
        %v984 = vld [vmem:[%s278 + $0x178] sm:$0xff]
        %v985 = vld [vmem:[%s278 + $0x180] sm:$0xff]
        %v986 = vld [vmem:[%s278 + $0x188] sm:$0xff]
        %v987 = vld [vmem:[%s278 + $0x190] sm:$0xff]
        %v988 = vld [vmem:[%s278 + $0x198] sm:$0xff]
        %v989 = vld [vmem:[%s278 + $0x1a0] sm:$0xff]
        %v990 = vld [vmem:[%s278 + $0x1a8] sm:$0xff]
        %v991 = vld [vmem:[%s278 + $0x1b0] sm:$0xff]
        %v992 = vld [vmem:[%s278 + $0x1b8] sm:$0xff]
        %v993 = vld [vmem:[%s278 + $0x1c0] sm:$0xff]
        %v994 = vld [vmem:[%s278 + $0x1c8] sm:$0xff]
        %v995 = vld [vmem:[%s278 + $0x1d0] sm:$0xff]
        %v996 = vld [vmem:[%s278 + $0x1d8] sm:$0xff]
        %v997 = vld [vmem:[%s278 + $0x1e0] sm:$0xff]
        %v998 = vld [vmem:[%s278 + $0x1e8] sm:$0xff]
        %v999 = vld [vmem:[%s278 + $0x1f0] sm:$0xff]
        %v1000 = vld [vmem:[%s278 + $0x1f8] sm:$0xff]
        %v1001 = vunpack.c.l.bf16 %v937
        %v1002 = vunpack.c.h.bf16 %v937
        %v1003 = vunpack.c.l.bf16 %v938
        %v1004 = vunpack.c.h.bf16 %v938
        %v1005 = vunpack.c.l.bf16 %v939
        %v1006 = vunpack.c.h.bf16 %v939
        %v1007 = vunpack.c.l.bf16 %v940
        %v1008 = vunpack.c.h.bf16 %v940
        %v1009 = vunpack.c.l.bf16 %v941
        %v1010 = vunpack.c.h.bf16 %v941
        %v1011 = vunpack.c.l.bf16 %v942
        %v1012 = vunpack.c.h.bf16 %v942
        %v1013 = vunpack.c.l.bf16 %v943
        %v1014 = vunpack.c.h.bf16 %v943
        %v1015 = vunpack.c.l.bf16 %v944
        %v1016 = vunpack.c.h.bf16 %v944
        %v1017 = vunpack.c.l.bf16 %v945
        %v1018 = vunpack.c.h.bf16 %v945
        %v1019 = vunpack.c.l.bf16 %v946
        %v1020 = vunpack.c.h.bf16 %v946
        %v1021 = vunpack.c.l.bf16 %v947
        %v1022 = vunpack.c.h.bf16 %v947
        %v1023 = vunpack.c.l.bf16 %v948
        %v1024 = vunpack.c.h.bf16 %v948
        %v1025 = vunpack.c.l.bf16 %v949
        %v1026 = vunpack.c.h.bf16 %v949
        %v1027 = vunpack.c.l.bf16 %v950
        %v1028 = vunpack.c.h.bf16 %v950
        %v1029 = vunpack.c.l.bf16 %v951
        %v1030 = vunpack.c.h.bf16 %v951
        %v1031 = vunpack.c.l.bf16 %v952
        %v1032 = vunpack.c.h.bf16 %v952
        %v1033 = vunpack.c.l.bf16 %v953
        %v1034 = vunpack.c.h.bf16 %v953
        %v1035 = vunpack.c.l.bf16 %v954
        %v1036 = vunpack.c.h.bf16 %v954
        %v1037 = vunpack.c.l.bf16 %v955
        %v1038 = vunpack.c.h.bf16 %v955
        %v1039 = vunpack.c.l.bf16 %v956
        %v1040 = vunpack.c.h.bf16 %v956
        %v1041 = vunpack.c.l.bf16 %v957
        %v1042 = vunpack.c.h.bf16 %v957
        %v1043 = vunpack.c.l.bf16 %v958
        %v1044 = vunpack.c.h.bf16 %v958
        %v1045 = vunpack.c.l.bf16 %v959
        %v1046 = vunpack.c.h.bf16 %v959
        %v1047 = vunpack.c.l.bf16 %v960
        %v1048 = vunpack.c.h.bf16 %v960
        %v1049 = vunpack.c.l.bf16 %v961
        %v1050 = vunpack.c.h.bf16 %v961
        %v1051 = vunpack.c.l.bf16 %v962
        %v1052 = vunpack.c.h.bf16 %v962
        %v1053 = vunpack.c.l.bf16 %v963
        %v1054 = vunpack.c.h.bf16 %v963
        %v1055 = vunpack.c.l.bf16 %v964
        %v1056 = vunpack.c.h.bf16 %v964
        %v1057 = vunpack.c.l.bf16 %v965
        %v1058 = vunpack.c.h.bf16 %v965
        %v1059 = vunpack.c.l.bf16 %v966
        %v1060 = vunpack.c.h.bf16 %v966
        %v1061 = vunpack.c.l.bf16 %v967
        %v1062 = vunpack.c.h.bf16 %v967
        %v1063 = vunpack.c.l.bf16 %v968
        %v1064 = vunpack.c.h.bf16 %v968
        %v1065 = vunpack.c.l.bf16 %v969
        %v1066 = vunpack.c.h.bf16 %v969
        %v1067 = vunpack.c.l.bf16 %v970
        %v1068 = vunpack.c.h.bf16 %v970
        %v1069 = vunpack.c.l.bf16 %v971
        %v1070 = vunpack.c.h.bf16 %v971
        %v1071 = vunpack.c.l.bf16 %v972
        %v1072 = vunpack.c.h.bf16 %v972
        %v1073 = vunpack.c.l.bf16 %v973
        %v1074 = vunpack.c.h.bf16 %v973
        %v1075 = vunpack.c.l.bf16 %v974
        %v1076 = vunpack.c.h.bf16 %v974
        %v1077 = vunpack.c.l.bf16 %v975
        %v1078 = vunpack.c.h.bf16 %v975
        %v1079 = vunpack.c.l.bf16 %v976
        %v1080 = vunpack.c.h.bf16 %v976
        %v1081 = vunpack.c.l.bf16 %v977
        %v1082 = vunpack.c.h.bf16 %v977
        %v1083 = vunpack.c.l.bf16 %v978
        %v1084 = vunpack.c.h.bf16 %v978
        %v1085 = vunpack.c.l.bf16 %v979
        %v1086 = vunpack.c.h.bf16 %v979
        %v1087 = vunpack.c.l.bf16 %v980
        %v1088 = vunpack.c.h.bf16 %v980
        %v1089 = vunpack.c.l.bf16 %v981
        %v1090 = vunpack.c.h.bf16 %v981
        %v1091 = vunpack.c.l.bf16 %v982
        %v1092 = vunpack.c.h.bf16 %v982
        %v1093 = vunpack.c.l.bf16 %v983
        %v1094 = vunpack.c.h.bf16 %v983
        %v1095 = vunpack.c.l.bf16 %v984
        %v1096 = vunpack.c.h.bf16 %v984
        %v1097 = vunpack.c.l.bf16 %v985
        %v1098 = vunpack.c.h.bf16 %v985
        %v1099 = vunpack.c.l.bf16 %v986
        %v1100 = vunpack.c.h.bf16 %v986
        %v1101 = vunpack.c.l.bf16 %v987
        %v1102 = vunpack.c.h.bf16 %v987
        %v1103 = vunpack.c.l.bf16 %v988
        %v1104 = vunpack.c.h.bf16 %v988
        %v1105 = vunpack.c.l.bf16 %v989
        %v1106 = vunpack.c.h.bf16 %v989
        %v1107 = vunpack.c.l.bf16 %v990
        %v1108 = vunpack.c.h.bf16 %v990
        %v1109 = vunpack.c.l.bf16 %v991
        %v1110 = vunpack.c.h.bf16 %v991
        %v1111 = vunpack.c.l.bf16 %v992
        %v1112 = vunpack.c.h.bf16 %v992
        %v1113 = vunpack.c.l.bf16 %v993
        %v1114 = vunpack.c.h.bf16 %v993
        %v1115 = vunpack.c.l.bf16 %v994
        %v1116 = vunpack.c.h.bf16 %v994
        %v1117 = vunpack.c.l.bf16 %v995
        %v1118 = vunpack.c.h.bf16 %v995
        %v1119 = vunpack.c.l.bf16 %v996
        %v1120 = vunpack.c.h.bf16 %v996
        %v1121 = vunpack.c.l.bf16 %v997
        %v1122 = vunpack.c.h.bf16 %v997
        %v1123 = vunpack.c.l.bf16 %v998
        %v1124 = vunpack.c.h.bf16 %v998
        %v1125 = vunpack.c.l.bf16 %v999
        %v1126 = vunpack.c.h.bf16 %v999
        %v1127 = vunpack.c.l.bf16 %v1000
        %v1128 = vunpack.c.h.bf16 %v1000
        %v1129 = vadd.f32 %v809, %v1001
        %v1130 = vadd.f32 %v810, %v1002
        %v1131 = vadd.f32 %v811, %v1003
        %v1132 = vadd.f32 %v812, %v1004
        %v1133 = vadd.f32 %v813, %v1005
        %v1134 = vadd.f32 %v814, %v1006
        %v1135 = vadd.f32 %v815, %v1007
        %v1136 = vadd.f32 %v816, %v1008
        %v1137 = vadd.f32 %v817, %v1009
        %v1138 = vadd.f32 %v818, %v1010
        %v1139 = vadd.f32 %v819, %v1011
        %v1140 = vadd.f32 %v820, %v1012
        %v1141 = vadd.f32 %v821, %v1013
        %v1142 = vadd.f32 %v822, %v1014
        %v1143 = vadd.f32 %v823, %v1015
        %v1144 = vadd.f32 %v824, %v1016
        %v1145 = vadd.f32 %v825, %v1017
        %v1146 = vadd.f32 %v826, %v1018
        %v1147 = vadd.f32 %v827, %v1019
        %v1148 = vadd.f32 %v828, %v1020
        %v1149 = vadd.f32 %v829, %v1021
        %v1150 = vadd.f32 %v830, %v1022
        %v1151 = vadd.f32 %v831, %v1023
        %v1152 = vadd.f32 %v832, %v1024
        %v1153 = vadd.f32 %v833, %v1025
        %v1154 = vadd.f32 %v834, %v1026
        %v1155 = vadd.f32 %v835, %v1027
        %v1156 = vadd.f32 %v836, %v1028
        %v1157 = vadd.f32 %v837, %v1029
        %v1158 = vadd.f32 %v838, %v1030
        %v1159 = vadd.f32 %v839, %v1031
        %v1160 = vadd.f32 %v840, %v1032
        %v1161 = vadd.f32 %v841, %v1033
        %v1162 = vadd.f32 %v842, %v1034
        %v1163 = vadd.f32 %v843, %v1035
        %v1164 = vadd.f32 %v844, %v1036
        %v1165 = vadd.f32 %v845, %v1037
        %v1166 = vadd.f32 %v846, %v1038
        %v1167 = vadd.f32 %v847, %v1039
        %v1168 = vadd.f32 %v848, %v1040
        %v1169 = vadd.f32 %v849, %v1041
        %v1170 = vadd.f32 %v850, %v1042
        %v1171 = vadd.f32 %v851, %v1043
        %v1172 = vadd.f32 %v852, %v1044
        %v1173 = vadd.f32 %v853, %v1045
        %v1174 = vadd.f32 %v854, %v1046
        %v1175 = vadd.f32 %v855, %v1047
        %v1176 = vadd.f32 %v856, %v1048
        %v1177 = vadd.f32 %v857, %v1049
        %v1178 = vadd.f32 %v858, %v1050
        %v1179 = vadd.f32 %v859, %v1051
        %v1180 = vadd.f32 %v860, %v1052
        %v1181 = vadd.f32 %v861, %v1053
        %v1182 = vadd.f32 %v862, %v1054
        %v1183 = vadd.f32 %v863, %v1055
        %v1184 = vadd.f32 %v864, %v1056
        %v1185 = vadd.f32 %v865, %v1057
        %v1186 = vadd.f32 %v866, %v1058
        %v1187 = vadd.f32 %v867, %v1059
        %v1188 = vadd.f32 %v868, %v1060
        %v1189 = vadd.f32 %v869, %v1061
        %v1190 = vadd.f32 %v870, %v1062
        %v1191 = vadd.f32 %v871, %v1063
        %v1192 = vadd.f32 %v872, %v1064
        %v1193 = vadd.f32 %v873, %v1065
        %v1194 = vadd.f32 %v874, %v1066
        %v1195 = vadd.f32 %v875, %v1067
        %v1196 = vadd.f32 %v876, %v1068
        %v1197 = vadd.f32 %v877, %v1069
        %v1198 = vadd.f32 %v878, %v1070
        %v1199 = vadd.f32 %v879, %v1071
        %v1200 = vadd.f32 %v880, %v1072
        %v1201 = vadd.f32 %v881, %v1073
        %v1202 = vadd.f32 %v882, %v1074
        %v1203 = vadd.f32 %v883, %v1075
        %v1204 = vadd.f32 %v884, %v1076
        %v1205 = vadd.f32 %v885, %v1077
        %v1206 = vadd.f32 %v886, %v1078
        %v1207 = vadd.f32 %v887, %v1079
        %v1208 = vadd.f32 %v888, %v1080
        %v1209 = vadd.f32 %v889, %v1081
        %v1210 = vadd.f32 %v890, %v1082
        %v1211 = vadd.f32 %v891, %v1083
        %v1212 = vadd.f32 %v892, %v1084
        %v1213 = vadd.f32 %v893, %v1085
        %v1214 = vadd.f32 %v894, %v1086
        %v1215 = vadd.f32 %v895, %v1087
        %v1216 = vadd.f32 %v896, %v1088
        %v1217 = vadd.f32 %v897, %v1089
        %v1218 = vadd.f32 %v898, %v1090
        %v1219 = vadd.f32 %v899, %v1091
        %v1220 = vadd.f32 %v900, %v1092
        %v1221 = vadd.f32 %v901, %v1093
        %v1222 = vadd.f32 %v902, %v1094
        %v1223 = vadd.f32 %v903, %v1095
        %v1224 = vadd.f32 %v904, %v1096
        %v1225 = vadd.f32 %v905, %v1097
        %v1226 = vadd.f32 %v906, %v1098
        %v1227 = vadd.f32 %v907, %v1099
        %v1228 = vadd.f32 %v908, %v1100
        %v1229 = vadd.f32 %v909, %v1101
        %v1230 = vadd.f32 %v910, %v1102
        %v1231 = vadd.f32 %v911, %v1103
        %v1232 = vadd.f32 %v912, %v1104
        %v1233 = vadd.f32 %v913, %v1105
        %v1234 = vadd.f32 %v914, %v1106
        %v1235 = vadd.f32 %v915, %v1107
        %v1236 = vadd.f32 %v916, %v1108
        %v1237 = vadd.f32 %v917, %v1109
        %v1238 = vadd.f32 %v918, %v1110
        %v1239 = vadd.f32 %v919, %v1111
        %v1240 = vadd.f32 %v920, %v1112
        %v1241 = vadd.f32 %v921, %v1113
        %v1242 = vadd.f32 %v922, %v1114
        %v1243 = vadd.f32 %v923, %v1115
        %v1244 = vadd.f32 %v924, %v1116
        %v1245 = vadd.f32 %v925, %v1117
        %v1246 = vadd.f32 %v926, %v1118
        %v1247 = vadd.f32 %v927, %v1119
        %v1248 = vadd.f32 %v928, %v1120
        %v1249 = vadd.f32 %v929, %v1121
        %v1250 = vadd.f32 %v930, %v1122
        %v1251 = vadd.f32 %v931, %v1123
        %v1252 = vadd.f32 %v932, %v1124
        %v1253 = vadd.f32 %v933, %v1125
        %v1254 = vadd.f32 %v934, %v1126
        %v1255 = vadd.f32 %v935, %v1127
        %v1256 = vadd.f32 %v936, %v1128
        %v1257 = vmax.f32 %v1129, 0.0
        %v1258 = vmax.f32 %v1130, 0.0
        %v1259 = vmax.f32 %v1131, 0.0
        %v1260 = vmax.f32 %v1132, 0.0
        %v1261 = vmax.f32 %v1133, 0.0
        %v1262 = vmax.f32 %v1134, 0.0
        %v1263 = vmax.f32 %v1135, 0.0
        %v1264 = vmax.f32 %v1136, 0.0
        %v1265 = vmax.f32 %v1137, 0.0
        %v1266 = vmax.f32 %v1138, 0.0
        %v1267 = vmax.f32 %v1139, 0.0
        %v1268 = vmax.f32 %v1140, 0.0
        %v1269 = vmax.f32 %v1141, 0.0
        %v1270 = vmax.f32 %v1142, 0.0
        %v1271 = vmax.f32 %v1143, 0.0
        %v1272 = vmax.f32 %v1144, 0.0
        %v1273 = vmax.f32 %v1145, 0.0
        %v1274 = vmax.f32 %v1146, 0.0
        %v1275 = vmax.f32 %v1147, 0.0
        %v1276 = vmax.f32 %v1148, 0.0
        %v1277 = vmax.f32 %v1149, 0.0
        %v1278 = vmax.f32 %v1150, 0.0
        %v1279 = vmax.f32 %v1151, 0.0
        %v1280 = vmax.f32 %v1152, 0.0
        %v1281 = vmax.f32 %v1153, 0.0
        %v1282 = vmax.f32 %v1154, 0.0
        %v1283 = vmax.f32 %v1155, 0.0
        %v1284 = vmax.f32 %v1156, 0.0
        %v1285 = vmax.f32 %v1157, 0.0
        %v1286 = vmax.f32 %v1158, 0.0
        %v1287 = vmax.f32 %v1159, 0.0
        %v1288 = vmax.f32 %v1160, 0.0
        %v1289 = vmax.f32 %v1161, 0.0
        %v1290 = vmax.f32 %v1162, 0.0
        %v1291 = vmax.f32 %v1163, 0.0
        %v1292 = vmax.f32 %v1164, 0.0
        %v1293 = vmax.f32 %v1165, 0.0
        %v1294 = vmax.f32 %v1166, 0.0
        %v1295 = vmax.f32 %v1167, 0.0
        %v1296 = vmax.f32 %v1168, 0.0
        %v1297 = vmax.f32 %v1169, 0.0
        %v1298 = vmax.f32 %v1170, 0.0
        %v1299 = vmax.f32 %v1171, 0.0
        %v1300 = vmax.f32 %v1172, 0.0
        %v1301 = vmax.f32 %v1173, 0.0
        %v1302 = vmax.f32 %v1174, 0.0
        %v1303 = vmax.f32 %v1175, 0.0
        %v1304 = vmax.f32 %v1176, 0.0
        %v1305 = vmax.f32 %v1177, 0.0
        %v1306 = vmax.f32 %v1178, 0.0
        %v1307 = vmax.f32 %v1179, 0.0
        %v1308 = vmax.f32 %v1180, 0.0
        %v1309 = vmax.f32 %v1181, 0.0
        %v1310 = vmax.f32 %v1182, 0.0
        %v1311 = vmax.f32 %v1183, 0.0
        %v1312 = vmax.f32 %v1184, 0.0
        %v1313 = vmax.f32 %v1185, 0.0
        %v1314 = vmax.f32 %v1186, 0.0
        %v1315 = vmax.f32 %v1187, 0.0
        %v1316 = vmax.f32 %v1188, 0.0
        %v1317 = vmax.f32 %v1189, 0.0
        %v1318 = vmax.f32 %v1190, 0.0
        %v1319 = vmax.f32 %v1191, 0.0
        %v1320 = vmax.f32 %v1192, 0.0
        %v1321 = vmax.f32 %v1193, 0.0
        %v1322 = vmax.f32 %v1194, 0.0
        %v1323 = vmax.f32 %v1195, 0.0
        %v1324 = vmax.f32 %v1196, 0.0
        %v1325 = vmax.f32 %v1197, 0.0
        %v1326 = vmax.f32 %v1198, 0.0
        %v1327 = vmax.f32 %v1199, 0.0
        %v1328 = vmax.f32 %v1200, 0.0
        %v1329 = vmax.f32 %v1201, 0.0
        %v1330 = vmax.f32 %v1202, 0.0
        %v1331 = vmax.f32 %v1203, 0.0
        %v1332 = vmax.f32 %v1204, 0.0
        %v1333 = vmax.f32 %v1205, 0.0
        %v1334 = vmax.f32 %v1206, 0.0
        %v1335 = vmax.f32 %v1207, 0.0
        %v1336 = vmax.f32 %v1208, 0.0
        %v1337 = vmax.f32 %v1209, 0.0
        %v1338 = vmax.f32 %v1210, 0.0
        %v1339 = vmax.f32 %v1211, 0.0
        %v1340 = vmax.f32 %v1212, 0.0
        %v1341 = vmax.f32 %v1213, 0.0
        %v1342 = vmax.f32 %v1214, 0.0
        %v1343 = vmax.f32 %v1215, 0.0
        %v1344 = vmax.f32 %v1216, 0.0
        %v1345 = vmax.f32 %v1217, 0.0
        %v1346 = vmax.f32 %v1218, 0.0
        %v1347 = vmax.f32 %v1219, 0.0
        %v1348 = vmax.f32 %v1220, 0.0
        %v1349 = vmax.f32 %v1221, 0.0
        %v1350 = vmax.f32 %v1222, 0.0
        %v1351 = vmax.f32 %v1223, 0.0
        %v1352 = vmax.f32 %v1224, 0.0
        %v1353 = vmax.f32 %v1225, 0.0
        %v1354 = vmax.f32 %v1226, 0.0
        %v1355 = vmax.f32 %v1227, 0.0
        %v1356 = vmax.f32 %v1228, 0.0
        %v1357 = vmax.f32 %v1229, 0.0
        %v1358 = vmax.f32 %v1230, 0.0
        %v1359 = vmax.f32 %v1231, 0.0
        %v1360 = vmax.f32 %v1232, 0.0
        %v1361 = vmax.f32 %v1233, 0.0
        %v1362 = vmax.f32 %v1234, 0.0
        %v1363 = vmax.f32 %v1235, 0.0
        %v1364 = vmax.f32 %v1236, 0.0
        %v1365 = vmax.f32 %v1237, 0.0
        %v1366 = vmax.f32 %v1238, 0.0
        %v1367 = vmax.f32 %v1239, 0.0
        %v1368 = vmax.f32 %v1240, 0.0
        %v1369 = vmax.f32 %v1241, 0.0
        %v1370 = vmax.f32 %v1242, 0.0
        %v1371 = vmax.f32 %v1243, 0.0
        %v1372 = vmax.f32 %v1244, 0.0
        %v1373 = vmax.f32 %v1245, 0.0
        %v1374 = vmax.f32 %v1246, 0.0
        %v1375 = vmax.f32 %v1247, 0.0
        %v1376 = vmax.f32 %v1248, 0.0
        %v1377 = vmax.f32 %v1249, 0.0
        %v1378 = vmax.f32 %v1250, 0.0
        %v1379 = vmax.f32 %v1251, 0.0
        %v1380 = vmax.f32 %v1252, 0.0
        %v1381 = vmax.f32 %v1253, 0.0
        %v1382 = vmax.f32 %v1254, 0.0
        %v1383 = vmax.f32 %v1255, 0.0
        %v1384 = vmax.f32 %v1256, 0.0
        %1385 = vst [vmem:[%s265] sm:$0xff] %v1257
        %1386 = vst [vmem:[%s265 + $0x8] sm:$0xff] %v1258
        %1387 = vst [vmem:[%s265 + $0x10] sm:$0xff] %v1259
        %1388 = vst [vmem:[%s265 + $0x18] sm:$0xff] %v1260
        %1389 = vst [vmem:[%s265 + $0x20] sm:$0xff] %v1261
        %1390 = vst [vmem:[%s265 + $0x28] sm:$0xff] %v1262
        %1391 = vst [vmem:[%s265 + $0x30] sm:$0xff] %v1263
        %1392 = vst [vmem:[%s265 + $0x38] sm:$0xff] %v1264
        %1393 = vst [vmem:[%s265 + $0x40] sm:$0xff] %v1265
        %1394 = vst [vmem:[%s265 + $0x48] sm:$0xff] %v1266
        %1395 = vst [vmem:[%s265 + $0x50] sm:$0xff] %v1267
        %1396 = vst [vmem:[%s265 + $0x58] sm:$0xff] %v1268
        %1397 = vst [vmem:[%s265 + $0x60] sm:$0xff] %v1269
        %1398 = vst [vmem:[%s265 + $0x68] sm:$0xff] %v1270
        %1399 = vst [vmem:[%s265 + $0x70] sm:$0xff] %v1271
        %1400 = vst [vmem:[%s265 + $0x78] sm:$0xff] %v1272
        %1401 = vst [vmem:[%s265 + $0x80] sm:$0xff] %v1273
        %1402 = vst [vmem:[%s265 + $0x88] sm:$0xff] %v1274
        %1403 = vst [vmem:[%s265 + $0x90] sm:$0xff] %v1275
        %1404 = vst [vmem:[%s265 + $0x98] sm:$0xff] %v1276
        %1405 = vst [vmem:[%s265 + $0xa0] sm:$0xff] %v1277
        %1406 = vst [vmem:[%s265 + $0xa8] sm:$0xff] %v1278
        %1407 = vst [vmem:[%s265 + $0xb0] sm:$0xff] %v1279
        %1408 = vst [vmem:[%s265 + $0xb8] sm:$0xff] %v1280
        %1409 = vst [vmem:[%s265 + $0xc0] sm:$0xff] %v1281
        %1410 = vst [vmem:[%s265 + $0xc8] sm:$0xff] %v1282
        %1411 = vst [vmem:[%s265 + $0xd0] sm:$0xff] %v1283
        %1412 = vst [vmem:[%s265 + $0xd8] sm:$0xff] %v1284
        %1413 = vst [vmem:[%s265 + $0xe0] sm:$0xff] %v1285
        %1414 = vst [vmem:[%s265 + $0xe8] sm:$0xff] %v1286
        %1415 = vst [vmem:[%s265 + $0xf0] sm:$0xff] %v1287
        %1416 = vst [vmem:[%s265 + $0xf8] sm:$0xff] %v1288
        %1417 = vst [vmem:[%s265 + $0x100] sm:$0xff] %v1289
        %1418 = vst [vmem:[%s265 + $0x108] sm:$0xff] %v1290
        %1419 = vst [vmem:[%s265 + $0x110] sm:$0xff] %v1291
        %1420 = vst [vmem:[%s265 + $0x118] sm:$0xff] %v1292
        %1421 = vst [vmem:[%s265 + $0x120] sm:$0xff] %v1293
        %1422 = vst [vmem:[%s265 + $0x128] sm:$0xff] %v1294
        %1423 = vst [vmem:[%s265 + $0x130] sm:$0xff] %v1295
        %1424 = vst [vmem:[%s265 + $0x138] sm:$0xff] %v1296
        %1425 = vst [vmem:[%s265 + $0x140] sm:$0xff] %v1297
        %1426 = vst [vmem:[%s265 + $0x148] sm:$0xff] %v1298
        %1427 = vst [vmem:[%s265 + $0x150] sm:$0xff] %v1299
        %1428 = vst [vmem:[%s265 + $0x158] sm:$0xff] %v1300
        %1429 = vst [vmem:[%s265 + $0x160] sm:$0xff] %v1301
        %1430 = vst [vmem:[%s265 + $0x168] sm:$0xff] %v1302
        %1431 = vst [vmem:[%s265 + $0x170] sm:$0xff] %v1303
        %1432 = vst [vmem:[%s265 + $0x178] sm:$0xff] %v1304
        %1433 = vst [vmem:[%s265 + $0x180] sm:$0xff] %v1305
        %1434 = vst [vmem:[%s265 + $0x188] sm:$0xff] %v1306
        %1435 = vst [vmem:[%s265 + $0x190] sm:$0xff] %v1307
        %1436 = vst [vmem:[%s265 + $0x198] sm:$0xff] %v1308
        %1437 = vst [vmem:[%s265 + $0x1a0] sm:$0xff] %v1309
        %1438 = vst [vmem:[%s265 + $0x1a8] sm:$0xff] %v1310
        %1439 = vst [vmem:[%s265 + $0x1b0] sm:$0xff] %v1311
        %1440 = vst [vmem:[%s265 + $0x1b8] sm:$0xff] %v1312
        %1441 = vst [vmem:[%s265 + $0x1c0] sm:$0xff] %v1313
        %1442 = vst [vmem:[%s265 + $0x1c8] sm:$0xff] %v1314
        %1443 = vst [vmem:[%s265 + $0x1d0] sm:$0xff] %v1315
        %1444 = vst [vmem:[%s265 + $0x1d8] sm:$0xff] %v1316
        %1445 = vst [vmem:[%s265 + $0x1e0] sm:$0xff] %v1317
        %1446 = vst [vmem:[%s265 + $0x1e8] sm:$0xff] %v1318
        %1447 = vst [vmem:[%s265 + $0x1f0] sm:$0xff] %v1319
        %1448 = vst [vmem:[%s265 + $0x1f8] sm:$0xff] %v1320
        %1449 = vst [vmem:[%s265 + $0x200] sm:$0xff] %v1321
        %1450 = vst [vmem:[%s265 + $0x208] sm:$0xff] %v1322
        %1451 = vst [vmem:[%s265 + $0x210] sm:$0xff] %v1323
        %1452 = vst [vmem:[%s265 + $0x218] sm:$0xff] %v1324
        %1453 = vst [vmem:[%s265 + $0x220] sm:$0xff] %v1325
        %1454 = vst [vmem:[%s265 + $0x228] sm:$0xff] %v1326
        %1455 = vst [vmem:[%s265 + $0x230] sm:$0xff] %v1327
        %1456 = vst [vmem:[%s265 + $0x238] sm:$0xff] %v1328
        %1457 = vst [vmem:[%s265 + $0x240] sm:$0xff] %v1329
        %1458 = vst [vmem:[%s265 + $0x248] sm:$0xff] %v1330
        %1459 = vst [vmem:[%s265 + $0x250] sm:$0xff] %v1331
        %1460 = vst [vmem:[%s265 + $0x258] sm:$0xff] %v1332
        %1461 = vst [vmem:[%s265 + $0x260] sm:$0xff] %v1333
        %1462 = vst [vmem:[%s265 + $0x268] sm:$0xff] %v1334
        %1463 = vst [vmem:[%s265 + $0x270] sm:$0xff] %v1335
        %1464 = vst [vmem:[%s265 + $0x278] sm:$0xff] %v1336
        %1465 = vst [vmem:[%s265 + $0x280] sm:$0xff] %v1337
        %1466 = vst [vmem:[%s265 + $0x288] sm:$0xff] %v1338
        %1467 = vst [vmem:[%s265 + $0x290] sm:$0xff] %v1339
        %1468 = vst [vmem:[%s265 + $0x298] sm:$0xff] %v1340
        %1469 = vst [vmem:[%s265 + $0x2a0] sm:$0xff] %v1341
        %1470 = vst [vmem:[%s265 + $0x2a8] sm:$0xff] %v1342
        %1471 = vst [vmem:[%s265 + $0x2b0] sm:$0xff] %v1343
        %1472 = vst [vmem:[%s265 + $0x2b8] sm:$0xff] %v1344
        %1473 = vst [vmem:[%s265 + $0x2c0] sm:$0xff] %v1345
        %1474 = vst [vmem:[%s265 + $0x2c8] sm:$0xff] %v1346
        %1475 = vst [vmem:[%s265 + $0x2d0] sm:$0xff] %v1347
        %1476 = vst [vmem:[%s265 + $0x2d8] sm:$0xff] %v1348
        %1477 = vst [vmem:[%s265 + $0x2e0] sm:$0xff] %v1349
        %1478 = vst [vmem:[%s265 + $0x2e8] sm:$0xff] %v1350
        %1479 = vst [vmem:[%s265 + $0x2f0] sm:$0xff] %v1351
        %1480 = vst [vmem:[%s265 + $0x2f8] sm:$0xff] %v1352
        %1481 = vst [vmem:[%s265 + $0x300] sm:$0xff] %v1353
        %1482 = vst [vmem:[%s265 + $0x308] sm:$0xff] %v1354
        %1483 = vst [vmem:[%s265 + $0x310] sm:$0xff] %v1355
        %1484 = vst [vmem:[%s265 + $0x318] sm:$0xff] %v1356
        %1485 = vst [vmem:[%s265 + $0x320] sm:$0xff] %v1357
        %1486 = vst [vmem:[%s265 + $0x328] sm:$0xff] %v1358
        %1487 = vst [vmem:[%s265 + $0x330] sm:$0xff] %v1359
        %1488 = vst [vmem:[%s265 + $0x338] sm:$0xff] %v1360
        %1489 = vst [vmem:[%s265 + $0x340] sm:$0xff] %v1361
        %1490 = vst [vmem:[%s265 + $0x348] sm:$0xff] %v1362
        %1491 = vst [vmem:[%s265 + $0x350] sm:$0xff] %v1363
        %1492 = vst [vmem:[%s265 + $0x358] sm:$0xff] %v1364
        %1493 = vst [vmem:[%s265 + $0x360] sm:$0xff] %v1365
        %1494 = vst [vmem:[%s265 + $0x368] sm:$0xff] %v1366
        %1495 = vst [vmem:[%s265 + $0x370] sm:$0xff] %v1367
        %1496 = vst [vmem:[%s265 + $0x378] sm:$0xff] %v1368
        %1497 = vst [vmem:[%s265 + $0x380] sm:$0xff] %v1369
        %1498 = vst [vmem:[%s265 + $0x388] sm:$0xff] %v1370
        %1499 = vst [vmem:[%s265 + $0x390] sm:$0xff] %v1371
        %1500 = vst [vmem:[%s265 + $0x398] sm:$0xff] %v1372
        %1501 = vst [vmem:[%s265 + $0x3a0] sm:$0xff] %v1373
        %1502 = vst [vmem:[%s265 + $0x3a8] sm:$0xff] %v1374
        %1503 = vst [vmem:[%s265 + $0x3b0] sm:$0xff] %v1375
        %1504 = vst [vmem:[%s265 + $0x3b8] sm:$0xff] %v1376
        %1505 = vst [vmem:[%s265 + $0x3c0] sm:$0xff] %v1377
        %1506 = vst [vmem:[%s265 + $0x3c8] sm:$0xff] %v1378
        %1507 = vst [vmem:[%s265 + $0x3d0] sm:$0xff] %v1379
        %1508 = vst [vmem:[%s265 + $0x3d8] sm:$0xff] %v1380
        %1509 = vst [vmem:[%s265 + $0x3e0] sm:$0xff] %v1381
        %1510 = vst [vmem:[%s265 + $0x3e8] sm:$0xff] %v1382
        %1511 = vst [vmem:[%s265 + $0x3f0] sm:$0xff] %v1383
        %1512 = vst [vmem:[%s265 + $0x3f8] sm:$0xff] %v1384
        %s1513 = sand.u32 %s164, 1
        %s1514 = scalar_lea.sflag [#allocation3], %s1513
        %s1515 = sand.u32 %s164, 1
        %s1516 = smul.addr %s1515, 1024
        %s1517 = scalar_lea.vmem [#allocation2], %s1516
        // Predicated region
        $region45: #{bottleneck_forward.7} parent=43 // pred_check
          %p1518 = pneg %p174
        $region46: #{bottleneck_forward.7} parent=43 // pred_check_branch
          %1520 = sbr.rel (%p1518) target = $region48
        $region47: #{bottleneck_forward.7} parent=43 // pred_region
          %s1521 = smul.u32 32, %s20
          %1523 = vsyncadd %s1514, 0
          %s1524 = smul.addr %s1521, 4
          %s1525 = smul.addr %s1524, 8
          %s1526 = scalar_lea.hbm %s6, %s1525
          %s1527 = sshll.u32 %s1517, 4
          %s1528 = int_to_ptr.vmem [resolvable:$true] %s1527
          %s1529 = sshll.u32 %s1526, 4
          %s1530 = int_to_ptr.hbm [resolvable:$true] %s1529
          %1535 = dma.vmem_to_hbm [thread:$0]  %s1528, 16384, %s1530, %s1514, 512, 512, 32
        $region48: #{bottleneck_forward.7} parent=43 // pred_fallthru
          _
      $region44: #{bottleneck_forward.7} parent=5 // pred_fallthru
        _
      %p1536 = scmp.le.s32.totalorder 2, %s15
      // Predicated region
      $region49: #{bottleneck_forward.7} parent=5 // pred_check
        %p1537 = pneg %p1536
      $region50: #{bottleneck_forward.7} parent=5 // pred_check_branch
        %1539 = sbr.rel (%p1537) target = $region52
      $region51: #{bottleneck_forward.7} parent=5 // pred_region
        %s1540 = ssub.s32 %s15, 2
        // Predicated region
        $region53: #{bottleneck_forward.7} parent=51 // pred_check
          %p1541 = pneg %p180
        $region54: #{bottleneck_forward.7} parent=51 // pred_check_branch
          %1543 = sbr.rel (%p1541) target = $region56
        $region55: #{bottleneck_forward.7} parent=51 // pred_region
          %s1544 = sand.u32 %s165, 1
          %s1545 = scalar_lea.sflag [#allocation3], %s1544
          %s1546 = sand.u32 %s165, 1
          %s1547 = smul.addr %s1546, 1024
          %s1548 = scalar_lea.vmem [#allocation2], %s1547
          %1550 = dma.done %s1545, 16384
        $region56: #{bottleneck_forward.7} parent=51 // pred_fallthru
          _
      $region52: #{bottleneck_forward.7} parent=5 // pred_fallthru
        _
    $region6: #{bottleneck_forward.7} parent=1 // loop_footer
      %s19 = sadd.s32 1, %s15
    $region7: #{bottleneck_forward.7} parent=1 // loop_footer_branch
      %14 = sbr.rel target = $region3
    $region8: #{bottleneck_forward.7} parent=1 // loop_exit
      _
    %1551 = vsyncpa [#allocation3], 1
    %s1552 = scalar_lea.sflag [#allocation3], 1
    %1553 = vsyncpa %s1552, 1

// kernel: bottleneck_forward.5
$region0: #{bottleneck_forward.5}
  #allocation0 [shape = 'u32[]', space=smem, size = 0x4, offset = 0x4, fixed_abs, tag = 'smem constant byte address 0x4 - core index']
  #allocation1 [shape = 'u32[72,128]{1,0:T(1,128)}', space=vmem, size = 0x9000, scoped, tag = 'internal scratch']
  #allocation2 [shape = 'bf16[18,18,128]{2,1,0:T(8,128)(2,1)}', space=vmem, size = 0x1b000, scoped, tag = 'scratch operand']
  %s0 = inlined_call_operand.vmem [shape: bf16[2,16,16,128], index: 0, kind: input, shape index: {}]
  %s1 = inlined_call_operand.vmem [shape: bf16[1152,128], index: 1, kind: input, shape index: {}]
  %s2 = inlined_call_operand.vmem [shape: f32[2,1,128], index: 2, kind: input, shape index: {}]
  %s3 = inlined_call_operand.vmem [shape: f32[2,1,128], index: 3, kind: input, shape index: {}]
  %s4 = inlined_call_operand.vmem [shape: f32[1,128], index: 4, kind: input, shape index: {}]
  %s5 = inlined_call_operand.vmem [shape: f32[1,128], index: 5, kind: input, shape index: {}]
  %s6 = inlined_call_operand.vmem [shape: bf16[2,256,128], index: 6, kind: output, shape index: {0}]
  %s7 = inlined_call_operand.vmem [shape: f32[2,1,128], index: 7, kind: output, shape index: {1}]
  %s8 = inlined_call_operand.vmem [shape: f32[2,1,128], index: 8, kind: output, shape index: {2}]
  %9 = xla_tuple %s6, %s7, %s8
  %s10 = sld [smem:[#allocation0]]
  $region73: #{bottleneck_forward.5} parent=0
    _
  %s12 = ssub.s32 1, %s10
  %s13 = scalar_select 0, %s12, %s10
  loop: start=0, step=1, limit=4
  $region2: #{bottleneck_forward.5} parent=0 // loop_pre_header
    _
  $region3: #{bottleneck_forward.5} parent=0 // loop_header
    %s15 = sphi 0, %s19
    %p16 = scmp.ge.s32.totalorder %s15, 4
    %s25 = sphi 0, %s27
    %s28 = sphi 0, %s25
    %s29 = sphi 0, %s28
    %s45 = sphi 0, %s29
    %s49 = sphi 0, %s49
    %s51 = sphi 0, %s49
    %s52 = sphi 0, %s51
    %s66 = sphi 0, %s52
    %s70 = sphi 0, %s70
    %s72 = sphi 0, %s70
    %s73 = sphi 0, %s72
    %s87 = sphi 0, %s73
    %s91 = sphi 0, %s91
    %s93 = sphi 0, %s91
    %s94 = sphi 0, %s93
    %s108 = sphi 0, %s94
    %s112 = sphi 0, %s112
    %s114 = sphi 0, %s112
    %s115 = sphi 0, %s114
    %s129 = sphi 0, %s115
    %s133 = sphi 0, %s133
    %s135 = sphi 0, %s133
    %s136 = sphi 0, %s135
    %s150 = sphi 0, %s136
    %s156 = sphi 0, %s158
    %s159 = sphi 0, %s156
    %s160 = sphi 0, %s159
    %s176 = sphi 0, %s160
    %s182 = sphi 0, %s184
    %s185 = sphi 0, %s182
    %s186 = sphi 0, %s185
    %s202 = sphi 0, %s186
    %s208 = sphi 0, %s210
    %s211 = sphi 0, %s208
    %s212 = sphi 0, %s211
    %s228 = sphi 0, %s212
  $region4: #{bottleneck_forward.5} parent=0 // loop_header_branch
    %18 = sbr.rel (%p16) target = $region8
  $region5: #{bottleneck_forward.5} parent=0 // loop_body
    %s20 = ssub.s32 %s15, 1
    %s21 = ssub.s32 %s15, 2
    %s22 = sadd.s32 %s15, 1
    %s23 = ssub.s32 %s15, %s22
    %p24 = scmp.eq.s32.totalorder %s23, 0
    %s26 = sadd.s32 %s25, 1
    %s27 = scalar_select %p24, %s25, %s26
    %p30 = pneg %p24
    %p31 = scmp.eq.s32.totalorder %s15, 1
    %p32 = por %p30, %p31
    %p33 = scmp.ne.s32.totalorder %s25, %s28
    %p34 = scmp.eq.s32.totalorder %s15, 0
    %p35 = por %p33, %p34
    %p36 = scmp.ne.s32.totalorder %s25, %s28
    %p37 = scmp.eq.s32.totalorder %s20, 1
    %p38 = por %p36, %p37
    %p39 = scmp.ne.s32.totalorder %s28, %s29
    %p40 = scmp.eq.s32.totalorder %s20, 0
    %p41 = por %p39, %p40
    %p42 = scmp.ne.s32.totalorder %s28, %s29
    %p43 = scmp.eq.s32.totalorder %s21, 1
    %p44 = por %p42, %p43
    %p46 = scmp.ne.s32.totalorder %s29, %s45
    %p47 = scmp.eq.s32.totalorder %s21, 0
    %p48 = por %p46, %p47
    %s50 = sadd.s32 %s49, 1
    %p53 = scmp.eq.s32.totalorder %s15, 1
    %p54 = scmp.ne.s32.totalorder %s49, %s51
    %p55 = scmp.eq.s32.totalorder %s15, 0
    %p56 = por %p54, %p55
    %p57 = scmp.ne.s32.totalorder %s49, %s51
    %p58 = scmp.eq.s32.totalorder %s20, 1
    %p59 = por %p57, %p58
    %p60 = scmp.ne.s32.totalorder %s51, %s52
    %p61 = scmp.eq.s32.totalorder %s20, 0
    %p62 = por %p60, %p61
    %p63 = scmp.ne.s32.totalorder %s51, %s52
    %p64 = scmp.eq.s32.totalorder %s21, 1
    %p65 = por %p63, %p64
    %p67 = scmp.ne.s32.totalorder %s52, %s66
    %p68 = scmp.eq.s32.totalorder %s21, 0
    %p69 = por %p67, %p68
    %s71 = sadd.s32 %s70, 1
    %p74 = scmp.eq.s32.totalorder %s15, 1
    %p75 = scmp.ne.s32.totalorder %s70, %s72
    %p76 = scmp.eq.s32.totalorder %s15, 0
    %p77 = por %p75, %p76
    %p78 = scmp.ne.s32.totalorder %s70, %s72
    %p79 = scmp.eq.s32.totalorder %s20, 1
    %p80 = por %p78, %p79
    %p81 = scmp.ne.s32.totalorder %s72, %s73
    %p82 = scmp.eq.s32.totalorder %s20, 0
    %p83 = por %p81, %p82
    %p84 = scmp.ne.s32.totalorder %s72, %s73
    %p85 = scmp.eq.s32.totalorder %s21, 1
    %p86 = por %p84, %p85
    %p88 = scmp.ne.s32.totalorder %s73, %s87
    %p89 = scmp.eq.s32.totalorder %s21, 0
    %p90 = por %p88, %p89
    %s92 = sadd.s32 %s91, 1
    %p95 = scmp.eq.s32.totalorder %s15, 1
    %p96 = scmp.ne.s32.totalorder %s91, %s93
    %p97 = scmp.eq.s32.totalorder %s15, 0
    %p98 = por %p96, %p97
    %p99 = scmp.ne.s32.totalorder %s91, %s93
    %p100 = scmp.eq.s32.totalorder %s20, 1
    %p101 = por %p99, %p100
    %p102 = scmp.ne.s32.totalorder %s93, %s94
    %p103 = scmp.eq.s32.totalorder %s20, 0
    %p104 = por %p102, %p103
    %p105 = scmp.ne.s32.totalorder %s93, %s94
    %p106 = scmp.eq.s32.totalorder %s21, 1
    %p107 = por %p105, %p106
    %p109 = scmp.ne.s32.totalorder %s94, %s108
    %p110 = scmp.eq.s32.totalorder %s21, 0
    %p111 = por %p109, %p110
    %s113 = sadd.s32 %s112, 1
    %p116 = scmp.eq.s32.totalorder %s15, 1
    %p117 = scmp.ne.s32.totalorder %s112, %s114
    %p118 = scmp.eq.s32.totalorder %s15, 0
    %p119 = por %p117, %p118
    %p120 = scmp.ne.s32.totalorder %s112, %s114
    %p121 = scmp.eq.s32.totalorder %s20, 1
    %p122 = por %p120, %p121
    %p123 = scmp.ne.s32.totalorder %s114, %s115
    %p124 = scmp.eq.s32.totalorder %s20, 0
    %p125 = por %p123, %p124
    %p126 = scmp.ne.s32.totalorder %s114, %s115
    %p127 = scmp.eq.s32.totalorder %s21, 1
    %p128 = por %p126, %p127
    %p130 = scmp.ne.s32.totalorder %s115, %s129
    %p131 = scmp.eq.s32.totalorder %s21, 0
    %p132 = por %p130, %p131
    %s134 = sadd.s32 %s133, 1
    %p137 = scmp.eq.s32.totalorder %s15, 1
    %p138 = scmp.ne.s32.totalorder %s133, %s135
    %p139 = scmp.eq.s32.totalorder %s15, 0
    %p140 = por %p138, %p139
    %p141 = scmp.ne.s32.totalorder %s133, %s135
    %p142 = scmp.eq.s32.totalorder %s20, 1
    %p143 = por %p141, %p142
    %p144 = scmp.ne.s32.totalorder %s135, %s136
    %p145 = scmp.eq.s32.totalorder %s20, 0
    %p146 = por %p144, %p145
    %p147 = scmp.ne.s32.totalorder %s135, %s136
    %p148 = scmp.eq.s32.totalorder %s21, 1
    %p149 = por %p147, %p148
    %p151 = scmp.ne.s32.totalorder %s136, %s150
    %p152 = scmp.eq.s32.totalorder %s21, 0
    %p153 = por %p151, %p152
    %s154 = ssub.s32 %s15, %s22
    %p155 = scmp.eq.s32.totalorder %s154, 0
    %s157 = sadd.s32 %s156, 1
    %s158 = scalar_select %p155, %s156, %s157
    %p161 = pneg %p155
    %p162 = scmp.eq.s32.totalorder %s15, 1
    %p163 = por %p161, %p162
    %p164 = scmp.ne.s32.totalorder %s156, %s159
    %p165 = scmp.eq.s32.totalorder %s15, 0
    %p166 = por %p164, %p165
    %p167 = scmp.ne.s32.totalorder %s156, %s159
    %p168 = scmp.eq.s32.totalorder %s20, 1
    %p169 = por %p167, %p168
    %p170 = scmp.ne.s32.totalorder %s159, %s160
    %p171 = scmp.eq.s32.totalorder %s20, 0
    %p172 = por %p170, %p171
    %p173 = scmp.ne.s32.totalorder %s159, %s160
    %p174 = scmp.eq.s32.totalorder %s21, 1
    %p175 = por %p173, %p174
    %p177 = scmp.ne.s32.totalorder %s160, %s176
    %p178 = scmp.eq.s32.totalorder %s21, 0
    %p179 = por %p177, %p178
    %s180 = ssub.s32 %s15, %s22
    %p181 = scmp.eq.s32.totalorder %s180, 0
    %s183 = sadd.s32 %s182, 1
    %s184 = scalar_select %p181, %s182, %s183
    %p187 = pneg %p181
    %p188 = scmp.eq.s32.totalorder %s15, 1
    %p189 = por %p187, %p188
    %p190 = scmp.ne.s32.totalorder %s182, %s185
    %p191 = scmp.eq.s32.totalorder %s15, 0
    %p192 = por %p190, %p191
    %p193 = scmp.ne.s32.totalorder %s182, %s185
    %p194 = scmp.eq.s32.totalorder %s20, 1
    %p195 = por %p193, %p194
    %p196 = scmp.ne.s32.totalorder %s185, %s186
    %p197 = scmp.eq.s32.totalorder %s20, 0
    %p198 = por %p196, %p197
    %p199 = scmp.ne.s32.totalorder %s185, %s186
    %p200 = scmp.eq.s32.totalorder %s21, 1
    %p201 = por %p199, %p200
    %p203 = scmp.ne.s32.totalorder %s186, %s202
    %p204 = scmp.eq.s32.totalorder %s21, 0
    %p205 = por %p203, %p204
    %s206 = ssub.s32 %s15, %s22
    %p207 = scmp.eq.s32.totalorder %s206, 0
    %s209 = sadd.s32 %s208, 1
    %s210 = scalar_select %p207, %s208, %s209
    %p213 = pneg %p207
    %p214 = scmp.eq.s32.totalorder %s15, 1
    %p215 = por %p213, %p214
    %p216 = scmp.ne.s32.totalorder %s208, %s211
    %p217 = scmp.eq.s32.totalorder %s15, 0
    %p218 = por %p216, %p217
    %p219 = scmp.ne.s32.totalorder %s208, %s211
    %p220 = scmp.eq.s32.totalorder %s20, 1
    %p221 = por %p219, %p220
    %p222 = scmp.ne.s32.totalorder %s211, %s212
    %p223 = scmp.eq.s32.totalorder %s20, 0
    %p224 = por %p222, %p223
    %p225 = scmp.ne.s32.totalorder %s211, %s212
    %p226 = scmp.eq.s32.totalorder %s21, 1
    %p227 = por %p225, %p226
    %p229 = scmp.ne.s32.totalorder %s212, %s228
    %p230 = scmp.eq.s32.totalorder %s21, 0
    %p231 = por %p229, %p230
    %p232 = scmp.le.s32.totalorder 1, %s15
    %p233 = scmp.lt.s32.totalorder %s15, 3
    %p234 = pnand %p232, %p233
    %p235 = pneg %p234
    // Predicated region
    $region9: #{bottleneck_forward.5} parent=5 // pred_check
      _
    $region10: #{bottleneck_forward.5} parent=5 // pred_check_branch
      %237 = sbr.rel (%p234) target = $region12
    $region11: #{bottleneck_forward.5} parent=5 // pred_region
      %s238 = ssub.s32 %s15, 1
      // Predicated region
      $region13: #{bottleneck_forward.5} parent=11 // pred_check
        %p239 = pneg %p62
      $region14: #{bottleneck_forward.5} parent=11 // pred_check_branch
        %241 = sbr.rel (%p239) target = $region16
      $region15: #{bottleneck_forward.5} parent=11 // pred_region
        _
      $region16: #{bottleneck_forward.5} parent=11 // pred_fallthru
        _
      // Predicated region
      $region17: #{bottleneck_forward.5} parent=11 // pred_check
        %p242 = pneg %p83
      $region18: #{bottleneck_forward.5} parent=11 // pred_check_branch
        %244 = sbr.rel (%p242) target = $region20
      $region19: #{bottleneck_forward.5} parent=11 // pred_region
        _
      $region20: #{bottleneck_forward.5} parent=11 // pred_fallthru
        _
      // Predicated region
      $region21: #{bottleneck_forward.5} parent=11 // pred_check
        %p245 = pneg %p104
      $region22: #{bottleneck_forward.5} parent=11 // pred_check_branch
        %247 = sbr.rel (%p245) target = $region24
      $region23: #{bottleneck_forward.5} parent=11 // pred_region
        _
      $region24: #{bottleneck_forward.5} parent=11 // pred_fallthru
        _
      // Predicated region
      $region25: #{bottleneck_forward.5} parent=11 // pred_check
        %p248 = pneg %p125
      $region26: #{bottleneck_forward.5} parent=11 // pred_check_branch
        %250 = sbr.rel (%p248) target = $region28
      $region27: #{bottleneck_forward.5} parent=11 // pred_region
        _
      $region28: #{bottleneck_forward.5} parent=11 // pred_fallthru
        _
      // Predicated region
      $region29: #{bottleneck_forward.5} parent=11 // pred_check
        %p251 = pneg %p146
      $region30: #{bottleneck_forward.5} parent=11 // pred_check_branch
        %253 = sbr.rel (%p251) target = $region32
      $region31: #{bottleneck_forward.5} parent=11 // pred_region
        _
      $region32: #{bottleneck_forward.5} parent=11 // pred_fallthru
        _
    $region12: #{bottleneck_forward.5} parent=5 // pred_fallthru
      _
    %p254 = scmp.lt.s32.totalorder %s15, 2
    // Predicated region
    $region33: #{bottleneck_forward.5} parent=5 // pred_check
      %p255 = pneg %p254
    $region34: #{bottleneck_forward.5} parent=5 // pred_check_branch
      %257 = sbr.rel (%p255) target = $region36
    $region35: #{bottleneck_forward.5} parent=5 // pred_region
      // Predicated region
      $region37: #{bottleneck_forward.5} parent=35 // pred_check
        %p258 = pneg %p35
      $region38: #{bottleneck_forward.5} parent=35 // pred_check_branch
        %260 = sbr.rel (%p258) target = $region40
      $region39: #{bottleneck_forward.5} parent=35 // pred_region
        %p261 = scmp.lt.s32.totalorder %s15, 1
        %s262 = scalar_select %p261, %s15, 1
        %s263 = smul.addr %s262, 32
        %s264 = smul.addr %s263, 4
        %s265 = scalar_lea.vmem %s0, %s264
      $region40: #{bottleneck_forward.5} parent=35 // pred_fallthru
        _
    $region36: #{bottleneck_forward.5} parent=5 // pred_fallthru
      _
    %p266 = scmp.le.s32.totalorder 1, %s15
    %p267 = scmp.lt.s32.totalorder %s15, 3
    %p268 = pnand %p266, %p267
    %p269 = pneg %p268
    // Predicated region
    $region41: #{bottleneck_forward.5} parent=5 // pred_check
      _
    $region42: #{bottleneck_forward.5} parent=5 // pred_check_branch
      %271 = sbr.rel (%p268) target = $region44
    $region43: #{bottleneck_forward.5} parent=5 // pred_region
      %s272 = ssub.s32 %s15, 1
      %p273 = scmp.lt.s32.totalorder %s20, 1
      %s274 = scalar_select %p273, %s20, 1
      %s275 = smul.addr %s274, 32
      %s276 = smul.addr %s275, 4
      %s277 = scalar_lea.vmem %s0, %s276
      %p278 = pneg %p41
      %p279 = pneg %p38
      %p280 = pneg %p62
      %p281 = pneg %p59
      %p282 = pneg %p83
      %p283 = pneg %p80
      %p284 = pneg %p104
      %p285 = pneg %p101
      %p286 = pneg %p125
      %p287 = pneg %p122
      %p288 = pneg %p146
      %p289 = pneg %p143
      %p290 = pneg %p172
      %p291 = pneg %p169
      %p292 = scmp.lt.s32.totalorder %s20, 1
      %s293 = scalar_select %p292, %s20, 1
      %s294 = smul.addr %s293, 32
      %s295 = smul.addr %s294, 4
      %s296 = scalar_lea.vmem %s6, %s295
      %p297 = pneg %p198
      %p298 = pneg %p195
      %p299 = scmp.lt.s32.totalorder %s20, 1
      %s300 = scalar_select %p299, %s20, 1
      %s301 = scalar_lea.vmem %s7, %s300
      %p302 = pneg %p224
      %p303 = pneg %p221
      %p304 = scmp.lt.s32.totalorder %s20, 1
      %s305 = scalar_select %p304, %s20, 1
      %s306 = scalar_lea.vmem %s8, %s305
      %p307 = scmp.lt.s32.totalorder %s20, 1
      %s308 = scalar_select %p307, %s20, 1
      %s309 = smul.addr %s308, 32
      %s310 = smul.addr %s309, 4
      %s311 = scalar_lea.vmem %s0, %s310
      %p312 = scmp.lt.s32.totalorder %s20, 1
      %s313 = scalar_select %p312, %s20, 1
      %s314 = smul.addr %s313, 32
      %s315 = smul.addr %s314, 4
      %s316 = scalar_lea.vmem %s6, %s315
      %p317 = scmp.lt.s32.totalorder %s20, 1
      %s318 = scalar_select %p317, %s20, 1
      %s319 = scalar_lea.vmem %s7, %s318
      %p320 = scmp.lt.s32.totalorder %s20, 1
      %s321 = scalar_select %p320, %s20, 1
      %s322 = scalar_lea.vmem %s8, %s321
      %v324 = vld [vmem:[%s2] sm:$0x1]
      %v325 = vld [vmem:[%s2 + $0x1] sm:$0x1]
      %v326 = vld [vmem:[%s3] sm:$0x1]
      %v327 = vld [vmem:[%s3 + $0x1] sm:$0x1]
      %v328 = vld [vmem:[%s4] sm:$0x1]
      %v329 = vld [vmem:[%s5] sm:$0x1]
      %vm330 = vcmask 1040384
      %v331 = vsel %vm330, %v324, 0.0
      %v332 = vsel %vm330, %v325, 0.0
      %v333 = vadd.f32 %v331, %v332
      %v334 = vrcp.pop 512.0
      %v335 = vmul.f32 512.0, %v334
      %v336 = vsub.f32 1.0, %v335
      %v337 = vmul.f32 %v334, %v336
      %v338 = vadd.f32 %v334, %v337
      %vm339 = vweird.f32 %v334
      %v340 = vsel %vm339, %v334, %v338
      %v341 = vmul.f32 %v333, %v340
      %v342 = vsel %vm330, %v326, 0.0
      %v343 = vsel %vm330, %v327, 0.0
      %v344 = vadd.f32 %v342, %v343
      %v345 = vmul.f32 %v344, %v340
      %v346 = vmul.f32 %v341, %v341
      %v347 = vsub.f32 %v345, %v346
      %v348 = vmax.f32 %v347, 0.0
      %v349 = vadd.f32 %v348, 1e-05
      %v350 = vrsqrt.pop %v349
      %v351 = vmul.f32 %v350, %v349
      %v352 = vmul.f32 %v351, %v350
      %v353 = vmul.f32 0.5, %v352
      %v354 = vsub.f32 1.5, %v353
      %v355 = vmul.f32 %v350, %v354
      %v356 = vmul.f32 %v349, %v355
      %vm357 = vcmp.eq.f32.partialorder %v349, inf
      %v358 = vsel %vm357, %v349, %v356
      %vm359 = vcmp.eq.f32.partialorder %v349, 0.0
      %v360 = vand.u32 %v349, 2147483648
      %v361 = vsel %vm359, %v360, %v358
      %v362 = vrcp.pop %v361
      %v363 = vmul.f32 %v361, %v362
      %v364 = vsub.f32 1.0, %v363
      %v365 = vmul.f32 %v362, %v364
      %v366 = vadd.f32 %v362, %v365
      %vm367 = vweird.f32 %v361
      %vm368 = vweird.f32 %v362
      %vm369 = vmor %vm367, %vm368
      %v370 = vsel %vm369, %v362, %v366
      %v371 = vand.u32 2147483647, %v361
      %vm372 = vcmp.eq.f32.partialorder %v371, 8.507059e+37
      %v373 = vand.u32 %v361, 2147483648
      %v374 = vor.u32 1.1754944e-38, %v373
      %v375 = vsel %vm372, %v374, %v370
      %v376 = vmul.f32 %v328, %v375
      %v377 = vmul.f32 %v341, %v376
      %v378 = vsub.f32 %v329, %v377
      %v379 = vld [vmem:[%s311] sm:$0xf]
      %v380 = vld [vmem:[%s311 + $0x4] sm:$0xf]
      %v381 = vld [vmem:[%s311 + $0x8] sm:$0xf]
      %v382 = vld [vmem:[%s311 + $0xc] sm:$0xf]
      %v383 = vld [vmem:[%s311 + $0x10] sm:$0xf]
      %v384 = vld [vmem:[%s311 + $0x14] sm:$0xf]
      %v385 = vld [vmem:[%s311 + $0x18] sm:$0xf]
      %v386 = vld [vmem:[%s311 + $0x1c] sm:$0xf]
      %v387 = vld [vmem:[%s311 + $0x20] sm:$0xf]
      %v388 = vld [vmem:[%s311 + $0x24] sm:$0xf]
      %v389 = vld [vmem:[%s311 + $0x28] sm:$0xf]
      %v390 = vld [vmem:[%s311 + $0x2c] sm:$0xf]
      %v391 = vld [vmem:[%s311 + $0x30] sm:$0xf]
      %v392 = vld [vmem:[%s311 + $0x34] sm:$0xf]
      %v393 = vld [vmem:[%s311 + $0x38] sm:$0xf]
      %v394 = vld [vmem:[%s311 + $0x3c] sm:$0xf]
      %v395 = vld [vmem:[%s311 + $0x40] sm:$0xf]
      %v396 = vld [vmem:[%s311 + $0x44] sm:$0xf]
      %v397 = vld [vmem:[%s311 + $0x48] sm:$0xf]
      %v398 = vld [vmem:[%s311 + $0x4c] sm:$0xf]
      %v399 = vld [vmem:[%s311 + $0x50] sm:$0xf]
      %v400 = vld [vmem:[%s311 + $0x54] sm:$0xf]
      %v401 = vld [vmem:[%s311 + $0x58] sm:$0xf]
      %v402 = vld [vmem:[%s311 + $0x5c] sm:$0xf]
      %v403 = vld [vmem:[%s311 + $0x60] sm:$0xf]
      %v404 = vld [vmem:[%s311 + $0x64] sm:$0xf]
      %v405 = vld [vmem:[%s311 + $0x68] sm:$0xf]
      %v406 = vld [vmem:[%s311 + $0x6c] sm:$0xf]
      %v407 = vld [vmem:[%s311 + $0x70] sm:$0xf]
      %v408 = vld [vmem:[%s311 + $0x74] sm:$0xf]
      %v409 = vld [vmem:[%s311 + $0x78] sm:$0xf]
      %v410 = vld [vmem:[%s311 + $0x7c] sm:$0xf]
      %v411 = vunpack.c.l.bf16 %v379
      %v412 = vunpack.c.l.bf16 %v380
      %v413 = vunpack.c.l.bf16 %v381
      %v414 = vunpack.c.l.bf16 %v382
      %v415 = vunpack.c.l.bf16 %v383
      %v416 = vunpack.c.l.bf16 %v384
      %v417 = vunpack.c.l.bf16 %v385
      %v418 = vunpack.c.l.bf16 %v386
      %v419 = vunpack.c.l.bf16 %v387
      %v420 = vunpack.c.l.bf16 %v388
      %v421 = vunpack.c.l.bf16 %v389
      %v422 = vunpack.c.l.bf16 %v390
      %v423 = vunpack.c.l.bf16 %v391
      %v424 = vunpack.c.l.bf16 %v392
      %v425 = vunpack.c.l.bf16 %v393
      %v426 = vunpack.c.l.bf16 %v394
      %v427 = vunpack.c.l.bf16 %v395
      %v428 = vunpack.c.l.bf16 %v396
      %v429 = vunpack.c.l.bf16 %v397
      %v430 = vunpack.c.l.bf16 %v398
      %v431 = vunpack.c.l.bf16 %v399
      %v432 = vunpack.c.l.bf16 %v400
      %v433 = vunpack.c.l.bf16 %v401
      %v434 = vunpack.c.l.bf16 %v402
      %v435 = vunpack.c.l.bf16 %v403
      %v436 = vunpack.c.l.bf16 %v404
      %v437 = vunpack.c.l.bf16 %v405
      %v438 = vunpack.c.l.bf16 %v406
      %v439 = vunpack.c.l.bf16 %v407
      %v440 = vunpack.c.l.bf16 %v408
      %v441 = vunpack.c.l.bf16 %v409
      %v442 = vunpack.c.l.bf16 %v410
      %v444 = vperm.slane %v376, 0
      %v446 = vmul.f32 %v411, %v444
      %v447 = vmul.f32 %v412, %v444
      %v448 = vmul.f32 %v413, %v444
      %v449 = vmul.f32 %v414, %v444
      %v450 = vmul.f32 %v415, %v444
      %v451 = vmul.f32 %v416, %v444
      %v452 = vmul.f32 %v417, %v444
      %v453 = vmul.f32 %v418, %v444
      %v454 = vmul.f32 %v419, %v444
      %v455 = vmul.f32 %v420, %v444
      %v456 = vmul.f32 %v421, %v444
      %v457 = vmul.f32 %v422, %v444
      %v458 = vmul.f32 %v423, %v444
      %v459 = vmul.f32 %v424, %v444
      %v460 = vmul.f32 %v425, %v444
      %v461 = vmul.f32 %v426, %v444
      %v462 = vmul.f32 %v427, %v444
      %v463 = vmul.f32 %v428, %v444
      %v464 = vmul.f32 %v429, %v444
      %v465 = vmul.f32 %v430, %v444
      %v466 = vmul.f32 %v431, %v444
      %v467 = vmul.f32 %v432, %v444
      %v468 = vmul.f32 %v433, %v444
      %v469 = vmul.f32 %v434, %v444
      %v470 = vmul.f32 %v435, %v444
      %v471 = vmul.f32 %v436, %v444
      %v472 = vmul.f32 %v437, %v444
      %v473 = vmul.f32 %v438, %v444
      %v474 = vmul.f32 %v439, %v444
      %v475 = vmul.f32 %v440, %v444
      %v476 = vmul.f32 %v441, %v444
      %v477 = vmul.f32 %v442, %v444
      %v479 = vperm.slane %v378, 0
      %v481 = vadd.f32 %v446, %v479
      %v482 = vadd.f32 %v447, %v479
      %v483 = vadd.f32 %v448, %v479
      %v484 = vadd.f32 %v449, %v479
      %v485 = vadd.f32 %v450, %v479
      %v486 = vadd.f32 %v451, %v479
      %v487 = vadd.f32 %v452, %v479
      %v488 = vadd.f32 %v453, %v479
      %v489 = vadd.f32 %v454, %v479
      %v490 = vadd.f32 %v455, %v479
      %v491 = vadd.f32 %v456, %v479
      %v492 = vadd.f32 %v457, %v479
      %v493 = vadd.f32 %v458, %v479
      %v494 = vadd.f32 %v459, %v479
      %v495 = vadd.f32 %v460, %v479
      %v496 = vadd.f32 %v461, %v479
      %v497 = vadd.f32 %v462, %v479
      %v498 = vadd.f32 %v463, %v479
      %v499 = vadd.f32 %v464, %v479
      %v500 = vadd.f32 %v465, %v479
      %v501 = vadd.f32 %v466, %v479
      %v502 = vadd.f32 %v467, %v479
      %v503 = vadd.f32 %v468, %v479
      %v504 = vadd.f32 %v469, %v479
      %v505 = vadd.f32 %v470, %v479
      %v506 = vadd.f32 %v471, %v479
      %v507 = vadd.f32 %v472, %v479
      %v508 = vadd.f32 %v473, %v479
      %v509 = vadd.f32 %v474, %v479
      %v510 = vadd.f32 %v475, %v479
      %v511 = vadd.f32 %v476, %v479
      %v512 = vadd.f32 %v477, %v479
      %v513 = vmax.f32 %v481, 0.0
      %v514 = vmax.f32 %v482, 0.0
      %v515 = vmax.f32 %v483, 0.0
      %v516 = vmax.f32 %v484, 0.0
      %v517 = vmax.f32 %v485, 0.0
      %v518 = vmax.f32 %v486, 0.0
      %v519 = vmax.f32 %v487, 0.0
      %v520 = vmax.f32 %v488, 0.0
      %v521 = vmax.f32 %v489, 0.0
      %v522 = vmax.f32 %v490, 0.0
      %v523 = vmax.f32 %v491, 0.0
      %v524 = vmax.f32 %v492, 0.0
      %v525 = vmax.f32 %v493, 0.0
      %v526 = vmax.f32 %v494, 0.0
      %v527 = vmax.f32 %v495, 0.0
      %v528 = vmax.f32 %v496, 0.0
      %v529 = vmax.f32 %v497, 0.0
      %v530 = vmax.f32 %v498, 0.0
      %v531 = vmax.f32 %v499, 0.0
      %v532 = vmax.f32 %v500, 0.0
      %v533 = vmax.f32 %v501, 0.0
      %v534 = vmax.f32 %v502, 0.0
      %v535 = vmax.f32 %v503, 0.0
      %v536 = vmax.f32 %v504, 0.0
      %v537 = vmax.f32 %v505, 0.0
      %v538 = vmax.f32 %v506, 0.0
      %v539 = vmax.f32 %v507, 0.0
      %v540 = vmax.f32 %v508, 0.0
      %v541 = vmax.f32 %v509, 0.0
      %v542 = vmax.f32 %v510, 0.0
      %v543 = vmax.f32 %v511, 0.0
      %v544 = vmax.f32 %v512, 0.0
      %v545 = vpack.c.bf16 %v513, %v513
      %v546 = vpack.c.bf16 %v514, %v514
      %v547 = vpack.c.bf16 %v515, %v515
      %v548 = vpack.c.bf16 %v516, %v516
      %v549 = vpack.c.bf16 %v517, %v517
      %v550 = vpack.c.bf16 %v518, %v518
      %v551 = vpack.c.bf16 %v519, %v519
      %v552 = vpack.c.bf16 %v520, %v520
      %v553 = vpack.c.bf16 %v521, %v521
      %v554 = vpack.c.bf16 %v522, %v522
      %v555 = vpack.c.bf16 %v523, %v523
      %v556 = vpack.c.bf16 %v524, %v524
      %v557 = vpack.c.bf16 %v525, %v525
      %v558 = vpack.c.bf16 %v526, %v526
      %v559 = vpack.c.bf16 %v527, %v527
      %v560 = vpack.c.bf16 %v528, %v528
      %v561 = vpack.c.bf16 %v529, %v529
      %v562 = vpack.c.bf16 %v530, %v530
      %v563 = vpack.c.bf16 %v531, %v531
      %v564 = vpack.c.bf16 %v532, %v532
      %v565 = vpack.c.bf16 %v533, %v533
      %v566 = vpack.c.bf16 %v534, %v534
      %v567 = vpack.c.bf16 %v535, %v535
      %v568 = vpack.c.bf16 %v536, %v536
      %v569 = vpack.c.bf16 %v537, %v537
      %v570 = vpack.c.bf16 %v538, %v538
      %v571 = vpack.c.bf16 %v539, %v539
      %v572 = vpack.c.bf16 %v540, %v540
      %v573 = vpack.c.bf16 %v541, %v541
      %v574 = vpack.c.bf16 %v542, %v542
      %v575 = vpack.c.bf16 %v543, %v543
      %v576 = vpack.c.bf16 %v544, %v544
      %577 = vst [vmem:[#allocation2] sm:$0xf] 0
      %578 = vst [vmem:[#allocation2 + $0x4] sm:$0xf] 0
      %579 = vst [vmem:[#allocation2 + $0x8] sm:$0x1] 0
      %s580 = scalar_lea.vmem [#allocation2], 204
      %581 = vst [vmem:[%s580] sm:$0xf] 0
      %582 = vst [vmem:[%s580 + $0x4] sm:$0xf] 0
      %583 = vst [vmem:[%s580 + $0x8] sm:$0x1] 0
      %vm584 = vcmask 1040384
      %vm585 = vsmask.f32 256
      %vm586 = vmand %vm584, %vm585
      %v587 = vld [vmem:[#allocation2] sm:$0x1]
      %v588 = vsel %vm586, 0, %v587
      %589 = vst [vmem:[#allocation2] sm:$0x1] %v588
      %v590 = vld [vmem:[#allocation2 + $0xc] sm:$0x1]
      %v591 = vsel %vm586, 0, %v590
      %592 = vst [vmem:[#allocation2 + $0xc] sm:$0x1] %v591
      %v593 = vld [vmem:[#allocation2 + $0x18] sm:$0x1]
      %v594 = vsel %vm586, 0, %v593
      %595 = vst [vmem:[#allocation2 + $0x18] sm:$0x1] %v594
      %v596 = vld [vmem:[#allocation2 + $0x24] sm:$0x1]
      %v597 = vsel %vm586, 0, %v596
      %598 = vst [vmem:[#allocation2 + $0x24] sm:$0x1] %v597
      %v599 = vld [vmem:[#allocation2 + $0x30] sm:$0x1]
      %v600 = vsel %vm586, 0, %v599
      %601 = vst [vmem:[#allocation2 + $0x30] sm:$0x1] %v600
      %v602 = vld [vmem:[#allocation2 + $0x3c] sm:$0x1]
      %v603 = vsel %vm586, 0, %v602
      %604 = vst [vmem:[#allocation2 + $0x3c] sm:$0x1] %v603
      %v605 = vld [vmem:[#allocation2 + $0x48] sm:$0x1]
      %v606 = vsel %vm586, 0, %v605
      %607 = vst [vmem:[#allocation2 + $0x48] sm:$0x1] %v606
      %v608 = vld [vmem:[#allocation2 + $0x54] sm:$0x1]
      %v609 = vsel %vm586, 0, %v608
      %610 = vst [vmem:[#allocation2 + $0x54] sm:$0x1] %v609
      %v611 = vld [vmem:[#allocation2 + $0x60] sm:$0x1]
      %v612 = vsel %vm586, 0, %v611
      %613 = vst [vmem:[#allocation2 + $0x60] sm:$0x1] %v612
      %v614 = vld [vmem:[#allocation2 + $0x6c] sm:$0x1]
      %v615 = vsel %vm586, 0, %v614
      %616 = vst [vmem:[#allocation2 + $0x6c] sm:$0x1] %v615
      %v617 = vld [vmem:[#allocation2 + $0x78] sm:$0x1]
      %v618 = vsel %vm586, 0, %v617
      %619 = vst [vmem:[#allocation2 + $0x78] sm:$0x1] %v618
      %v620 = vld [vmem:[#allocation2 + $0x84] sm:$0x1]
      %v621 = vsel %vm586, 0, %v620
      %622 = vst [vmem:[#allocation2 + $0x84] sm:$0x1] %v621
      %v623 = vld [vmem:[#allocation2 + $0x90] sm:$0x1]
      %v624 = vsel %vm586, 0, %v623
      %625 = vst [vmem:[#allocation2 + $0x90] sm:$0x1] %v624
      %v626 = vld [vmem:[#allocation2 + $0x9c] sm:$0x1]
      %v627 = vsel %vm586, 0, %v626
      %628 = vst [vmem:[#allocation2 + $0x9c] sm:$0x1] %v627
      %v629 = vld [vmem:[#allocation2 + $0xa8] sm:$0x1]
      %v630 = vsel %vm586, 0, %v629
      %631 = vst [vmem:[#allocation2 + $0xa8] sm:$0x1] %v630
      %v632 = vld [vmem:[#allocation2 + $0xb4] sm:$0x1]
      %v633 = vsel %vm586, 0, %v632
      %634 = vst [vmem:[#allocation2 + $0xb4] sm:$0x1] %v633
      %v635 = vld [vmem:[#allocation2 + $0xc0] sm:$0x1]
      %v636 = vsel %vm586, 0, %v635
      %637 = vst [vmem:[#allocation2 + $0xc0] sm:$0x1] %v636
      %v638 = vld [vmem:[#allocation2 + $0xcc] sm:$0x1]
      %v639 = vsel %vm586, 0, %v638
      %640 = vst [vmem:[#allocation2 + $0xcc] sm:$0x1] %v639
      %vm641 = vsmask.f32 7938
      %vm642 = vmand %vm584, %vm641
      %v643 = vld [vmem:[#allocation2 + $0x8] sm:$0x1]
      %v644 = vsel %vm642, 0, %v643
      %645 = vst [vmem:[#allocation2 + $0x8] sm:$0x1] %v644
      %v646 = vld [vmem:[#allocation2 + $0x14] sm:$0x1]
      %v647 = vsel %vm642, 0, %v646
      %648 = vst [vmem:[#allocation2 + $0x14] sm:$0x1] %v647
      %v649 = vld [vmem:[#allocation2 + $0x20] sm:$0x1]
      %v650 = vsel %vm642, 0, %v649
      %651 = vst [vmem:[#allocation2 + $0x20] sm:$0x1] %v650
      %v652 = vld [vmem:[#allocation2 + $0x2c] sm:$0x1]
      %v653 = vsel %vm642, 0, %v652
      %654 = vst [vmem:[#allocation2 + $0x2c] sm:$0x1] %v653
      %v655 = vld [vmem:[#allocation2 + $0x38] sm:$0x1]
      %v656 = vsel %vm642, 0, %v655
      %657 = vst [vmem:[#allocation2 + $0x38] sm:$0x1] %v656
      %v658 = vld [vmem:[#allocation2 + $0x44] sm:$0x1]
      %v659 = vsel %vm642, 0, %v658
      %660 = vst [vmem:[#allocation2 + $0x44] sm:$0x1] %v659
      %v661 = vld [vmem:[#allocation2 + $0x50] sm:$0x1]
      %v662 = vsel %vm642, 0, %v661
      %663 = vst [vmem:[#allocation2 + $0x50] sm:$0x1] %v662
      %v664 = vld [vmem:[#allocation2 + $0x5c] sm:$0x1]
      %v665 = vsel %vm642, 0, %v664
      %666 = vst [vmem:[#allocation2 + $0x5c] sm:$0x1] %v665
      %v667 = vld [vmem:[#allocation2 + $0x68] sm:$0x1]
      %v668 = vsel %vm642, 0, %v667
      %669 = vst [vmem:[#allocation2 + $0x68] sm:$0x1] %v668
      %v670 = vld [vmem:[#allocation2 + $0x74] sm:$0x1]
      %v671 = vsel %vm642, 0, %v670
      %672 = vst [vmem:[#allocation2 + $0x74] sm:$0x1] %v671
      %v673 = vld [vmem:[#allocation2 + $0x80] sm:$0x1]
      %v674 = vsel %vm642, 0, %v673
      %675 = vst [vmem:[#allocation2 + $0x80] sm:$0x1] %v674
      %v676 = vld [vmem:[#allocation2 + $0x8c] sm:$0x1]
      %v677 = vsel %vm642, 0, %v676
      %678 = vst [vmem:[#allocation2 + $0x8c] sm:$0x1] %v677
      %v679 = vld [vmem:[#allocation2 + $0x98] sm:$0x1]
      %v680 = vsel %vm642, 0, %v679
      %681 = vst [vmem:[#allocation2 + $0x98] sm:$0x1] %v680
      %v682 = vld [vmem:[#allocation2 + $0xa4] sm:$0x1]
      %v683 = vsel %vm642, 0, %v682
      %684 = vst [vmem:[#allocation2 + $0xa4] sm:$0x1] %v683
      %v685 = vld [vmem:[#allocation2 + $0xb0] sm:$0x1]
      %v686 = vsel %vm642, 0, %v685
      %687 = vst [vmem:[#allocation2 + $0xb0] sm:$0x1] %v686
      %v688 = vld [vmem:[#allocation2 + $0xbc] sm:$0x1]
      %v689 = vsel %vm642, 0, %v688
      %690 = vst [vmem:[#allocation2 + $0xbc] sm:$0x1] %v689
      %v691 = vld [vmem:[#allocation2 + $0xc8] sm:$0x1]
      %v692 = vsel %vm642, 0, %v691
      %693 = vst [vmem:[#allocation2 + $0xc8] sm:$0x1] %v692
      %v694 = vld [vmem:[#allocation2 + $0xd4] sm:$0x1]
      %v695 = vsel %vm642, 0, %v694
      %696 = vst [vmem:[#allocation2 + $0xd4] sm:$0x1] %v695
      %vm697 = vsmask.f32 4368
      %vm698 = vmor %vm585, %vm697
      %v700 = vshrl.u32 %v545, 16
      %v702 = vrot.slane %v700, 7
      %v703 = vshll.u32 %v545, 16
      %v705 = vor.u32 %v702, %v703
      %v706 = vrot.slane %v702, 4
      %v708 = vshrl.u32 %v546, 16
      %v710 = vrot.slane %v708, 7
      %v711 = vshll.u32 %v546, 16
      %v713 = vor.u32 %v710, %v711
      %v714 = vsel %vm698, %v706, %v713
      %v715 = vrot.slane %v710, 4
      %v717 = vshrl.u32 %v547, 16
      %v719 = vrot.slane %v717, 7
      %v720 = vshll.u32 %v547, 16
      %v722 = vor.u32 %v719, %v720
      %v723 = vrot.slane %v719, 4
      %v725 = vshrl.u32 %v548, 16
      %v727 = vrot.slane %v725, 7
      %v728 = vshll.u32 %v548, 16
      %v730 = vor.u32 %v727, %v728
      %v731 = vsel %vm698, %v723, %v730
      %v732 = vrot.slane %v727, 4
      %v734 = vshrl.u32 %v549, 16
      %v736 = vrot.slane %v734, 7
      %v737 = vshll.u32 %v549, 16
      %v739 = vor.u32 %v736, %v737
      %v740 = vrot.slane %v736, 4
      %v742 = vshrl.u32 %v550, 16
      %v744 = vrot.slane %v742, 7
      %v745 = vshll.u32 %v550, 16
      %v747 = vor.u32 %v744, %v745
      %v748 = vsel %vm698, %v740, %v747
      %v749 = vrot.slane %v744, 4
      %v751 = vshrl.u32 %v551, 16
      %v753 = vrot.slane %v751, 7
      %v754 = vshll.u32 %v551, 16
      %v756 = vor.u32 %v753, %v754
      %v757 = vrot.slane %v753, 4
      %v759 = vshrl.u32 %v552, 16
      %v761 = vrot.slane %v759, 7
      %v762 = vshll.u32 %v552, 16
      %v764 = vor.u32 %v761, %v762
      %v765 = vsel %vm698, %v757, %v764
      %v766 = vrot.slane %v761, 4
      %v768 = vshrl.u32 %v553, 16
      %v770 = vrot.slane %v768, 7
      %v771 = vshll.u32 %v553, 16
      %v773 = vor.u32 %v770, %v771
      %v774 = vrot.slane %v770, 4
      %v776 = vshrl.u32 %v554, 16
      %v778 = vrot.slane %v776, 7
      %v779 = vshll.u32 %v554, 16
      %v781 = vor.u32 %v778, %v779
      %v782 = vsel %vm698, %v774, %v781
      %v783 = vrot.slane %v778, 4
      %v785 = vshrl.u32 %v555, 16
      %v787 = vrot.slane %v785, 7
      %v788 = vshll.u32 %v555, 16
      %v790 = vor.u32 %v787, %v788
      %v791 = vrot.slane %v787, 4
      %v793 = vshrl.u32 %v556, 16
      %v795 = vrot.slane %v793, 7
      %v796 = vshll.u32 %v556, 16
      %v798 = vor.u32 %v795, %v796
      %v799 = vsel %vm698, %v791, %v798
      %v800 = vrot.slane %v795, 4
      %v802 = vshrl.u32 %v557, 16
      %v804 = vrot.slane %v802, 7
      %v805 = vshll.u32 %v557, 16
      %v807 = vor.u32 %v804, %v805
      %v808 = vrot.slane %v804, 4
      %v810 = vshrl.u32 %v558, 16
      %v812 = vrot.slane %v810, 7
      %v813 = vshll.u32 %v558, 16
      %v815 = vor.u32 %v812, %v813
      %v816 = vsel %vm698, %v808, %v815
      %v817 = vrot.slane %v812, 4
      %v819 = vshrl.u32 %v559, 16
      %v821 = vrot.slane %v819, 7
      %v822 = vshll.u32 %v559, 16
      %v824 = vor.u32 %v821, %v822
      %v825 = vrot.slane %v821, 4
      %v827 = vshrl.u32 %v560, 16
      %v829 = vrot.slane %v827, 7
      %v830 = vshll.u32 %v560, 16
      %v832 = vor.u32 %v829, %v830
      %v833 = vsel %vm698, %v825, %v832
      %v834 = vrot.slane %v829, 4
      %v836 = vshrl.u32 %v561, 16
      %v838 = vrot.slane %v836, 7
      %v839 = vshll.u32 %v561, 16
      %v841 = vor.u32 %v838, %v839
      %v842 = vrot.slane %v838, 4
      %v844 = vshrl.u32 %v562, 16
      %v846 = vrot.slane %v844, 7
      %v847 = vshll.u32 %v562, 16
      %v849 = vor.u32 %v846, %v847
      %v850 = vsel %vm698, %v842, %v849
      %v851 = vrot.slane %v846, 4
      %v853 = vshrl.u32 %v563, 16
      %v855 = vrot.slane %v853, 7
      %v856 = vshll.u32 %v563, 16
      %v858 = vor.u32 %v855, %v856
      %v859 = vrot.slane %v855, 4
      %v861 = vshrl.u32 %v564, 16
      %v863 = vrot.slane %v861, 7
      %v864 = vshll.u32 %v564, 16
      %v866 = vor.u32 %v863, %v864
      %v867 = vsel %vm698, %v859, %v866
      %v868 = vrot.slane %v863, 4
      %v870 = vshrl.u32 %v565, 16
      %v872 = vrot.slane %v870, 7
      %v873 = vshll.u32 %v565, 16
      %v875 = vor.u32 %v872, %v873
      %v876 = vrot.slane %v872, 4
      %v878 = vshrl.u32 %v566, 16
      %v880 = vrot.slane %v878, 7
      %v881 = vshll.u32 %v566, 16
      %v883 = vor.u32 %v880, %v881
      %v884 = vsel %vm698, %v876, %v883
      %v885 = vrot.slane %v880, 4
      %v887 = vshrl.u32 %v567, 16
      %v889 = vrot.slane %v887, 7
      %v890 = vshll.u32 %v567, 16
      %v892 = vor.u32 %v889, %v890
      %v893 = vrot.slane %v889, 4
      %v895 = vshrl.u32 %v568, 16
      %v897 = vrot.slane %v895, 7
      %v898 = vshll.u32 %v568, 16
      %v900 = vor.u32 %v897, %v898
      %v901 = vsel %vm698, %v893, %v900
      %v902 = vrot.slane %v897, 4
      %v904 = vshrl.u32 %v569, 16
      %v906 = vrot.slane %v904, 7
      %v907 = vshll.u32 %v569, 16
      %v909 = vor.u32 %v906, %v907
      %v910 = vrot.slane %v906, 4
      %v912 = vshrl.u32 %v570, 16
      %v914 = vrot.slane %v912, 7
      %v915 = vshll.u32 %v570, 16
      %v917 = vor.u32 %v914, %v915
      %v918 = vsel %vm698, %v910, %v917
      %v919 = vrot.slane %v914, 4
      %v921 = vshrl.u32 %v571, 16
      %v923 = vrot.slane %v921, 7
      %v924 = vshll.u32 %v571, 16
      %v926 = vor.u32 %v923, %v924
      %v927 = vrot.slane %v923, 4
      %v929 = vshrl.u32 %v572, 16
      %v931 = vrot.slane %v929, 7
      %v932 = vshll.u32 %v572, 16
      %v934 = vor.u32 %v931, %v932
      %v935 = vsel %vm698, %v927, %v934
      %v936 = vrot.slane %v931, 4
      %v938 = vshrl.u32 %v573, 16
      %v940 = vrot.slane %v938, 7
      %v941 = vshll.u32 %v573, 16
      %v943 = vor.u32 %v940, %v941
      %v944 = vrot.slane %v940, 4
      %v946 = vshrl.u32 %v574, 16
      %v948 = vrot.slane %v946, 7
      %v949 = vshll.u32 %v574, 16
      %v951 = vor.u32 %v948, %v949
      %v952 = vsel %vm698, %v944, %v951
      %v953 = vrot.slane %v948, 4
      %v955 = vshrl.u32 %v575, 16
      %v957 = vrot.slane %v955, 7
      %v958 = vshll.u32 %v575, 16
      %v960 = vor.u32 %v957, %v958
      %v961 = vrot.slane %v957, 4
      %v963 = vshrl.u32 %v576, 16
      %v965 = vrot.slane %v963, 7
      %v966 = vshll.u32 %v576, 16
      %v968 = vor.u32 %v965, %v966
      %v969 = vsel %vm698, %v961, %v968
      %v970 = vrot.slane %v965, 4
      %s1019 = scalar_lea.vmem [#allocation2], 12
      %vm1020 = vcmask 1043456
      %vm1021 = vmand %vm1020, %vm641
      %v1022 = vld [vmem:[%s1019] sm:$0xf]
      %v1023 = vsel %vm1021, %v705, %v1022
      %1024 = vst [vmem:[%s1019] sm:$0xf] %v1023
      %1025 = vst [vmem:[%s1019 + $0x4] sm:$0xf] %v714
      %v1026 = vld [vmem:[%s1019 + $0x8] sm:$0x1]
      %v1027 = vsel %vm586, %v715, %v1026
      %1028 = vst [vmem:[%s1019 + $0x8] sm:$0x1] %v1027
      %v1029 = vld [vmem:[%s1019 + $0xc] sm:$0xf]
      %v1030 = vsel %vm1021, %v722, %v1029
      %1031 = vst [vmem:[%s1019 + $0xc] sm:$0xf] %v1030
      %1032 = vst [vmem:[%s1019 + $0x10] sm:$0xf] %v731
      %v1033 = vld [vmem:[%s1019 + $0x14] sm:$0x1]
      %v1034 = vsel %vm586, %v732, %v1033
      %1035 = vst [vmem:[%s1019 + $0x14] sm:$0x1] %v1034
      %v1036 = vld [vmem:[%s1019 + $0x18] sm:$0xf]
      %v1037 = vsel %vm1021, %v739, %v1036
      %1038 = vst [vmem:[%s1019 + $0x18] sm:$0xf] %v1037
      %1039 = vst [vmem:[%s1019 + $0x1c] sm:$0xf] %v748
      %v1040 = vld [vmem:[%s1019 + $0x20] sm:$0x1]
      %v1041 = vsel %vm586, %v749, %v1040
      %1042 = vst [vmem:[%s1019 + $0x20] sm:$0x1] %v1041
      %v1043 = vld [vmem:[%s1019 + $0x24] sm:$0xf]
      %v1044 = vsel %vm1021, %v756, %v1043
      %1045 = vst [vmem:[%s1019 + $0x24] sm:$0xf] %v1044
      %1046 = vst [vmem:[%s1019 + $0x28] sm:$0xf] %v765
      %v1047 = vld [vmem:[%s1019 + $0x2c] sm:$0x1]
      %v1048 = vsel %vm586, %v766, %v1047
      %1049 = vst [vmem:[%s1019 + $0x2c] sm:$0x1] %v1048
      %v1050 = vld [vmem:[%s1019 + $0x30] sm:$0xf]
      %v1051 = vsel %vm1021, %v773, %v1050
      %1052 = vst [vmem:[%s1019 + $0x30] sm:$0xf] %v1051
      %1053 = vst [vmem:[%s1019 + $0x34] sm:$0xf] %v782
      %v1054 = vld [vmem:[%s1019 + $0x38] sm:$0x1]
      %v1055 = vsel %vm586, %v783, %v1054
      %1056 = vst [vmem:[%s1019 + $0x38] sm:$0x1] %v1055
      %v1057 = vld [vmem:[%s1019 + $0x3c] sm:$0xf]
      %v1058 = vsel %vm1021, %v790, %v1057
      %1059 = vst [vmem:[%s1019 + $0x3c] sm:$0xf] %v1058
      %1060 = vst [vmem:[%s1019 + $0x40] sm:$0xf] %v799
      %v1061 = vld [vmem:[%s1019 + $0x44] sm:$0x1]
      %v1062 = vsel %vm586, %v800, %v1061
      %1063 = vst [vmem:[%s1019 + $0x44] sm:$0x1] %v1062
      %v1064 = vld [vmem:[%s1019 + $0x48] sm:$0xf]
      %v1065 = vsel %vm1021, %v807, %v1064
      %1066 = vst [vmem:[%s1019 + $0x48] sm:$0xf] %v1065
      %1067 = vst [vmem:[%s1019 + $0x4c] sm:$0xf] %v816
      %v1068 = vld [vmem:[%s1019 + $0x50] sm:$0x1]
      %v1069 = vsel %vm586, %v817, %v1068
      %1070 = vst [vmem:[%s1019 + $0x50] sm:$0x1] %v1069
      %v1071 = vld [vmem:[%s1019 + $0x54] sm:$0xf]
      %v1072 = vsel %vm1021, %v824, %v1071
      %1073 = vst [vmem:[%s1019 + $0x54] sm:$0xf] %v1072
      %1074 = vst [vmem:[%s1019 + $0x58] sm:$0xf] %v833
      %v1075 = vld [vmem:[%s1019 + $0x5c] sm:$0x1]
      %v1076 = vsel %vm586, %v834, %v1075
      %1077 = vst [vmem:[%s1019 + $0x5c] sm:$0x1] %v1076
      %v1078 = vld [vmem:[%s1019 + $0x60] sm:$0xf]
      %v1079 = vsel %vm1021, %v841, %v1078
      %1080 = vst [vmem:[%s1019 + $0x60] sm:$0xf] %v1079
      %1081 = vst [vmem:[%s1019 + $0x64] sm:$0xf] %v850
      %v1082 = vld [vmem:[%s1019 + $0x68] sm:$0x1]
      %v1083 = vsel %vm586, %v851, %v1082
      %1084 = vst [vmem:[%s1019 + $0x68] sm:$0x1] %v1083
      %v1085 = vld [vmem:[%s1019 + $0x6c] sm:$0xf]
      %v1086 = vsel %vm1021, %v858, %v1085
      %1087 = vst [vmem:[%s1019 + $0x6c] sm:$0xf] %v1086
      %1088 = vst [vmem:[%s1019 + $0x70] sm:$0xf] %v867
      %v1089 = vld [vmem:[%s1019 + $0x74] sm:$0x1]
      %v1090 = vsel %vm586, %v868, %v1089
      %1091 = vst [vmem:[%s1019 + $0x74] sm:$0x1] %v1090
      %v1092 = vld [vmem:[%s1019 + $0x78] sm:$0xf]
      %v1093 = vsel %vm1021, %v875, %v1092
      %1094 = vst [vmem:[%s1019 + $0x78] sm:$0xf] %v1093
      %1095 = vst [vmem:[%s1019 + $0x7c] sm:$0xf] %v884
      %v1096 = vld [vmem:[%s1019 + $0x80] sm:$0x1]
      %v1097 = vsel %vm586, %v885, %v1096
      %1098 = vst [vmem:[%s1019 + $0x80] sm:$0x1] %v1097
      %v1099 = vld [vmem:[%s1019 + $0x84] sm:$0xf]
      %v1100 = vsel %vm1021, %v892, %v1099
      %1101 = vst [vmem:[%s1019 + $0x84] sm:$0xf] %v1100
      %1102 = vst [vmem:[%s1019 + $0x88] sm:$0xf] %v901
      %v1103 = vld [vmem:[%s1019 + $0x8c] sm:$0x1]
      %v1104 = vsel %vm586, %v902, %v1103
      %1105 = vst [vmem:[%s1019 + $0x8c] sm:$0x1] %v1104
      %v1106 = vld [vmem:[%s1019 + $0x90] sm:$0xf]
      %v1107 = vsel %vm1021, %v909, %v1106
      %1108 = vst [vmem:[%s1019 + $0x90] sm:$0xf] %v1107
      %1109 = vst [vmem:[%s1019 + $0x94] sm:$0xf] %v918
      %v1110 = vld [vmem:[%s1019 + $0x98] sm:$0x1]
      %v1111 = vsel %vm586, %v919, %v1110
      %1112 = vst [vmem:[%s1019 + $0x98] sm:$0x1] %v1111
      %v1113 = vld [vmem:[%s1019 + $0x9c] sm:$0xf]
      %v1114 = vsel %vm1021, %v926, %v1113
      %1115 = vst [vmem:[%s1019 + $0x9c] sm:$0xf] %v1114
      %1116 = vst [vmem:[%s1019 + $0xa0] sm:$0xf] %v935
      %v1117 = vld [vmem:[%s1019 + $0xa4] sm:$0x1]
      %v1118 = vsel %vm586, %v936, %v1117
      %1119 = vst [vmem:[%s1019 + $0xa4] sm:$0x1] %v1118
      %v1120 = vld [vmem:[%s1019 + $0xa8] sm:$0xf]
      %v1121 = vsel %vm1021, %v943, %v1120
      %1122 = vst [vmem:[%s1019 + $0xa8] sm:$0xf] %v1121
      %1123 = vst [vmem:[%s1019 + $0xac] sm:$0xf] %v952
      %v1124 = vld [vmem:[%s1019 + $0xb0] sm:$0x1]
      %v1125 = vsel %vm586, %v953, %v1124
      %1126 = vst [vmem:[%s1019 + $0xb0] sm:$0x1] %v1125
      %v1127 = vld [vmem:[%s1019 + $0xb4] sm:$0xf]
      %v1128 = vsel %vm1021, %v960, %v1127
      %1129 = vst [vmem:[%s1019 + $0xb4] sm:$0xf] %v1128
      %1130 = vst [vmem:[%s1019 + $0xb8] sm:$0xf] %v969
      %v1131 = vld [vmem:[%s1019 + $0xbc] sm:$0x1]
      %v1132 = vsel %vm586, %v970, %v1131
      %1133 = vst [vmem:[%s1019 + $0xbc] sm:$0x1] %v1132
      %v1134 = vld [vmem:[#allocation2] sm:$0xf]
      %v1135 = vld [vmem:[#allocation2 + $0x4] sm:$0xf]
      %v1136 = vld [vmem:[#allocation2 + $0xc] sm:$0xf]
      %v1137 = vld [vmem:[#allocation2 + $0x10] sm:$0xf]
      %v1138 = vld [vmem:[#allocation2 + $0x18] sm:$0xf]
      %v1139 = vld [vmem:[#allocation2 + $0x1c] sm:$0xf]
      %v1140 = vld [vmem:[#allocation2 + $0x24] sm:$0xf]
      %v1141 = vld [vmem:[#allocation2 + $0x28] sm:$0xf]
      %v1142 = vld [vmem:[#allocation2 + $0x30] sm:$0xf]
      %v1143 = vld [vmem:[#allocation2 + $0x34] sm:$0xf]
      %v1144 = vld [vmem:[#allocation2 + $0x3c] sm:$0xf]
      %v1145 = vld [vmem:[#allocation2 + $0x40] sm:$0xf]
      %v1146 = vld [vmem:[#allocation2 + $0x48] sm:$0xf]
      %v1147 = vld [vmem:[#allocation2 + $0x4c] sm:$0xf]
      %v1148 = vld [vmem:[#allocation2 + $0x54] sm:$0xf]
      %v1149 = vld [vmem:[#allocation2 + $0x58] sm:$0xf]
      %v1150 = vld [vmem:[#allocation2 + $0x60] sm:$0xf]
      %v1151 = vld [vmem:[#allocation2 + $0x64] sm:$0xf]
      %v1152 = vld [vmem:[#allocation2 + $0x6c] sm:$0xf]
      %v1153 = vld [vmem:[#allocation2 + $0x70] sm:$0xf]
      %v1154 = vld [vmem:[#allocation2 + $0x78] sm:$0xf]
      %v1155 = vld [vmem:[#allocation2 + $0x7c] sm:$0xf]
      %v1156 = vld [vmem:[#allocation2 + $0x84] sm:$0xf]
      %v1157 = vld [vmem:[#allocation2 + $0x88] sm:$0xf]
      %v1158 = vld [vmem:[#allocation2 + $0x90] sm:$0xf]
      %v1159 = vld [vmem:[#allocation2 + $0x94] sm:$0xf]
      %v1160 = vld [vmem:[#allocation2 + $0x9c] sm:$0xf]
      %v1161 = vld [vmem:[#allocation2 + $0xa0] sm:$0xf]
      %v1162 = vld [vmem:[#allocation2 + $0xa8] sm:$0xf]
      %v1163 = vld [vmem:[#allocation2 + $0xac] sm:$0xf]
      %v1164 = vld [vmem:[#allocation2 + $0xb4] sm:$0xf]
      %v1165 = vld [vmem:[#allocation2 + $0xb8] sm:$0xf]
      %v1166 = vld [vmem:[#allocation2 + $0x8] sm:$0x1]
      %v1167 = vld [vmem:[#allocation2 + $0x14] sm:$0x1]
      %v1168 = vld [vmem:[#allocation2 + $0x20] sm:$0x1]
      %v1169 = vld [vmem:[#allocation2 + $0x2c] sm:$0x1]
      %v1170 = vld [vmem:[#allocation2 + $0x38] sm:$0x1]
      %v1171 = vld [vmem:[#allocation2 + $0x44] sm:$0x1]
      %v1172 = vld [vmem:[#allocation2 + $0x50] sm:$0x1]
      %v1173 = vld [vmem:[#allocation2 + $0x5c] sm:$0x1]
      %v1174 = vld [vmem:[#allocation2 + $0x68] sm:$0x1]
      %v1175 = vld [vmem:[#allocation2 + $0x74] sm:$0x1]
      %v1176 = vld [vmem:[#allocation2 + $0x80] sm:$0x1]
      %v1177 = vld [vmem:[#allocation2 + $0x8c] sm:$0x1]
      %v1178 = vld [vmem:[#allocation2 + $0x98] sm:$0x1]
      %v1179 = vld [vmem:[#allocation2 + $0xa4] sm:$0x1]
      %v1180 = vld [vmem:[#allocation2 + $0xb0] sm:$0x1]
      %v1181 = vld [vmem:[#allocation2 + $0xbc] sm:$0x1]
      %vm1182 = vsmask.f32 3328
      %vm1183 = vsmask.f32 7440
      %vm1184 = vmor %vm1182, %vm1183
      %v1186 = vshrl.u32 %v1134, 16
      %v1188 = vrot.slane %v1186, 4
      %v1189 = vshll.u32 %v1134, 16
      %v1191 = vrot.slane %v1189, 5
      %v1192 = vor.u32 %v1188, %v1191
      %v1193 = vrot.slane %v1192, 4
      %v1195 = vshll.u32 %v1135, 16
      %v1197 = vrot.slane %v1195, 5
      %v1198 = vsel %vm1184, %v1193, %v1197
      %v1199 = vshrl.u32 %v1135, 16
      %v1201 = vrot.slane %v1199, 4
      %v1202 = vor.u32 %v1201, %v1197
      %v1203 = vrot.slane %v1202, 4
      %v1205 = vshll.u32 %v1166, 16
      %v1207 = vrot.slane %v1205, 5
      %v1208 = vsel %vm1184, %v1203, %v1207
      %v1210 = vshrl.u32 %v1136, 16
      %v1212 = vrot.slane %v1210, 4
      %v1213 = vshll.u32 %v1136, 16
      %v1215 = vrot.slane %v1213, 5
      %v1216 = vor.u32 %v1212, %v1215
      %v1217 = vrot.slane %v1216, 4
      %v1219 = vshll.u32 %v1137, 16
      %v1221 = vrot.slane %v1219, 5
      %v1222 = vsel %vm1184, %v1217, %v1221
      %v1223 = vshrl.u32 %v1137, 16
      %v1225 = vrot.slane %v1223, 4
      %v1226 = vor.u32 %v1225, %v1221
      %v1227 = vrot.slane %v1226, 4
      %v1229 = vshll.u32 %v1167, 16
      %v1231 = vrot.slane %v1229, 5
      %v1232 = vsel %vm1184, %v1227, %v1231
      %v1234 = vshrl.u32 %v1138, 16
      %v1236 = vrot.slane %v1234, 4
      %v1237 = vshll.u32 %v1138, 16
      %v1239 = vrot.slane %v1237, 5
      %v1240 = vor.u32 %v1236, %v1239
      %v1241 = vrot.slane %v1240, 4
      %v1243 = vshll.u32 %v1139, 16
      %v1245 = vrot.slane %v1243, 5
      %v1246 = vsel %vm1184, %v1241, %v1245
      %v1247 = vshrl.u32 %v1139, 16
      %v1249 = vrot.slane %v1247, 4
      %v1250 = vor.u32 %v1249, %v1245
      %v1251 = vrot.slane %v1250, 4
      %v1253 = vshll.u32 %v1168, 16
      %v1255 = vrot.slane %v1253, 5
      %v1256 = vsel %vm1184, %v1251, %v1255
      %v1258 = vshrl.u32 %v1140, 16
      %v1260 = vrot.slane %v1258, 4
      %v1261 = vshll.u32 %v1140, 16
      %v1263 = vrot.slane %v1261, 5
      %v1264 = vor.u32 %v1260, %v1263
      %v1265 = vrot.slane %v1264, 4
      %v1267 = vshll.u32 %v1141, 16
      %v1269 = vrot.slane %v1267, 5
      %v1270 = vsel %vm1184, %v1265, %v1269
      %v1271 = vshrl.u32 %v1141, 16
      %v1273 = vrot.slane %v1271, 4
      %v1274 = vor.u32 %v1273, %v1269
      %v1275 = vrot.slane %v1274, 4
      %v1277 = vshll.u32 %v1169, 16
      %v1279 = vrot.slane %v1277, 5
      %v1280 = vsel %vm1184, %v1275, %v1279
      %v1282 = vshrl.u32 %v1142, 16
      %v1284 = vrot.slane %v1282, 4
      %v1285 = vshll.u32 %v1142, 16
      %v1287 = vrot.slane %v1285, 5
      %v1288 = vor.u32 %v1284, %v1287
      %v1289 = vrot.slane %v1288, 4
      %v1291 = vshll.u32 %v1143, 16
      %v1293 = vrot.slane %v1291, 5
      %v1294 = vsel %vm1184, %v1289, %v1293
      %v1295 = vshrl.u32 %v1143, 16
      %v1297 = vrot.slane %v1295, 4
      %v1298 = vor.u32 %v1297, %v1293
      %v1299 = vrot.slane %v1298, 4
      %v1301 = vshll.u32 %v1170, 16
      %v1303 = vrot.slane %v1301, 5
      %v1304 = vsel %vm1184, %v1299, %v1303
      %v1306 = vshrl.u32 %v1144, 16
      %v1308 = vrot.slane %v1306, 4
      %v1309 = vshll.u32 %v1144, 16
      %v1311 = vrot.slane %v1309, 5
      %v1312 = vor.u32 %v1308, %v1311
      %v1313 = vrot.slane %v1312, 4
      %v1315 = vshll.u32 %v1145, 16
      %v1317 = vrot.slane %v1315, 5
      %v1318 = vsel %vm1184, %v1313, %v1317
      %v1319 = vshrl.u32 %v1145, 16
      %v1321 = vrot.slane %v1319, 4
      %v1322 = vor.u32 %v1321, %v1317
      %v1323 = vrot.slane %v1322, 4
      %v1325 = vshll.u32 %v1171, 16
      %v1327 = vrot.slane %v1325, 5
      %v1328 = vsel %vm1184, %v1323, %v1327
      %v1330 = vshrl.u32 %v1146, 16
      %v1332 = vrot.slane %v1330, 4
      %v1333 = vshll.u32 %v1146, 16
      %v1335 = vrot.slane %v1333, 5
      %v1336 = vor.u32 %v1332, %v1335
      %v1337 = vrot.slane %v1336, 4
      %v1339 = vshll.u32 %v1147, 16
      %v1341 = vrot.slane %v1339, 5
      %v1342 = vsel %vm1184, %v1337, %v1341
      %v1343 = vshrl.u32 %v1147, 16
      %v1345 = vrot.slane %v1343, 4
      %v1346 = vor.u32 %v1345, %v1341
      %v1347 = vrot.slane %v1346, 4
      %v1349 = vshll.u32 %v1172, 16
      %v1351 = vrot.slane %v1349, 5
      %v1352 = vsel %vm1184, %v1347, %v1351
      %v1354 = vshrl.u32 %v1148, 16
      %v1356 = vrot.slane %v1354, 4
      %v1357 = vshll.u32 %v1148, 16
      %v1359 = vrot.slane %v1357, 5
      %v1360 = vor.u32 %v1356, %v1359
      %v1361 = vrot.slane %v1360, 4
      %v1363 = vshll.u32 %v1149, 16
      %v1365 = vrot.slane %v1363, 5
      %v1366 = vsel %vm1184, %v1361, %v1365
      %v1367 = vshrl.u32 %v1149, 16
      %v1369 = vrot.slane %v1367, 4
      %v1370 = vor.u32 %v1369, %v1365
      %v1371 = vrot.slane %v1370, 4
      %v1373 = vshll.u32 %v1173, 16
      %v1375 = vrot.slane %v1373, 5
      %v1376 = vsel %vm1184, %v1371, %v1375
      %v1378 = vshrl.u32 %v1150, 16
      %v1380 = vrot.slane %v1378, 4
      %v1381 = vshll.u32 %v1150, 16
      %v1383 = vrot.slane %v1381, 5
      %v1384 = vor.u32 %v1380, %v1383
      %v1385 = vrot.slane %v1384, 4
      %v1387 = vshll.u32 %v1151, 16
      %v1389 = vrot.slane %v1387, 5
      %v1390 = vsel %vm1184, %v1385, %v1389
      %v1391 = vshrl.u32 %v1151, 16
      %v1393 = vrot.slane %v1391, 4
      %v1394 = vor.u32 %v1393, %v1389
      %v1395 = vrot.slane %v1394, 4
      %v1397 = vshll.u32 %v1174, 16
      %v1399 = vrot.slane %v1397, 5
      %v1400 = vsel %vm1184, %v1395, %v1399
      %v1402 = vshrl.u32 %v1152, 16
      %v1404 = vrot.slane %v1402, 4
      %v1405 = vshll.u32 %v1152, 16
      %v1407 = vrot.slane %v1405, 5
      %v1408 = vor.u32 %v1404, %v1407
      %v1409 = vrot.slane %v1408, 4
      %v1411 = vshll.u32 %v1153, 16
      %v1413 = vrot.slane %v1411, 5
      %v1414 = vsel %vm1184, %v1409, %v1413
      %v1415 = vshrl.u32 %v1153, 16
      %v1417 = vrot.slane %v1415, 4
      %v1418 = vor.u32 %v1417, %v1413
      %v1419 = vrot.slane %v1418, 4
      %v1421 = vshll.u32 %v1175, 16
      %v1423 = vrot.slane %v1421, 5
      %v1424 = vsel %vm1184, %v1419, %v1423
      %v1426 = vshrl.u32 %v1154, 16
      %v1428 = vrot.slane %v1426, 4
      %v1429 = vshll.u32 %v1154, 16
      %v1431 = vrot.slane %v1429, 5
      %v1432 = vor.u32 %v1428, %v1431
      %v1433 = vrot.slane %v1432, 4
      %v1435 = vshll.u32 %v1155, 16
      %v1437 = vrot.slane %v1435, 5
      %v1438 = vsel %vm1184, %v1433, %v1437
      %v1439 = vshrl.u32 %v1155, 16
      %v1441 = vrot.slane %v1439, 4
      %v1442 = vor.u32 %v1441, %v1437
      %v1443 = vrot.slane %v1442, 4
      %v1445 = vshll.u32 %v1176, 16
      %v1447 = vrot.slane %v1445, 5
      %v1448 = vsel %vm1184, %v1443, %v1447
      %v1450 = vshrl.u32 %v1156, 16
      %v1452 = vrot.slane %v1450, 4
      %v1453 = vshll.u32 %v1156, 16
      %v1455 = vrot.slane %v1453, 5
      %v1456 = vor.u32 %v1452, %v1455
      %v1457 = vrot.slane %v1456, 4
      %v1459 = vshll.u32 %v1157, 16
      %v1461 = vrot.slane %v1459, 5
      %v1462 = vsel %vm1184, %v1457, %v1461
      %v1463 = vshrl.u32 %v1157, 16
      %v1465 = vrot.slane %v1463, 4
      %v1466 = vor.u32 %v1465, %v1461
      %v1467 = vrot.slane %v1466, 4
      %v1469 = vshll.u32 %v1177, 16
      %v1471 = vrot.slane %v1469, 5
      %v1472 = vsel %vm1184, %v1467, %v1471
      %v1474 = vshrl.u32 %v1158, 16
      %v1476 = vrot.slane %v1474, 4
      %v1477 = vshll.u32 %v1158, 16
      %v1479 = vrot.slane %v1477, 5
      %v1480 = vor.u32 %v1476, %v1479
      %v1481 = vrot.slane %v1480, 4
      %v1483 = vshll.u32 %v1159, 16
      %v1485 = vrot.slane %v1483, 5
      %v1486 = vsel %vm1184, %v1481, %v1485
      %v1487 = vshrl.u32 %v1159, 16
      %v1489 = vrot.slane %v1487, 4
      %v1490 = vor.u32 %v1489, %v1485
      %v1491 = vrot.slane %v1490, 4
      %v1493 = vshll.u32 %v1178, 16
      %v1495 = vrot.slane %v1493, 5
      %v1496 = vsel %vm1184, %v1491, %v1495
      %v1498 = vshrl.u32 %v1160, 16
      %v1500 = vrot.slane %v1498, 4
      %v1501 = vshll.u32 %v1160, 16
      %v1503 = vrot.slane %v1501, 5
      %v1504 = vor.u32 %v1500, %v1503
      %v1505 = vrot.slane %v1504, 4
      %v1507 = vshll.u32 %v1161, 16
      %v1509 = vrot.slane %v1507, 5
      %v1510 = vsel %vm1184, %v1505, %v1509
      %v1511 = vshrl.u32 %v1161, 16
      %v1513 = vrot.slane %v1511, 4
      %v1514 = vor.u32 %v1513, %v1509
      %v1515 = vrot.slane %v1514, 4
      %v1517 = vshll.u32 %v1179, 16
      %v1519 = vrot.slane %v1517, 5
      %v1520 = vsel %vm1184, %v1515, %v1519
      %v1522 = vshrl.u32 %v1162, 16
      %v1524 = vrot.slane %v1522, 4
      %v1525 = vshll.u32 %v1162, 16
      %v1527 = vrot.slane %v1525, 5
      %v1528 = vor.u32 %v1524, %v1527
      %v1529 = vrot.slane %v1528, 4
      %v1531 = vshll.u32 %v1163, 16
      %v1533 = vrot.slane %v1531, 5
      %v1534 = vsel %vm1184, %v1529, %v1533
      %v1535 = vshrl.u32 %v1163, 16
      %v1537 = vrot.slane %v1535, 4
      %v1538 = vor.u32 %v1537, %v1533
      %v1539 = vrot.slane %v1538, 4
      %v1541 = vshll.u32 %v1180, 16
      %v1543 = vrot.slane %v1541, 5
      %v1544 = vsel %vm1184, %v1539, %v1543
      %v1546 = vshrl.u32 %v1164, 16
      %v1548 = vrot.slane %v1546, 4
      %v1549 = vshll.u32 %v1164, 16
      %v1551 = vrot.slane %v1549, 5
      %v1552 = vor.u32 %v1548, %v1551
      %v1553 = vrot.slane %v1552, 4
      %v1555 = vshll.u32 %v1165, 16
      %v1557 = vrot.slane %v1555, 5
      %v1558 = vsel %vm1184, %v1553, %v1557
      %v1559 = vshrl.u32 %v1165, 16
      %v1561 = vrot.slane %v1559, 4
      %v1562 = vor.u32 %v1561, %v1557
      %v1563 = vrot.slane %v1562, 4
      %v1565 = vshll.u32 %v1181, 16
      %v1567 = vrot.slane %v1565, 5
      %v1568 = vsel %vm1184, %v1563, %v1567
      %v1569 = vld [vmem:[#allocation2] sm:$0xe]
      %v1570 = vld [vmem:[#allocation2 + $0xc] sm:$0xe]
      %v1571 = vld [vmem:[#allocation2 + $0x18] sm:$0xe]
      %v1572 = vld [vmem:[#allocation2 + $0x24] sm:$0xe]
      %v1573 = vld [vmem:[#allocation2 + $0x30] sm:$0xe]
      %v1574 = vld [vmem:[#allocation2 + $0x3c] sm:$0xe]
      %v1575 = vld [vmem:[#allocation2 + $0x48] sm:$0xe]
      %v1576 = vld [vmem:[#allocation2 + $0x54] sm:$0xe]
      %v1577 = vld [vmem:[#allocation2 + $0x60] sm:$0xe]
      %v1578 = vld [vmem:[#allocation2 + $0x6c] sm:$0xe]
      %v1579 = vld [vmem:[#allocation2 + $0x78] sm:$0xe]
      %v1580 = vld [vmem:[#allocation2 + $0x84] sm:$0xe]
      %v1581 = vld [vmem:[#allocation2 + $0x90] sm:$0xe]
      %v1582 = vld [vmem:[#allocation2 + $0x9c] sm:$0xe]
      %v1583 = vld [vmem:[#allocation2 + $0xa8] sm:$0xe]
      %v1584 = vld [vmem:[#allocation2 + $0xb4] sm:$0xe]
      %vm1633 = vcmask 1042432
      %vm1634 = vcmask 1046532
      %vm1635 = vmor %vm1633, %vm1634
      %v1636 = vrot.slane %v1569, 5
      %v1637 = vrot.slane %v1636, 4
      %v1638 = vrot.slane %v1135, 5
      %v1639 = vsel %vm1635, %v1637, %v1638
      %v1640 = vrot.slane %v1638, 4
      %v1641 = vrot.slane %v1166, 5
      %v1642 = vsel %vm1635, %v1640, %v1641
      %v1643 = vrot.slane %v1570, 5
      %v1644 = vrot.slane %v1643, 4
      %v1645 = vrot.slane %v1137, 5
      %v1646 = vsel %vm1635, %v1644, %v1645
      %v1647 = vrot.slane %v1645, 4
      %v1648 = vrot.slane %v1167, 5
      %v1649 = vsel %vm1635, %v1647, %v1648
      %v1650 = vrot.slane %v1571, 5
      %v1651 = vrot.slane %v1650, 4
      %v1652 = vrot.slane %v1139, 5
      %v1653 = vsel %vm1635, %v1651, %v1652
      %v1654 = vrot.slane %v1652, 4
      %v1655 = vrot.slane %v1168, 5
      %v1656 = vsel %vm1635, %v1654, %v1655
      %v1657 = vrot.slane %v1572, 5
      %v1658 = vrot.slane %v1657, 4
      %v1659 = vrot.slane %v1141, 5
      %v1660 = vsel %vm1635, %v1658, %v1659
      %v1661 = vrot.slane %v1659, 4
      %v1662 = vrot.slane %v1169, 5
      %v1663 = vsel %vm1635, %v1661, %v1662
      %v1664 = vrot.slane %v1573, 5
      %v1665 = vrot.slane %v1664, 4
      %v1666 = vrot.slane %v1143, 5
      %v1667 = vsel %vm1635, %v1665, %v1666
      %v1668 = vrot.slane %v1666, 4
      %v1669 = vrot.slane %v1170, 5
      %v1670 = vsel %vm1635, %v1668, %v1669
      %v1671 = vrot.slane %v1574, 5
      %v1672 = vrot.slane %v1671, 4
      %v1673 = vrot.slane %v1145, 5
      %v1674 = vsel %vm1635, %v1672, %v1673
      %v1675 = vrot.slane %v1673, 4
      %v1676 = vrot.slane %v1171, 5
      %v1677 = vsel %vm1635, %v1675, %v1676
      %v1678 = vrot.slane %v1575, 5
      %v1679 = vrot.slane %v1678, 4
      %v1680 = vrot.slane %v1147, 5
      %v1681 = vsel %vm1635, %v1679, %v1680
      %v1682 = vrot.slane %v1680, 4
      %v1683 = vrot.slane %v1172, 5
      %v1684 = vsel %vm1635, %v1682, %v1683
      %v1685 = vrot.slane %v1576, 5
      %v1686 = vrot.slane %v1685, 4
      %v1687 = vrot.slane %v1149, 5
      %v1688 = vsel %vm1635, %v1686, %v1687
      %v1689 = vrot.slane %v1687, 4
      %v1690 = vrot.slane %v1173, 5
      %v1691 = vsel %vm1635, %v1689, %v1690
      %v1692 = vrot.slane %v1577, 5
      %v1693 = vrot.slane %v1692, 4
      %v1694 = vrot.slane %v1151, 5
      %v1695 = vsel %vm1635, %v1693, %v1694
      %v1696 = vrot.slane %v1694, 4
      %v1697 = vrot.slane %v1174, 5
      %v1698 = vsel %vm1635, %v1696, %v1697
      %v1699 = vrot.slane %v1578, 5
      %v1700 = vrot.slane %v1699, 4
      %v1701 = vrot.slane %v1153, 5
      %v1702 = vsel %vm1635, %v1700, %v1701
      %v1703 = vrot.slane %v1701, 4
      %v1704 = vrot.slane %v1175, 5
      %v1705 = vsel %vm1635, %v1703, %v1704
      %v1706 = vrot.slane %v1579, 5
      %v1707 = vrot.slane %v1706, 4
      %v1708 = vrot.slane %v1155, 5
      %v1709 = vsel %vm1635, %v1707, %v1708
      %v1710 = vrot.slane %v1708, 4
      %v1711 = vrot.slane %v1176, 5
      %v1712 = vsel %vm1635, %v1710, %v1711
      %v1713 = vrot.slane %v1580, 5
      %v1714 = vrot.slane %v1713, 4
      %v1715 = vrot.slane %v1157, 5
      %v1716 = vsel %vm1635, %v1714, %v1715
      %v1717 = vrot.slane %v1715, 4
      %v1718 = vrot.slane %v1177, 5
      %v1719 = vsel %vm1635, %v1717, %v1718
      %v1720 = vrot.slane %v1581, 5
      %v1721 = vrot.slane %v1720, 4
      %v1722 = vrot.slane %v1159, 5
      %v1723 = vsel %vm1635, %v1721, %v1722
      %v1724 = vrot.slane %v1722, 4
      %v1725 = vrot.slane %v1178, 5
      %v1726 = vsel %vm1635, %v1724, %v1725
      %v1727 = vrot.slane %v1582, 5
      %v1728 = vrot.slane %v1727, 4
      %v1729 = vrot.slane %v1161, 5
      %v1730 = vsel %vm1635, %v1728, %v1729
      %v1731 = vrot.slane %v1729, 4
      %v1732 = vrot.slane %v1179, 5
      %v1733 = vsel %vm1635, %v1731, %v1732
      %v1734 = vrot.slane %v1583, 5
      %v1735 = vrot.slane %v1734, 4
      %v1736 = vrot.slane %v1163, 5
      %v1737 = vsel %vm1635, %v1735, %v1736
      %v1738 = vrot.slane %v1736, 4
      %v1739 = vrot.slane %v1180, 5
      %v1740 = vsel %vm1635, %v1738, %v1739
      %v1741 = vrot.slane %v1584, 5
      %v1742 = vrot.slane %v1741, 4
      %v1743 = vrot.slane %v1165, 5
      %v1744 = vsel %vm1635, %v1742, %v1743
      %v1745 = vrot.slane %v1743, 4
      %v1746 = vrot.slane %v1181, 5
      %v1747 = vsel %vm1635, %v1745, %v1746
      %v1748 = vld [vmem:[%s1019] sm:$0xf]
      %v1749 = vld [vmem:[%s1019 + $0x4] sm:$0xf]
      %v1750 = vld [vmem:[%s1019 + $0xc] sm:$0xf]
      %v1751 = vld [vmem:[%s1019 + $0x10] sm:$0xf]
      %v1752 = vld [vmem:[%s1019 + $0x18] sm:$0xf]
      %v1753 = vld [vmem:[%s1019 + $0x1c] sm:$0xf]
      %v1754 = vld [vmem:[%s1019 + $0x24] sm:$0xf]
      %v1755 = vld [vmem:[%s1019 + $0x28] sm:$0xf]
      %v1756 = vld [vmem:[%s1019 + $0x30] sm:$0xf]
      %v1757 = vld [vmem:[%s1019 + $0x34] sm:$0xf]
      %v1758 = vld [vmem:[%s1019 + $0x3c] sm:$0xf]
      %v1759 = vld [vmem:[%s1019 + $0x40] sm:$0xf]
      %v1760 = vld [vmem:[%s1019 + $0x48] sm:$0xf]
      %v1761 = vld [vmem:[%s1019 + $0x4c] sm:$0xf]
      %v1762 = vld [vmem:[%s1019 + $0x54] sm:$0xf]
      %v1763 = vld [vmem:[%s1019 + $0x58] sm:$0xf]
      %v1764 = vld [vmem:[%s1019 + $0x60] sm:$0xf]
      %v1765 = vld [vmem:[%s1019 + $0x64] sm:$0xf]
      %v1766 = vld [vmem:[%s1019 + $0x6c] sm:$0xf]
      %v1767 = vld [vmem:[%s1019 + $0x70] sm:$0xf]
      %v1768 = vld [vmem:[%s1019 + $0x78] sm:$0xf]
      %v1769 = vld [vmem:[%s1019 + $0x7c] sm:$0xf]
      %v1770 = vld [vmem:[%s1019 + $0x84] sm:$0xf]
      %v1771 = vld [vmem:[%s1019 + $0x88] sm:$0xf]
      %v1772 = vld [vmem:[%s1019 + $0x90] sm:$0xf]
      %v1773 = vld [vmem:[%s1019 + $0x94] sm:$0xf]
      %v1774 = vld [vmem:[%s1019 + $0x9c] sm:$0xf]
      %v1775 = vld [vmem:[%s1019 + $0xa0] sm:$0xf]
      %v1776 = vld [vmem:[%s1019 + $0xa8] sm:$0xf]
      %v1777 = vld [vmem:[%s1019 + $0xac] sm:$0xf]
      %v1778 = vld [vmem:[%s1019 + $0xb4] sm:$0xf]
      %v1779 = vld [vmem:[%s1019 + $0xb8] sm:$0xf]
      %v1780 = vld [vmem:[%s1019 + $0x8] sm:$0x1]
      %v1781 = vld [vmem:[%s1019 + $0x14] sm:$0x1]
      %v1782 = vld [vmem:[%s1019 + $0x20] sm:$0x1]
      %v1783 = vld [vmem:[%s1019 + $0x2c] sm:$0x1]
      %v1784 = vld [vmem:[%s1019 + $0x38] sm:$0x1]
      %v1785 = vld [vmem:[%s1019 + $0x44] sm:$0x1]
      %v1786 = vld [vmem:[%s1019 + $0x50] sm:$0x1]
      %v1787 = vld [vmem:[%s1019 + $0x5c] sm:$0x1]
      %v1788 = vld [vmem:[%s1019 + $0x68] sm:$0x1]
      %v1789 = vld [vmem:[%s1019 + $0x74] sm:$0x1]
      %v1790 = vld [vmem:[%s1019 + $0x80] sm:$0x1]
      %v1791 = vld [vmem:[%s1019 + $0x8c] sm:$0x1]
      %v1792 = vld [vmem:[%s1019 + $0x98] sm:$0x1]
      %v1793 = vld [vmem:[%s1019 + $0xa4] sm:$0x1]
      %v1794 = vld [vmem:[%s1019 + $0xb0] sm:$0x1]
      %v1795 = vld [vmem:[%s1019 + $0xbc] sm:$0x1]
      %v1797 = vshrl.u32 %v1748, 16
      %v1799 = vrot.slane %v1797, 4
      %v1800 = vshll.u32 %v1748, 16
      %v1802 = vrot.slane %v1800, 5
      %v1803 = vor.u32 %v1799, %v1802
      %v1804 = vrot.slane %v1803, 4
      %v1806 = vshll.u32 %v1749, 16
      %v1808 = vrot.slane %v1806, 5
      %v1809 = vsel %vm1184, %v1804, %v1808
      %v1810 = vshrl.u32 %v1749, 16
      %v1812 = vrot.slane %v1810, 4
      %v1813 = vor.u32 %v1812, %v1808
      %v1814 = vrot.slane %v1813, 4
      %v1816 = vshll.u32 %v1780, 16
      %v1818 = vrot.slane %v1816, 5
      %v1819 = vsel %vm1184, %v1814, %v1818
      %v1821 = vshrl.u32 %v1750, 16
      %v1823 = vrot.slane %v1821, 4
      %v1824 = vshll.u32 %v1750, 16
      %v1826 = vrot.slane %v1824, 5
      %v1827 = vor.u32 %v1823, %v1826
      %v1828 = vrot.slane %v1827, 4
      %v1830 = vshll.u32 %v1751, 16
      %v1832 = vrot.slane %v1830, 5
      %v1833 = vsel %vm1184, %v1828, %v1832
      %v1834 = vshrl.u32 %v1751, 16
      %v1836 = vrot.slane %v1834, 4
      %v1837 = vor.u32 %v1836, %v1832
      %v1838 = vrot.slane %v1837, 4
      %v1840 = vshll.u32 %v1781, 16
      %v1842 = vrot.slane %v1840, 5
      %v1843 = vsel %vm1184, %v1838, %v1842
      %v1845 = vshrl.u32 %v1752, 16
      %v1847 = vrot.slane %v1845, 4
      %v1848 = vshll.u32 %v1752, 16
      %v1850 = vrot.slane %v1848, 5
      %v1851 = vor.u32 %v1847, %v1850
      %v1852 = vrot.slane %v1851, 4
      %v1854 = vshll.u32 %v1753, 16
      %v1856 = vrot.slane %v1854, 5
      %v1857 = vsel %vm1184, %v1852, %v1856
      %v1858 = vshrl.u32 %v1753, 16
      %v1860 = vrot.slane %v1858, 4
      %v1861 = vor.u32 %v1860, %v1856
      %v1862 = vrot.slane %v1861, 4
      %v1864 = vshll.u32 %v1782, 16
      %v1866 = vrot.slane %v1864, 5
      %v1867 = vsel %vm1184, %v1862, %v1866
      %v1869 = vshrl.u32 %v1754, 16
      %v1871 = vrot.slane %v1869, 4
      %v1872 = vshll.u32 %v1754, 16
      %v1874 = vrot.slane %v1872, 5
      %v1875 = vor.u32 %v1871, %v1874
      %v1876 = vrot.slane %v1875, 4
      %v1878 = vshll.u32 %v1755, 16
      %v1880 = vrot.slane %v1878, 5
      %v1881 = vsel %vm1184, %v1876, %v1880
      %v1882 = vshrl.u32 %v1755, 16
      %v1884 = vrot.slane %v1882, 4
      %v1885 = vor.u32 %v1884, %v1880
      %v1886 = vrot.slane %v1885, 4
      %v1888 = vshll.u32 %v1783, 16
      %v1890 = vrot.slane %v1888, 5
      %v1891 = vsel %vm1184, %v1886, %v1890
      %v1893 = vshrl.u32 %v1756, 16
      %v1895 = vrot.slane %v1893, 4
      %v1896 = vshll.u32 %v1756, 16
      %v1898 = vrot.slane %v1896, 5
      %v1899 = vor.u32 %v1895, %v1898
      %v1900 = vrot.slane %v1899, 4
      %v1902 = vshll.u32 %v1757, 16
      %v1904 = vrot.slane %v1902, 5
      %v1905 = vsel %vm1184, %v1900, %v1904
      %v1906 = vshrl.u32 %v1757, 16
      %v1908 = vrot.slane %v1906, 4
      %v1909 = vor.u32 %v1908, %v1904
      %v1910 = vrot.slane %v1909, 4
      %v1912 = vshll.u32 %v1784, 16
      %v1914 = vrot.slane %v1912, 5
      %v1915 = vsel %vm1184, %v1910, %v1914
      %v1917 = vshrl.u32 %v1758, 16
      %v1919 = vrot.slane %v1917, 4
      %v1920 = vshll.u32 %v1758, 16
      %v1922 = vrot.slane %v1920, 5
      %v1923 = vor.u32 %v1919, %v1922
      %v1924 = vrot.slane %v1923, 4
      %v1926 = vshll.u32 %v1759, 16
      %v1928 = vrot.slane %v1926, 5
      %v1929 = vsel %vm1184, %v1924, %v1928
      %v1930 = vshrl.u32 %v1759, 16
      %v1932 = vrot.slane %v1930, 4
      %v1933 = vor.u32 %v1932, %v1928
      %v1934 = vrot.slane %v1933, 4
      %v1936 = vshll.u32 %v1785, 16
      %v1938 = vrot.slane %v1936, 5
      %v1939 = vsel %vm1184, %v1934, %v1938
      %v1941 = vshrl.u32 %v1760, 16
      %v1943 = vrot.slane %v1941, 4
      %v1944 = vshll.u32 %v1760, 16
      %v1946 = vrot.slane %v1944, 5
      %v1947 = vor.u32 %v1943, %v1946
      %v1948 = vrot.slane %v1947, 4
      %v1950 = vshll.u32 %v1761, 16
      %v1952 = vrot.slane %v1950, 5
      %v1953 = vsel %vm1184, %v1948, %v1952
      %v1954 = vshrl.u32 %v1761, 16
      %v1956 = vrot.slane %v1954, 4
      %v1957 = vor.u32 %v1956, %v1952
      %v1958 = vrot.slane %v1957, 4
      %v1960 = vshll.u32 %v1786, 16
      %v1962 = vrot.slane %v1960, 5
      %v1963 = vsel %vm1184, %v1958, %v1962
      %v1965 = vshrl.u32 %v1762, 16
      %v1967 = vrot.slane %v1965, 4
      %v1968 = vshll.u32 %v1762, 16
      %v1970 = vrot.slane %v1968, 5
      %v1971 = vor.u32 %v1967, %v1970
      %v1972 = vrot.slane %v1971, 4
      %v1974 = vshll.u32 %v1763, 16
      %v1976 = vrot.slane %v1974, 5
      %v1977 = vsel %vm1184, %v1972, %v1976
      %v1978 = vshrl.u32 %v1763, 16
      %v1980 = vrot.slane %v1978, 4
      %v1981 = vor.u32 %v1980, %v1976
      %v1982 = vrot.slane %v1981, 4
      %v1984 = vshll.u32 %v1787, 16
      %v1986 = vrot.slane %v1984, 5
      %v1987 = vsel %vm1184, %v1982, %v1986
      %v1989 = vshrl.u32 %v1764, 16
      %v1991 = vrot.slane %v1989, 4
      %v1992 = vshll.u32 %v1764, 16
      %v1994 = vrot.slane %v1992, 5
      %v1995 = vor.u32 %v1991, %v1994
      %v1996 = vrot.slane %v1995, 4
      %v1998 = vshll.u32 %v1765, 16
      %v2000 = vrot.slane %v1998, 5
      %v2001 = vsel %vm1184, %v1996, %v2000
      %v2002 = vshrl.u32 %v1765, 16
      %v2004 = vrot.slane %v2002, 4
      %v2005 = vor.u32 %v2004, %v2000
      %v2006 = vrot.slane %v2005, 4
      %v2008 = vshll.u32 %v1788, 16
      %v2010 = vrot.slane %v2008, 5
      %v2011 = vsel %vm1184, %v2006, %v2010
      %v2013 = vshrl.u32 %v1766, 16
      %v2015 = vrot.slane %v2013, 4
      %v2016 = vshll.u32 %v1766, 16
      %v2018 = vrot.slane %v2016, 5
      %v2019 = vor.u32 %v2015, %v2018
      %v2020 = vrot.slane %v2019, 4
      %v2022 = vshll.u32 %v1767, 16
      %v2024 = vrot.slane %v2022, 5
      %v2025 = vsel %vm1184, %v2020, %v2024
      %v2026 = vshrl.u32 %v1767, 16
      %v2028 = vrot.slane %v2026, 4
      %v2029 = vor.u32 %v2028, %v2024
      %v2030 = vrot.slane %v2029, 4
      %v2032 = vshll.u32 %v1789, 16
      %v2034 = vrot.slane %v2032, 5
      %v2035 = vsel %vm1184, %v2030, %v2034
      %v2037 = vshrl.u32 %v1768, 16
      %v2039 = vrot.slane %v2037, 4
      %v2040 = vshll.u32 %v1768, 16
      %v2042 = vrot.slane %v2040, 5
      %v2043 = vor.u32 %v2039, %v2042
      %v2044 = vrot.slane %v2043, 4
      %v2046 = vshll.u32 %v1769, 16
      %v2048 = vrot.slane %v2046, 5
      %v2049 = vsel %vm1184, %v2044, %v2048
      %v2050 = vshrl.u32 %v1769, 16
      %v2052 = vrot.slane %v2050, 4
      %v2053 = vor.u32 %v2052, %v2048
      %v2054 = vrot.slane %v2053, 4
      %v2056 = vshll.u32 %v1790, 16
      %v2058 = vrot.slane %v2056, 5
      %v2059 = vsel %vm1184, %v2054, %v2058
      %v2061 = vshrl.u32 %v1770, 16
      %v2063 = vrot.slane %v2061, 4
      %v2064 = vshll.u32 %v1770, 16
      %v2066 = vrot.slane %v2064, 5
      %v2067 = vor.u32 %v2063, %v2066
      %v2068 = vrot.slane %v2067, 4
      %v2070 = vshll.u32 %v1771, 16
      %v2072 = vrot.slane %v2070, 5
      %v2073 = vsel %vm1184, %v2068, %v2072
      %v2074 = vshrl.u32 %v1771, 16
      %v2076 = vrot.slane %v2074, 4
      %v2077 = vor.u32 %v2076, %v2072
      %v2078 = vrot.slane %v2077, 4
      %v2080 = vshll.u32 %v1791, 16
      %v2082 = vrot.slane %v2080, 5
      %v2083 = vsel %vm1184, %v2078, %v2082
      %v2085 = vshrl.u32 %v1772, 16
      %v2087 = vrot.slane %v2085, 4
      %v2088 = vshll.u32 %v1772, 16
      %v2090 = vrot.slane %v2088, 5
      %v2091 = vor.u32 %v2087, %v2090
      %v2092 = vrot.slane %v2091, 4
      %v2094 = vshll.u32 %v1773, 16
      %v2096 = vrot.slane %v2094, 5
      %v2097 = vsel %vm1184, %v2092, %v2096
      %v2098 = vshrl.u32 %v1773, 16
      %v2100 = vrot.slane %v2098, 4
      %v2101 = vor.u32 %v2100, %v2096
      %v2102 = vrot.slane %v2101, 4
      %v2104 = vshll.u32 %v1792, 16
      %v2106 = vrot.slane %v2104, 5
      %v2107 = vsel %vm1184, %v2102, %v2106
      %v2109 = vshrl.u32 %v1774, 16
      %v2111 = vrot.slane %v2109, 4
      %v2112 = vshll.u32 %v1774, 16
      %v2114 = vrot.slane %v2112, 5
      %v2115 = vor.u32 %v2111, %v2114
      %v2116 = vrot.slane %v2115, 4
      %v2118 = vshll.u32 %v1775, 16
      %v2120 = vrot.slane %v2118, 5
      %v2121 = vsel %vm1184, %v2116, %v2120
      %v2122 = vshrl.u32 %v1775, 16
      %v2124 = vrot.slane %v2122, 4
      %v2125 = vor.u32 %v2124, %v2120
      %v2126 = vrot.slane %v2125, 4
      %v2128 = vshll.u32 %v1793, 16
      %v2130 = vrot.slane %v2128, 5
      %v2131 = vsel %vm1184, %v2126, %v2130
      %v2133 = vshrl.u32 %v1776, 16
      %v2135 = vrot.slane %v2133, 4
      %v2136 = vshll.u32 %v1776, 16
      %v2138 = vrot.slane %v2136, 5
      %v2139 = vor.u32 %v2135, %v2138
      %v2140 = vrot.slane %v2139, 4
      %v2142 = vshll.u32 %v1777, 16
      %v2144 = vrot.slane %v2142, 5
      %v2145 = vsel %vm1184, %v2140, %v2144
      %v2146 = vshrl.u32 %v1777, 16
      %v2148 = vrot.slane %v2146, 4
      %v2149 = vor.u32 %v2148, %v2144
      %v2150 = vrot.slane %v2149, 4
      %v2152 = vshll.u32 %v1794, 16
      %v2154 = vrot.slane %v2152, 5
      %v2155 = vsel %vm1184, %v2150, %v2154
      %v2157 = vshrl.u32 %v1778, 16
      %v2159 = vrot.slane %v2157, 4
      %v2160 = vshll.u32 %v1778, 16
      %v2162 = vrot.slane %v2160, 5
      %v2163 = vor.u32 %v2159, %v2162
      %v2164 = vrot.slane %v2163, 4
      %v2166 = vshll.u32 %v1779, 16
      %v2168 = vrot.slane %v2166, 5
      %v2169 = vsel %vm1184, %v2164, %v2168
      %v2170 = vshrl.u32 %v1779, 16
      %v2172 = vrot.slane %v2170, 4
      %v2173 = vor.u32 %v2172, %v2168
      %v2174 = vrot.slane %v2173, 4
      %v2176 = vshll.u32 %v1795, 16
      %v2178 = vrot.slane %v2176, 5
      %v2179 = vsel %vm1184, %v2174, %v2178
      %v2180 = vld [vmem:[%s1019] sm:$0xe]
      %v2181 = vld [vmem:[%s1019 + $0xc] sm:$0xe]
      %v2182 = vld [vmem:[%s1019 + $0x18] sm:$0xe]
      %v2183 = vld [vmem:[%s1019 + $0x24] sm:$0xe]
      %v2184 = vld [vmem:[%s1019 + $0x30] sm:$0xe]
      %v2185 = vld [vmem:[%s1019 + $0x3c] sm:$0xe]
      %v2186 = vld [vmem:[%s1019 + $0x48] sm:$0xe]
      %v2187 = vld [vmem:[%s1019 + $0x54] sm:$0xe]
      %v2188 = vld [vmem:[%s1019 + $0x60] sm:$0xe]
      %v2189 = vld [vmem:[%s1019 + $0x6c] sm:$0xe]
      %v2190 = vld [vmem:[%s1019 + $0x78] sm:$0xe]
      %v2191 = vld [vmem:[%s1019 + $0x84] sm:$0xe]
      %v2192 = vld [vmem:[%s1019 + $0x90] sm:$0xe]
      %v2193 = vld [vmem:[%s1019 + $0x9c] sm:$0xe]
      %v2194 = vld [vmem:[%s1019 + $0xa8] sm:$0xe]
      %v2195 = vld [vmem:[%s1019 + $0xb4] sm:$0xe]
      %v2244 = vrot.slane %v2180, 5
      %v2245 = vrot.slane %v2244, 4
      %v2246 = vrot.slane %v1749, 5
      %v2247 = vsel %vm1635, %v2245, %v2246
      %v2248 = vrot.slane %v2246, 4
      %v2249 = vrot.slane %v1780, 5
      %v2250 = vsel %vm1635, %v2248, %v2249
      %v2251 = vrot.slane %v2181, 5
      %v2252 = vrot.slane %v2251, 4
      %v2253 = vrot.slane %v1751, 5
      %v2254 = vsel %vm1635, %v2252, %v2253
      %v2255 = vrot.slane %v2253, 4
      %v2256 = vrot.slane %v1781, 5
      %v2257 = vsel %vm1635, %v2255, %v2256
      %v2258 = vrot.slane %v2182, 5
      %v2259 = vrot.slane %v2258, 4
      %v2260 = vrot.slane %v1753, 5
      %v2261 = vsel %vm1635, %v2259, %v2260
      %v2262 = vrot.slane %v2260, 4
      %v2263 = vrot.slane %v1782, 5
      %v2264 = vsel %vm1635, %v2262, %v2263
      %v2265 = vrot.slane %v2183, 5
      %v2266 = vrot.slane %v2265, 4
      %v2267 = vrot.slane %v1755, 5
      %v2268 = vsel %vm1635, %v2266, %v2267
      %v2269 = vrot.slane %v2267, 4
      %v2270 = vrot.slane %v1783, 5
      %v2271 = vsel %vm1635, %v2269, %v2270
      %v2272 = vrot.slane %v2184, 5
      %v2273 = vrot.slane %v2272, 4
      %v2274 = vrot.slane %v1757, 5
      %v2275 = vsel %vm1635, %v2273, %v2274
      %v2276 = vrot.slane %v2274, 4
      %v2277 = vrot.slane %v1784, 5
      %v2278 = vsel %vm1635, %v2276, %v2277
      %v2279 = vrot.slane %v2185, 5
      %v2280 = vrot.slane %v2279, 4
      %v2281 = vrot.slane %v1759, 5
      %v2282 = vsel %vm1635, %v2280, %v2281
      %v2283 = vrot.slane %v2281, 4
      %v2284 = vrot.slane %v1785, 5
      %v2285 = vsel %vm1635, %v2283, %v2284
      %v2286 = vrot.slane %v2186, 5
      %v2287 = vrot.slane %v2286, 4
      %v2288 = vrot.slane %v1761, 5
      %v2289 = vsel %vm1635, %v2287, %v2288
      %v2290 = vrot.slane %v2288, 4
      %v2291 = vrot.slane %v1786, 5
      %v2292 = vsel %vm1635, %v2290, %v2291
      %v2293 = vrot.slane %v2187, 5
      %v2294 = vrot.slane %v2293, 4
      %v2295 = vrot.slane %v1763, 5
      %v2296 = vsel %vm1635, %v2294, %v2295
      %v2297 = vrot.slane %v2295, 4
      %v2298 = vrot.slane %v1787, 5
      %v2299 = vsel %vm1635, %v2297, %v2298
      %v2300 = vrot.slane %v2188, 5
      %v2301 = vrot.slane %v2300, 4
      %v2302 = vrot.slane %v1765, 5
      %v2303 = vsel %vm1635, %v2301, %v2302
      %v2304 = vrot.slane %v2302, 4
      %v2305 = vrot.slane %v1788, 5
      %v2306 = vsel %vm1635, %v2304, %v2305
      %v2307 = vrot.slane %v2189, 5
      %v2308 = vrot.slane %v2307, 4
      %v2309 = vrot.slane %v1767, 5
      %v2310 = vsel %vm1635, %v2308, %v2309
      %v2311 = vrot.slane %v2309, 4
      %v2312 = vrot.slane %v1789, 5
      %v2313 = vsel %vm1635, %v2311, %v2312
      %v2314 = vrot.slane %v2190, 5
      %v2315 = vrot.slane %v2314, 4
      %v2316 = vrot.slane %v1769, 5
      %v2317 = vsel %vm1635, %v2315, %v2316
      %v2318 = vrot.slane %v2316, 4
      %v2319 = vrot.slane %v1790, 5
      %v2320 = vsel %vm1635, %v2318, %v2319
      %v2321 = vrot.slane %v2191, 5
      %v2322 = vrot.slane %v2321, 4
      %v2323 = vrot.slane %v1771, 5
      %v2324 = vsel %vm1635, %v2322, %v2323
      %v2325 = vrot.slane %v2323, 4
      %v2326 = vrot.slane %v1791, 5
      %v2327 = vsel %vm1635, %v2325, %v2326
      %v2328 = vrot.slane %v2192, 5
      %v2329 = vrot.slane %v2328, 4
      %v2330 = vrot.slane %v1773, 5
      %v2331 = vsel %vm1635, %v2329, %v2330
      %v2332 = vrot.slane %v2330, 4
      %v2333 = vrot.slane %v1792, 5
      %v2334 = vsel %vm1635, %v2332, %v2333
      %v2335 = vrot.slane %v2193, 5
      %v2336 = vrot.slane %v2335, 4
      %v2337 = vrot.slane %v1775, 5
      %v2338 = vsel %vm1635, %v2336, %v2337
      %v2339 = vrot.slane %v2337, 4
      %v2340 = vrot.slane %v1793, 5
      %v2341 = vsel %vm1635, %v2339, %v2340
      %v2342 = vrot.slane %v2194, 5
      %v2343 = vrot.slane %v2342, 4
      %v2344 = vrot.slane %v1777, 5
      %v2345 = vsel %vm1635, %v2343, %v2344
      %v2346 = vrot.slane %v2344, 4
      %v2347 = vrot.slane %v1794, 5
      %v2348 = vsel %vm1635, %v2346, %v2347
      %v2349 = vrot.slane %v2195, 5
      %v2350 = vrot.slane %v2349, 4
      %v2351 = vrot.slane %v1779, 5
      %v2352 = vsel %vm1635, %v2350, %v2351
      %v2353 = vrot.slane %v2351, 4
      %v2354 = vrot.slane %v1795, 5
      %v2355 = vsel %vm1635, %v2353, %v2354
      %s2356 = scalar_lea.vmem [#allocation2], 24
      %v2357 = vld [vmem:[%s2356] sm:$0xf]
      %v2358 = vld [vmem:[%s2356 + $0x4] sm:$0xf]
      %v2359 = vld [vmem:[%s2356 + $0xc] sm:$0xf]
      %v2360 = vld [vmem:[%s2356 + $0x10] sm:$0xf]
      %v2361 = vld [vmem:[%s2356 + $0x18] sm:$0xf]
      %v2362 = vld [vmem:[%s2356 + $0x1c] sm:$0xf]
      %v2363 = vld [vmem:[%s2356 + $0x24] sm:$0xf]
      %v2364 = vld [vmem:[%s2356 + $0x28] sm:$0xf]
      %v2365 = vld [vmem:[%s2356 + $0x30] sm:$0xf]
      %v2366 = vld [vmem:[%s2356 + $0x34] sm:$0xf]
      %v2367 = vld [vmem:[%s2356 + $0x3c] sm:$0xf]
      %v2368 = vld [vmem:[%s2356 + $0x40] sm:$0xf]
      %v2369 = vld [vmem:[%s2356 + $0x48] sm:$0xf]
      %v2370 = vld [vmem:[%s2356 + $0x4c] sm:$0xf]
      %v2371 = vld [vmem:[%s2356 + $0x54] sm:$0xf]
      %v2372 = vld [vmem:[%s2356 + $0x58] sm:$0xf]
      %v2373 = vld [vmem:[%s2356 + $0x60] sm:$0xf]
      %v2374 = vld [vmem:[%s2356 + $0x64] sm:$0xf]
      %v2375 = vld [vmem:[%s2356 + $0x6c] sm:$0xf]
      %v2376 = vld [vmem:[%s2356 + $0x70] sm:$0xf]
      %v2377 = vld [vmem:[%s2356 + $0x78] sm:$0xf]
      %v2378 = vld [vmem:[%s2356 + $0x7c] sm:$0xf]
      %v2379 = vld [vmem:[%s2356 + $0x84] sm:$0xf]
      %v2380 = vld [vmem:[%s2356 + $0x88] sm:$0xf]
      %v2381 = vld [vmem:[%s2356 + $0x90] sm:$0xf]
      %v2382 = vld [vmem:[%s2356 + $0x94] sm:$0xf]
      %v2383 = vld [vmem:[%s2356 + $0x9c] sm:$0xf]
      %v2384 = vld [vmem:[%s2356 + $0xa0] sm:$0xf]
      %v2385 = vld [vmem:[%s2356 + $0xa8] sm:$0xf]
      %v2386 = vld [vmem:[%s2356 + $0xac] sm:$0xf]
      %v2387 = vld [vmem:[%s2356 + $0xb4] sm:$0xf]
      %v2388 = vld [vmem:[%s2356 + $0xb8] sm:$0xf]
      %v2389 = vld [vmem:[%s2356 + $0x8] sm:$0x1]
      %v2390 = vld [vmem:[%s2356 + $0x14] sm:$0x1]
      %v2391 = vld [vmem:[%s2356 + $0x20] sm:$0x1]
      %v2392 = vld [vmem:[%s2356 + $0x2c] sm:$0x1]
      %v2393 = vld [vmem:[%s2356 + $0x38] sm:$0x1]
      %v2394 = vld [vmem:[%s2356 + $0x44] sm:$0x1]
      %v2395 = vld [vmem:[%s2356 + $0x50] sm:$0x1]
      %v2396 = vld [vmem:[%s2356 + $0x5c] sm:$0x1]
      %v2397 = vld [vmem:[%s2356 + $0x68] sm:$0x1]
      %v2398 = vld [vmem:[%s2356 + $0x74] sm:$0x1]
      %v2399 = vld [vmem:[%s2356 + $0x80] sm:$0x1]
      %v2400 = vld [vmem:[%s2356 + $0x8c] sm:$0x1]
      %v2401 = vld [vmem:[%s2356 + $0x98] sm:$0x1]
      %v2402 = vld [vmem:[%s2356 + $0xa4] sm:$0x1]
      %v2403 = vld [vmem:[%s2356 + $0xb0] sm:$0x1]
      %v2404 = vld [vmem:[%s2356 + $0xbc] sm:$0x1]
      %v2406 = vshrl.u32 %v2357, 16
      %v2408 = vrot.slane %v2406, 4
      %v2409 = vshll.u32 %v2357, 16
      %v2411 = vrot.slane %v2409, 5
      %v2412 = vor.u32 %v2408, %v2411
      %v2413 = vrot.slane %v2412, 4
      %v2415 = vshll.u32 %v2358, 16
      %v2417 = vrot.slane %v2415, 5
      %v2418 = vsel %vm1184, %v2413, %v2417
      %v2419 = vshrl.u32 %v2358, 16
      %v2421 = vrot.slane %v2419, 4
      %v2422 = vor.u32 %v2421, %v2417
      %v2423 = vrot.slane %v2422, 4
      %v2425 = vshll.u32 %v2389, 16
      %v2427 = vrot.slane %v2425, 5
      %v2428 = vsel %vm1184, %v2423, %v2427
      %v2430 = vshrl.u32 %v2359, 16
      %v2432 = vrot.slane %v2430, 4
      %v2433 = vshll.u32 %v2359, 16
      %v2435 = vrot.slane %v2433, 5
      %v2436 = vor.u32 %v2432, %v2435
      %v2437 = vrot.slane %v2436, 4
      %v2439 = vshll.u32 %v2360, 16
      %v2441 = vrot.slane %v2439, 5
      %v2442 = vsel %vm1184, %v2437, %v2441
      %v2443 = vshrl.u32 %v2360, 16
      %v2445 = vrot.slane %v2443, 4
      %v2446 = vor.u32 %v2445, %v2441
      %v2447 = vrot.slane %v2446, 4
      %v2449 = vshll.u32 %v2390, 16
      %v2451 = vrot.slane %v2449, 5
      %v2452 = vsel %vm1184, %v2447, %v2451
      %v2454 = vshrl.u32 %v2361, 16
      %v2456 = vrot.slane %v2454, 4
      %v2457 = vshll.u32 %v2361, 16
      %v2459 = vrot.slane %v2457, 5
      %v2460 = vor.u32 %v2456, %v2459
      %v2461 = vrot.slane %v2460, 4
      %v2463 = vshll.u32 %v2362, 16
      %v2465 = vrot.slane %v2463, 5
      %v2466 = vsel %vm1184, %v2461, %v2465
      %v2467 = vshrl.u32 %v2362, 16
      %v2469 = vrot.slane %v2467, 4
      %v2470 = vor.u32 %v2469, %v2465
      %v2471 = vrot.slane %v2470, 4
      %v2473 = vshll.u32 %v2391, 16
      %v2475 = vrot.slane %v2473, 5
      %v2476 = vsel %vm1184, %v2471, %v2475
      %v2478 = vshrl.u32 %v2363, 16
      %v2480 = vrot.slane %v2478, 4
      %v2481 = vshll.u32 %v2363, 16
      %v2483 = vrot.slane %v2481, 5
      %v2484 = vor.u32 %v2480, %v2483
      %v2485 = vrot.slane %v2484, 4
      %v2487 = vshll.u32 %v2364, 16
      %v2489 = vrot.slane %v2487, 5
      %v2490 = vsel %vm1184, %v2485, %v2489
      %v2491 = vshrl.u32 %v2364, 16
      %v2493 = vrot.slane %v2491, 4
      %v2494 = vor.u32 %v2493, %v2489
      %v2495 = vrot.slane %v2494, 4
      %v2497 = vshll.u32 %v2392, 16
      %v2499 = vrot.slane %v2497, 5
      %v2500 = vsel %vm1184, %v2495, %v2499
      %v2502 = vshrl.u32 %v2365, 16
      %v2504 = vrot.slane %v2502, 4
      %v2505 = vshll.u32 %v2365, 16
      %v2507 = vrot.slane %v2505, 5
      %v2508 = vor.u32 %v2504, %v2507
      %v2509 = vrot.slane %v2508, 4
      %v2511 = vshll.u32 %v2366, 16
      %v2513 = vrot.slane %v2511, 5
      %v2514 = vsel %vm1184, %v2509, %v2513
      %v2515 = vshrl.u32 %v2366, 16
      %v2517 = vrot.slane %v2515, 4
      %v2518 = vor.u32 %v2517, %v2513
      %v2519 = vrot.slane %v2518, 4
      %v2521 = vshll.u32 %v2393, 16
      %v2523 = vrot.slane %v2521, 5
      %v2524 = vsel %vm1184, %v2519, %v2523
      %v2526 = vshrl.u32 %v2367, 16
      %v2528 = vrot.slane %v2526, 4
      %v2529 = vshll.u32 %v2367, 16
      %v2531 = vrot.slane %v2529, 5
      %v2532 = vor.u32 %v2528, %v2531
      %v2533 = vrot.slane %v2532, 4
      %v2535 = vshll.u32 %v2368, 16
      %v2537 = vrot.slane %v2535, 5
      %v2538 = vsel %vm1184, %v2533, %v2537
      %v2539 = vshrl.u32 %v2368, 16
      %v2541 = vrot.slane %v2539, 4
      %v2542 = vor.u32 %v2541, %v2537
      %v2543 = vrot.slane %v2542, 4
      %v2545 = vshll.u32 %v2394, 16
      %v2547 = vrot.slane %v2545, 5
      %v2548 = vsel %vm1184, %v2543, %v2547
      %v2550 = vshrl.u32 %v2369, 16
      %v2552 = vrot.slane %v2550, 4
      %v2553 = vshll.u32 %v2369, 16
      %v2555 = vrot.slane %v2553, 5
      %v2556 = vor.u32 %v2552, %v2555
      %v2557 = vrot.slane %v2556, 4
      %v2559 = vshll.u32 %v2370, 16
      %v2561 = vrot.slane %v2559, 5
      %v2562 = vsel %vm1184, %v2557, %v2561
      %v2563 = vshrl.u32 %v2370, 16
      %v2565 = vrot.slane %v2563, 4
      %v2566 = vor.u32 %v2565, %v2561
      %v2567 = vrot.slane %v2566, 4
      %v2569 = vshll.u32 %v2395, 16
      %v2571 = vrot.slane %v2569, 5
      %v2572 = vsel %vm1184, %v2567, %v2571
      %v2574 = vshrl.u32 %v2371, 16
      %v2576 = vrot.slane %v2574, 4
      %v2577 = vshll.u32 %v2371, 16
      %v2579 = vrot.slane %v2577, 5
      %v2580 = vor.u32 %v2576, %v2579
      %v2581 = vrot.slane %v2580, 4
      %v2583 = vshll.u32 %v2372, 16
      %v2585 = vrot.slane %v2583, 5
      %v2586 = vsel %vm1184, %v2581, %v2585
      %v2587 = vshrl.u32 %v2372, 16
      %v2589 = vrot.slane %v2587, 4
      %v2590 = vor.u32 %v2589, %v2585
      %v2591 = vrot.slane %v2590, 4
      %v2593 = vshll.u32 %v2396, 16
      %v2595 = vrot.slane %v2593, 5
      %v2596 = vsel %vm1184, %v2591, %v2595
      %v2598 = vshrl.u32 %v2373, 16
      %v2600 = vrot.slane %v2598, 4
      %v2601 = vshll.u32 %v2373, 16
      %v2603 = vrot.slane %v2601, 5
      %v2604 = vor.u32 %v2600, %v2603
      %v2605 = vrot.slane %v2604, 4
      %v2607 = vshll.u32 %v2374, 16
      %v2609 = vrot.slane %v2607, 5
      %v2610 = vsel %vm1184, %v2605, %v2609
      %v2611 = vshrl.u32 %v2374, 16
      %v2613 = vrot.slane %v2611, 4
      %v2614 = vor.u32 %v2613, %v2609
      %v2615 = vrot.slane %v2614, 4
      %v2617 = vshll.u32 %v2397, 16
      %v2619 = vrot.slane %v2617, 5
      %v2620 = vsel %vm1184, %v2615, %v2619
      %v2622 = vshrl.u32 %v2375, 16
      %v2624 = vrot.slane %v2622, 4
      %v2625 = vshll.u32 %v2375, 16
      %v2627 = vrot.slane %v2625, 5
      %v2628 = vor.u32 %v2624, %v2627
      %v2629 = vrot.slane %v2628, 4
      %v2631 = vshll.u32 %v2376, 16
      %v2633 = vrot.slane %v2631, 5
      %v2634 = vsel %vm1184, %v2629, %v2633
      %v2635 = vshrl.u32 %v2376, 16
      %v2637 = vrot.slane %v2635, 4
      %v2638 = vor.u32 %v2637, %v2633
      %v2639 = vrot.slane %v2638, 4
      %v2641 = vshll.u32 %v2398, 16
      %v2643 = vrot.slane %v2641, 5
      %v2644 = vsel %vm1184, %v2639, %v2643
      %v2646 = vshrl.u32 %v2377, 16
      %v2648 = vrot.slane %v2646, 4
      %v2649 = vshll.u32 %v2377, 16
      %v2651 = vrot.slane %v2649, 5
      %v2652 = vor.u32 %v2648, %v2651
      %v2653 = vrot.slane %v2652, 4
      %v2655 = vshll.u32 %v2378, 16
      %v2657 = vrot.slane %v2655, 5
      %v2658 = vsel %vm1184, %v2653, %v2657
      %v2659 = vshrl.u32 %v2378, 16
      %v2661 = vrot.slane %v2659, 4
      %v2662 = vor.u32 %v2661, %v2657
      %v2663 = vrot.slane %v2662, 4
      %v2665 = vshll.u32 %v2399, 16
      %v2667 = vrot.slane %v2665, 5
      %v2668 = vsel %vm1184, %v2663, %v2667
      %v2670 = vshrl.u32 %v2379, 16
      %v2672 = vrot.slane %v2670, 4
      %v2673 = vshll.u32 %v2379, 16
      %v2675 = vrot.slane %v2673, 5
      %v2676 = vor.u32 %v2672, %v2675
      %v2677 = vrot.slane %v2676, 4
      %v2679 = vshll.u32 %v2380, 16
      %v2681 = vrot.slane %v2679, 5
      %v2682 = vsel %vm1184, %v2677, %v2681
      %v2683 = vshrl.u32 %v2380, 16
      %v2685 = vrot.slane %v2683, 4
      %v2686 = vor.u32 %v2685, %v2681
      %v2687 = vrot.slane %v2686, 4
      %v2689 = vshll.u32 %v2400, 16
      %v2691 = vrot.slane %v2689, 5
      %v2692 = vsel %vm1184, %v2687, %v2691
      %v2694 = vshrl.u32 %v2381, 16
      %v2696 = vrot.slane %v2694, 4
      %v2697 = vshll.u32 %v2381, 16
      %v2699 = vrot.slane %v2697, 5
      %v2700 = vor.u32 %v2696, %v2699
      %v2701 = vrot.slane %v2700, 4
      %v2703 = vshll.u32 %v2382, 16
      %v2705 = vrot.slane %v2703, 5
      %v2706 = vsel %vm1184, %v2701, %v2705
      %v2707 = vshrl.u32 %v2382, 16
      %v2709 = vrot.slane %v2707, 4
      %v2710 = vor.u32 %v2709, %v2705
      %v2711 = vrot.slane %v2710, 4
      %v2713 = vshll.u32 %v2401, 16
      %v2715 = vrot.slane %v2713, 5
      %v2716 = vsel %vm1184, %v2711, %v2715
      %v2718 = vshrl.u32 %v2383, 16
      %v2720 = vrot.slane %v2718, 4
      %v2721 = vshll.u32 %v2383, 16
      %v2723 = vrot.slane %v2721, 5
      %v2724 = vor.u32 %v2720, %v2723
      %v2725 = vrot.slane %v2724, 4
      %v2727 = vshll.u32 %v2384, 16
      %v2729 = vrot.slane %v2727, 5
      %v2730 = vsel %vm1184, %v2725, %v2729
      %v2731 = vshrl.u32 %v2384, 16
      %v2733 = vrot.slane %v2731, 4
      %v2734 = vor.u32 %v2733, %v2729
      %v2735 = vrot.slane %v2734, 4
      %v2737 = vshll.u32 %v2402, 16
      %v2739 = vrot.slane %v2737, 5
      %v2740 = vsel %vm1184, %v2735, %v2739
      %v2742 = vshrl.u32 %v2385, 16
      %v2744 = vrot.slane %v2742, 4
      %v2745 = vshll.u32 %v2385, 16
      %v2747 = vrot.slane %v2745, 5
      %v2748 = vor.u32 %v2744, %v2747
      %v2749 = vrot.slane %v2748, 4
      %v2751 = vshll.u32 %v2386, 16
      %v2753 = vrot.slane %v2751, 5
      %v2754 = vsel %vm1184, %v2749, %v2753
      %v2755 = vshrl.u32 %v2386, 16
      %v2757 = vrot.slane %v2755, 4
      %v2758 = vor.u32 %v2757, %v2753
      %v2759 = vrot.slane %v2758, 4
      %v2761 = vshll.u32 %v2403, 16
      %v2763 = vrot.slane %v2761, 5
      %v2764 = vsel %vm1184, %v2759, %v2763
      %v2766 = vshrl.u32 %v2387, 16
      %v2768 = vrot.slane %v2766, 4
      %v2769 = vshll.u32 %v2387, 16
      %v2771 = vrot.slane %v2769, 5
      %v2772 = vor.u32 %v2768, %v2771
      %v2773 = vrot.slane %v2772, 4
      %v2775 = vshll.u32 %v2388, 16
      %v2777 = vrot.slane %v2775, 5
      %v2778 = vsel %vm1184, %v2773, %v2777
      %v2779 = vshrl.u32 %v2388, 16
      %v2781 = vrot.slane %v2779, 4
      %v2782 = vor.u32 %v2781, %v2777
      %v2783 = vrot.slane %v2782, 4
      %v2785 = vshll.u32 %v2404, 16
      %v2787 = vrot.slane %v2785, 5
      %v2788 = vsel %vm1184, %v2783, %v2787
      %v2789 = vld [vmem:[%s2356] sm:$0xe]
      %v2790 = vld [vmem:[%s2356 + $0xc] sm:$0xe]
      %v2791 = vld [vmem:[%s2356 + $0x18] sm:$0xe]
      %v2792 = vld [vmem:[%s2356 + $0x24] sm:$0xe]
      %v2793 = vld [vmem:[%s2356 + $0x30] sm:$0xe]
      %v2794 = vld [vmem:[%s2356 + $0x3c] sm:$0xe]
      %v2795 = vld [vmem:[%s2356 + $0x48] sm:$0xe]
      %v2796 = vld [vmem:[%s2356 + $0x54] sm:$0xe]
      %v2797 = vld [vmem:[%s2356 + $0x60] sm:$0xe]
      %v2798 = vld [vmem:[%s2356 + $0x6c] sm:$0xe]
      %v2799 = vld [vmem:[%s2356 + $0x78] sm:$0xe]
      %v2800 = vld [vmem:[%s2356 + $0x84] sm:$0xe]
      %v2801 = vld [vmem:[%s2356 + $0x90] sm:$0xe]
      %v2802 = vld [vmem:[%s2356 + $0x9c] sm:$0xe]
      %v2803 = vld [vmem:[%s2356 + $0xa8] sm:$0xe]
      %v2804 = vld [vmem:[%s2356 + $0xb4] sm:$0xe]
      %v2853 = vrot.slane %v2789, 5
      %v2854 = vrot.slane %v2853, 4
      %v2855 = vrot.slane %v2358, 5
      %v2856 = vsel %vm1635, %v2854, %v2855
      %v2857 = vrot.slane %v2855, 4
      %v2858 = vrot.slane %v2389, 5
      %v2859 = vsel %vm1635, %v2857, %v2858
      %v2860 = vrot.slane %v2790, 5
      %v2861 = vrot.slane %v2860, 4
      %v2862 = vrot.slane %v2360, 5
      %v2863 = vsel %vm1635, %v2861, %v2862
      %v2864 = vrot.slane %v2862, 4
      %v2865 = vrot.slane %v2390, 5
      %v2866 = vsel %vm1635, %v2864, %v2865
      %v2867 = vrot.slane %v2791, 5
      %v2868 = vrot.slane %v2867, 4
      %v2869 = vrot.slane %v2362, 5
      %v2870 = vsel %vm1635, %v2868, %v2869
      %v2871 = vrot.slane %v2869, 4
      %v2872 = vrot.slane %v2391, 5
      %v2873 = vsel %vm1635, %v2871, %v2872
      %v2874 = vrot.slane %v2792, 5
      %v2875 = vrot.slane %v2874, 4
      %v2876 = vrot.slane %v2364, 5
      %v2877 = vsel %vm1635, %v2875, %v2876
      %v2878 = vrot.slane %v2876, 4
      %v2879 = vrot.slane %v2392, 5
      %v2880 = vsel %vm1635, %v2878, %v2879
      %v2881 = vrot.slane %v2793, 5
      %v2882 = vrot.slane %v2881, 4
      %v2883 = vrot.slane %v2366, 5
      %v2884 = vsel %vm1635, %v2882, %v2883
      %v2885 = vrot.slane %v2883, 4
      %v2886 = vrot.slane %v2393, 5
      %v2887 = vsel %vm1635, %v2885, %v2886
      %v2888 = vrot.slane %v2794, 5
      %v2889 = vrot.slane %v2888, 4
      %v2890 = vrot.slane %v2368, 5
      %v2891 = vsel %vm1635, %v2889, %v2890
      %v2892 = vrot.slane %v2890, 4
      %v2893 = vrot.slane %v2394, 5
      %v2894 = vsel %vm1635, %v2892, %v2893
      %v2895 = vrot.slane %v2795, 5
      %v2896 = vrot.slane %v2895, 4
      %v2897 = vrot.slane %v2370, 5
      %v2898 = vsel %vm1635, %v2896, %v2897
      %v2899 = vrot.slane %v2897, 4
      %v2900 = vrot.slane %v2395, 5
      %v2901 = vsel %vm1635, %v2899, %v2900
      %v2902 = vrot.slane %v2796, 5
      %v2903 = vrot.slane %v2902, 4
      %v2904 = vrot.slane %v2372, 5
      %v2905 = vsel %vm1635, %v2903, %v2904
      %v2906 = vrot.slane %v2904, 4
      %v2907 = vrot.slane %v2396, 5
      %v2908 = vsel %vm1635, %v2906, %v2907
      %v2909 = vrot.slane %v2797, 5
      %v2910 = vrot.slane %v2909, 4
      %v2911 = vrot.slane %v2374, 5
      %v2912 = vsel %vm1635, %v2910, %v2911
      %v2913 = vrot.slane %v2911, 4
      %v2914 = vrot.slane %v2397, 5
      %v2915 = vsel %vm1635, %v2913, %v2914
      %v2916 = vrot.slane %v2798, 5
      %v2917 = vrot.slane %v2916, 4
      %v2918 = vrot.slane %v2376, 5
      %v2919 = vsel %vm1635, %v2917, %v2918
      %v2920 = vrot.slane %v2918, 4
      %v2921 = vrot.slane %v2398, 5
      %v2922 = vsel %vm1635, %v2920, %v2921
      %v2923 = vrot.slane %v2799, 5
      %v2924 = vrot.slane %v2923, 4
      %v2925 = vrot.slane %v2378, 5
      %v2926 = vsel %vm1635, %v2924, %v2925
      %v2927 = vrot.slane %v2925, 4
      %v2928 = vrot.slane %v2399, 5
      %v2929 = vsel %vm1635, %v2927, %v2928
      %v2930 = vrot.slane %v2800, 5
      %v2931 = vrot.slane %v2930, 4
      %v2932 = vrot.slane %v2380, 5
      %v2933 = vsel %vm1635, %v2931, %v2932
      %v2934 = vrot.slane %v2932, 4
      %v2935 = vrot.slane %v2400, 5
      %v2936 = vsel %vm1635, %v2934, %v2935
      %v2937 = vrot.slane %v2801, 5
      %v2938 = vrot.slane %v2937, 4
      %v2939 = vrot.slane %v2382, 5
      %v2940 = vsel %vm1635, %v2938, %v2939
      %v2941 = vrot.slane %v2939, 4
      %v2942 = vrot.slane %v2401, 5
      %v2943 = vsel %vm1635, %v2941, %v2942
      %v2944 = vrot.slane %v2802, 5
      %v2945 = vrot.slane %v2944, 4
      %v2946 = vrot.slane %v2384, 5
      %v2947 = vsel %vm1635, %v2945, %v2946
      %v2948 = vrot.slane %v2946, 4
      %v2949 = vrot.slane %v2402, 5
      %v2950 = vsel %vm1635, %v2948, %v2949
      %v2951 = vrot.slane %v2803, 5
      %v2952 = vrot.slane %v2951, 4
      %v2953 = vrot.slane %v2386, 5
      %v2954 = vsel %vm1635, %v2952, %v2953
      %v2955 = vrot.slane %v2953, 4
      %v2956 = vrot.slane %v2403, 5
      %v2957 = vsel %vm1635, %v2955, %v2956
      %v2958 = vrot.slane %v2804, 5
      %v2959 = vrot.slane %v2958, 4
      %v2960 = vrot.slane %v2388, 5
      %v2961 = vsel %vm1635, %v2959, %v2960
      %v2962 = vrot.slane %v2960, 4
      %v2963 = vrot.slane %v2404, 5
      %v2964 = vsel %vm1635, %v2962, %v2963
      %v2981 = vunpack.c.l.b16 %v1134
      %v2982 = vunpack.c.l.b16 %v1135
      %v2983 = vunpack.c.l.b16 %v1136
      %v2984 = vunpack.c.l.b16 %v1137
      %v2985 = vunpack.c.l.b16 %v1138
      %v2986 = vunpack.c.l.b16 %v1139
      %v2987 = vunpack.c.l.b16 %v1140
      %v2988 = vunpack.c.l.b16 %v1141
      %v2989 = vunpack.c.l.b16 %v1142
      %v2990 = vunpack.c.l.b16 %v1143
      %v2991 = vunpack.c.l.b16 %v1144
      %v2992 = vunpack.c.l.b16 %v1145
      %v2993 = vunpack.c.l.b16 %v1146
      %v2994 = vunpack.c.l.b16 %v1147
      %v2995 = vunpack.c.l.b16 %v1148
      %v2996 = vunpack.c.l.b16 %v1149
      %v2997 = vunpack.c.l.b16 %v1150
      %v2998 = vunpack.c.l.b16 %v1151
      %v2999 = vunpack.c.l.b16 %v1152
      %v3000 = vunpack.c.l.b16 %v1153
      %v3001 = vunpack.c.l.b16 %v1154
      %v3002 = vunpack.c.l.b16 %v1155
      %v3003 = vunpack.c.l.b16 %v1156
      %v3004 = vunpack.c.l.b16 %v1157
      %v3005 = vunpack.c.l.b16 %v1158
      %v3006 = vunpack.c.l.b16 %v1159
      %v3007 = vunpack.c.l.b16 %v1160
      %v3008 = vunpack.c.l.b16 %v1161
      %v3009 = vunpack.c.l.b16 %v1162
      %v3010 = vunpack.c.l.b16 %v1163
      %v3011 = vunpack.c.l.b16 %v1164
      %v3012 = vunpack.c.l.b16 %v1165
      %v3013 = vpack.c.b16 %v2982, %v2981
      %v3014 = vpack.c.b16 %v2984, %v2983
      %v3015 = vpack.c.b16 %v2986, %v2985
      %v3016 = vpack.c.b16 %v2988, %v2987
      %v3017 = vpack.c.b16 %v2990, %v2989
      %v3018 = vpack.c.b16 %v2992, %v2991
      %v3019 = vpack.c.b16 %v2994, %v2993
      %v3020 = vpack.c.b16 %v2996, %v2995
      %v3021 = vpack.c.b16 %v2998, %v2997
      %v3022 = vpack.c.b16 %v3000, %v2999
      %v3023 = vpack.c.b16 %v3002, %v3001
      %v3024 = vpack.c.b16 %v3004, %v3003
      %v3025 = vpack.c.b16 %v3006, %v3005
      %v3026 = vpack.c.b16 %v3008, %v3007
      %v3027 = vpack.c.b16 %v3010, %v3009
      %v3028 = vpack.c.b16 %v3012, %v3011
      %v3045 = vunpack.c.l.b16 %v1198
      %v3046 = vunpack.c.l.b16 %v1208
      %v3047 = vunpack.c.l.b16 %v1222
      %v3048 = vunpack.c.l.b16 %v1232
      %v3049 = vunpack.c.l.b16 %v1246
      %v3050 = vunpack.c.l.b16 %v1256
      %v3051 = vunpack.c.l.b16 %v1270
      %v3052 = vunpack.c.l.b16 %v1280
      %v3053 = vunpack.c.l.b16 %v1294
      %v3054 = vunpack.c.l.b16 %v1304
      %v3055 = vunpack.c.l.b16 %v1318
      %v3056 = vunpack.c.l.b16 %v1328
      %v3057 = vunpack.c.l.b16 %v1342
      %v3058 = vunpack.c.l.b16 %v1352
      %v3059 = vunpack.c.l.b16 %v1366
      %v3060 = vunpack.c.l.b16 %v1376
      %v3061 = vunpack.c.l.b16 %v1390
      %v3062 = vunpack.c.l.b16 %v1400
      %v3063 = vunpack.c.l.b16 %v1414
      %v3064 = vunpack.c.l.b16 %v1424
      %v3065 = vunpack.c.l.b16 %v1438
      %v3066 = vunpack.c.l.b16 %v1448
      %v3067 = vunpack.c.l.b16 %v1462
      %v3068 = vunpack.c.l.b16 %v1472
      %v3069 = vunpack.c.l.b16 %v1486
      %v3070 = vunpack.c.l.b16 %v1496
      %v3071 = vunpack.c.l.b16 %v1510
      %v3072 = vunpack.c.l.b16 %v1520
      %v3073 = vunpack.c.l.b16 %v1534
      %v3074 = vunpack.c.l.b16 %v1544
      %v3075 = vunpack.c.l.b16 %v1558
      %v3076 = vunpack.c.l.b16 %v1568
      %v3077 = vpack.c.b16 %v3046, %v3045
      %v3078 = vpack.c.b16 %v3048, %v3047
      %v3079 = vpack.c.b16 %v3050, %v3049
      %v3080 = vpack.c.b16 %v3052, %v3051
      %v3081 = vpack.c.b16 %v3054, %v3053
      %v3082 = vpack.c.b16 %v3056, %v3055
      %v3083 = vpack.c.b16 %v3058, %v3057
      %v3084 = vpack.c.b16 %v3060, %v3059
      %v3085 = vpack.c.b16 %v3062, %v3061
      %v3086 = vpack.c.b16 %v3064, %v3063
      %v3087 = vpack.c.b16 %v3066, %v3065
      %v3088 = vpack.c.b16 %v3068, %v3067
      %v3089 = vpack.c.b16 %v3070, %v3069
      %v3090 = vpack.c.b16 %v3072, %v3071
      %v3091 = vpack.c.b16 %v3074, %v3073
      %v3092 = vpack.c.b16 %v3076, %v3075
      %v3109 = vunpack.c.l.b16 %v1639
      %v3110 = vunpack.c.l.b16 %v1642
      %v3111 = vunpack.c.l.b16 %v1646
      %v3112 = vunpack.c.l.b16 %v1649
      %v3113 = vunpack.c.l.b16 %v1653
      %v3114 = vunpack.c.l.b16 %v1656
      %v3115 = vunpack.c.l.b16 %v1660
      %v3116 = vunpack.c.l.b16 %v1663
      %v3117 = vunpack.c.l.b16 %v1667
      %v3118 = vunpack.c.l.b16 %v1670
      %v3119 = vunpack.c.l.b16 %v1674
      %v3120 = vunpack.c.l.b16 %v1677
      %v3121 = vunpack.c.l.b16 %v1681
      %v3122 = vunpack.c.l.b16 %v1684
      %v3123 = vunpack.c.l.b16 %v1688
      %v3124 = vunpack.c.l.b16 %v1691
      %v3125 = vunpack.c.l.b16 %v1695
      %v3126 = vunpack.c.l.b16 %v1698
      %v3127 = vunpack.c.l.b16 %v1702
      %v3128 = vunpack.c.l.b16 %v1705
      %v3129 = vunpack.c.l.b16 %v1709
      %v3130 = vunpack.c.l.b16 %v1712
      %v3131 = vunpack.c.l.b16 %v1716
      %v3132 = vunpack.c.l.b16 %v1719
      %v3133 = vunpack.c.l.b16 %v1723
      %v3134 = vunpack.c.l.b16 %v1726
      %v3135 = vunpack.c.l.b16 %v1730
      %v3136 = vunpack.c.l.b16 %v1733
      %v3137 = vunpack.c.l.b16 %v1737
      %v3138 = vunpack.c.l.b16 %v1740
      %v3139 = vunpack.c.l.b16 %v1744
      %v3140 = vunpack.c.l.b16 %v1747
      %v3141 = vpack.c.b16 %v3110, %v3109
      %v3142 = vpack.c.b16 %v3112, %v3111
      %v3143 = vpack.c.b16 %v3114, %v3113
      %v3144 = vpack.c.b16 %v3116, %v3115
      %v3145 = vpack.c.b16 %v3118, %v3117
      %v3146 = vpack.c.b16 %v3120, %v3119
      %v3147 = vpack.c.b16 %v3122, %v3121
      %v3148 = vpack.c.b16 %v3124, %v3123
      %v3149 = vpack.c.b16 %v3126, %v3125
      %v3150 = vpack.c.b16 %v3128, %v3127
      %v3151 = vpack.c.b16 %v3130, %v3129
      %v3152 = vpack.c.b16 %v3132, %v3131
      %v3153 = vpack.c.b16 %v3134, %v3133
      %v3154 = vpack.c.b16 %v3136, %v3135
      %v3155 = vpack.c.b16 %v3138, %v3137
      %v3156 = vpack.c.b16 %v3140, %v3139
      %v3189 = vunpack.c.l.b16 %v1748
      %v3190 = vunpack.c.l.b16 %v1749
      %v3191 = vunpack.c.l.b16 %v1750
      %v3192 = vunpack.c.l.b16 %v1751
      %v3193 = vunpack.c.l.b16 %v1752
      %v3194 = vunpack.c.l.b16 %v1753
      %v3195 = vunpack.c.l.b16 %v1754
      %v3196 = vunpack.c.l.b16 %v1755
      %v3197 = vunpack.c.l.b16 %v1756
      %v3198 = vunpack.c.l.b16 %v1757
      %v3199 = vunpack.c.l.b16 %v1758
      %v3200 = vunpack.c.l.b16 %v1759
      %v3201 = vunpack.c.l.b16 %v1760
      %v3202 = vunpack.c.l.b16 %v1761
      %v3203 = vunpack.c.l.b16 %v1762
      %v3204 = vunpack.c.l.b16 %v1763
      %v3205 = vunpack.c.l.b16 %v1764
      %v3206 = vunpack.c.l.b16 %v1765
      %v3207 = vunpack.c.l.b16 %v1766
      %v3208 = vunpack.c.l.b16 %v1767
      %v3209 = vunpack.c.l.b16 %v1768
      %v3210 = vunpack.c.l.b16 %v1769
      %v3211 = vunpack.c.l.b16 %v1770
      %v3212 = vunpack.c.l.b16 %v1771
      %v3213 = vunpack.c.l.b16 %v1772
      %v3214 = vunpack.c.l.b16 %v1773
      %v3215 = vunpack.c.l.b16 %v1774
      %v3216 = vunpack.c.l.b16 %v1775
      %v3217 = vunpack.c.l.b16 %v1776
      %v3218 = vunpack.c.l.b16 %v1777
      %v3219 = vunpack.c.l.b16 %v1778
      %v3220 = vunpack.c.l.b16 %v1779
      %v3221 = vpack.c.b16 %v3190, %v3189
      %v3222 = vpack.c.b16 %v3192, %v3191
      %v3223 = vpack.c.b16 %v3194, %v3193
      %v3224 = vpack.c.b16 %v3196, %v3195
      %v3225 = vpack.c.b16 %v3198, %v3197
      %v3226 = vpack.c.b16 %v3200, %v3199
      %v3227 = vpack.c.b16 %v3202, %v3201
      %v3228 = vpack.c.b16 %v3204, %v3203
      %v3229 = vpack.c.b16 %v3206, %v3205
      %v3230 = vpack.c.b16 %v3208, %v3207
      %v3231 = vpack.c.b16 %v3210, %v3209
      %v3232 = vpack.c.b16 %v3212, %v3211
      %v3233 = vpack.c.b16 %v3214, %v3213
      %v3234 = vpack.c.b16 %v3216, %v3215
      %v3235 = vpack.c.b16 %v3218, %v3217
      %v3236 = vpack.c.b16 %v3220, %v3219
      %v3253 = vunpack.c.l.b16 %v1809
      %v3254 = vunpack.c.l.b16 %v1819
      %v3255 = vunpack.c.l.b16 %v1833
      %v3256 = vunpack.c.l.b16 %v1843
      %v3257 = vunpack.c.l.b16 %v1857
      %v3258 = vunpack.c.l.b16 %v1867
      %v3259 = vunpack.c.l.b16 %v1881
      %v3260 = vunpack.c.l.b16 %v1891
      %v3261 = vunpack.c.l.b16 %v1905
      %v3262 = vunpack.c.l.b16 %v1915
      %v3263 = vunpack.c.l.b16 %v1929
      %v3264 = vunpack.c.l.b16 %v1939
      %v3265 = vunpack.c.l.b16 %v1953
      %v3266 = vunpack.c.l.b16 %v1963
      %v3267 = vunpack.c.l.b16 %v1977
      %v3268 = vunpack.c.l.b16 %v1987
      %v3269 = vunpack.c.l.b16 %v2001
      %v3270 = vunpack.c.l.b16 %v2011
      %v3271 = vunpack.c.l.b16 %v2025
      %v3272 = vunpack.c.l.b16 %v2035
      %v3273 = vunpack.c.l.b16 %v2049
      %v3274 = vunpack.c.l.b16 %v2059
      %v3275 = vunpack.c.l.b16 %v2073
      %v3276 = vunpack.c.l.b16 %v2083
      %v3277 = vunpack.c.l.b16 %v2097
      %v3278 = vunpack.c.l.b16 %v2107
      %v3279 = vunpack.c.l.b16 %v2121
      %v3280 = vunpack.c.l.b16 %v2131
      %v3281 = vunpack.c.l.b16 %v2145
      %v3282 = vunpack.c.l.b16 %v2155
      %v3283 = vunpack.c.l.b16 %v2169
      %v3284 = vunpack.c.l.b16 %v2179
      %v3285 = vpack.c.b16 %v3254, %v3253
      %v3286 = vpack.c.b16 %v3256, %v3255
      %v3287 = vpack.c.b16 %v3258, %v3257
      %v3288 = vpack.c.b16 %v3260, %v3259
      %v3289 = vpack.c.b16 %v3262, %v3261
      %v3290 = vpack.c.b16 %v3264, %v3263
      %v3291 = vpack.c.b16 %v3266, %v3265
      %v3292 = vpack.c.b16 %v3268, %v3267
      %v3293 = vpack.c.b16 %v3270, %v3269
      %v3294 = vpack.c.b16 %v3272, %v3271
      %v3295 = vpack.c.b16 %v3274, %v3273
      %v3296 = vpack.c.b16 %v3276, %v3275
      %v3297 = vpack.c.b16 %v3278, %v3277
      %v3298 = vpack.c.b16 %v3280, %v3279
      %v3299 = vpack.c.b16 %v3282, %v3281
      %v3300 = vpack.c.b16 %v3284, %v3283
      %v3317 = vunpack.c.l.b16 %v2247
      %v3318 = vunpack.c.l.b16 %v2250
      %v3319 = vunpack.c.l.b16 %v2254
      %v3320 = vunpack.c.l.b16 %v2257
      %v3321 = vunpack.c.l.b16 %v2261
      %v3322 = vunpack.c.l.b16 %v2264
      %v3323 = vunpack.c.l.b16 %v2268
      %v3324 = vunpack.c.l.b16 %v2271
      %v3325 = vunpack.c.l.b16 %v2275
      %v3326 = vunpack.c.l.b16 %v2278
      %v3327 = vunpack.c.l.b16 %v2282
      %v3328 = vunpack.c.l.b16 %v2285
      %v3329 = vunpack.c.l.b16 %v2289
      %v3330 = vunpack.c.l.b16 %v2292
      %v3331 = vunpack.c.l.b16 %v2296
      %v3332 = vunpack.c.l.b16 %v2299
      %v3333 = vunpack.c.l.b16 %v2303
      %v3334 = vunpack.c.l.b16 %v2306
      %v3335 = vunpack.c.l.b16 %v2310
      %v3336 = vunpack.c.l.b16 %v2313
      %v3337 = vunpack.c.l.b16 %v2317
      %v3338 = vunpack.c.l.b16 %v2320
      %v3339 = vunpack.c.l.b16 %v2324
      %v3340 = vunpack.c.l.b16 %v2327
      %v3341 = vunpack.c.l.b16 %v2331
      %v3342 = vunpack.c.l.b16 %v2334
      %v3343 = vunpack.c.l.b16 %v2338
      %v3344 = vunpack.c.l.b16 %v2341
      %v3345 = vunpack.c.l.b16 %v2345
      %v3346 = vunpack.c.l.b16 %v2348
      %v3347 = vunpack.c.l.b16 %v2352
      %v3348 = vunpack.c.l.b16 %v2355
      %v3349 = vpack.c.b16 %v3318, %v3317
      %v3350 = vpack.c.b16 %v3320, %v3319
      %v3351 = vpack.c.b16 %v3322, %v3321
      %v3352 = vpack.c.b16 %v3324, %v3323
      %v3353 = vpack.c.b16 %v3326, %v3325
      %v3354 = vpack.c.b16 %v3328, %v3327
      %v3355 = vpack.c.b16 %v3330, %v3329
      %v3356 = vpack.c.b16 %v3332, %v3331
      %v3357 = vpack.c.b16 %v3334, %v3333
      %v3358 = vpack.c.b16 %v3336, %v3335
      %v3359 = vpack.c.b16 %v3338, %v3337
      %v3360 = vpack.c.b16 %v3340, %v3339
      %v3361 = vpack.c.b16 %v3342, %v3341
      %v3362 = vpack.c.b16 %v3344, %v3343
      %v3363 = vpack.c.b16 %v3346, %v3345
      %v3364 = vpack.c.b16 %v3348, %v3347
      %v3397 = vunpack.c.l.b16 %v2357
      %v3398 = vunpack.c.l.b16 %v2358
      %v3399 = vunpack.c.l.b16 %v2359
      %v3400 = vunpack.c.l.b16 %v2360
      %v3401 = vunpack.c.l.b16 %v2361
      %v3402 = vunpack.c.l.b16 %v2362
      %v3403 = vunpack.c.l.b16 %v2363
      %v3404 = vunpack.c.l.b16 %v2364
      %v3405 = vunpack.c.l.b16 %v2365
      %v3406 = vunpack.c.l.b16 %v2366
      %v3407 = vunpack.c.l.b16 %v2367
      %v3408 = vunpack.c.l.b16 %v2368
      %v3409 = vunpack.c.l.b16 %v2369
      %v3410 = vunpack.c.l.b16 %v2370
      %v3411 = vunpack.c.l.b16 %v2371
      %v3412 = vunpack.c.l.b16 %v2372
      %v3413 = vunpack.c.l.b16 %v2373
      %v3414 = vunpack.c.l.b16 %v2374
      %v3415 = vunpack.c.l.b16 %v2375
      %v3416 = vunpack.c.l.b16 %v2376
      %v3417 = vunpack.c.l.b16 %v2377
      %v3418 = vunpack.c.l.b16 %v2378
      %v3419 = vunpack.c.l.b16 %v2379
      %v3420 = vunpack.c.l.b16 %v2380
      %v3421 = vunpack.c.l.b16 %v2381
      %v3422 = vunpack.c.l.b16 %v2382
      %v3423 = vunpack.c.l.b16 %v2383
      %v3424 = vunpack.c.l.b16 %v2384
      %v3425 = vunpack.c.l.b16 %v2385
      %v3426 = vunpack.c.l.b16 %v2386
      %v3427 = vunpack.c.l.b16 %v2387
      %v3428 = vunpack.c.l.b16 %v2388
      %v3429 = vpack.c.b16 %v3398, %v3397
      %v3430 = vpack.c.b16 %v3400, %v3399
      %v3431 = vpack.c.b16 %v3402, %v3401
      %v3432 = vpack.c.b16 %v3404, %v3403
      %v3433 = vpack.c.b16 %v3406, %v3405
      %v3434 = vpack.c.b16 %v3408, %v3407
      %v3435 = vpack.c.b16 %v3410, %v3409
      %v3436 = vpack.c.b16 %v3412, %v3411
      %v3437 = vpack.c.b16 %v3414, %v3413
      %v3438 = vpack.c.b16 %v3416, %v3415
      %v3439 = vpack.c.b16 %v3418, %v3417
      %v3440 = vpack.c.b16 %v3420, %v3419
      %v3441 = vpack.c.b16 %v3422, %v3421
      %v3442 = vpack.c.b16 %v3424, %v3423
      %v3443 = vpack.c.b16 %v3426, %v3425
      %v3444 = vpack.c.b16 %v3428, %v3427
      %v3461 = vunpack.c.l.b16 %v2418
      %v3462 = vunpack.c.l.b16 %v2428
      %v3463 = vunpack.c.l.b16 %v2442
      %v3464 = vunpack.c.l.b16 %v2452
      %v3465 = vunpack.c.l.b16 %v2466
      %v3466 = vunpack.c.l.b16 %v2476
      %v3467 = vunpack.c.l.b16 %v2490
      %v3468 = vunpack.c.l.b16 %v2500
      %v3469 = vunpack.c.l.b16 %v2514
      %v3470 = vunpack.c.l.b16 %v2524
      %v3471 = vunpack.c.l.b16 %v2538
      %v3472 = vunpack.c.l.b16 %v2548
      %v3473 = vunpack.c.l.b16 %v2562
      %v3474 = vunpack.c.l.b16 %v2572
      %v3475 = vunpack.c.l.b16 %v2586
      %v3476 = vunpack.c.l.b16 %v2596
      %v3477 = vunpack.c.l.b16 %v2610
      %v3478 = vunpack.c.l.b16 %v2620
      %v3479 = vunpack.c.l.b16 %v2634
      %v3480 = vunpack.c.l.b16 %v2644
      %v3481 = vunpack.c.l.b16 %v2658
      %v3482 = vunpack.c.l.b16 %v2668
      %v3483 = vunpack.c.l.b16 %v2682
      %v3484 = vunpack.c.l.b16 %v2692
      %v3485 = vunpack.c.l.b16 %v2706
      %v3486 = vunpack.c.l.b16 %v2716
      %v3487 = vunpack.c.l.b16 %v2730
      %v3488 = vunpack.c.l.b16 %v2740
      %v3489 = vunpack.c.l.b16 %v2754
      %v3490 = vunpack.c.l.b16 %v2764
      %v3491 = vunpack.c.l.b16 %v2778
      %v3492 = vunpack.c.l.b16 %v2788
      %v3493 = vpack.c.b16 %v3462, %v3461
      %v3494 = vpack.c.b16 %v3464, %v3463
      %v3495 = vpack.c.b16 %v3466, %v3465
      %v3496 = vpack.c.b16 %v3468, %v3467
      %v3497 = vpack.c.b16 %v3470, %v3469
      %v3498 = vpack.c.b16 %v3472, %v3471
      %v3499 = vpack.c.b16 %v3474, %v3473
      %v3500 = vpack.c.b16 %v3476, %v3475
      %v3501 = vpack.c.b16 %v3478, %v3477
      %v3502 = vpack.c.b16 %v3480, %v3479
      %v3503 = vpack.c.b16 %v3482, %v3481
      %v3504 = vpack.c.b16 %v3484, %v3483
      %v3505 = vpack.c.b16 %v3486, %v3485
      %v3506 = vpack.c.b16 %v3488, %v3487
      %v3507 = vpack.c.b16 %v3490, %v3489
      %v3508 = vpack.c.b16 %v3492, %v3491
      %v3525 = vunpack.c.l.b16 %v2856
      %v3526 = vunpack.c.l.b16 %v2859
      %v3527 = vunpack.c.l.b16 %v2863
      %v3528 = vunpack.c.l.b16 %v2866
      %v3529 = vunpack.c.l.b16 %v2870
      %v3530 = vunpack.c.l.b16 %v2873
      %v3531 = vunpack.c.l.b16 %v2877
      %v3532 = vunpack.c.l.b16 %v2880
      %v3533 = vunpack.c.l.b16 %v2884
      %v3534 = vunpack.c.l.b16 %v2887
      %v3535 = vunpack.c.l.b16 %v2891
      %v3536 = vunpack.c.l.b16 %v2894
      %v3537 = vunpack.c.l.b16 %v2898
      %v3538 = vunpack.c.l.b16 %v2901
      %v3539 = vunpack.c.l.b16 %v2905
      %v3540 = vunpack.c.l.b16 %v2908
      %v3541 = vunpack.c.l.b16 %v2912
      %v3542 = vunpack.c.l.b16 %v2915
      %v3543 = vunpack.c.l.b16 %v2919
      %v3544 = vunpack.c.l.b16 %v2922
      %v3545 = vunpack.c.l.b16 %v2926
      %v3546 = vunpack.c.l.b16 %v2929
      %v3547 = vunpack.c.l.b16 %v2933
      %v3548 = vunpack.c.l.b16 %v2936
      %v3549 = vunpack.c.l.b16 %v2940
      %v3550 = vunpack.c.l.b16 %v2943
      %v3551 = vunpack.c.l.b16 %v2947
      %v3552 = vunpack.c.l.b16 %v2950
      %v3553 = vunpack.c.l.b16 %v2954
      %v3554 = vunpack.c.l.b16 %v2957
      %v3555 = vunpack.c.l.b16 %v2961
      %v3556 = vunpack.c.l.b16 %v2964
      %v3557 = vpack.c.b16 %v3526, %v3525
      %v3558 = vpack.c.b16 %v3528, %v3527
      %v3559 = vpack.c.b16 %v3530, %v3529
      %v3560 = vpack.c.b16 %v3532, %v3531
      %v3561 = vpack.c.b16 %v3534, %v3533
      %v3562 = vpack.c.b16 %v3536, %v3535
      %v3563 = vpack.c.b16 %v3538, %v3537
      %v3564 = vpack.c.b16 %v3540, %v3539
      %v3565 = vpack.c.b16 %v3542, %v3541
      %v3566 = vpack.c.b16 %v3544, %v3543
      %v3567 = vpack.c.b16 %v3546, %v3545
      %v3568 = vpack.c.b16 %v3548, %v3547
      %v3569 = vpack.c.b16 %v3550, %v3549
      %v3570 = vpack.c.b16 %v3552, %v3551
      %v3571 = vpack.c.b16 %v3554, %v3553
      %v3572 = vpack.c.b16 %v3556, %v3555
      %v3589 = vld [vmem:[%s1] sm:$0xf]
      %v3590 = vld [vmem:[%s1 + $0x4] sm:$0xf]
      %v3591 = vld [vmem:[%s1 + $0x8] sm:$0xf]
      %v3592 = vld [vmem:[%s1 + $0xc] sm:$0xf]
      %v3593 = vld [vmem:[%s1 + $0x10] sm:$0xf]
      %v3594 = vld [vmem:[%s1 + $0x14] sm:$0xf]
      %v3595 = vld [vmem:[%s1 + $0x18] sm:$0xf]
      %v3596 = vld [vmem:[%s1 + $0x1c] sm:$0xf]
      %v3597 = vld [vmem:[%s1 + $0x20] sm:$0xf]
      %v3598 = vld [vmem:[%s1 + $0x24] sm:$0xf]
      %v3599 = vld [vmem:[%s1 + $0x28] sm:$0xf]
      %v3600 = vld [vmem:[%s1 + $0x2c] sm:$0xf]
      %v3601 = vld [vmem:[%s1 + $0x30] sm:$0xf]
      %v3602 = vld [vmem:[%s1 + $0x34] sm:$0xf]
      %v3603 = vld [vmem:[%s1 + $0x38] sm:$0xf]
      %v3604 = vld [vmem:[%s1 + $0x3c] sm:$0xf]
      %v3605 = vld [vmem:[%s1 + $0x40] sm:$0xf]
      %v3606 = vld [vmem:[%s1 + $0x44] sm:$0xf]
      %v3607 = vld [vmem:[%s1 + $0x48] sm:$0xf]
      %v3608 = vld [vmem:[%s1 + $0x4c] sm:$0xf]
      %v3609 = vld [vmem:[%s1 + $0x50] sm:$0xf]
      %v3610 = vld [vmem:[%s1 + $0x54] sm:$0xf]
      %v3611 = vld [vmem:[%s1 + $0x58] sm:$0xf]
      %v3612 = vld [vmem:[%s1 + $0x5c] sm:$0xf]
      %v3613 = vld [vmem:[%s1 + $0x60] sm:$0xf]
      %v3614 = vld [vmem:[%s1 + $0x64] sm:$0xf]
      %v3615 = vld [vmem:[%s1 + $0x68] sm:$0xf]
      %v3616 = vld [vmem:[%s1 + $0x6c] sm:$0xf]
      %v3617 = vld [vmem:[%s1 + $0x70] sm:$0xf]
      %v3618 = vld [vmem:[%s1 + $0x74] sm:$0xf]
      %v3619 = vld [vmem:[%s1 + $0x78] sm:$0xf]
      %v3620 = vld [vmem:[%s1 + $0x7c] sm:$0xf]
      %v3621 = vld [vmem:[%s1 + $0x80] sm:$0xf]
      %v3622 = vld [vmem:[%s1 + $0x84] sm:$0xf]
      %v3623 = vld [vmem:[%s1 + $0x88] sm:$0xf]
      %v3624 = vld [vmem:[%s1 + $0x8c] sm:$0xf]
      %v3625 = vld [vmem:[%s1 + $0x90] sm:$0xf]
      %v3626 = vld [vmem:[%s1 + $0x94] sm:$0xf]
      %v3627 = vld [vmem:[%s1 + $0x98] sm:$0xf]
      %v3628 = vld [vmem:[%s1 + $0x9c] sm:$0xf]
      %v3629 = vld [vmem:[%s1 + $0xa0] sm:$0xf]
      %v3630 = vld [vmem:[%s1 + $0xa4] sm:$0xf]
      %v3631 = vld [vmem:[%s1 + $0xa8] sm:$0xf]
      %v3632 = vld [vmem:[%s1 + $0xac] sm:$0xf]
      %v3633 = vld [vmem:[%s1 + $0xb0] sm:$0xf]
      %v3634 = vld [vmem:[%s1 + $0xb4] sm:$0xf]
      %v3635 = vld [vmem:[%s1 + $0xb8] sm:$0xf]
      %v3636 = vld [vmem:[%s1 + $0xbc] sm:$0xf]
      %v3637 = vld [vmem:[%s1 + $0xc0] sm:$0xf]
      %v3638 = vld [vmem:[%s1 + $0xc4] sm:$0xf]
      %v3639 = vld [vmem:[%s1 + $0xc8] sm:$0xf]
      %v3640 = vld [vmem:[%s1 + $0xcc] sm:$0xf]
      %v3641 = vld [vmem:[%s1 + $0xd0] sm:$0xf]
      %v3642 = vld [vmem:[%s1 + $0xd4] sm:$0xf]
      %v3643 = vld [vmem:[%s1 + $0xd8] sm:$0xf]
      %v3644 = vld [vmem:[%s1 + $0xdc] sm:$0xf]
      %v3645 = vld [vmem:[%s1 + $0xe0] sm:$0xf]
      %v3646 = vld [vmem:[%s1 + $0xe4] sm:$0xf]
      %v3647 = vld [vmem:[%s1 + $0xe8] sm:$0xf]
      %v3648 = vld [vmem:[%s1 + $0xec] sm:$0xf]
      %v3649 = vld [vmem:[%s1 + $0xf0] sm:$0xf]
      %v3650 = vld [vmem:[%s1 + $0xf4] sm:$0xf]
      %v3651 = vld [vmem:[%s1 + $0xf8] sm:$0xf]
      %v3652 = vld [vmem:[%s1 + $0xfc] sm:$0xf]
      %v3653 = vld [vmem:[%s1 + $0x100] sm:$0xf]
      %v3654 = vld [vmem:[%s1 + $0x104] sm:$0xf]
      %v3655 = vld [vmem:[%s1 + $0x108] sm:$0xf]
      %v3656 = vld [vmem:[%s1 + $0x10c] sm:$0xf]
      %v3657 = vld [vmem:[%s1 + $0x110] sm:$0xf]
      %v3658 = vld [vmem:[%s1 + $0x114] sm:$0xf]
      %v3659 = vld [vmem:[%s1 + $0x118] sm:$0xf]
      %v3660 = vld [vmem:[%s1 + $0x11c] sm:$0xf]
      %v3661 = vld [vmem:[%s1 + $0x120] sm:$0xf]
      %v3662 = vld [vmem:[%s1 + $0x124] sm:$0xf]
      %v3663 = vld [vmem:[%s1 + $0x128] sm:$0xf]
      %v3664 = vld [vmem:[%s1 + $0x12c] sm:$0xf]
      %v3665 = vld [vmem:[%s1 + $0x130] sm:$0xf]
      %v3666 = vld [vmem:[%s1 + $0x134] sm:$0xf]
      %v3667 = vld [vmem:[%s1 + $0x138] sm:$0xf]
      %v3668 = vld [vmem:[%s1 + $0x13c] sm:$0xf]
      %v3669 = vld [vmem:[%s1 + $0x140] sm:$0xf]
      %v3670 = vld [vmem:[%s1 + $0x144] sm:$0xf]
      %v3671 = vld [vmem:[%s1 + $0x148] sm:$0xf]
      %v3672 = vld [vmem:[%s1 + $0x14c] sm:$0xf]
      %v3673 = vld [vmem:[%s1 + $0x150] sm:$0xf]
      %v3674 = vld [vmem:[%s1 + $0x154] sm:$0xf]
      %v3675 = vld [vmem:[%s1 + $0x158] sm:$0xf]
      %v3676 = vld [vmem:[%s1 + $0x15c] sm:$0xf]
      %v3677 = vld [vmem:[%s1 + $0x160] sm:$0xf]
      %v3678 = vld [vmem:[%s1 + $0x164] sm:$0xf]
      %v3679 = vld [vmem:[%s1 + $0x168] sm:$0xf]
      %v3680 = vld [vmem:[%s1 + $0x16c] sm:$0xf]
      %v3681 = vld [vmem:[%s1 + $0x170] sm:$0xf]
      %v3682 = vld [vmem:[%s1 + $0x174] sm:$0xf]
      %v3683 = vld [vmem:[%s1 + $0x178] sm:$0xf]
      %v3684 = vld [vmem:[%s1 + $0x17c] sm:$0xf]
      %v3685 = vld [vmem:[%s1 + $0x180] sm:$0xf]
      %v3686 = vld [vmem:[%s1 + $0x184] sm:$0xf]
      %v3687 = vld [vmem:[%s1 + $0x188] sm:$0xf]
      %v3688 = vld [vmem:[%s1 + $0x18c] sm:$0xf]
      %v3689 = vld [vmem:[%s1 + $0x190] sm:$0xf]
      %v3690 = vld [vmem:[%s1 + $0x194] sm:$0xf]
      %v3691 = vld [vmem:[%s1 + $0x198] sm:$0xf]
      %v3692 = vld [vmem:[%s1 + $0x19c] sm:$0xf]
      %v3693 = vld [vmem:[%s1 + $0x1a0] sm:$0xf]
      %v3694 = vld [vmem:[%s1 + $0x1a4] sm:$0xf]
      %v3695 = vld [vmem:[%s1 + $0x1a8] sm:$0xf]
      %v3696 = vld [vmem:[%s1 + $0x1ac] sm:$0xf]
      %v3697 = vld [vmem:[%s1 + $0x1b0] sm:$0xf]
      %v3698 = vld [vmem:[%s1 + $0x1b4] sm:$0xf]
      %v3699 = vld [vmem:[%s1 + $0x1b8] sm:$0xf]
      %v3700 = vld [vmem:[%s1 + $0x1bc] sm:$0xf]
      %v3701 = vld [vmem:[%s1 + $0x1c0] sm:$0xf]
      %v3702 = vld [vmem:[%s1 + $0x1c4] sm:$0xf]
      %v3703 = vld [vmem:[%s1 + $0x1c8] sm:$0xf]
      %v3704 = vld [vmem:[%s1 + $0x1cc] sm:$0xf]
      %v3705 = vld [vmem:[%s1 + $0x1d0] sm:$0xf]
      %v3706 = vld [vmem:[%s1 + $0x1d4] sm:$0xf]
      %v3707 = vld [vmem:[%s1 + $0x1d8] sm:$0xf]
      %v3708 = vld [vmem:[%s1 + $0x1dc] sm:$0xf]
      %v3709 = vld [vmem:[%s1 + $0x1e0] sm:$0xf]
      %v3710 = vld [vmem:[%s1 + $0x1e4] sm:$0xf]
      %v3711 = vld [vmem:[%s1 + $0x1e8] sm:$0xf]
      %v3712 = vld [vmem:[%s1 + $0x1ec] sm:$0xf]
      %v3713 = vld [vmem:[%s1 + $0x1f0] sm:$0xf]
      %v3714 = vld [vmem:[%s1 + $0x1f4] sm:$0xf]
      %v3715 = vld [vmem:[%s1 + $0x1f8] sm:$0xf]
      %v3716 = vld [vmem:[%s1 + $0x1fc] sm:$0xf]
      %v3717 = vld [vmem:[%s1 + $0x200] sm:$0xf]
      %v3718 = vld [vmem:[%s1 + $0x204] sm:$0xf]
      %v3719 = vld [vmem:[%s1 + $0x208] sm:$0xf]
      %v3720 = vld [vmem:[%s1 + $0x20c] sm:$0xf]
      %v3721 = vld [vmem:[%s1 + $0x210] sm:$0xf]
      %v3722 = vld [vmem:[%s1 + $0x214] sm:$0xf]
      %v3723 = vld [vmem:[%s1 + $0x218] sm:$0xf]
      %v3724 = vld [vmem:[%s1 + $0x21c] sm:$0xf]
      %v3725 = vld [vmem:[%s1 + $0x220] sm:$0xf]
      %v3726 = vld [vmem:[%s1 + $0x224] sm:$0xf]
      %v3727 = vld [vmem:[%s1 + $0x228] sm:$0xf]
      %v3728 = vld [vmem:[%s1 + $0x22c] sm:$0xf]
      %v3729 = vld [vmem:[%s1 + $0x230] sm:$0xf]
      %v3730 = vld [vmem:[%s1 + $0x234] sm:$0xf]
      %v3731 = vld [vmem:[%s1 + $0x238] sm:$0xf]
      %v3732 = vld [vmem:[%s1 + $0x23c] sm:$0xf]
      %v3877 = vunpack.c.l.b16 %v3589
      %v3878 = vunpack.c.l.b16 %v3590
      %v3879 = vunpack.c.l.b16 %v3591
      %v3880 = vunpack.c.l.b16 %v3592
      %v3881 = vunpack.c.l.b16 %v3593
      %v3882 = vunpack.c.l.b16 %v3594
      %v3883 = vunpack.c.l.b16 %v3595
      %v3884 = vunpack.c.l.b16 %v3596
      %v3885 = vunpack.c.l.b16 %v3597
      %v3886 = vunpack.c.l.b16 %v3598
      %v3887 = vunpack.c.l.b16 %v3599
      %v3888 = vunpack.c.l.b16 %v3600
      %v3889 = vunpack.c.l.b16 %v3601
      %v3890 = vunpack.c.l.b16 %v3602
      %v3891 = vunpack.c.l.b16 %v3603
      %v3892 = vunpack.c.l.b16 %v3604
      %v3893 = vunpack.c.l.b16 %v3605
      %v3894 = vunpack.c.l.b16 %v3606
      %v3895 = vunpack.c.l.b16 %v3607
      %v3896 = vunpack.c.l.b16 %v3608
      %v3897 = vunpack.c.l.b16 %v3609
      %v3898 = vunpack.c.l.b16 %v3610
      %v3899 = vunpack.c.l.b16 %v3611
      %v3900 = vunpack.c.l.b16 %v3612
      %v3901 = vunpack.c.l.b16 %v3613
      %v3902 = vunpack.c.l.b16 %v3614
      %v3903 = vunpack.c.l.b16 %v3615
      %v3904 = vunpack.c.l.b16 %v3616
      %v3905 = vunpack.c.l.b16 %v3617
      %v3906 = vunpack.c.l.b16 %v3618
      %v3907 = vunpack.c.l.b16 %v3619
      %v3908 = vunpack.c.l.b16 %v3620
      %v3909 = vunpack.c.l.b16 %v3621
      %v3910 = vunpack.c.l.b16 %v3622
      %v3911 = vunpack.c.l.b16 %v3623
      %v3912 = vunpack.c.l.b16 %v3624
      %v3913 = vunpack.c.l.b16 %v3625
      %v3914 = vunpack.c.l.b16 %v3626
      %v3915 = vunpack.c.l.b16 %v3627
      %v3916 = vunpack.c.l.b16 %v3628
      %v3917 = vunpack.c.l.b16 %v3629
      %v3918 = vunpack.c.l.b16 %v3630
      %v3919 = vunpack.c.l.b16 %v3631
      %v3920 = vunpack.c.l.b16 %v3632
      %v3921 = vunpack.c.l.b16 %v3633
      %v3922 = vunpack.c.l.b16 %v3634
      %v3923 = vunpack.c.l.b16 %v3635
      %v3924 = vunpack.c.l.b16 %v3636
      %v3925 = vunpack.c.l.b16 %v3637
      %v3926 = vunpack.c.l.b16 %v3638
      %v3927 = vunpack.c.l.b16 %v3639
      %v3928 = vunpack.c.l.b16 %v3640
      %v3929 = vunpack.c.l.b16 %v3641
      %v3930 = vunpack.c.l.b16 %v3642
      %v3931 = vunpack.c.l.b16 %v3643
      %v3932 = vunpack.c.l.b16 %v3644
      %v3933 = vunpack.c.l.b16 %v3645
      %v3934 = vunpack.c.l.b16 %v3646
      %v3935 = vunpack.c.l.b16 %v3647
      %v3936 = vunpack.c.l.b16 %v3648
      %v3937 = vunpack.c.l.b16 %v3649
      %v3938 = vunpack.c.l.b16 %v3650
      %v3939 = vunpack.c.l.b16 %v3651
      %v3940 = vunpack.c.l.b16 %v3652
      %v3941 = vunpack.c.l.b16 %v3653
      %v3942 = vunpack.c.l.b16 %v3654
      %v3943 = vunpack.c.l.b16 %v3655
      %v3944 = vunpack.c.l.b16 %v3656
      %v3945 = vunpack.c.l.b16 %v3657
      %v3946 = vunpack.c.l.b16 %v3658
      %v3947 = vunpack.c.l.b16 %v3659
      %v3948 = vunpack.c.l.b16 %v3660
      %v3949 = vunpack.c.l.b16 %v3661
      %v3950 = vunpack.c.l.b16 %v3662
      %v3951 = vunpack.c.l.b16 %v3663
      %v3952 = vunpack.c.l.b16 %v3664
      %v3953 = vunpack.c.l.b16 %v3665
      %v3954 = vunpack.c.l.b16 %v3666
      %v3955 = vunpack.c.l.b16 %v3667
      %v3956 = vunpack.c.l.b16 %v3668
      %v3957 = vunpack.c.l.b16 %v3669
      %v3958 = vunpack.c.l.b16 %v3670
      %v3959 = vunpack.c.l.b16 %v3671
      %v3960 = vunpack.c.l.b16 %v3672
      %v3961 = vunpack.c.l.b16 %v3673
      %v3962 = vunpack.c.l.b16 %v3674
      %v3963 = vunpack.c.l.b16 %v3675
      %v3964 = vunpack.c.l.b16 %v3676
      %v3965 = vunpack.c.l.b16 %v3677
      %v3966 = vunpack.c.l.b16 %v3678
      %v3967 = vunpack.c.l.b16 %v3679
      %v3968 = vunpack.c.l.b16 %v3680
      %v3969 = vunpack.c.l.b16 %v3681
      %v3970 = vunpack.c.l.b16 %v3682
      %v3971 = vunpack.c.l.b16 %v3683
      %v3972 = vunpack.c.l.b16 %v3684
      %v3973 = vunpack.c.l.b16 %v3685
      %v3974 = vunpack.c.l.b16 %v3686
      %v3975 = vunpack.c.l.b16 %v3687
      %v3976 = vunpack.c.l.b16 %v3688
      %v3977 = vunpack.c.l.b16 %v3689
      %v3978 = vunpack.c.l.b16 %v3690
      %v3979 = vunpack.c.l.b16 %v3691
      %v3980 = vunpack.c.l.b16 %v3692
      %v3981 = vunpack.c.l.b16 %v3693
      %v3982 = vunpack.c.l.b16 %v3694
      %v3983 = vunpack.c.l.b16 %v3695
      %v3984 = vunpack.c.l.b16 %v3696
      %v3985 = vunpack.c.l.b16 %v3697
      %v3986 = vunpack.c.l.b16 %v3698
      %v3987 = vunpack.c.l.b16 %v3699
      %v3988 = vunpack.c.l.b16 %v3700
      %v3989 = vunpack.c.l.b16 %v3701
      %v3990 = vunpack.c.l.b16 %v3702
      %v3991 = vunpack.c.l.b16 %v3703
      %v3992 = vunpack.c.l.b16 %v3704
      %v3993 = vunpack.c.l.b16 %v3705
      %v3994 = vunpack.c.l.b16 %v3706
      %v3995 = vunpack.c.l.b16 %v3707
      %v3996 = vunpack.c.l.b16 %v3708
      %v3997 = vunpack.c.l.b16 %v3709
      %v3998 = vunpack.c.l.b16 %v3710
      %v3999 = vunpack.c.l.b16 %v3711
      %v4000 = vunpack.c.l.b16 %v3712
      %v4001 = vunpack.c.l.b16 %v3713
      %v4002 = vunpack.c.l.b16 %v3714
      %v4003 = vunpack.c.l.b16 %v3715
      %v4004 = vunpack.c.l.b16 %v3716
      %v4005 = vunpack.c.l.b16 %v3717
      %v4006 = vunpack.c.l.b16 %v3718
      %v4007 = vunpack.c.l.b16 %v3719
      %v4008 = vunpack.c.l.b16 %v3720
      %v4009 = vunpack.c.l.b16 %v3721
      %v4010 = vunpack.c.l.b16 %v3722
      %v4011 = vunpack.c.l.b16 %v3723
      %v4012 = vunpack.c.l.b16 %v3724
      %v4013 = vunpack.c.l.b16 %v3725
      %v4014 = vunpack.c.l.b16 %v3726
      %v4015 = vunpack.c.l.b16 %v3727
      %v4016 = vunpack.c.l.b16 %v3728
      %v4017 = vunpack.c.l.b16 %v3729
      %v4018 = vunpack.c.l.b16 %v3730
      %v4019 = vunpack.c.l.b16 %v3731
      %v4020 = vunpack.c.l.b16 %v3732
      %v4021 = vpack.c.b16 %v3878, %v3877
      %v4022 = vpack.c.b16 %v3880, %v3879
      %v4023 = vpack.c.b16 %v3882, %v3881
      %v4024 = vpack.c.b16 %v3884, %v3883
      %v4025 = vpack.c.b16 %v3886, %v3885
      %v4026 = vpack.c.b16 %v3888, %v3887
      %v4027 = vpack.c.b16 %v3890, %v3889
      %v4028 = vpack.c.b16 %v3892, %v3891
      %v4029 = vpack.c.b16 %v3894, %v3893
      %v4030 = vpack.c.b16 %v3896, %v3895
      %v4031 = vpack.c.b16 %v3898, %v3897
      %v4032 = vpack.c.b16 %v3900, %v3899
      %v4033 = vpack.c.b16 %v3902, %v3901
      %v4034 = vpack.c.b16 %v3904, %v3903
      %v4035 = vpack.c.b16 %v3906, %v3905
      %v4036 = vpack.c.b16 %v3908, %v3907
      %v4037 = vpack.c.b16 %v3910, %v3909
      %v4038 = vpack.c.b16 %v3912, %v3911
      %v4039 = vpack.c.b16 %v3914, %v3913
      %v4040 = vpack.c.b16 %v3916, %v3915
      %v4041 = vpack.c.b16 %v3918, %v3917
      %v4042 = vpack.c.b16 %v3920, %v3919
      %v4043 = vpack.c.b16 %v3922, %v3921
      %v4044 = vpack.c.b16 %v3924, %v3923
      %v4045 = vpack.c.b16 %v3926, %v3925
      %v4046 = vpack.c.b16 %v3928, %v3927
      %v4047 = vpack.c.b16 %v3930, %v3929
      %v4048 = vpack.c.b16 %v3932, %v3931
      %v4049 = vpack.c.b16 %v3934, %v3933
      %v4050 = vpack.c.b16 %v3936, %v3935
      %v4051 = vpack.c.b16 %v3938, %v3937
      %v4052 = vpack.c.b16 %v3940, %v3939
      %v4053 = vpack.c.b16 %v3942, %v3941
      %v4054 = vpack.c.b16 %v3944, %v3943
      %v4055 = vpack.c.b16 %v3946, %v3945
      %v4056 = vpack.c.b16 %v3948, %v3947
      %v4057 = vpack.c.b16 %v3950, %v3949
      %v4058 = vpack.c.b16 %v3952, %v3951
      %v4059 = vpack.c.b16 %v3954, %v3953
      %v4060 = vpack.c.b16 %v3956, %v3955
      %v4061 = vpack.c.b16 %v3958, %v3957
      %v4062 = vpack.c.b16 %v3960, %v3959
      %v4063 = vpack.c.b16 %v3962, %v3961
      %v4064 = vpack.c.b16 %v3964, %v3963
      %v4065 = vpack.c.b16 %v3966, %v3965
      %v4066 = vpack.c.b16 %v3968, %v3967
      %v4067 = vpack.c.b16 %v3970, %v3969
      %v4068 = vpack.c.b16 %v3972, %v3971
      %v4069 = vpack.c.b16 %v3974, %v3973
      %v4070 = vpack.c.b16 %v3976, %v3975
      %v4071 = vpack.c.b16 %v3978, %v3977
      %v4072 = vpack.c.b16 %v3980, %v3979
      %v4073 = vpack.c.b16 %v3982, %v3981
      %v4074 = vpack.c.b16 %v3984, %v3983
      %v4075 = vpack.c.b16 %v3986, %v3985
      %v4076 = vpack.c.b16 %v3988, %v3987
      %v4077 = vpack.c.b16 %v3990, %v3989
      %v4078 = vpack.c.b16 %v3992, %v3991
      %v4079 = vpack.c.b16 %v3994, %v3993
      %v4080 = vpack.c.b16 %v3996, %v3995
      %v4081 = vpack.c.b16 %v3998, %v3997
      %v4082 = vpack.c.b16 %v4000, %v3999
      %v4083 = vpack.c.b16 %v4002, %v4001
      %v4084 = vpack.c.b16 %v4004, %v4003
      %v4085 = vpack.c.b16 %v4006, %v4005
      %v4086 = vpack.c.b16 %v4008, %v4007
      %v4087 = vpack.c.b16 %v4010, %v4009
      %v4088 = vpack.c.b16 %v4012, %v4011
      %v4089 = vpack.c.b16 %v4014, %v4013
      %v4090 = vpack.c.b16 %v4016, %v4015
      %v4091 = vpack.c.b16 %v4018, %v4017
      %v4092 = vpack.c.b16 %v4020, %v4019
      %4165 = vmatpush.bf16.msra.mxu0 %v4028
      %4166 = vmatpush.bf16.msra.mxu0 %v4027
      %4167 = vmatpush.bf16.msra.mxu0 %v4026
      %4168 = vmatpush.bf16.msra.mxu0 %v4025
      %4169 = vmatpush.bf16.msra.mxu0 %v4024
      %4170 = vmatpush.bf16.msra.mxu0 %v4023
      %4171 = vmatpush.bf16.msra.mxu0 %v4022
      %4172 = vmatpush.bf16.msra.mxu0 %v4021
      %4173 = vmatmul.bf16.gmra.mxu0 %v3013
      %v4174 = vpop.f32.mrf.mxu0
      %v4175 = vadd.f32 0.0, %v4174
      %v4176 = vpop.f32.mrf.mxu0
      %v4177 = vadd.f32 0.0, %v4176
      %4178 = vmatmul.bf16.gmra.mxu0 %v3014
      %v4179 = vpop.f32.mrf.mxu0
      %v4180 = vadd.f32 0.0, %v4179
      %v4181 = vpop.f32.mrf.mxu0
      %v4182 = vadd.f32 0.0, %v4181
      %4183 = vmatmul.bf16.gmra.mxu0 %v3015
      %v4184 = vpop.f32.mrf.mxu0
      %v4185 = vadd.f32 0.0, %v4184
      %v4186 = vpop.f32.mrf.mxu0
      %v4187 = vadd.f32 0.0, %v4186
      %4188 = vmatmul.bf16.gmra.mxu0 %v3016
      %v4189 = vpop.f32.mrf.mxu0
      %v4190 = vadd.f32 0.0, %v4189
      %v4191 = vpop.f32.mrf.mxu0
      %v4192 = vadd.f32 0.0, %v4191
      %4193 = vmatmul.bf16.gmra.mxu0 %v3017
      %v4194 = vpop.f32.mrf.mxu0
      %v4195 = vadd.f32 0.0, %v4194
      %v4196 = vpop.f32.mrf.mxu0
      %v4197 = vadd.f32 0.0, %v4196
      %4198 = vmatmul.bf16.gmra.mxu0 %v3018
      %v4199 = vpop.f32.mrf.mxu0
      %v4200 = vadd.f32 0.0, %v4199
      %v4201 = vpop.f32.mrf.mxu0
      %v4202 = vadd.f32 0.0, %v4201
      %4203 = vmatmul.bf16.gmra.mxu0 %v3019
      %v4204 = vpop.f32.mrf.mxu0
      %v4205 = vadd.f32 0.0, %v4204
      %v4206 = vpop.f32.mrf.mxu0
      %v4207 = vadd.f32 0.0, %v4206
      %4208 = vmatmul.bf16.gmra.mxu0 %v3020
      %v4209 = vpop.f32.mrf.mxu0
      %v4210 = vadd.f32 0.0, %v4209
      %v4211 = vpop.f32.mrf.mxu0
      %v4212 = vadd.f32 0.0, %v4211
      %4213 = vmatmul.bf16.gmra.mxu0 %v3021
      %v4214 = vpop.f32.mrf.mxu0
      %v4215 = vadd.f32 0.0, %v4214
      %v4216 = vpop.f32.mrf.mxu0
      %v4217 = vadd.f32 0.0, %v4216
      %4218 = vmatmul.bf16.gmra.mxu0 %v3022
      %v4219 = vpop.f32.mrf.mxu0
      %v4220 = vadd.f32 0.0, %v4219
      %v4221 = vpop.f32.mrf.mxu0
      %v4222 = vadd.f32 0.0, %v4221
      %4223 = vmatmul.bf16.gmra.mxu0 %v3023
      %v4224 = vpop.f32.mrf.mxu0
      %v4225 = vadd.f32 0.0, %v4224
      %v4226 = vpop.f32.mrf.mxu0
      %v4227 = vadd.f32 0.0, %v4226
      %4228 = vmatmul.bf16.gmra.mxu0 %v3024
      %v4229 = vpop.f32.mrf.mxu0
      %v4230 = vadd.f32 0.0, %v4229
      %v4231 = vpop.f32.mrf.mxu0
      %v4232 = vadd.f32 0.0, %v4231
      %4233 = vmatmul.bf16.gmra.mxu0 %v3025
      %v4234 = vpop.f32.mrf.mxu0
      %v4235 = vadd.f32 0.0, %v4234
      %v4236 = vpop.f32.mrf.mxu0
      %v4237 = vadd.f32 0.0, %v4236
      %4238 = vmatmul.bf16.gmra.mxu0 %v3026
      %v4239 = vpop.f32.mrf.mxu0
      %v4240 = vadd.f32 0.0, %v4239
      %v4241 = vpop.f32.mrf.mxu0
      %v4242 = vadd.f32 0.0, %v4241
      %4243 = vmatmul.bf16.gmra.mxu0 %v3027
      %v4244 = vpop.f32.mrf.mxu0
      %v4245 = vadd.f32 0.0, %v4244
      %v4246 = vpop.f32.mrf.mxu0
      %v4247 = vadd.f32 0.0, %v4246
      %4248 = vmatmul.bf16.gmra.mxu0 %v3028
      %v4249 = vpop.f32.mrf.mxu0
      %v4250 = vadd.f32 0.0, %v4249
      %v4251 = vpop.f32.mrf.mxu0
      %v4252 = vadd.f32 0.0, %v4251
      %4253 = vdwg.mxu0
      %4254 = vmatpush.bf16.msra.mxu0 %v4036
      %4255 = vmatpush.bf16.msra.mxu0 %v4035
      %4256 = vmatpush.bf16.msra.mxu0 %v4034
      %4257 = vmatpush.bf16.msra.mxu0 %v4033
      %4258 = vmatpush.bf16.msra.mxu0 %v4032
      %4259 = vmatpush.bf16.msra.mxu0 %v4031
      %4260 = vmatpush.bf16.msra.mxu0 %v4030
      %4261 = vmatpush.bf16.msra.mxu0 %v4029
      %4262 = vmatmul.bf16.gmra.mxu0 %v3077
      %v4263 = vpop.f32.mrf.mxu0
      %v4264 = vadd.f32 %v4175, %v4263
      %v4265 = vpop.f32.mrf.mxu0
      %v4266 = vadd.f32 %v4177, %v4265
      %4267 = vmatmul.bf16.gmra.mxu0 %v3078
      %v4268 = vpop.f32.mrf.mxu0
      %v4269 = vadd.f32 %v4180, %v4268
      %v4270 = vpop.f32.mrf.mxu0
      %v4271 = vadd.f32 %v4182, %v4270
      %4272 = vmatmul.bf16.gmra.mxu0 %v3079
      %v4273 = vpop.f32.mrf.mxu0
      %v4274 = vadd.f32 %v4185, %v4273
      %v4275 = vpop.f32.mrf.mxu0
      %v4276 = vadd.f32 %v4187, %v4275
      %4277 = vmatmul.bf16.gmra.mxu0 %v3080
      %v4278 = vpop.f32.mrf.mxu0
      %v4279 = vadd.f32 %v4190, %v4278
      %v4280 = vpop.f32.mrf.mxu0
      %v4281 = vadd.f32 %v4192, %v4280
      %4282 = vmatmul.bf16.gmra.mxu0 %v3081
      %v4283 = vpop.f32.mrf.mxu0
      %v4284 = vadd.f32 %v4195, %v4283
      %v4285 = vpop.f32.mrf.mxu0
      %v4286 = vadd.f32 %v4197, %v4285
      %4287 = vmatmul.bf16.gmra.mxu0 %v3082
      %v4288 = vpop.f32.mrf.mxu0
      %v4289 = vadd.f32 %v4200, %v4288
      %v4290 = vpop.f32.mrf.mxu0
      %v4291 = vadd.f32 %v4202, %v4290
      %4292 = vmatmul.bf16.gmra.mxu0 %v3083
      %v4293 = vpop.f32.mrf.mxu0
      %v4294 = vadd.f32 %v4205, %v4293
      %v4295 = vpop.f32.mrf.mxu0
      %v4296 = vadd.f32 %v4207, %v4295
      %4297 = vmatmul.bf16.gmra.mxu0 %v3084
      %v4298 = vpop.f32.mrf.mxu0
      %v4299 = vadd.f32 %v4210, %v4298
      %v4300 = vpop.f32.mrf.mxu0
      %v4301 = vadd.f32 %v4212, %v4300
      %4302 = vmatmul.bf16.gmra.mxu0 %v3085
      %v4303 = vpop.f32.mrf.mxu0
      %v4304 = vadd.f32 %v4215, %v4303
      %v4305 = vpop.f32.mrf.mxu0
      %v4306 = vadd.f32 %v4217, %v4305
      %4307 = vmatmul.bf16.gmra.mxu0 %v3086
      %v4308 = vpop.f32.mrf.mxu0
      %v4309 = vadd.f32 %v4220, %v4308
      %v4310 = vpop.f32.mrf.mxu0
      %v4311 = vadd.f32 %v4222, %v4310
      %4312 = vmatmul.bf16.gmra.mxu0 %v3087
      %v4313 = vpop.f32.mrf.mxu0
      %v4314 = vadd.f32 %v4225, %v4313
      %v4315 = vpop.f32.mrf.mxu0
      %v4316 = vadd.f32 %v4227, %v4315
      %4317 = vmatmul.bf16.gmra.mxu0 %v3088
      %v4318 = vpop.f32.mrf.mxu0
      %v4319 = vadd.f32 %v4230, %v4318
      %v4320 = vpop.f32.mrf.mxu0
      %v4321 = vadd.f32 %v4232, %v4320
      %4322 = vmatmul.bf16.gmra.mxu0 %v3089
      %v4323 = vpop.f32.mrf.mxu0
      %v4324 = vadd.f32 %v4235, %v4323
      %v4325 = vpop.f32.mrf.mxu0
      %v4326 = vadd.f32 %v4237, %v4325
      %4327 = vmatmul.bf16.gmra.mxu0 %v3090
      %v4328 = vpop.f32.mrf.mxu0
      %v4329 = vadd.f32 %v4240, %v4328
      %v4330 = vpop.f32.mrf.mxu0
      %v4331 = vadd.f32 %v4242, %v4330
      %4332 = vmatmul.bf16.gmra.mxu0 %v3091
      %v4333 = vpop.f32.mrf.mxu0
      %v4334 = vadd.f32 %v4245, %v4333
      %v4335 = vpop.f32.mrf.mxu0
      %v4336 = vadd.f32 %v4247, %v4335
      %4337 = vmatmul.bf16.gmra.mxu0 %v3092
      %v4338 = vpop.f32.mrf.mxu0
      %v4339 = vadd.f32 %v4250, %v4338
      %v4340 = vpop.f32.mrf.mxu0
      %v4341 = vadd.f32 %v4252, %v4340
      %4342 = vdwg.mxu0
      %4343 = vmatpush.bf16.msra.mxu0 %v4044
      %4344 = vmatpush.bf16.msra.mxu0 %v4043
      %4345 = vmatpush.bf16.msra.mxu0 %v4042
      %4346 = vmatpush.bf16.msra.mxu0 %v4041
      %4347 = vmatpush.bf16.msra.mxu0 %v4040
      %4348 = vmatpush.bf16.msra.mxu0 %v4039
      %4349 = vmatpush.bf16.msra.mxu0 %v4038
      %4350 = vmatpush.bf16.msra.mxu0 %v4037
      %4351 = vmatmul.bf16.gmra.mxu0 %v3141
      %v4352 = vpop.f32.mrf.mxu0
      %v4353 = vadd.f32 %v4264, %v4352
      %v4354 = vpop.f32.mrf.mxu0
      %v4355 = vadd.f32 %v4266, %v4354
      %4356 = vmatmul.bf16.gmra.mxu0 %v3142
      %v4357 = vpop.f32.mrf.mxu0
      %v4358 = vadd.f32 %v4269, %v4357
      %v4359 = vpop.f32.mrf.mxu0
      %v4360 = vadd.f32 %v4271, %v4359
      %4361 = vmatmul.bf16.gmra.mxu0 %v3143
      %v4362 = vpop.f32.mrf.mxu0
      %v4363 = vadd.f32 %v4274, %v4362
      %v4364 = vpop.f32.mrf.mxu0
      %v4365 = vadd.f32 %v4276, %v4364
      %4366 = vmatmul.bf16.gmra.mxu0 %v3144
      %v4367 = vpop.f32.mrf.mxu0
      %v4368 = vadd.f32 %v4279, %v4367
      %v4369 = vpop.f32.mrf.mxu0
      %v4370 = vadd.f32 %v4281, %v4369
      %4371 = vmatmul.bf16.gmra.mxu0 %v3145
      %v4372 = vpop.f32.mrf.mxu0
      %v4373 = vadd.f32 %v4284, %v4372
      %v4374 = vpop.f32.mrf.mxu0
      %v4375 = vadd.f32 %v4286, %v4374
      %4376 = vmatmul.bf16.gmra.mxu0 %v3146
      %v4377 = vpop.f32.mrf.mxu0
      %v4378 = vadd.f32 %v4289, %v4377
      %v4379 = vpop.f32.mrf.mxu0
      %v4380 = vadd.f32 %v4291, %v4379
      %4381 = vmatmul.bf16.gmra.mxu0 %v3147
      %v4382 = vpop.f32.mrf.mxu0
      %v4383 = vadd.f32 %v4294, %v4382
      %v4384 = vpop.f32.mrf.mxu0
      %v4385 = vadd.f32 %v4296, %v4384
      %4386 = vmatmul.bf16.gmra.mxu0 %v3148
      %v4387 = vpop.f32.mrf.mxu0
      %v4388 = vadd.f32 %v4299, %v4387
      %v4389 = vpop.f32.mrf.mxu0
      %v4390 = vadd.f32 %v4301, %v4389
      %4391 = vmatmul.bf16.gmra.mxu0 %v3149
      %v4392 = vpop.f32.mrf.mxu0
      %v4393 = vadd.f32 %v4304, %v4392
      %v4394 = vpop.f32.mrf.mxu0
      %v4395 = vadd.f32 %v4306, %v4394
      %4396 = vmatmul.bf16.gmra.mxu0 %v3150
      %v4397 = vpop.f32.mrf.mxu0
      %v4398 = vadd.f32 %v4309, %v4397
      %v4399 = vpop.f32.mrf.mxu0
      %v4400 = vadd.f32 %v4311, %v4399
      %4401 = vmatmul.bf16.gmra.mxu0 %v3151
      %v4402 = vpop.f32.mrf.mxu0
      %v4403 = vadd.f32 %v4314, %v4402
      %v4404 = vpop.f32.mrf.mxu0
      %v4405 = vadd.f32 %v4316, %v4404
      %4406 = vmatmul.bf16.gmra.mxu0 %v3152
      %v4407 = vpop.f32.mrf.mxu0
      %v4408 = vadd.f32 %v4319, %v4407
      %v4409 = vpop.f32.mrf.mxu0
      %v4410 = vadd.f32 %v4321, %v4409
      %4411 = vmatmul.bf16.gmra.mxu0 %v3153
      %v4412 = vpop.f32.mrf.mxu0
      %v4413 = vadd.f32 %v4324, %v4412
      %v4414 = vpop.f32.mrf.mxu0
      %v4415 = vadd.f32 %v4326, %v4414
      %4416 = vmatmul.bf16.gmra.mxu0 %v3154
      %v4417 = vpop.f32.mrf.mxu0
      %v4418 = vadd.f32 %v4329, %v4417
      %v4419 = vpop.f32.mrf.mxu0
      %v4420 = vadd.f32 %v4331, %v4419
      %4421 = vmatmul.bf16.gmra.mxu0 %v3155
      %v4422 = vpop.f32.mrf.mxu0
      %v4423 = vadd.f32 %v4334, %v4422
      %v4424 = vpop.f32.mrf.mxu0
      %v4425 = vadd.f32 %v4336, %v4424
      %4426 = vmatmul.bf16.gmra.mxu0 %v3156
      %v4427 = vpop.f32.mrf.mxu0
      %v4428 = vadd.f32 %v4339, %v4427
      %v4429 = vpop.f32.mrf.mxu0
      %v4430 = vadd.f32 %v4341, %v4429
      %4431 = vdwg.mxu0
      %4432 = vmatpush.bf16.msra.mxu0 %v4052
      %4433 = vmatpush.bf16.msra.mxu0 %v4051
      %4434 = vmatpush.bf16.msra.mxu0 %v4050
      %4435 = vmatpush.bf16.msra.mxu0 %v4049
      %4436 = vmatpush.bf16.msra.mxu0 %v4048
      %4437 = vmatpush.bf16.msra.mxu0 %v4047
      %4438 = vmatpush.bf16.msra.mxu0 %v4046
      %4439 = vmatpush.bf16.msra.mxu0 %v4045
      %4440 = vmatmul.bf16.gmra.mxu0 %v3221
      %v4441 = vpop.f32.mrf.mxu0
      %v4442 = vadd.f32 %v4353, %v4441
      %v4443 = vpop.f32.mrf.mxu0
      %v4444 = vadd.f32 %v4355, %v4443
      %4445 = vmatmul.bf16.gmra.mxu0 %v3222
      %v4446 = vpop.f32.mrf.mxu0
      %v4447 = vadd.f32 %v4358, %v4446
      %v4448 = vpop.f32.mrf.mxu0
      %v4449 = vadd.f32 %v4360, %v4448
      %4450 = vmatmul.bf16.gmra.mxu0 %v3223
      %v4451 = vpop.f32.mrf.mxu0
      %v4452 = vadd.f32 %v4363, %v4451
      %v4453 = vpop.f32.mrf.mxu0
      %v4454 = vadd.f32 %v4365, %v4453
      %4455 = vmatmul.bf16.gmra.mxu0 %v3224
      %v4456 = vpop.f32.mrf.mxu0
      %v4457 = vadd.f32 %v4368, %v4456
      %v4458 = vpop.f32.mrf.mxu0
      %v4459 = vadd.f32 %v4370, %v4458
      %4460 = vmatmul.bf16.gmra.mxu0 %v3225
      %v4461 = vpop.f32.mrf.mxu0
      %v4462 = vadd.f32 %v4373, %v4461
      %v4463 = vpop.f32.mrf.mxu0
      %v4464 = vadd.f32 %v4375, %v4463
      %4465 = vmatmul.bf16.gmra.mxu0 %v3226
      %v4466 = vpop.f32.mrf.mxu0
      %v4467 = vadd.f32 %v4378, %v4466
      %v4468 = vpop.f32.mrf.mxu0
      %v4469 = vadd.f32 %v4380, %v4468
      %4470 = vmatmul.bf16.gmra.mxu0 %v3227
      %v4471 = vpop.f32.mrf.mxu0
      %v4472 = vadd.f32 %v4383, %v4471
      %v4473 = vpop.f32.mrf.mxu0
      %v4474 = vadd.f32 %v4385, %v4473
      %4475 = vmatmul.bf16.gmra.mxu0 %v3228
      %v4476 = vpop.f32.mrf.mxu0
      %v4477 = vadd.f32 %v4388, %v4476
      %v4478 = vpop.f32.mrf.mxu0
      %v4479 = vadd.f32 %v4390, %v4478
      %4480 = vmatmul.bf16.gmra.mxu0 %v3229
      %v4481 = vpop.f32.mrf.mxu0
      %v4482 = vadd.f32 %v4393, %v4481
      %v4483 = vpop.f32.mrf.mxu0
      %v4484 = vadd.f32 %v4395, %v4483
      %4485 = vmatmul.bf16.gmra.mxu0 %v3230
      %v4486 = vpop.f32.mrf.mxu0
      %v4487 = vadd.f32 %v4398, %v4486
      %v4488 = vpop.f32.mrf.mxu0
      %v4489 = vadd.f32 %v4400, %v4488
      %4490 = vmatmul.bf16.gmra.mxu0 %v3231
      %v4491 = vpop.f32.mrf.mxu0
      %v4492 = vadd.f32 %v4403, %v4491
      %v4493 = vpop.f32.mrf.mxu0
      %v4494 = vadd.f32 %v4405, %v4493
      %4495 = vmatmul.bf16.gmra.mxu0 %v3232
      %v4496 = vpop.f32.mrf.mxu0
      %v4497 = vadd.f32 %v4408, %v4496
      %v4498 = vpop.f32.mrf.mxu0
      %v4499 = vadd.f32 %v4410, %v4498
      %4500 = vmatmul.bf16.gmra.mxu0 %v3233
      %v4501 = vpop.f32.mrf.mxu0
      %v4502 = vadd.f32 %v4413, %v4501
      %v4503 = vpop.f32.mrf.mxu0
      %v4504 = vadd.f32 %v4415, %v4503
      %4505 = vmatmul.bf16.gmra.mxu0 %v3234
      %v4506 = vpop.f32.mrf.mxu0
      %v4507 = vadd.f32 %v4418, %v4506
      %v4508 = vpop.f32.mrf.mxu0
      %v4509 = vadd.f32 %v4420, %v4508
      %4510 = vmatmul.bf16.gmra.mxu0 %v3235
      %v4511 = vpop.f32.mrf.mxu0
      %v4512 = vadd.f32 %v4423, %v4511
      %v4513 = vpop.f32.mrf.mxu0
      %v4514 = vadd.f32 %v4425, %v4513
      %4515 = vmatmul.bf16.gmra.mxu0 %v3236
      %v4516 = vpop.f32.mrf.mxu0
      %v4517 = vadd.f32 %v4428, %v4516
      %v4518 = vpop.f32.mrf.mxu0
      %v4519 = vadd.f32 %v4430, %v4518
      %4520 = vdwg.mxu0
      %4521 = vmatpush.bf16.msra.mxu0 %v4060
      %4522 = vmatpush.bf16.msra.mxu0 %v4059
      %4523 = vmatpush.bf16.msra.mxu0 %v4058
      %4524 = vmatpush.bf16.msra.mxu0 %v4057
      %4525 = vmatpush.bf16.msra.mxu0 %v4056
      %4526 = vmatpush.bf16.msra.mxu0 %v4055
      %4527 = vmatpush.bf16.msra.mxu0 %v4054
      %4528 = vmatpush.bf16.msra.mxu0 %v4053
      %4529 = vmatmul.bf16.gmra.mxu0 %v3285
      %v4530 = vpop.f32.mrf.mxu0
      %v4531 = vadd.f32 %v4442, %v4530
      %v4532 = vpop.f32.mrf.mxu0
      %v4533 = vadd.f32 %v4444, %v4532
      %4534 = vmatmul.bf16.gmra.mxu0 %v3286
      %v4535 = vpop.f32.mrf.mxu0
      %v4536 = vadd.f32 %v4447, %v4535
      %v4537 = vpop.f32.mrf.mxu0
      %v4538 = vadd.f32 %v4449, %v4537
      %4539 = vmatmul.bf16.gmra.mxu0 %v3287
      %v4540 = vpop.f32.mrf.mxu0
      %v4541 = vadd.f32 %v4452, %v4540
      %v4542 = vpop.f32.mrf.mxu0
      %v4543 = vadd.f32 %v4454, %v4542
      %4544 = vmatmul.bf16.gmra.mxu0 %v3288
      %v4545 = vpop.f32.mrf.mxu0
      %v4546 = vadd.f32 %v4457, %v4545
      %v4547 = vpop.f32.mrf.mxu0
      %v4548 = vadd.f32 %v4459, %v4547
      %4549 = vmatmul.bf16.gmra.mxu0 %v3289
      %v4550 = vpop.f32.mrf.mxu0
      %v4551 = vadd.f32 %v4462, %v4550
      %v4552 = vpop.f32.mrf.mxu0
      %v4553 = vadd.f32 %v4464, %v4552
      %4554 = vmatmul.bf16.gmra.mxu0 %v3290
      %v4555 = vpop.f32.mrf.mxu0
      %v4556 = vadd.f32 %v4467, %v4555
      %v4557 = vpop.f32.mrf.mxu0
      %v4558 = vadd.f32 %v4469, %v4557
      %4559 = vmatmul.bf16.gmra.mxu0 %v3291
      %v4560 = vpop.f32.mrf.mxu0
      %v4561 = vadd.f32 %v4472, %v4560
      %v4562 = vpop.f32.mrf.mxu0
      %v4563 = vadd.f32 %v4474, %v4562
      %4564 = vmatmul.bf16.gmra.mxu0 %v3292
      %v4565 = vpop.f32.mrf.mxu0
      %v4566 = vadd.f32 %v4477, %v4565
      %v4567 = vpop.f32.mrf.mxu0
      %v4568 = vadd.f32 %v4479, %v4567
      %4569 = vmatmul.bf16.gmra.mxu0 %v3293
      %v4570 = vpop.f32.mrf.mxu0
      %v4571 = vadd.f32 %v4482, %v4570
      %v4572 = vpop.f32.mrf.mxu0
      %v4573 = vadd.f32 %v4484, %v4572
      %4574 = vmatmul.bf16.gmra.mxu0 %v3294
      %v4575 = vpop.f32.mrf.mxu0
      %v4576 = vadd.f32 %v4487, %v4575
      %v4577 = vpop.f32.mrf.mxu0
      %v4578 = vadd.f32 %v4489, %v4577
      %4579 = vmatmul.bf16.gmra.mxu0 %v3295
      %v4580 = vpop.f32.mrf.mxu0
      %v4581 = vadd.f32 %v4492, %v4580
      %v4582 = vpop.f32.mrf.mxu0
      %v4583 = vadd.f32 %v4494, %v4582
      %4584 = vmatmul.bf16.gmra.mxu0 %v3296
      %v4585 = vpop.f32.mrf.mxu0
      %v4586 = vadd.f32 %v4497, %v4585
      %v4587 = vpop.f32.mrf.mxu0
      %v4588 = vadd.f32 %v4499, %v4587
      %4589 = vmatmul.bf16.gmra.mxu0 %v3297
      %v4590 = vpop.f32.mrf.mxu0
      %v4591 = vadd.f32 %v4502, %v4590
      %v4592 = vpop.f32.mrf.mxu0
      %v4593 = vadd.f32 %v4504, %v4592
      %4594 = vmatmul.bf16.gmra.mxu0 %v3298
      %v4595 = vpop.f32.mrf.mxu0
      %v4596 = vadd.f32 %v4507, %v4595
      %v4597 = vpop.f32.mrf.mxu0
      %v4598 = vadd.f32 %v4509, %v4597
      %4599 = vmatmul.bf16.gmra.mxu0 %v3299
      %v4600 = vpop.f32.mrf.mxu0
      %v4601 = vadd.f32 %v4512, %v4600
      %v4602 = vpop.f32.mrf.mxu0
      %v4603 = vadd.f32 %v4514, %v4602
      %4604 = vmatmul.bf16.gmra.mxu0 %v3300
      %v4605 = vpop.f32.mrf.mxu0
      %v4606 = vadd.f32 %v4517, %v4605
      %v4607 = vpop.f32.mrf.mxu0
      %v4608 = vadd.f32 %v4519, %v4607
      %4609 = vdwg.mxu0
      %4610 = vmatpush.bf16.msra.mxu0 %v4068
      %4611 = vmatpush.bf16.msra.mxu0 %v4067
      %4612 = vmatpush.bf16.msra.mxu0 %v4066
      %4613 = vmatpush.bf16.msra.mxu0 %v4065
      %4614 = vmatpush.bf16.msra.mxu0 %v4064
      %4615 = vmatpush.bf16.msra.mxu0 %v4063
      %4616 = vmatpush.bf16.msra.mxu0 %v4062
      %4617 = vmatpush.bf16.msra.mxu0 %v4061
      %4618 = vmatmul.bf16.gmra.mxu0 %v3349
      %v4619 = vpop.f32.mrf.mxu0
      %v4620 = vadd.f32 %v4531, %v4619
      %v4621 = vpop.f32.mrf.mxu0
      %v4622 = vadd.f32 %v4533, %v4621
      %4623 = vmatmul.bf16.gmra.mxu0 %v3350
      %v4624 = vpop.f32.mrf.mxu0
      %v4625 = vadd.f32 %v4536, %v4624
      %v4626 = vpop.f32.mrf.mxu0
      %v4627 = vadd.f32 %v4538, %v4626
      %4628 = vmatmul.bf16.gmra.mxu0 %v3351
      %v4629 = vpop.f32.mrf.mxu0
      %v4630 = vadd.f32 %v4541, %v4629
      %v4631 = vpop.f32.mrf.mxu0
      %v4632 = vadd.f32 %v4543, %v4631
      %4633 = vmatmul.bf16.gmra.mxu0 %v3352
      %v4634 = vpop.f32.mrf.mxu0
      %v4635 = vadd.f32 %v4546, %v4634
      %v4636 = vpop.f32.mrf.mxu0
      %v4637 = vadd.f32 %v4548, %v4636
      %4638 = vmatmul.bf16.gmra.mxu0 %v3353
      %v4639 = vpop.f32.mrf.mxu0
      %v4640 = vadd.f32 %v4551, %v4639
      %v4641 = vpop.f32.mrf.mxu0
      %v4642 = vadd.f32 %v4553, %v4641
      %4643 = vmatmul.bf16.gmra.mxu0 %v3354
      %v4644 = vpop.f32.mrf.mxu0
      %v4645 = vadd.f32 %v4556, %v4644
      %v4646 = vpop.f32.mrf.mxu0
      %v4647 = vadd.f32 %v4558, %v4646
      %4648 = vmatmul.bf16.gmra.mxu0 %v3355
      %v4649 = vpop.f32.mrf.mxu0
      %v4650 = vadd.f32 %v4561, %v4649
      %v4651 = vpop.f32.mrf.mxu0
      %v4652 = vadd.f32 %v4563, %v4651
      %4653 = vmatmul.bf16.gmra.mxu0 %v3356
      %v4654 = vpop.f32.mrf.mxu0
      %v4655 = vadd.f32 %v4566, %v4654
      %v4656 = vpop.f32.mrf.mxu0
      %v4657 = vadd.f32 %v4568, %v4656
      %4658 = vmatmul.bf16.gmra.mxu0 %v3357
      %v4659 = vpop.f32.mrf.mxu0
      %v4660 = vadd.f32 %v4571, %v4659
      %v4661 = vpop.f32.mrf.mxu0
      %v4662 = vadd.f32 %v4573, %v4661
      %4663 = vmatmul.bf16.gmra.mxu0 %v3358
      %v4664 = vpop.f32.mrf.mxu0
      %v4665 = vadd.f32 %v4576, %v4664
      %v4666 = vpop.f32.mrf.mxu0
      %v4667 = vadd.f32 %v4578, %v4666
      %4668 = vmatmul.bf16.gmra.mxu0 %v3359
      %v4669 = vpop.f32.mrf.mxu0
      %v4670 = vadd.f32 %v4581, %v4669
      %v4671 = vpop.f32.mrf.mxu0
      %v4672 = vadd.f32 %v4583, %v4671
      %4673 = vmatmul.bf16.gmra.mxu0 %v3360
      %v4674 = vpop.f32.mrf.mxu0
      %v4675 = vadd.f32 %v4586, %v4674
      %v4676 = vpop.f32.mrf.mxu0
      %v4677 = vadd.f32 %v4588, %v4676
      %4678 = vmatmul.bf16.gmra.mxu0 %v3361
      %v4679 = vpop.f32.mrf.mxu0
      %v4680 = vadd.f32 %v4591, %v4679
      %v4681 = vpop.f32.mrf.mxu0
      %v4682 = vadd.f32 %v4593, %v4681
      %4683 = vmatmul.bf16.gmra.mxu0 %v3362
      %v4684 = vpop.f32.mrf.mxu0
      %v4685 = vadd.f32 %v4596, %v4684
      %v4686 = vpop.f32.mrf.mxu0
      %v4687 = vadd.f32 %v4598, %v4686
      %4688 = vmatmul.bf16.gmra.mxu0 %v3363
      %v4689 = vpop.f32.mrf.mxu0
      %v4690 = vadd.f32 %v4601, %v4689
      %v4691 = vpop.f32.mrf.mxu0
      %v4692 = vadd.f32 %v4603, %v4691
      %4693 = vmatmul.bf16.gmra.mxu0 %v3364
      %v4694 = vpop.f32.mrf.mxu0
      %v4695 = vadd.f32 %v4606, %v4694
      %v4696 = vpop.f32.mrf.mxu0
      %v4697 = vadd.f32 %v4608, %v4696
      %4698 = vdwg.mxu0
      %4699 = vmatpush.bf16.msra.mxu0 %v4076
      %4700 = vmatpush.bf16.msra.mxu0 %v4075
      %4701 = vmatpush.bf16.msra.mxu0 %v4074
      %4702 = vmatpush.bf16.msra.mxu0 %v4073
      %4703 = vmatpush.bf16.msra.mxu0 %v4072
      %4704 = vmatpush.bf16.msra.mxu0 %v4071
      %4705 = vmatpush.bf16.msra.mxu0 %v4070
      %4706 = vmatpush.bf16.msra.mxu0 %v4069
      %4707 = vmatmul.bf16.gmra.mxu0 %v3429
      %v4708 = vpop.f32.mrf.mxu0
      %v4709 = vadd.f32 %v4620, %v4708
      %v4710 = vpop.f32.mrf.mxu0
      %v4711 = vadd.f32 %v4622, %v4710
      %4712 = vmatmul.bf16.gmra.mxu0 %v3430
      %v4713 = vpop.f32.mrf.mxu0
      %v4714 = vadd.f32 %v4625, %v4713
      %v4715 = vpop.f32.mrf.mxu0
      %v4716 = vadd.f32 %v4627, %v4715
      %4717 = vmatmul.bf16.gmra.mxu0 %v3431
      %v4718 = vpop.f32.mrf.mxu0
      %v4719 = vadd.f32 %v4630, %v4718
      %v4720 = vpop.f32.mrf.mxu0
      %v4721 = vadd.f32 %v4632, %v4720
      %4722 = vmatmul.bf16.gmra.mxu0 %v3432
      %v4723 = vpop.f32.mrf.mxu0
      %v4724 = vadd.f32 %v4635, %v4723
      %v4725 = vpop.f32.mrf.mxu0
      %v4726 = vadd.f32 %v4637, %v4725
      %4727 = vmatmul.bf16.gmra.mxu0 %v3433
      %v4728 = vpop.f32.mrf.mxu0
      %v4729 = vadd.f32 %v4640, %v4728
      %v4730 = vpop.f32.mrf.mxu0
      %v4731 = vadd.f32 %v4642, %v4730
      %4732 = vmatmul.bf16.gmra.mxu0 %v3434
      %v4733 = vpop.f32.mrf.mxu0
      %v4734 = vadd.f32 %v4645, %v4733
      %v4735 = vpop.f32.mrf.mxu0
      %v4736 = vadd.f32 %v4647, %v4735
      %4737 = vmatmul.bf16.gmra.mxu0 %v3435
      %v4738 = vpop.f32.mrf.mxu0
      %v4739 = vadd.f32 %v4650, %v4738
      %v4740 = vpop.f32.mrf.mxu0
      %v4741 = vadd.f32 %v4652, %v4740
      %4742 = vmatmul.bf16.gmra.mxu0 %v3436
      %v4743 = vpop.f32.mrf.mxu0
      %v4744 = vadd.f32 %v4655, %v4743
      %v4745 = vpop.f32.mrf.mxu0
      %v4746 = vadd.f32 %v4657, %v4745
      %4747 = vmatmul.bf16.gmra.mxu0 %v3437
      %v4748 = vpop.f32.mrf.mxu0
      %v4749 = vadd.f32 %v4660, %v4748
      %v4750 = vpop.f32.mrf.mxu0
      %v4751 = vadd.f32 %v4662, %v4750
      %4752 = vmatmul.bf16.gmra.mxu0 %v3438
      %v4753 = vpop.f32.mrf.mxu0
      %v4754 = vadd.f32 %v4665, %v4753
      %v4755 = vpop.f32.mrf.mxu0
      %v4756 = vadd.f32 %v4667, %v4755
      %4757 = vmatmul.bf16.gmra.mxu0 %v3439
      %v4758 = vpop.f32.mrf.mxu0
      %v4759 = vadd.f32 %v4670, %v4758
      %v4760 = vpop.f32.mrf.mxu0
      %v4761 = vadd.f32 %v4672, %v4760
      %4762 = vmatmul.bf16.gmra.mxu0 %v3440
      %v4763 = vpop.f32.mrf.mxu0
      %v4764 = vadd.f32 %v4675, %v4763
      %v4765 = vpop.f32.mrf.mxu0
      %v4766 = vadd.f32 %v4677, %v4765
      %4767 = vmatmul.bf16.gmra.mxu0 %v3441
      %v4768 = vpop.f32.mrf.mxu0
      %v4769 = vadd.f32 %v4680, %v4768
      %v4770 = vpop.f32.mrf.mxu0
      %v4771 = vadd.f32 %v4682, %v4770
      %4772 = vmatmul.bf16.gmra.mxu0 %v3442
      %v4773 = vpop.f32.mrf.mxu0
      %v4774 = vadd.f32 %v4685, %v4773
      %v4775 = vpop.f32.mrf.mxu0
      %v4776 = vadd.f32 %v4687, %v4775
      %4777 = vmatmul.bf16.gmra.mxu0 %v3443
      %v4778 = vpop.f32.mrf.mxu0
      %v4779 = vadd.f32 %v4690, %v4778
      %v4780 = vpop.f32.mrf.mxu0
      %v4781 = vadd.f32 %v4692, %v4780
      %4782 = vmatmul.bf16.gmra.mxu0 %v3444
      %v4783 = vpop.f32.mrf.mxu0
      %v4784 = vadd.f32 %v4695, %v4783
      %v4785 = vpop.f32.mrf.mxu0
      %v4786 = vadd.f32 %v4697, %v4785
      %4787 = vdwg.mxu0
      %4788 = vmatpush.bf16.msra.mxu0 %v4084
      %4789 = vmatpush.bf16.msra.mxu0 %v4083
      %4790 = vmatpush.bf16.msra.mxu0 %v4082
      %4791 = vmatpush.bf16.msra.mxu0 %v4081
      %4792 = vmatpush.bf16.msra.mxu0 %v4080
      %4793 = vmatpush.bf16.msra.mxu0 %v4079
      %4794 = vmatpush.bf16.msra.mxu0 %v4078
      %4795 = vmatpush.bf16.msra.mxu0 %v4077
      %4796 = vmatmul.bf16.gmra.mxu0 %v3493
      %v4797 = vpop.f32.mrf.mxu0
      %v4798 = vadd.f32 %v4709, %v4797
      %v4799 = vpop.f32.mrf.mxu0
      %v4800 = vadd.f32 %v4711, %v4799
      %4801 = vmatmul.bf16.gmra.mxu0 %v3494
      %v4802 = vpop.f32.mrf.mxu0
      %v4803 = vadd.f32 %v4714, %v4802
      %v4804 = vpop.f32.mrf.mxu0
      %v4805 = vadd.f32 %v4716, %v4804
      %4806 = vmatmul.bf16.gmra.mxu0 %v3495
      %v4807 = vpop.f32.mrf.mxu0
      %v4808 = vadd.f32 %v4719, %v4807
      %v4809 = vpop.f32.mrf.mxu0
      %v4810 = vadd.f32 %v4721, %v4809
      %4811 = vmatmul.bf16.gmra.mxu0 %v3496
      %v4812 = vpop.f32.mrf.mxu0
      %v4813 = vadd.f32 %v4724, %v4812
      %v4814 = vpop.f32.mrf.mxu0
      %v4815 = vadd.f32 %v4726, %v4814
      %4816 = vmatmul.bf16.gmra.mxu0 %v3497
      %v4817 = vpop.f32.mrf.mxu0
      %v4818 = vadd.f32 %v4729, %v4817
      %v4819 = vpop.f32.mrf.mxu0
      %v4820 = vadd.f32 %v4731, %v4819
      %4821 = vmatmul.bf16.gmra.mxu0 %v3498
      %v4822 = vpop.f32.mrf.mxu0
      %v4823 = vadd.f32 %v4734, %v4822
      %v4824 = vpop.f32.mrf.mxu0
      %v4825 = vadd.f32 %v4736, %v4824
      %4826 = vmatmul.bf16.gmra.mxu0 %v3499
      %v4827 = vpop.f32.mrf.mxu0
      %v4828 = vadd.f32 %v4739, %v4827
      %v4829 = vpop.f32.mrf.mxu0
      %v4830 = vadd.f32 %v4741, %v4829
      %4831 = vmatmul.bf16.gmra.mxu0 %v3500
      %v4832 = vpop.f32.mrf.mxu0
      %v4833 = vadd.f32 %v4744, %v4832
      %v4834 = vpop.f32.mrf.mxu0
      %v4835 = vadd.f32 %v4746, %v4834
      %4836 = vmatmul.bf16.gmra.mxu0 %v3501
      %v4837 = vpop.f32.mrf.mxu0
      %v4838 = vadd.f32 %v4749, %v4837
      %v4839 = vpop.f32.mrf.mxu0
      %v4840 = vadd.f32 %v4751, %v4839
      %4841 = vmatmul.bf16.gmra.mxu0 %v3502
      %v4842 = vpop.f32.mrf.mxu0
      %v4843 = vadd.f32 %v4754, %v4842
      %v4844 = vpop.f32.mrf.mxu0
      %v4845 = vadd.f32 %v4756, %v4844
      %4846 = vmatmul.bf16.gmra.mxu0 %v3503
      %v4847 = vpop.f32.mrf.mxu0
      %v4848 = vadd.f32 %v4759, %v4847
      %v4849 = vpop.f32.mrf.mxu0
      %v4850 = vadd.f32 %v4761, %v4849
      %4851 = vmatmul.bf16.gmra.mxu0 %v3504
      %v4852 = vpop.f32.mrf.mxu0
      %v4853 = vadd.f32 %v4764, %v4852
      %v4854 = vpop.f32.mrf.mxu0
      %v4855 = vadd.f32 %v4766, %v4854
      %4856 = vmatmul.bf16.gmra.mxu0 %v3505
      %v4857 = vpop.f32.mrf.mxu0
      %v4858 = vadd.f32 %v4769, %v4857
      %v4859 = vpop.f32.mrf.mxu0
      %v4860 = vadd.f32 %v4771, %v4859
      %4861 = vmatmul.bf16.gmra.mxu0 %v3506
      %v4862 = vpop.f32.mrf.mxu0
      %v4863 = vadd.f32 %v4774, %v4862
      %v4864 = vpop.f32.mrf.mxu0
      %v4865 = vadd.f32 %v4776, %v4864
      %4866 = vmatmul.bf16.gmra.mxu0 %v3507
      %v4867 = vpop.f32.mrf.mxu0
      %v4868 = vadd.f32 %v4779, %v4867
      %v4869 = vpop.f32.mrf.mxu0
      %v4870 = vadd.f32 %v4781, %v4869
      %4871 = vmatmul.bf16.gmra.mxu0 %v3508
      %v4872 = vpop.f32.mrf.mxu0
      %v4873 = vadd.f32 %v4784, %v4872
      %v4874 = vpop.f32.mrf.mxu0
      %v4875 = vadd.f32 %v4786, %v4874
      %4876 = vdwg.mxu0
      %4877 = vmatpush.bf16.msra.mxu0 %v4092
      %4878 = vmatpush.bf16.msra.mxu0 %v4091
      %4879 = vmatpush.bf16.msra.mxu0 %v4090
      %4880 = vmatpush.bf16.msra.mxu0 %v4089
      %4881 = vmatpush.bf16.msra.mxu0 %v4088
      %4882 = vmatpush.bf16.msra.mxu0 %v4087
      %4883 = vmatpush.bf16.msra.mxu0 %v4086
      %4884 = vmatpush.bf16.msra.mxu0 %v4085
      %4885 = vmatmul.bf16.gmra.mxu0 %v3557
      %v4886 = vpop.f32.mrf.mxu0
      %v4887 = vadd.f32 %v4798, %v4886
      %v4888 = vpop.f32.mrf.mxu0
      %v4889 = vadd.f32 %v4800, %v4888
      %4890 = vmatmul.bf16.gmra.mxu0 %v3558
      %v4891 = vpop.f32.mrf.mxu0
      %v4892 = vadd.f32 %v4803, %v4891
      %v4893 = vpop.f32.mrf.mxu0
      %v4894 = vadd.f32 %v4805, %v4893
      %4895 = vmatmul.bf16.gmra.mxu0 %v3559
      %v4896 = vpop.f32.mrf.mxu0
      %v4897 = vadd.f32 %v4808, %v4896
      %v4898 = vpop.f32.mrf.mxu0
      %v4899 = vadd.f32 %v4810, %v4898
      %4900 = vmatmul.bf16.gmra.mxu0 %v3560
      %v4901 = vpop.f32.mrf.mxu0
      %v4902 = vadd.f32 %v4813, %v4901
      %v4903 = vpop.f32.mrf.mxu0
      %v4904 = vadd.f32 %v4815, %v4903
      %4905 = vmatmul.bf16.gmra.mxu0 %v3561
      %v4906 = vpop.f32.mrf.mxu0
      %v4907 = vadd.f32 %v4818, %v4906
      %v4908 = vpop.f32.mrf.mxu0
      %v4909 = vadd.f32 %v4820, %v4908
      %4910 = vmatmul.bf16.gmra.mxu0 %v3562
      %v4911 = vpop.f32.mrf.mxu0
      %v4912 = vadd.f32 %v4823, %v4911
      %v4913 = vpop.f32.mrf.mxu0
      %v4914 = vadd.f32 %v4825, %v4913
      %4915 = vmatmul.bf16.gmra.mxu0 %v3563
      %v4916 = vpop.f32.mrf.mxu0
      %v4917 = vadd.f32 %v4828, %v4916
      %v4918 = vpop.f32.mrf.mxu0
      %v4919 = vadd.f32 %v4830, %v4918
      %4920 = vmatmul.bf16.gmra.mxu0 %v3564
      %v4921 = vpop.f32.mrf.mxu0
      %v4922 = vadd.f32 %v4833, %v4921
      %v4923 = vpop.f32.mrf.mxu0
      %v4924 = vadd.f32 %v4835, %v4923
      %4925 = vmatmul.bf16.gmra.mxu0 %v3565
      %v4926 = vpop.f32.mrf.mxu0
      %v4927 = vadd.f32 %v4838, %v4926
      %v4928 = vpop.f32.mrf.mxu0
      %v4929 = vadd.f32 %v4840, %v4928
      %4930 = vmatmul.bf16.gmra.mxu0 %v3566
      %v4931 = vpop.f32.mrf.mxu0
      %v4932 = vadd.f32 %v4843, %v4931
      %v4933 = vpop.f32.mrf.mxu0
      %v4934 = vadd.f32 %v4845, %v4933
      %4935 = vmatmul.bf16.gmra.mxu0 %v3567
      %v4936 = vpop.f32.mrf.mxu0
      %v4937 = vadd.f32 %v4848, %v4936
      %v4938 = vpop.f32.mrf.mxu0
      %v4939 = vadd.f32 %v4850, %v4938
      %4940 = vmatmul.bf16.gmra.mxu0 %v3568
      %v4941 = vpop.f32.mrf.mxu0
      %v4942 = vadd.f32 %v4853, %v4941
      %v4943 = vpop.f32.mrf.mxu0
      %v4944 = vadd.f32 %v4855, %v4943
      %4945 = vmatmul.bf16.gmra.mxu0 %v3569
      %v4946 = vpop.f32.mrf.mxu0
      %v4947 = vadd.f32 %v4858, %v4946
      %v4948 = vpop.f32.mrf.mxu0
      %v4949 = vadd.f32 %v4860, %v4948
      %4950 = vmatmul.bf16.gmra.mxu0 %v3570
      %v4951 = vpop.f32.mrf.mxu0
      %v4952 = vadd.f32 %v4863, %v4951
      %v4953 = vpop.f32.mrf.mxu0
      %v4954 = vadd.f32 %v4865, %v4953
      %4955 = vmatmul.bf16.gmra.mxu0 %v3571
      %v4956 = vpop.f32.mrf.mxu0
      %v4957 = vadd.f32 %v4868, %v4956
      %v4958 = vpop.f32.mrf.mxu0
      %v4959 = vadd.f32 %v4870, %v4958
      %4960 = vmatmul.bf16.gmra.mxu0 %v3572
      %v4961 = vpop.f32.mrf.mxu0
      %v4962 = vadd.f32 %v4873, %v4961
      %v4963 = vpop.f32.mrf.mxu0
      %v4964 = vadd.f32 %v4875, %v4963
      %4965 = vdwg.mxu0
      %v4966 = vpack.c.bf16 %v4887, %v4887
      %v4967 = vpack.c.bf16 %v4889, %v4889
      %v4968 = vpack.c.bf16 %v4892, %v4892
      %v4969 = vpack.c.bf16 %v4894, %v4894
      %v4970 = vpack.c.bf16 %v4897, %v4897
      %v4971 = vpack.c.bf16 %v4899, %v4899
      %v4972 = vpack.c.bf16 %v4902, %v4902
      %v4973 = vpack.c.bf16 %v4904, %v4904
      %v4974 = vpack.c.bf16 %v4907, %v4907
      %v4975 = vpack.c.bf16 %v4909, %v4909
      %v4976 = vpack.c.bf16 %v4912, %v4912
      %v4977 = vpack.c.bf16 %v4914, %v4914
      %v4978 = vpack.c.bf16 %v4917, %v4917
      %v4979 = vpack.c.bf16 %v4919, %v4919
      %v4980 = vpack.c.bf16 %v4922, %v4922
      %v4981 = vpack.c.bf16 %v4924, %v4924
      %v4982 = vpack.c.bf16 %v4927, %v4927
      %v4983 = vpack.c.bf16 %v4929, %v4929
      %v4984 = vpack.c.bf16 %v4932, %v4932
      %v4985 = vpack.c.bf16 %v4934, %v4934
      %v4986 = vpack.c.bf16 %v4937, %v4937
      %v4987 = vpack.c.bf16 %v4939, %v4939
      %v4988 = vpack.c.bf16 %v4942, %v4942
      %v4989 = vpack.c.bf16 %v4944, %v4944
      %v4990 = vpack.c.bf16 %v4947, %v4947
      %v4991 = vpack.c.bf16 %v4949, %v4949
      %v4992 = vpack.c.bf16 %v4952, %v4952
      %v4993 = vpack.c.bf16 %v4954, %v4954
      %v4994 = vpack.c.bf16 %v4957, %v4957
      %v4995 = vpack.c.bf16 %v4959, %v4959
      %v4996 = vpack.c.bf16 %v4962, %v4962
      %v4997 = vpack.c.bf16 %v4964, %v4964
      %4998 = vst [vmem:[%s316] sm:$0xf] %v4966
      %4999 = vst [vmem:[%s316 + $0x4] sm:$0xf] %v4967
      %5000 = vst [vmem:[%s316 + $0x8] sm:$0xf] %v4968
      %5001 = vst [vmem:[%s316 + $0xc] sm:$0xf] %v4969
      %5002 = vst [vmem:[%s316 + $0x10] sm:$0xf] %v4970
      %5003 = vst [vmem:[%s316 + $0x14] sm:$0xf] %v4971
      %5004 = vst [vmem:[%s316 + $0x18] sm:$0xf] %v4972
      %5005 = vst [vmem:[%s316 + $0x1c] sm:$0xf] %v4973
      %5006 = vst [vmem:[%s316 + $0x20] sm:$0xf] %v4974
      %5007 = vst [vmem:[%s316 + $0x24] sm:$0xf] %v4975
      %5008 = vst [vmem:[%s316 + $0x28] sm:$0xf] %v4976
      %5009 = vst [vmem:[%s316 + $0x2c] sm:$0xf] %v4977
      %5010 = vst [vmem:[%s316 + $0x30] sm:$0xf] %v4978
      %5011 = vst [vmem:[%s316 + $0x34] sm:$0xf] %v4979
      %5012 = vst [vmem:[%s316 + $0x38] sm:$0xf] %v4980
      %5013 = vst [vmem:[%s316 + $0x3c] sm:$0xf] %v4981
      %5014 = vst [vmem:[%s316 + $0x40] sm:$0xf] %v4982
      %5015 = vst [vmem:[%s316 + $0x44] sm:$0xf] %v4983
      %5016 = vst [vmem:[%s316 + $0x48] sm:$0xf] %v4984
      %5017 = vst [vmem:[%s316 + $0x4c] sm:$0xf] %v4985
      %5018 = vst [vmem:[%s316 + $0x50] sm:$0xf] %v4986
      %5019 = vst [vmem:[%s316 + $0x54] sm:$0xf] %v4987
      %5020 = vst [vmem:[%s316 + $0x58] sm:$0xf] %v4988
      %5021 = vst [vmem:[%s316 + $0x5c] sm:$0xf] %v4989
      %5022 = vst [vmem:[%s316 + $0x60] sm:$0xf] %v4990
      %5023 = vst [vmem:[%s316 + $0x64] sm:$0xf] %v4991
      %5024 = vst [vmem:[%s316 + $0x68] sm:$0xf] %v4992
      %5025 = vst [vmem:[%s316 + $0x6c] sm:$0xf] %v4993
      %5026 = vst [vmem:[%s316 + $0x70] sm:$0xf] %v4994
      %5027 = vst [vmem:[%s316 + $0x74] sm:$0xf] %v4995
      %5028 = vst [vmem:[%s316 + $0x78] sm:$0xf] %v4996
      %5029 = vst [vmem:[%s316 + $0x7c] sm:$0xf] %v4997
      %v5030 = vadd.f32 %v4887, %v4889
      %v5031 = vadd.f32 %v5030, %v4892
      %v5032 = vadd.f32 %v5031, %v4894
      %v5033 = vadd.f32 %v5032, %v4897
      %v5034 = vadd.f32 %v5033, %v4899
      %v5035 = vadd.f32 %v5034, %v4902
      %v5036 = vadd.f32 %v5035, %v4904
      %v5037 = vadd.f32 %v5036, %v4907
      %v5038 = vadd.f32 %v5037, %v4909
      %v5039 = vadd.f32 %v5038, %v4912
      %v5040 = vadd.f32 %v5039, %v4914
      %v5041 = vadd.f32 %v5040, %v4917
      %v5042 = vadd.f32 %v5041, %v4919
      %v5043 = vadd.f32 %v5042, %v4922
      %v5044 = vadd.f32 %v5043, %v4924
      %v5045 = vadd.f32 %v5044, %v4927
      %v5046 = vadd.f32 %v5045, %v4929
      %v5047 = vadd.f32 %v5046, %v4932
      %v5048 = vadd.f32 %v5047, %v4934
      %v5049 = vadd.f32 %v5048, %v4937
      %v5050 = vadd.f32 %v5049, %v4939
      %v5051 = vadd.f32 %v5050, %v4942
      %v5052 = vadd.f32 %v5051, %v4944
      %v5053 = vadd.f32 %v5052, %v4947
      %v5054 = vadd.f32 %v5053, %v4949
      %v5055 = vadd.f32 %v5054, %v4952
      %v5056 = vadd.f32 %v5055, %v4954
      %v5057 = vadd.f32 %v5056, %v4957
      %v5058 = vadd.f32 %v5057, %v4959
      %v5059 = vadd.f32 %v5058, %v4962
      %v5060 = vadd.f32 %v5059, %v4964
      %v5061 = vrot.slane %v5060, 4
      %v5062 = vadd.f32 %v5060, %v5061
      %v5063 = vrot.slane %v5062, 2
      %v5064 = vadd.f32 %v5062, %v5063
      %v5065 = vrot.slane %v5064, 1
      %v5066 = vadd.f32 %v5064, %v5065
      %5067 = vst [vmem:[%s319] sm:$0x1] %v5066
      %v5068 = vmul.f32 %v4887, %v4887
      %v5069 = vmul.f32 %v4889, %v4889
      %v5070 = vmul.f32 %v4892, %v4892
      %v5071 = vmul.f32 %v4894, %v4894
      %v5072 = vmul.f32 %v4897, %v4897
      %v5073 = vmul.f32 %v4899, %v4899
      %v5074 = vmul.f32 %v4902, %v4902
      %v5075 = vmul.f32 %v4904, %v4904
      %v5076 = vmul.f32 %v4907, %v4907
      %v5077 = vmul.f32 %v4909, %v4909
      %v5078 = vmul.f32 %v4912, %v4912
      %v5079 = vmul.f32 %v4914, %v4914
      %v5080 = vmul.f32 %v4917, %v4917
      %v5081 = vmul.f32 %v4919, %v4919
      %v5082 = vmul.f32 %v4922, %v4922
      %v5083 = vmul.f32 %v4924, %v4924
      %v5084 = vmul.f32 %v4927, %v4927
      %v5085 = vmul.f32 %v4929, %v4929
      %v5086 = vmul.f32 %v4932, %v4932
      %v5087 = vmul.f32 %v4934, %v4934
      %v5088 = vmul.f32 %v4937, %v4937
      %v5089 = vmul.f32 %v4939, %v4939
      %v5090 = vmul.f32 %v4942, %v4942
      %v5091 = vmul.f32 %v4944, %v4944
      %v5092 = vmul.f32 %v4947, %v4947
      %v5093 = vmul.f32 %v4949, %v4949
      %v5094 = vmul.f32 %v4952, %v4952
      %v5095 = vmul.f32 %v4954, %v4954
      %v5096 = vmul.f32 %v4957, %v4957
      %v5097 = vmul.f32 %v4959, %v4959
      %v5098 = vmul.f32 %v4962, %v4962
      %v5099 = vmul.f32 %v4964, %v4964
      %v5100 = vadd.f32 %v5068, %v5069
      %v5101 = vadd.f32 %v5100, %v5070
      %v5102 = vadd.f32 %v5101, %v5071
      %v5103 = vadd.f32 %v5102, %v5072
      %v5104 = vadd.f32 %v5103, %v5073
      %v5105 = vadd.f32 %v5104, %v5074
      %v5106 = vadd.f32 %v5105, %v5075
      %v5107 = vadd.f32 %v5106, %v5076
      %v5108 = vadd.f32 %v5107, %v5077
      %v5109 = vadd.f32 %v5108, %v5078
      %v5110 = vadd.f32 %v5109, %v5079
      %v5111 = vadd.f32 %v5110, %v5080
      %v5112 = vadd.f32 %v5111, %v5081
      %v5113 = vadd.f32 %v5112, %v5082
      %v5114 = vadd.f32 %v5113, %v5083
      %v5115 = vadd.f32 %v5114, %v5084
      %v5116 = vadd.f32 %v5115, %v5085
      %v5117 = vadd.f32 %v5116, %v5086
      %v5118 = vadd.f32 %v5117, %v5087
      %v5119 = vadd.f32 %v5118, %v5088
      %v5120 = vadd.f32 %v5119, %v5089
      %v5121 = vadd.f32 %v5120, %v5090
      %v5122 = vadd.f32 %v5121, %v5091
      %v5123 = vadd.f32 %v5122, %v5092
      %v5124 = vadd.f32 %v5123, %v5093
      %v5125 = vadd.f32 %v5124, %v5094
      %v5126 = vadd.f32 %v5125, %v5095
      %v5127 = vadd.f32 %v5126, %v5096
      %v5128 = vadd.f32 %v5127, %v5097
      %v5129 = vadd.f32 %v5128, %v5098
      %v5130 = vadd.f32 %v5129, %v5099
      %v5131 = vrot.slane %v5130, 4
      %v5132 = vadd.f32 %v5130, %v5131
      %v5133 = vrot.slane %v5132, 2
      %v5134 = vadd.f32 %v5132, %v5133
      %v5135 = vrot.slane %v5134, 1
      %v5136 = vadd.f32 %v5134, %v5135
      %5137 = vst [vmem:[%s322] sm:$0x1] %v5136
      %p5138 = scmp.lt.s32.totalorder %s20, 1
      %s5139 = scalar_select %p5138, %s20, 1
      %s5140 = smul.addr %s5139, 32
      %s5141 = smul.addr %s5140, 4
      %s5142 = scalar_lea.vmem %s6, %s5141
      %p5143 = scmp.lt.s32.totalorder %s20, 1
      %s5144 = scalar_select %p5143, %s20, 1
      %s5145 = scalar_lea.vmem %s7, %s5144
      %p5146 = scmp.lt.s32.totalorder %s20, 1
      %s5147 = scalar_select %p5146, %s20, 1
      %s5148 = scalar_lea.vmem %s8, %s5147
      // Predicated region
      $region45: #{bottleneck_forward.5} parent=43 // pred_check
        %p5149 = pneg %p169
      $region46: #{bottleneck_forward.5} parent=43 // pred_check_branch
        %5151 = sbr.rel (%p5149) target = $region48
      $region47: #{bottleneck_forward.5} parent=43 // pred_region
        _
      $region48: #{bottleneck_forward.5} parent=43 // pred_fallthru
        _
      // Predicated region
      $region49: #{bottleneck_forward.5} parent=43 // pred_check
        %p5152 = pneg %p195
      $region50: #{bottleneck_forward.5} parent=43 // pred_check_branch
        %5154 = sbr.rel (%p5152) target = $region52
      $region51: #{bottleneck_forward.5} parent=43 // pred_region
        _
      $region52: #{bottleneck_forward.5} parent=43 // pred_fallthru
        _
      // Predicated region
      $region53: #{bottleneck_forward.5} parent=43 // pred_check
        %p5155 = pneg %p221
      $region54: #{bottleneck_forward.5} parent=43 // pred_check_branch
        %5157 = sbr.rel (%p5155) target = $region56
      $region55: #{bottleneck_forward.5} parent=43 // pred_region
        _
      $region56: #{bottleneck_forward.5} parent=43 // pred_fallthru
        _
    $region44: #{bottleneck_forward.5} parent=5 // pred_fallthru
      _
    %p5158 = scmp.le.s32.totalorder 2, %s15
    // Predicated region
    $region57: #{bottleneck_forward.5} parent=5 // pred_check
      %p5159 = pneg %p5158
    $region58: #{bottleneck_forward.5} parent=5 // pred_check_branch
      %5161 = sbr.rel (%p5159) target = $region60
    $region59: #{bottleneck_forward.5} parent=5 // pred_region
      %s5162 = ssub.s32 %s15, 2
      // Predicated region
      $region61: #{bottleneck_forward.5} parent=59 // pred_check
        %p5163 = pneg %p175
      $region62: #{bottleneck_forward.5} parent=59 // pred_check_branch
        %5165 = sbr.rel (%p5163) target = $region64
      $region63: #{bottleneck_forward.5} parent=59 // pred_region
        %p5166 = scmp.lt.s32.totalorder %s21, 1
        %s5167 = scalar_select %p5166, %s21, 1
        %s5168 = smul.addr %s5167, 32
        %s5169 = smul.addr %s5168, 4
        %s5170 = scalar_lea.vmem %s6, %s5169
      $region64: #{bottleneck_forward.5} parent=59 // pred_fallthru
        _
      // Predicated region
      $region65: #{bottleneck_forward.5} parent=59 // pred_check
        %p5171 = pneg %p201
      $region66: #{bottleneck_forward.5} parent=59 // pred_check_branch
        %5173 = sbr.rel (%p5171) target = $region68
      $region67: #{bottleneck_forward.5} parent=59 // pred_region
        %p5174 = scmp.lt.s32.totalorder %s21, 1
        %s5175 = scalar_select %p5174, %s21, 1
        %s5176 = scalar_lea.vmem %s7, %s5175
      $region68: #{bottleneck_forward.5} parent=59 // pred_fallthru
        _
      // Predicated region
      $region69: #{bottleneck_forward.5} parent=59 // pred_check
        %p5177 = pneg %p227
      $region70: #{bottleneck_forward.5} parent=59 // pred_check_branch
        %5179 = sbr.rel (%p5177) target = $region72
      $region71: #{bottleneck_forward.5} parent=59 // pred_region
        %p5180 = scmp.lt.s32.totalorder %s21, 1
        %s5181 = scalar_select %p5180, %s21, 1
        %s5182 = scalar_lea.vmem %s8, %s5181
      $region72: #{bottleneck_forward.5} parent=59 // pred_fallthru
        _
    $region60: #{bottleneck_forward.5} parent=5 // pred_fallthru
      _
  $region6: #{bottleneck_forward.5} parent=0 // loop_footer
    %s19 = sadd.s32 1, %s15
  $region7: #{bottleneck_forward.5} parent=0 // loop_footer_branch
    %14 = sbr.rel target = $region3
  $region8: #{bottleneck_forward.5} parent=0 // loop_exit
    _

</llo_original>
